<compile_context>
chip_gen: v6e
topology: v6e:2x2x1
jax: 0.10.0
libtpu: 0.0.40
codegen_flags: <defaults>
</compile_context>

<pallas_src>
import jax
import jax.numpy as jnp
from jax.experimental import pallas as pl
from jax.experimental.pallas import tpu as pltpu

D = 32                   # intermid_dim
FF = 64                  # dim_feedforward = intermid_dim * 2
NHEAD = 16
HEAD_DIM = D // NHEAD    # = 2
NUM_LAYERS = 2
LN_EPS = 1e-5
OUT_PAD = 128            # head output padded to a full 128-lane tile (lane-dense store)
VEC_W = 128              # packed small-vector table width

# rows of the packed bias / LayerNorm-parameter table
ROW_B_PRE = 0
ROW_LNH_G = 1
ROW_LNH_B = 2
ROW_B_HEAD = 3
ROW_LAYER_BASE = 4
ROWS_PER_LAYER = 8
(OFF_QKV_B, OFF_OUT_B, OFF_LN1_G, OFF_LN1_B,
 OFF_LN2_G, OFF_LN2_B, OFF_FF1_B, OFF_FF2_B) = range(ROWS_PER_LAYER)
VEC_ROWS = ROW_LAYER_BASE + NUM_LAYERS * ROWS_PER_LAYER   # 20


def _layer_norm(v, g, b):
    mu = jnp.mean(v, axis=-1, keepdims=True)
    var = jnp.mean(jnp.square(v - mu), axis=-1, keepdims=True)
    return (v - mu) * jax.lax.rsqrt(var + LN_EPS) * g + b


def _mm(a, w_bf16):
    # MXU matmul: bf16 operands, f32 accumulation.
    return jnp.dot(a.astype(jnp.bfloat16), w_bf16, preferred_element_type=jnp.float32)


def pixel_transformer_kernel(
    x_ref,        # (BT, N, C)      f32   batch tile of tokens
    wpre_ref,     # (C, D)          bf16
    pos_ref,      # (N, D)          f32
    qkv_w_ref,    # (L, D, 3D)      bf16
    out_w_ref,    # (L, D, D)       bf16
    ff1_w_ref,    # (L, D, FF)      bf16
    ff2_w_ref,    # (L, FF, D)      bf16
    whead_ref,    # (D, OUT_PAD)    bf16  (zero-padded columns beyond out_dim)
    vecs_ref,     # (VEC_ROWS, 128) f32   packed biases / LayerNorm params
    o_ref,        # (BT, OUT_PAD)   f32
):
    bt, n, c = x_ref.shape      # N (=16) is a multiple of 8, so the reshapes below are free
    m = bt * n

    x = x_ref[...].reshape(m, c)

    # preprocess: Linear(C -> D) + positional embedding
    h = _mm(x, wpre_ref[...]) + vecs_ref[ROW_B_PRE:ROW_B_PRE + 1, :D]
    h = (h.reshape(bt, n, D) + pos_ref[...]).reshape(m, D)            # (M, D) f32

    scale = HEAD_DIM ** -0.5

    for l in range(NUM_LAYERS):
        base = ROW_LAYER_BASE + l * ROWS_PER_LAYER
        b_qkv = vecs_ref[base + OFF_QKV_B:base + OFF_QKV_B + 1, :3 * D]
        b_out = vecs_ref[base + OFF_OUT_B:base + OFF_OUT_B + 1, :D]
        g1 = vecs_ref[base + OFF_LN1_G:base + OFF_LN1_G + 1, :D]
        be1 = vecs_ref[base + OFF_LN1_B:base + OFF_LN1_B + 1, :D]
        g2 = vecs_ref[base + OFF_LN2_G:base + OFF_LN2_G + 1, :D]
        be2 = vecs_ref[base + OFF_LN2_B:base + OFF_LN2_B + 1, :D]
        b_ff1 = vecs_ref[base + OFF_FF1_B:base + OFF_FF1_B + 1, :FF]
        b_ff2 = vecs_ref[base + OFF_FF2_B:base + OFF_FF2_B + 1, :D]
        w_o = out_w_ref[l].astype(jnp.float32)                        # (D, D), used row-wise on VPU

        # fused QKV projection on the flattened slab: one MXU matmul for the whole tile
        qkv = _mm(h, qkv_w_ref[l]) + b_qkv                            # (M, 3D) f32
        q3 = qkv[:, 0:D].reshape(bt, n, D) * scale
        k3 = qkv[:, D:2 * D].reshape(bt, n, D)
        v3 = qkv[:, 2 * D:3 * D].reshape(bt, n, D)
        # put the key/value token axis on lanes (XLU transpose, done once per layer)
        kT = jnp.transpose(k3, (0, 2, 1))                             # (BT, D, N)
        vT = jnp.transpose(v3, (0, 2, 1))                             # (BT, D, N)

        # multi-head self-attention on the VPU: head_dim == 2, so scores are two rank-1
        # outer products — no MXU pushes with a contraction dim of 2.  The out-projection
        # rows of each head are folded in via broadcast-FMAs into `proj`.
        proj = jnp.zeros((bt, n, D), jnp.float32)
        for hh in range(NHEAD):
            c0 = 2 * hh
            c1 = c0 + 1
            s = (q3[:, :, c0:c0 + 1] * kT[:, c0:c0 + 1, :]
                 + q3[:, :, c1:c1 + 1] * kT[:, c1:c1 + 1, :])          # (BT, N, N)
            s = s - jnp.max(s, axis=-1, keepdims=True)
            p = jnp.exp(s)
            p = p * pl.reciprocal(jnp.sum(p, axis=-1, keepdims=True), approx=True)
            a0 = jnp.sum(p * vT[:, c0:c0 + 1, :], axis=-1, keepdims=True)   # (BT, N, 1)
            a1 = jnp.sum(p * vT[:, c1:c1 + 1, :], axis=-1, keepdims=True)
            proj = proj + a0 * w_o[c0:c0 + 1, :] + a1 * w_o[c1:c1 + 1, :]

        # residual + LayerNorm 1 (post-norm, matches norm_first=False)
        h = _layer_norm(h + proj.reshape(m, D) + b_out, g1, be1)

        # feed-forward (MXU) + residual + LayerNorm 2
        ff = jnp.maximum(_mm(h, ff1_w_ref[l]) + b_ff1, 0.0)
        ff = _mm(ff, ff2_w_ref[l]) + b_ff2
        h = _layer_norm(h + ff, g2, be2)

    # mean over tokens, LayerNorm, head Linear — lane-dense (BT, 128) store
    pooled = jnp.sum(h.reshape(bt, n, D), axis=1) * (1.0 / n)          # (BT, D)
    pooled = _layer_norm(pooled,
                         vecs_ref[ROW_LNH_G:ROW_LNH_G + 1, :D],
                         vecs_ref[ROW_LNH_B:ROW_LNH_B + 1, :D])
    o_ref[...] = _mm(pooled, whead_ref[...]) + vecs_ref[ROW_B_HEAD:ROW_B_HEAD + 1, :]


def init_params(key, in_chans, out_dim):
    """Deterministic synthetic parameters.  Linear weights stored as (in, out)."""
    ks = jax.random.split(key, 13)
    s = 0.1
    p = {}
    p["w_pre"] = jax.random.normal(ks[0], (in_chans, D), jnp.float32) * s
    p["b_pre"] = jax.random.normal(ks[1], (1, D), jnp.float32) * s
    p["pos_embedding"] = jax.random.normal(ks[2], (1, 4 ** 2 + 1, D), jnp.float32)
    p["qkv_w"] = jax.random.normal(ks[3], (NUM_LAYERS, D, 3 * D), jnp.float32) * s
    p["qkv_b"] = jax.random.normal(ks[4], (NUM_LAYERS, 3 * D), jnp.float32) * s
    p["out_w"] = jax.random.normal(ks[5], (NUM_LAYERS, D, D), jnp.float32) * s
    p["out_b"] = jax.random.normal(ks[6], (NUM_LAYERS, D), jnp.float32) * s
    p["ln1_g"] = jnp.ones((NUM_LAYERS, D), jnp.float32)
    p["ln1_b"] = jnp.zeros((NUM_LAYERS, D), jnp.float32)
    p["ln2_g"] = jnp.ones((NUM_LAYERS, D), jnp.float32)
    p["ln2_b"] = jnp.zeros((NUM_LAYERS, D), jnp.float32)
    p["ff1_w"] = jax.random.normal(ks[7], (NUM_LAYERS, D, FF), jnp.float32) * s
    p["ff1_b"] = jax.random.normal(ks[8], (NUM_LAYERS, FF), jnp.float32) * s
    p["ff2_w"] = jax.random.normal(ks[9], (NUM_LAYERS, FF, D), jnp.float32) * s
    p["ff2_b"] = jax.random.normal(ks[10], (NUM_LAYERS, D), jnp.float32) * s
    p["lnh_g"] = jnp.ones((1, D), jnp.float32)
    p["lnh_b"] = jnp.zeros((1, D), jnp.float32)
    p["w_head"] = jax.random.normal(ks[11], (D, out_dim), jnp.float32) * s
    p["b_head"] = jax.random.normal(ks[12], (1, out_dim), jnp.float32) * s
    return p


def _pad_row(v):
    v = jnp.asarray(v, jnp.float32).reshape(-1)
    return jnp.pad(v, (0, VEC_W - v.shape[0]))


def _pack_vectors(params):
    rows = [
        _pad_row(params["b_pre"]),      # ROW_B_PRE
        _pad_row(params["lnh_g"]),      # ROW_LNH_G
        _pad_row(params["lnh_b"]),      # ROW_LNH_B
        _pad_row(params["b_head"]),     # ROW_B_HEAD (zero-padded to OUT_PAD lanes)
    ]
    for l in range(NUM_LAYERS):
        rows += [
            _pad_row(params["qkv_b"][l]),
            _pad_row(params["out_b"][l]),
            _pad_row(params["ln1_g"][l]),
            _pad_row(params["ln1_b"][l]),
            _pad_row(params["ln2_g"][l]),
            _pad_row(params["ln2_b"][l]),
            _pad_row(params["ff1_b"][l]),
            _pad_row(params["ff2_b"][l]),
        ]
    return jnp.stack(rows, axis=0)      # (VEC_ROWS, 128)


def pixel_transformer_forward(x_nchw, params, *, b_tile=128):
    b, c, hh, ww = x_nchw.shape
    n = hh * ww                          # intended use is 4x4 -> N=16 (pos_embedding has 17 slots)
    assert n <= params["pos_embedding"].shape[1], "sequence longer than pos_embedding"
    out_dim = params["w_head"].shape[1]
    assert out_dim <= OUT_PAD, "head wider than one lane tile not supported"

    # batch tiling: many elements per grid step; pad the batch so the grid divides exactly.
    if b <= b_tile:
        bt, b_pad = b, b
    else:
        bt = max(8, (b_tile // 8) * 8)   # keep the output block's sublane constraint
        b_pad = ((b + bt - 1) // bt) * bt

    # NCHW -> (b, N, C) token layout (matches x.reshape(b, C, -1).transpose(1, 2))
    x_tokens = jnp.transpose(x_nchw.reshape(b, c, n), (0, 2, 1)).astype(jnp.float32)
    if b_pad > b:
        x_tokens = jnp.pad(x_tokens, ((0, b_pad - b), (0, 0), (0, 0)))

    bf = jnp.bfloat16
    pos = params["pos_embedding"][0, :n, :].astype(jnp.float32)       # forward uses [:, :N]
    w_head = jnp.zeros((D, OUT_PAD), bf).at[:, :out_dim].set(params["w_head"].astype(bf))
    weights = [
        params["w_pre"].astype(bf),
        pos,
        params["qkv_w"].astype(bf),
        params["out_w"].astype(bf),
        params["ff1_w"].astype(bf),
        params["ff2_w"].astype(bf),
        w_head,
        _pack_vectors(params),
    ]

    def full_spec(a):
        nd = a.ndim
        return pl.BlockSpec(a.shape, lambda i, _nd=nd: (0,) * _nd)

    grid = (b_pad // bt,)
    out = pl.pallas_call(
        pixel_transformer_kernel,
        out_shape=jax.ShapeDtypeStruct((b_pad, OUT_PAD), jnp.float32),
        grid=grid,
        in_specs=[pl.BlockSpec((bt, n, c), lambda i: (i, 0, 0))]
                 + [full_spec(w) for w in weights],
        out_specs=pl.BlockSpec((bt, OUT_PAD), lambda i: (i, 0)),
        compiler_params=pltpu.CompilerParams(
            dimension_semantics=("parallel",),
            vmem_limit_bytes=48 * 1024 * 1024,
        ),
    )(x_tokens, *weights)
    return out[:b, :out_dim]


if __name__ == "__main__":
    key = jax.random.PRNGKey(0)
    kx, kp = jax.random.split(key)

    in_chans, out_dim = 4, 10
    params = init_params(kp, in_chans, out_dim)

    # H = W = 4 so N = 16 tokens, consistent with pos_embedding of size 4**2 + 1 = 17.
    x = jax.random.normal(kx, (2, in_chans, 4, 4), jnp.float32)       # NCHW, like PyTorch
    y = pixel_transformer_forward(x, params)
    jax.block_until_ready(y)
    assert y.shape == (2, out_dim)
    assert bool(jnp.all(jnp.isfinite(y)))

    # also exercise the batched multi-step grid path (batch padding + B_TILE tiling)
    xb = jax.random.normal(kx, (20, in_chans, 4, 4), jnp.float32)
    yb = pixel_transformer_forward(xb, params, b_tile=8)
    jax.block_until_ready(yb)
    assert yb.shape == (20, out_dim)
    assert bool(jnp.all(jnp.isfinite(yb)))
    y2 = pixel_transformer_forward(xb[:2], params)
    assert bool(jnp.allclose(yb[:2], y2, atol=1e-4, rtol=1e-4))

    print("KERNEL_OK")
</pallas_src>

<mosaic_0001>
module attributes {stable_mosaic.version = 11 : i64} {
  func.func @pixel_transformer_kernel(%arg0: i32, %arg1: memref<2x16x4xf32, #tpu.memory_space<vmem>>, %arg2: memref<4x32xbf16, #tpu.memory_space<vmem>>, %arg3: memref<16x32xf32, #tpu.memory_space<vmem>>, %arg4: memref<2x32x96xbf16, #tpu.memory_space<vmem>>, %arg5: memref<2x32x32xbf16, #tpu.memory_space<vmem>>, %arg6: memref<2x32x64xbf16, #tpu.memory_space<vmem>>, %arg7: memref<2x64x32xbf16, #tpu.memory_space<vmem>>, %arg8: memref<32x128xbf16, #tpu.memory_space<vmem>>, %arg9: memref<20x128xf32, #tpu.memory_space<vmem>>, %arg10: memref<2x128xf32, #tpu.memory_space<vmem>>) attributes {dimension_semantics = [#tpu.dimension_semantics<parallel>], iteration_bounds = array<i64: 1>, scalar_prefetch = 0 : i64, scratch_operands = 0 : i64, tpu.core_type = #tpu.core_type<tc>, window_params = [{transform_indices = @transform_0, window_bounds = array<i64: 2, 16, 4>}, {pipeline_mode = #tpu.pipeline_mode<synchronous>, transform_indices = @transform_1, window_bounds = array<i64: 4, 32>}, {pipeline_mode = #tpu.pipeline_mode<synchronous>, transform_indices = @transform_2, window_bounds = array<i64: 16, 32>}, {pipeline_mode = #tpu.pipeline_mode<synchronous>, transform_indices = @transform_3, window_bounds = array<i64: 2, 32, 96>}, {pipeline_mode = #tpu.pipeline_mode<synchronous>, transform_indices = @transform_4, window_bounds = array<i64: 2, 32, 32>}, {pipeline_mode = #tpu.pipeline_mode<synchronous>, transform_indices = @transform_5, window_bounds = array<i64: 2, 32, 64>}, {pipeline_mode = #tpu.pipeline_mode<synchronous>, transform_indices = @transform_6, window_bounds = array<i64: 2, 64, 32>}, {pipeline_mode = #tpu.pipeline_mode<synchronous>, transform_indices = @transform_7, window_bounds = array<i64: 32, 128>}, {pipeline_mode = #tpu.pipeline_mode<synchronous>, transform_indices = @transform_8, window_bounds = array<i64: 20, 128>}, {transform_indices = @transform_9, window_bounds = array<i64: 2, 128>}]} {
    %c0 = arith.constant 0 : index
    %c0_0 = arith.constant 0 : index
    %c0_1 = arith.constant 0 : index
    %0 = vector.load %arg1[%c0, %c0_0, %c0_1] : memref<2x16x4xf32, #tpu.memory_space<vmem>>, vector<2x16x4xf32>
    %1 = vector.shape_cast %0 : vector<2x16x4xf32> to vector<32x4xf32>
    %c0_2 = arith.constant 0 : index
    %c0_3 = arith.constant 0 : index
    %2 = vector.load %arg2[%c0_2, %c0_3] : memref<4x32xbf16, #tpu.memory_space<vmem>>, vector<4x32xbf16>
    %3 = arith.truncf %1 : vector<32x4xf32> to vector<32x4xbf16>
    %cst = arith.constant dense<0.000000e+00> : vector<32x32xf32>
    %4 = tpu.matmul %3, %2, %cst {dimension_numbers = #tpu.dot_dimension_numbers<[1], [0], [0], [1], [0, 0, 1, 1], [], []>} : vector<32x4xbf16>, vector<4x32xbf16>, vector<32x32xf32> -> vector<32x32xf32>
    %c0_4 = arith.constant 0 : index
    %c0_5 = arith.constant 0 : index
    %5 = vector.load %arg9[%c0_4, %c0_5] : memref<20x128xf32, #tpu.memory_space<vmem>>, vector<1x32xf32>
    %6 = vector.broadcast %5 : vector<1x32xf32> to vector<32x32xf32>
    %7 = arith.addf %4, %6 : vector<32x32xf32>
    %8 = vector.shape_cast %7 : vector<32x32xf32> to vector<2x16x32xf32>
    %c0_6 = arith.constant 0 : index
    %c0_7 = arith.constant 0 : index
    %9 = vector.load %arg3[%c0_6, %c0_7] : memref<16x32xf32, #tpu.memory_space<vmem>>, vector<16x32xf32>
    %10 = vector.shape_cast %9 : vector<16x32xf32> to vector<1x16x32xf32>
    %11 = vector.broadcast %10 : vector<1x16x32xf32> to vector<2x16x32xf32>
    %12 = arith.addf %8, %11 : vector<2x16x32xf32>
    %13 = vector.shape_cast %12 : vector<2x16x32xf32> to vector<32x32xf32>
    %c4 = arith.constant 4 : index
    %c0_8 = arith.constant 0 : index
    %14 = vector.load %arg9[%c4, %c0_8] : memref<20x128xf32, #tpu.memory_space<vmem>>, vector<1x96xf32>
    %c5 = arith.constant 5 : index
    %c0_9 = arith.constant 0 : index
    %15 = vector.load %arg9[%c5, %c0_9] : memref<20x128xf32, #tpu.memory_space<vmem>>, vector<1x32xf32>
    %c6 = arith.constant 6 : index
    %c0_10 = arith.constant 0 : index
    %16 = vector.load %arg9[%c6, %c0_10] : memref<20x128xf32, #tpu.memory_space<vmem>>, vector<1x32xf32>
    %c7 = arith.constant 7 : index
    %c0_11 = arith.constant 0 : index
    %17 = vector.load %arg9[%c7, %c0_11] : memref<20x128xf32, #tpu.memory_space<vmem>>, vector<1x32xf32>
    %c8 = arith.constant 8 : index
    %c0_12 = arith.constant 0 : index
    %18 = vector.load %arg9[%c8, %c0_12] : memref<20x128xf32, #tpu.memory_space<vmem>>, vector<1x32xf32>
    %c9 = arith.constant 9 : index
    %c0_13 = arith.constant 0 : index
    %19 = vector.load %arg9[%c9, %c0_13] : memref<20x128xf32, #tpu.memory_space<vmem>>, vector<1x32xf32>
    %c10 = arith.constant 10 : index
    %c0_14 = arith.constant 0 : index
    %20 = vector.load %arg9[%c10, %c0_14] : memref<20x128xf32, #tpu.memory_space<vmem>>, vector<1x64xf32>
    %c11 = arith.constant 11 : index
    %c0_15 = arith.constant 0 : index
    %21 = vector.load %arg9[%c11, %c0_15] : memref<20x128xf32, #tpu.memory_space<vmem>>, vector<1x32xf32>
    %c0_16 = arith.constant 0 : index
    %c0_17 = arith.constant 0 : index
    %c0_18 = arith.constant 0 : index
    %22 = vector.load %arg5[%c0_16, %c0_17, %c0_18] : memref<2x32x32xbf16, #tpu.memory_space<vmem>>, vector<1x32x32xbf16>
    %23 = vector.shape_cast %22 : vector<1x32x32xbf16> to vector<32x32xbf16>
    %24 = arith.extf %23 : vector<32x32xbf16> to vector<32x32xf32>
    %c0_19 = arith.constant 0 : index
    %c0_20 = arith.constant 0 : index
    %c0_21 = arith.constant 0 : index
    %25 = vector.load %arg4[%c0_19, %c0_20, %c0_21] : memref<2x32x96xbf16, #tpu.memory_space<vmem>>, vector<1x32x96xbf16>
    %26 = vector.shape_cast %25 : vector<1x32x96xbf16> to vector<32x96xbf16>
    %27 = arith.truncf %13 : vector<32x32xf32> to vector<32x32xbf16>
    %cst_22 = arith.constant dense<0.000000e+00> : vector<32x96xf32>
    %28 = tpu.matmul %27, %26, %cst_22 {dimension_numbers = #tpu.dot_dimension_numbers<[1], [0], [0], [1], [0, 0, 1, 1], [], []>} : vector<32x32xbf16>, vector<32x96xbf16>, vector<32x96xf32> -> vector<32x96xf32>
    %29 = vector.broadcast %14 : vector<1x96xf32> to vector<32x96xf32>
    %30 = arith.addf %28, %29 : vector<32x96xf32>
    %31 = vector.extract_strided_slice %30 {offsets = [0, 0], sizes = [32, 32], strides = [1, 1]} : vector<32x96xf32> to vector<32x32xf32>
    %32 = vector.shape_cast %31 : vector<32x32xf32> to vector<2x16x32xf32>
    %cst_23 = arith.constant 0.707106769 : f32
    %33 = vector.broadcast %cst_23 : f32 to vector<2x16x32xf32>
    %34 = arith.mulf %32, %33 : vector<2x16x32xf32>
    %35 = vector.extract_strided_slice %30 {offsets = [0, 32], sizes = [32, 32], strides = [1, 1]} : vector<32x96xf32> to vector<32x32xf32>
    %36 = vector.shape_cast %35 : vector<32x32xf32> to vector<2x16x32xf32>
    %37 = vector.extract_strided_slice %30 {offsets = [0, 64], sizes = [32, 32], strides = [1, 1]} : vector<32x96xf32> to vector<32x32xf32>
    %38 = vector.shape_cast %37 : vector<32x32xf32> to vector<2x16x32xf32>
    %39 = tpu.transpose %36, [0, 2, 1] : vector<2x16x32xf32> -> vector<2x32x16xf32>
    %40 = tpu.transpose %38, [0, 2, 1] : vector<2x16x32xf32> -> vector<2x32x16xf32>
    %cst_24 = arith.constant 0.000000e+00 : f32
    %41 = vector.broadcast %cst_24 : f32 to vector<2x16x32xf32>
    %42 = vector.extract_strided_slice %34 {offsets = [0, 0, 0], sizes = [2, 16, 1], strides = [1, 1, 1]} : vector<2x16x32xf32> to vector<2x16x1xf32>
    %43 = vector.extract_strided_slice %39 {offsets = [0, 0, 0], sizes = [2, 1, 16], strides = [1, 1, 1]} : vector<2x32x16xf32> to vector<2x1x16xf32>
    %44 = vector.broadcast %42 : vector<2x16x1xf32> to vector<2x16x16xf32>
    %45 = vector.broadcast %43 : vector<2x1x16xf32> to vector<2x16x16xf32>
    %46 = arith.mulf %44, %45 : vector<2x16x16xf32>
    %47 = vector.extract_strided_slice %34 {offsets = [0, 0, 1], sizes = [2, 16, 1], strides = [1, 1, 1]} : vector<2x16x32xf32> to vector<2x16x1xf32>
    %48 = vector.extract_strided_slice %39 {offsets = [0, 1, 0], sizes = [2, 1, 16], strides = [1, 1, 1]} : vector<2x32x16xf32> to vector<2x1x16xf32>
    %49 = vector.broadcast %47 : vector<2x16x1xf32> to vector<2x16x16xf32>
    %50 = vector.broadcast %48 : vector<2x1x16xf32> to vector<2x16x16xf32>
    %51 = arith.mulf %49, %50 : vector<2x16x16xf32>
    %52 = arith.addf %46, %51 : vector<2x16x16xf32>
    %cst_25 = arith.constant dense<0xFF800000> : vector<2x16xf32>
    %53 = vector.multi_reduction <maximumf>, %52, %cst_25 [2] : vector<2x16x16xf32> to vector<2x16xf32>
    %54 = vector.shape_cast %53 : vector<2x16xf32> to vector<2x16x1xf32>
    %55 = vector.broadcast %54 : vector<2x16x1xf32> to vector<2x16x16xf32>
    %56 = arith.subf %52, %55 : vector<2x16x16xf32>
    %57 = math.exp %56 : vector<2x16x16xf32>
    %cst_26 = arith.constant dense<0.000000e+00> : vector<2x16xf32>
    %58 = vector.multi_reduction <add>, %57, %cst_26 [2] : vector<2x16x16xf32> to vector<2x16xf32>
    %59 = vector.shape_cast %58 : vector<2x16xf32> to vector<2x16x1xf32>
    %60 = tpu.reciprocal %59 {approx = true} : vector<2x16x1xf32> -> vector<2x16x1xf32>
    %61 = vector.broadcast %60 : vector<2x16x1xf32> to vector<2x16x16xf32>
    %62 = arith.mulf %57, %61 : vector<2x16x16xf32>
    %63 = vector.extract_strided_slice %40 {offsets = [0, 0, 0], sizes = [2, 1, 16], strides = [1, 1, 1]} : vector<2x32x16xf32> to vector<2x1x16xf32>
    %64 = vector.broadcast %63 : vector<2x1x16xf32> to vector<2x16x16xf32>
    %65 = arith.mulf %62, %64 : vector<2x16x16xf32>
    %cst_27 = arith.constant dense<0.000000e+00> : vector<2x16xf32>
    %66 = vector.multi_reduction <add>, %65, %cst_27 [2] : vector<2x16x16xf32> to vector<2x16xf32>
    %67 = vector.shape_cast %66 : vector<2x16xf32> to vector<2x16x1xf32>
    %68 = vector.extract_strided_slice %40 {offsets = [0, 1, 0], sizes = [2, 1, 16], strides = [1, 1, 1]} : vector<2x32x16xf32> to vector<2x1x16xf32>
    %69 = vector.broadcast %68 : vector<2x1x16xf32> to vector<2x16x16xf32>
    %70 = arith.mulf %62, %69 : vector<2x16x16xf32>
    %cst_28 = arith.constant dense<0.000000e+00> : vector<2x16xf32>
    %71 = vector.multi_reduction <add>, %70, %cst_28 [2] : vector<2x16x16xf32> to vector<2x16xf32>
    %72 = vector.shape_cast %71 : vector<2x16xf32> to vector<2x16x1xf32>
    %73 = vector.extract_strided_slice %24 {offsets = [0, 0], sizes = [1, 32], strides = [1, 1]} : vector<32x32xf32> to vector<1x32xf32>
    %74 = vector.shape_cast %73 : vector<1x32xf32> to vector<1x1x32xf32>
    %75 = vector.broadcast %67 : vector<2x16x1xf32> to vector<2x16x32xf32>
    %76 = vector.broadcast %74 : vector<1x1x32xf32> to vector<2x16x32xf32>
    %77 = arith.mulf %75, %76 : vector<2x16x32xf32>
    %78 = arith.addf %41, %77 : vector<2x16x32xf32>
    %79 = vector.extract_strided_slice %24 {offsets = [1, 0], sizes = [1, 32], strides = [1, 1]} : vector<32x32xf32> to vector<1x32xf32>
    %80 = vector.shape_cast %79 : vector<1x32xf32> to vector<1x1x32xf32>
    %81 = vector.broadcast %72 : vector<2x16x1xf32> to vector<2x16x32xf32>
    %82 = vector.broadcast %80 : vector<1x1x32xf32> to vector<2x16x32xf32>
    %83 = arith.mulf %81, %82 : vector<2x16x32xf32>
    %84 = arith.addf %78, %83 : vector<2x16x32xf32>
    %85 = vector.extract_strided_slice %34 {offsets = [0, 0, 2], sizes = [2, 16, 1], strides = [1, 1, 1]} : vector<2x16x32xf32> to vector<2x16x1xf32>
    %86 = vector.extract_strided_slice %39 {offsets = [0, 2, 0], sizes = [2, 1, 16], strides = [1, 1, 1]} : vector<2x32x16xf32> to vector<2x1x16xf32>
    %87 = vector.broadcast %85 : vector<2x16x1xf32> to vector<2x16x16xf32>
    %88 = vector.broadcast %86 : vector<2x1x16xf32> to vector<2x16x16xf32>
    %89 = arith.mulf %87, %88 : vector<2x16x16xf32>
    %90 = vector.extract_strided_slice %34 {offsets = [0, 0, 3], sizes = [2, 16, 1], strides = [1, 1, 1]} : vector<2x16x32xf32> to vector<2x16x1xf32>
    %91 = vector.extract_strided_slice %39 {offsets = [0, 3, 0], sizes = [2, 1, 16], strides = [1, 1, 1]} : vector<2x32x16xf32> to vector<2x1x16xf32>
    %92 = vector.broadcast %90 : vector<2x16x1xf32> to vector<2x16x16xf32>
    %93 = vector.broadcast %91 : vector<2x1x16xf32> to vector<2x16x16xf32>
    %94 = arith.mulf %92, %93 : vector<2x16x16xf32>
    %95 = arith.addf %89, %94 : vector<2x16x16xf32>
    %cst_29 = arith.constant dense<0xFF800000> : vector<2x16xf32>
    %96 = vector.multi_reduction <maximumf>, %95, %cst_29 [2] : vector<2x16x16xf32> to vector<2x16xf32>
    %97 = vector.shape_cast %96 : vector<2x16xf32> to vector<2x16x1xf32>
    %98 = vector.broadcast %97 : vector<2x16x1xf32> to vector<2x16x16xf32>
    %99 = arith.subf %95, %98 : vector<2x16x16xf32>
    %100 = math.exp %99 : vector<2x16x16xf32>
    %cst_30 = arith.constant dense<0.000000e+00> : vector<2x16xf32>
    %101 = vector.multi_reduction <add>, %100, %cst_30 [2] : vector<2x16x16xf32> to vector<2x16xf32>
    %102 = vector.shape_cast %101 : vector<2x16xf32> to vector<2x16x1xf32>
    %103 = tpu.reciprocal %102 {approx = true} : vector<2x16x1xf32> -> vector<2x16x1xf32>
    %104 = vector.broadcast %103 : vector<2x16x1xf32> to vector<2x16x16xf32>
    %105 = arith.mulf %100, %104 : vector<2x16x16xf32>
    %106 = vector.extract_strided_slice %40 {offsets = [0, 2, 0], sizes = [2, 1, 16], strides = [1, 1, 1]} : vector<2x32x16xf32> to vector<2x1x16xf32>
    %107 = vector.broadcast %106 : vector<2x1x16xf32> to vector<2x16x16xf32>
    %108 = arith.mulf %105, %107 : vector<2x16x16xf32>
    %cst_31 = arith.constant dense<0.000000e+00> : vector<2x16xf32>
    %109 = vector.multi_reduction <add>, %108, %cst_31 [2] : vector<2x16x16xf32> to vector<2x16xf32>
    %110 = vector.shape_cast %109 : vector<2x16xf32> to vector<2x16x1xf32>
    %111 = vector.extract_strided_slice %40 {offsets = [0, 3, 0], sizes = [2, 1, 16], strides = [1, 1, 1]} : vector<2x32x16xf32> to vector<2x1x16xf32>
    %112 = vector.broadcast %111 : vector<2x1x16xf32> to vector<2x16x16xf32>
    %113 = arith.mulf %105, %112 : vector<2x16x16xf32>
    %cst_32 = arith.constant dense<0.000000e+00> : vector<2x16xf32>
    %114 = vector.multi_reduction <add>, %113, %cst_32 [2] : vector<2x16x16xf32> to vector<2x16xf32>
    %115 = vector.shape_cast %114 : vector<2x16xf32> to vector<2x16x1xf32>
    %116 = vector.extract_strided_slice %24 {offsets = [2, 0], sizes = [1, 32], strides = [1, 1]} : vector<32x32xf32> to vector<1x32xf32>
    %117 = vector.shape_cast %116 : vector<1x32xf32> to vector<1x1x32xf32>
    %118 = vector.broadcast %110 : vector<2x16x1xf32> to vector<2x16x32xf32>
    %119 = vector.broadcast %117 : vector<1x1x32xf32> to vector<2x16x32xf32>
    %120 = arith.mulf %118, %119 : vector<2x16x32xf32>
    %121 = arith.addf %84, %120 : vector<2x16x32xf32>
    %122 = vector.extract_strided_slice %24 {offsets = [3, 0], sizes = [1, 32], strides = [1, 1]} : vector<32x32xf32> to vector<1x32xf32>
    %123 = vector.shape_cast %122 : vector<1x32xf32> to vector<1x1x32xf32>
    %124 = vector.broadcast %115 : vector<2x16x1xf32> to vector<2x16x32xf32>
    %125 = vector.broadcast %123 : vector<1x1x32xf32> to vector<2x16x32xf32>
    %126 = arith.mulf %124, %125 : vector<2x16x32xf32>
    %127 = arith.addf %121, %126 : vector<2x16x32xf32>
    %128 = vector.extract_strided_slice %34 {offsets = [0, 0, 4], sizes = [2, 16, 1], strides = [1, 1, 1]} : vector<2x16x32xf32> to vector<2x16x1xf32>
    %129 = vector.extract_strided_slice %39 {offsets = [0, 4, 0], sizes = [2, 1, 16], strides = [1, 1, 1]} : vector<2x32x16xf32> to vector<2x1x16xf32>
    %130 = vector.broadcast %128 : vector<2x16x1xf32> to vector<2x16x16xf32>
    %131 = vector.broadcast %129 : vector<2x1x16xf32> to vector<2x16x16xf32>
    %132 = arith.mulf %130, %131 : vector<2x16x16xf32>
    %133 = vector.extract_strided_slice %34 {offsets = [0, 0, 5], sizes = [2, 16, 1], strides = [1, 1, 1]} : vector<2x16x32xf32> to vector<2x16x1xf32>
    %134 = vector.extract_strided_slice %39 {offsets = [0, 5, 0], sizes = [2, 1, 16], strides = [1, 1, 1]} : vector<2x32x16xf32> to vector<2x1x16xf32>
    %135 = vector.broadcast %133 : vector<2x16x1xf32> to vector<2x16x16xf32>
    %136 = vector.broadcast %134 : vector<2x1x16xf32> to vector<2x16x16xf32>
    %137 = arith.mulf %135, %136 : vector<2x16x16xf32>
    %138 = arith.addf %132, %137 : vector<2x16x16xf32>
    %cst_33 = arith.constant dense<0xFF800000> : vector<2x16xf32>
    %139 = vector.multi_reduction <maximumf>, %138, %cst_33 [2] : vector<2x16x16xf32> to vector<2x16xf32>
    %140 = vector.shape_cast %139 : vector<2x16xf32> to vector<2x16x1xf32>
    %141 = vector.broadcast %140 : vector<2x16x1xf32> to vector<2x16x16xf32>
    %142 = arith.subf %138, %141 : vector<2x16x16xf32>
    %143 = math.exp %142 : vector<2x16x16xf32>
    %cst_34 = arith.constant dense<0.000000e+00> : vector<2x16xf32>
    %144 = vector.multi_reduction <add>, %143, %cst_34 [2] : vector<2x16x16xf32> to vector<2x16xf32>
    %145 = vector.shape_cast %144 : vector<2x16xf32> to vector<2x16x1xf32>
    %146 = tpu.reciprocal %145 {approx = true} : vector<2x16x1xf32> -> vector<2x16x1xf32>
    %147 = vector.broadcast %146 : vector<2x16x1xf32> to vector<2x16x16xf32>
    %148 = arith.mulf %143, %147 : vector<2x16x16xf32>
    %149 = vector.extract_strided_slice %40 {offsets = [0, 4, 0], sizes = [2, 1, 16], strides = [1, 1, 1]} : vector<2x32x16xf32> to vector<2x1x16xf32>
    %150 = vector.broadcast %149 : vector<2x1x16xf32> to vector<2x16x16xf32>
    %151 = arith.mulf %148, %150 : vector<2x16x16xf32>
    %cst_35 = arith.constant dense<0.000000e+00> : vector<2x16xf32>
    %152 = vector.multi_reduction <add>, %151, %cst_35 [2] : vector<2x16x16xf32> to vector<2x16xf32>
    %153 = vector.shape_cast %152 : vector<2x16xf32> to vector<2x16x1xf32>
    %154 = vector.extract_strided_slice %40 {offsets = [0, 5, 0], sizes = [2, 1, 16], strides = [1, 1, 1]} : vector<2x32x16xf32> to vector<2x1x16xf32>
    %155 = vector.broadcast %154 : vector<2x1x16xf32> to vector<2x16x16xf32>
    %156 = arith.mulf %148, %155 : vector<2x16x16xf32>
    %cst_36 = arith.constant dense<0.000000e+00> : vector<2x16xf32>
    %157 = vector.multi_reduction <add>, %156, %cst_36 [2] : vector<2x16x16xf32> to vector<2x16xf32>
    %158 = vector.shape_cast %157 : vector<2x16xf32> to vector<2x16x1xf32>
    %159 = vector.extract_strided_slice %24 {offsets = [4, 0], sizes = [1, 32], strides = [1, 1]} : vector<32x32xf32> to vector<1x32xf32>
    %160 = vector.shape_cast %159 : vector<1x32xf32> to vector<1x1x32xf32>
    %161 = vector.broadcast %153 : vector<2x16x1xf32> to vector<2x16x32xf32>
    %162 = vector.broadcast %160 : vector<1x1x32xf32> to vector<2x16x32xf32>
    %163 = arith.mulf %161, %162 : vector<2x16x32xf32>
    %164 = arith.addf %127, %163 : vector<2x16x32xf32>
    %165 = vector.extract_strided_slice %24 {offsets = [5, 0], sizes = [1, 32], strides = [1, 1]} : vector<32x32xf32> to vector<1x32xf32>
    %166 = vector.shape_cast %165 : vector<1x32xf32> to vector<1x1x32xf32>
    %167 = vector.broadcast %158 : vector<2x16x1xf32> to vector<2x16x32xf32>
    %168 = vector.broadcast %166 : vector<1x1x32xf32> to vector<2x16x32xf32>
    %169 = arith.mulf %167, %168 : vector<2x16x32xf32>
    %170 = arith.addf %164, %169 : vector<2x16x32xf32>
    %171 = vector.extract_strided_slice %34 {offsets = [0, 0, 6], sizes = [2, 16, 1], strides = [1, 1, 1]} : vector<2x16x32xf32> to vector<2x16x1xf32>
    %172 = vector.extract_strided_slice %39 {offsets = [0, 6, 0], sizes = [2, 1, 16], strides = [1, 1, 1]} : vector<2x32x16xf32> to vector<2x1x16xf32>
    %173 = vector.broadcast %171 : vector<2x16x1xf32> to vector<2x16x16xf32>
    %174 = vector.broadcast %172 : vector<2x1x16xf32> to vector<2x16x16xf32>
    %175 = arith.mulf %173, %174 : vector<2x16x16xf32>
    %176 = vector.extract_strided_slice %34 {offsets = [0, 0, 7], sizes = [2, 16, 1], strides = [1, 1, 1]} : vector<2x16x32xf32> to vector<2x16x1xf32>
    %177 = vector.extract_strided_slice %39 {offsets = [0, 7, 0], sizes = [2, 1, 16], strides = [1, 1, 1]} : vector<2x32x16xf32> to vector<2x1x16xf32>
    %178 = vector.broadcast %176 : vector<2x16x1xf32> to vector<2x16x16xf32>
    %179 = vector.broadcast %177 : vector<2x1x16xf32> to vector<2x16x16xf32>
    %180 = arith.mulf %178, %179 : vector<2x16x16xf32>
    %181 = arith.addf %175, %180 : vector<2x16x16xf32>
    %cst_37 = arith.constant dense<0xFF800000> : vector<2x16xf32>
    %182 = vector.multi_reduction <maximumf>, %181, %cst_37 [2] : vector<2x16x16xf32> to vector<2x16xf32>
    %183 = vector.shape_cast %182 : vector<2x16xf32> to vector<2x16x1xf32>
    %184 = vector.broadcast %183 : vector<2x16x1xf32> to vector<2x16x16xf32>
    %185 = arith.subf %181, %184 : vector<2x16x16xf32>
    %186 = math.exp %185 : vector<2x16x16xf32>
    %cst_38 = arith.constant dense<0.000000e+00> : vector<2x16xf32>
    %187 = vector.multi_reduction <add>, %186, %cst_38 [2] : vector<2x16x16xf32> to vector<2x16xf32>
    %188 = vector.shape_cast %187 : vector<2x16xf32> to vector<2x16x1xf32>
    %189 = tpu.reciprocal %188 {approx = true} : vector<2x16x1xf32> -> vector<2x16x1xf32>
    %190 = vector.broadcast %189 : vector<2x16x1xf32> to vector<2x16x16xf32>
    %191 = arith.mulf %186, %190 : vector<2x16x16xf32>
    %192 = vector.extract_strided_slice %40 {offsets = [0, 6, 0], sizes = [2, 1, 16], strides = [1, 1, 1]} : vector<2x32x16xf32> to vector<2x1x16xf32>
    %193 = vector.broadcast %192 : vector<2x1x16xf32> to vector<2x16x16xf32>
    %194 = arith.mulf %191, %193 : vector<2x16x16xf32>
    %cst_39 = arith.constant dense<0.000000e+00> : vector<2x16xf32>
    %195 = vector.multi_reduction <add>, %194, %cst_39 [2] : vector<2x16x16xf32> to vector<2x16xf32>
    %196 = vector.shape_cast %195 : vector<2x16xf32> to vector<2x16x1xf32>
    %197 = vector.extract_strided_slice %40 {offsets = [0, 7, 0], sizes = [2, 1, 16], strides = [1, 1, 1]} : vector<2x32x16xf32> to vector<2x1x16xf32>
    %198 = vector.broadcast %197 : vector<2x1x16xf32> to vector<2x16x16xf32>
    %199 = arith.mulf %191, %198 : vector<2x16x16xf32>
    %cst_40 = arith.constant dense<0.000000e+00> : vector<2x16xf32>
    %200 = vector.multi_reduction <add>, %199, %cst_40 [2] : vector<2x16x16xf32> to vector<2x16xf32>
    %201 = vector.shape_cast %200 : vector<2x16xf32> to vector<2x16x1xf32>
    %202 = vector.extract_strided_slice %24 {offsets = [6, 0], sizes = [1, 32], strides = [1, 1]} : vector<32x32xf32> to vector<1x32xf32>
    %203 = vector.shape_cast %202 : vector<1x32xf32> to vector<1x1x32xf32>
    %204 = vector.broadcast %196 : vector<2x16x1xf32> to vector<2x16x32xf32>
    %205 = vector.broadcast %203 : vector<1x1x32xf32> to vector<2x16x32xf32>
    %206 = arith.mulf %204, %205 : vector<2x16x32xf32>
    %207 = arith.addf %170, %206 : vector<2x16x32xf32>
    %208 = vector.extract_strided_slice %24 {offsets = [7, 0], sizes = [1, 32], strides = [1, 1]} : vector<32x32xf32> to vector<1x32xf32>
    %209 = vector.shape_cast %208 : vector<1x32xf32> to vector<1x1x32xf32>
    %210 = vector.broadcast %201 : vector<2x16x1xf32> to vector<2x16x32xf32>
    %211 = vector.broadcast %209 : vector<1x1x32xf32> to vector<2x16x32xf32>
    %212 = arith.mulf %210, %211 : vector<2x16x32xf32>
    %213 = arith.addf %207, %212 : vector<2x16x32xf32>
    %214 = vector.extract_strided_slice %34 {offsets = [0, 0, 8], sizes = [2, 16, 1], strides = [1, 1, 1]} : vector<2x16x32xf32> to vector<2x16x1xf32>
    %215 = vector.extract_strided_slice %39 {offsets = [0, 8, 0], sizes = [2, 1, 16], strides = [1, 1, 1]} : vector<2x32x16xf32> to vector<2x1x16xf32>
    %216 = vector.broadcast %214 : vector<2x16x1xf32> to vector<2x16x16xf32>
    %217 = vector.broadcast %215 : vector<2x1x16xf32> to vector<2x16x16xf32>
    %218 = arith.mulf %216, %217 : vector<2x16x16xf32>
    %219 = vector.extract_strided_slice %34 {offsets = [0, 0, 9], sizes = [2, 16, 1], strides = [1, 1, 1]} : vector<2x16x32xf32> to vector<2x16x1xf32>
    %220 = vector.extract_strided_slice %39 {offsets = [0, 9, 0], sizes = [2, 1, 16], strides = [1, 1, 1]} : vector<2x32x16xf32> to vector<2x1x16xf32>
    %221 = vector.broadcast %219 : vector<2x16x1xf32> to vector<2x16x16xf32>
    %222 = vector.broadcast %220 : vector<2x1x16xf32> to vector<2x16x16xf32>
    %223 = arith.mulf %221, %222 : vector<2x16x16xf32>
    %224 = arith.addf %218, %223 : vector<2x16x16xf32>
    %cst_41 = arith.constant dense<0xFF800000> : vector<2x16xf32>
    %225 = vector.multi_reduction <maximumf>, %224, %cst_41 [2] : vector<2x16x16xf32> to vector<2x16xf32>
    %226 = vector.shape_cast %225 : vector<2x16xf32> to vector<2x16x1xf32>
    %227 = vector.broadcast %226 : vector<2x16x1xf32> to vector<2x16x16xf32>
    %228 = arith.subf %224, %227 : vector<2x16x16xf32>
    %229 = math.exp %228 : vector<2x16x16xf32>
    %cst_42 = arith.constant dense<0.000000e+00> : vector<2x16xf32>
    %230 = vector.multi_reduction <add>, %229, %cst_42 [2] : vector<2x16x16xf32> to vector<2x16xf32>
    %231 = vector.shape_cast %230 : vector<2x16xf32> to vector<2x16x1xf32>
    %232 = tpu.reciprocal %231 {approx = true} : vector<2x16x1xf32> -> vector<2x16x1xf32>
    %233 = vector.broadcast %232 : vector<2x16x1xf32> to vector<2x16x16xf32>
    %234 = arith.mulf %229, %233 : vector<2x16x16xf32>
    %235 = vector.extract_strided_slice %40 {offsets = [0, 8, 0], sizes = [2, 1, 16], strides = [1, 1, 1]} : vector<2x32x16xf32> to vector<2x1x16xf32>
    %236 = vector.broadcast %235 : vector<2x1x16xf32> to vector<2x16x16xf32>
    %237 = arith.mulf %234, %236 : vector<2x16x16xf32>
    %cst_43 = arith.constant dense<0.000000e+00> : vector<2x16xf32>
    %238 = vector.multi_reduction <add>, %237, %cst_43 [2] : vector<2x16x16xf32> to vector<2x16xf32>
    %239 = vector.shape_cast %238 : vector<2x16xf32> to vector<2x16x1xf32>
    %240 = vector.extract_strided_slice %40 {offsets = [0, 9, 0], sizes = [2, 1, 16], strides = [1, 1, 1]} : vector<2x32x16xf32> to vector<2x1x16xf32>
    %241 = vector.broadcast %240 : vector<2x1x16xf32> to vector<2x16x16xf32>
    %242 = arith.mulf %234, %241 : vector<2x16x16xf32>
    %cst_44 = arith.constant dense<0.000000e+00> : vector<2x16xf32>
    %243 = vector.multi_reduction <add>, %242, %cst_44 [2] : vector<2x16x16xf32> to vector<2x16xf32>
    %244 = vector.shape_cast %243 : vector<2x16xf32> to vector<2x16x1xf32>
    %245 = vector.extract_strided_slice %24 {offsets = [8, 0], sizes = [1, 32], strides = [1, 1]} : vector<32x32xf32> to vector<1x32xf32>
    %246 = vector.shape_cast %245 : vector<1x32xf32> to vector<1x1x32xf32>
    %247 = vector.broadcast %239 : vector<2x16x1xf32> to vector<2x16x32xf32>
    %248 = vector.broadcast %246 : vector<1x1x32xf32> to vector<2x16x32xf32>
    %249 = arith.mulf %247, %248 : vector<2x16x32xf32>
    %250 = arith.addf %213, %249 : vector<2x16x32xf32>
    %251 = vector.extract_strided_slice %24 {offsets = [9, 0], sizes = [1, 32], strides = [1, 1]} : vector<32x32xf32> to vector<1x32xf32>
    %252 = vector.shape_cast %251 : vector<1x32xf32> to vector<1x1x32xf32>
    %253 = vector.broadcast %244 : vector<2x16x1xf32> to vector<2x16x32xf32>
    %254 = vector.broadcast %252 : vector<1x1x32xf32> to vector<2x16x32xf32>
    %255 = arith.mulf %253, %254 : vector<2x16x32xf32>
    %256 = arith.addf %250, %255 : vector<2x16x32xf32>
    %257 = vector.extract_strided_slice %34 {offsets = [0, 0, 10], sizes = [2, 16, 1], strides = [1, 1, 1]} : vector<2x16x32xf32> to vector<2x16x1xf32>
    %258 = vector.extract_strided_slice %39 {offsets = [0, 10, 0], sizes = [2, 1, 16], strides = [1, 1, 1]} : vector<2x32x16xf32> to vector<2x1x16xf32>
    %259 = vector.broadcast %257 : vector<2x16x1xf32> to vector<2x16x16xf32>
    %260 = vector.broadcast %258 : vector<2x1x16xf32> to vector<2x16x16xf32>
    %261 = arith.mulf %259, %260 : vector<2x16x16xf32>
    %262 = vector.extract_strided_slice %34 {offsets = [0, 0, 11], sizes = [2, 16, 1], strides = [1, 1, 1]} : vector<2x16x32xf32> to vector<2x16x1xf32>
    %263 = vector.extract_strided_slice %39 {offsets = [0, 11, 0], sizes = [2, 1, 16], strides = [1, 1, 1]} : vector<2x32x16xf32> to vector<2x1x16xf32>
    %264 = vector.broadcast %262 : vector<2x16x1xf32> to vector<2x16x16xf32>
    %265 = vector.broadcast %263 : vector<2x1x16xf32> to vector<2x16x16xf32>
    %266 = arith.mulf %264, %265 : vector<2x16x16xf32>
    %267 = arith.addf %261, %266 : vector<2x16x16xf32>
    %cst_45 = arith.constant dense<0xFF800000> : vector<2x16xf32>
    %268 = vector.multi_reduction <maximumf>, %267, %cst_45 [2] : vector<2x16x16xf32> to vector<2x16xf32>
    %269 = vector.shape_cast %268 : vector<2x16xf32> to vector<2x16x1xf32>
    %270 = vector.broadcast %269 : vector<2x16x1xf32> to vector<2x16x16xf32>
    %271 = arith.subf %267, %270 : vector<2x16x16xf32>
    %272 = math.exp %271 : vector<2x16x16xf32>
    %cst_46 = arith.constant dense<0.000000e+00> : vector<2x16xf32>
    %273 = vector.multi_reduction <add>, %272, %cst_46 [2] : vector<2x16x16xf32> to vector<2x16xf32>
    %274 = vector.shape_cast %273 : vector<2x16xf32> to vector<2x16x1xf32>
    %275 = tpu.reciprocal %274 {approx = true} : vector<2x16x1xf32> -> vector<2x16x1xf32>
    %276 = vector.broadcast %275 : vector<2x16x1xf32> to vector<2x16x16xf32>
    %277 = arith.mulf %272, %276 : vector<2x16x16xf32>
    %278 = vector.extract_strided_slice %40 {offsets = [0, 10, 0], sizes = [2, 1, 16], strides = [1, 1, 1]} : vector<2x32x16xf32> to vector<2x1x16xf32>
    %279 = vector.broadcast %278 : vector<2x1x16xf32> to vector<2x16x16xf32>
    %280 = arith.mulf %277, %279 : vector<2x16x16xf32>
    %cst_47 = arith.constant dense<0.000000e+00> : vector<2x16xf32>
    %281 = vector.multi_reduction <add>, %280, %cst_47 [2] : vector<2x16x16xf32> to vector<2x16xf32>
    %282 = vector.shape_cast %281 : vector<2x16xf32> to vector<2x16x1xf32>
    %283 = vector.extract_strided_slice %40 {offsets = [0, 11, 0], sizes = [2, 1, 16], strides = [1, 1, 1]} : vector<2x32x16xf32> to vector<2x1x16xf32>
    %284 = vector.broadcast %283 : vector<2x1x16xf32> to vector<2x16x16xf32>
    %285 = arith.mulf %277, %284 : vector<2x16x16xf32>
    %cst_48 = arith.constant dense<0.000000e+00> : vector<2x16xf32>
    %286 = vector.multi_reduction <add>, %285, %cst_48 [2] : vector<2x16x16xf32> to vector<2x16xf32>
    %287 = vector.shape_cast %286 : vector<2x16xf32> to vector<2x16x1xf32>
    %288 = vector.extract_strided_slice %24 {offsets = [10, 0], sizes = [1, 32], strides = [1, 1]} : vector<32x32xf32> to vector<1x32xf32>
    %289 = vector.shape_cast %288 : vector<1x32xf32> to vector<1x1x32xf32>
    %290 = vector.broadcast %282 : vector<2x16x1xf32> to vector<2x16x32xf32>
    %291 = vector.broadcast %289 : vector<1x1x32xf32> to vector<2x16x32xf32>
    %292 = arith.mulf %290, %291 : vector<2x16x32xf32>
    %293 = arith.addf %256, %292 : vector<2x16x32xf32>
    %294 = vector.extract_strided_slice %24 {offsets = [11, 0], sizes = [1, 32], strides = [1, 1]} : vector<32x32xf32> to vector<1x32xf32>
    %295 = vector.shape_cast %294 : vector<1x32xf32> to vector<1x1x32xf32>
    %296 = vector.broadcast %287 : vector<2x16x1xf32> to vector<2x16x32xf32>
    %297 = vector.broadcast %295 : vector<1x1x32xf32> to vector<2x16x32xf32>
    %298 = arith.mulf %296, %297 : vector<2x16x32xf32>
    %299 = arith.addf %293, %298 : vector<2x16x32xf32>
    %300 = vector.extract_strided_slice %34 {offsets = [0, 0, 12], sizes = [2, 16, 1], strides = [1, 1, 1]} : vector<2x16x32xf32> to vector<2x16x1xf32>
    %301 = vector.extract_strided_slice %39 {offsets = [0, 12, 0], sizes = [2, 1, 16], strides = [1, 1, 1]} : vector<2x32x16xf32> to vector<2x1x16xf32>
    %302 = vector.broadcast %300 : vector<2x16x1xf32> to vector<2x16x16xf32>
    %303 = vector.broadcast %301 : vector<2x1x16xf32> to vector<2x16x16xf32>
    %304 = arith.mulf %302, %303 : vector<2x16x16xf32>
    %305 = vector.extract_strided_slice %34 {offsets = [0, 0, 13], sizes = [2, 16, 1], strides = [1, 1, 1]} : vector<2x16x32xf32> to vector<2x16x1xf32>
    %306 = vector.extract_strided_slice %39 {offsets = [0, 13, 0], sizes = [2, 1, 16], strides = [1, 1, 1]} : vector<2x32x16xf32> to vector<2x1x16xf32>
    %307 = vector.broadcast %305 : vector<2x16x1xf32> to vector<2x16x16xf32>
    %308 = vector.broadcast %306 : vector<2x1x16xf32> to vector<2x16x16xf32>
    %309 = arith.mulf %307, %308 : vector<2x16x16xf32>
    %310 = arith.addf %304, %309 : vector<2x16x16xf32>
    %cst_49 = arith.constant dense<0xFF800000> : vector<2x16xf32>
    %311 = vector.multi_reduction <maximumf>, %310, %cst_49 [2] : vector<2x16x16xf32> to vector<2x16xf32>
    %312 = vector.shape_cast %311 : vector<2x16xf32> to vector<2x16x1xf32>
    %313 = vector.broadcast %312 : vector<2x16x1xf32> to vector<2x16x16xf32>
    %314 = arith.subf %310, %313 : vector<2x16x16xf32>
    %315 = math.exp %314 : vector<2x16x16xf32>
    %cst_50 = arith.constant dense<0.000000e+00> : vector<2x16xf32>
    %316 = vector.multi_reduction <add>, %315, %cst_50 [2] : vector<2x16x16xf32> to vector<2x16xf32>
    %317 = vector.shape_cast %316 : vector<2x16xf32> to vector<2x16x1xf32>
    %318 = tpu.reciprocal %317 {approx = true} : vector<2x16x1xf32> -> vector<2x16x1xf32>
    %319 = vector.broadcast %318 : vector<2x16x1xf32> to vector<2x16x16xf32>
    %320 = arith.mulf %315, %319 : vector<2x16x16xf32>
    %321 = vector.extract_strided_slice %40 {offsets = [0, 12, 0], sizes = [2, 1, 16], strides = [1, 1, 1]} : vector<2x32x16xf32> to vector<2x1x16xf32>
    %322 = vector.broadcast %321 : vector<2x1x16xf32> to vector<2x16x16xf32>
    %323 = arith.mulf %320, %322 : vector<2x16x16xf32>
    %cst_51 = arith.constant dense<0.000000e+00> : vector<2x16xf32>
    %324 = vector.multi_reduction <add>, %323, %cst_51 [2] : vector<2x16x16xf32> to vector<2x16xf32>
    %325 = vector.shape_cast %324 : vector<2x16xf32> to vector<2x16x1xf32>
    %326 = vector.extract_strided_slice %40 {offsets = [0, 13, 0], sizes = [2, 1, 16], strides = [1, 1, 1]} : vector<2x32x16xf32> to vector<2x1x16xf32>
    %327 = vector.broadcast %326 : vector<2x1x16xf32> to vector<2x16x16xf32>
    %328 = arith.mulf %320, %327 : vector<2x16x16xf32>
    %cst_52 = arith.constant dense<0.000000e+00> : vector<2x16xf32>
    %329 = vector.multi_reduction <add>, %328, %cst_52 [2] : vector<2x16x16xf32> to vector<2x16xf32>
    %330 = vector.shape_cast %329 : vector<2x16xf32> to vector<2x16x1xf32>
    %331 = vector.extract_strided_slice %24 {offsets = [12, 0], sizes = [1, 32], strides = [1, 1]} : vector<32x32xf32> to vector<1x32xf32>
    %332 = vector.shape_cast %331 : vector<1x32xf32> to vector<1x1x32xf32>
    %333 = vector.broadcast %325 : vector<2x16x1xf32> to vector<2x16x32xf32>
    %334 = vector.broadcast %332 : vector<1x1x32xf32> to vector<2x16x32xf32>
    %335 = arith.mulf %333, %334 : vector<2x16x32xf32>
    %336 = arith.addf %299, %335 : vector<2x16x32xf32>
    %337 = vector.extract_strided_slice %24 {offsets = [13, 0], sizes = [1, 32], strides = [1, 1]} : vector<32x32xf32> to vector<1x32xf32>
    %338 = vector.shape_cast %337 : vector<1x32xf32> to vector<1x1x32xf32>
    %339 = vector.broadcast %330 : vector<2x16x1xf32> to vector<2x16x32xf32>
    %340 = vector.broadcast %338 : vector<1x1x32xf32> to vector<2x16x32xf32>
    %341 = arith.mulf %339, %340 : vector<2x16x32xf32>
    %342 = arith.addf %336, %341 : vector<2x16x32xf32>
    %343 = vector.extract_strided_slice %34 {offsets = [0, 0, 14], sizes = [2, 16, 1], strides = [1, 1, 1]} : vector<2x16x32xf32> to vector<2x16x1xf32>
    %344 = vector.extract_strided_slice %39 {offsets = [0, 14, 0], sizes = [2, 1, 16], strides = [1, 1, 1]} : vector<2x32x16xf32> to vector<2x1x16xf32>
    %345 = vector.broadcast %343 : vector<2x16x1xf32> to vector<2x16x16xf32>
    %346 = vector.broadcast %344 : vector<2x1x16xf32> to vector<2x16x16xf32>
    %347 = arith.mulf %345, %346 : vector<2x16x16xf32>
    %348 = vector.extract_strided_slice %34 {offsets = [0, 0, 15], sizes = [2, 16, 1], strides = [1, 1, 1]} : vector<2x16x32xf32> to vector<2x16x1xf32>
    %349 = vector.extract_strided_slice %39 {offsets = [0, 15, 0], sizes = [2, 1, 16], strides = [1, 1, 1]} : vector<2x32x16xf32> to vector<2x1x16xf32>
    %350 = vector.broadcast %348 : vector<2x16x1xf32> to vector<2x16x16xf32>
    %351 = vector.broadcast %349 : vector<2x1x16xf32> to vector<2x16x16xf32>
    %352 = arith.mulf %350, %351 : vector<2x16x16xf32>
    %353 = arith.addf %347, %352 : vector<2x16x16xf32>
    %cst_53 = arith.constant dense<0xFF800000> : vector<2x16xf32>
    %354 = vector.multi_reduction <maximumf>, %353, %cst_53 [2] : vector<2x16x16xf32> to vector<2x16xf32>
    %355 = vector.shape_cast %354 : vector<2x16xf32> to vector<2x16x1xf32>
    %356 = vector.broadcast %355 : vector<2x16x1xf32> to vector<2x16x16xf32>
    %357 = arith.subf %353, %356 : vector<2x16x16xf32>
    %358 = math.exp %357 : vector<2x16x16xf32>
    %cst_54 = arith.constant dense<0.000000e+00> : vector<2x16xf32>
    %359 = vector.multi_reduction <add>, %358, %cst_54 [2] : vector<2x16x16xf32> to vector<2x16xf32>
    %360 = vector.shape_cast %359 : vector<2x16xf32> to vector<2x16x1xf32>
    %361 = tpu.reciprocal %360 {approx = true} : vector<2x16x1xf32> -> vector<2x16x1xf32>
    %362 = vector.broadcast %361 : vector<2x16x1xf32> to vector<2x16x16xf32>
    %363 = arith.mulf %358, %362 : vector<2x16x16xf32>
    %364 = vector.extract_strided_slice %40 {offsets = [0, 14, 0], sizes = [2, 1, 16], strides = [1, 1, 1]} : vector<2x32x16xf32> to vector<2x1x16xf32>
    %365 = vector.broadcast %364 : vector<2x1x16xf32> to vector<2x16x16xf32>
    %366 = arith.mulf %363, %365 : vector<2x16x16xf32>
    %cst_55 = arith.constant dense<0.000000e+00> : vector<2x16xf32>
    %367 = vector.multi_reduction <add>, %366, %cst_55 [2] : vector<2x16x16xf32> to vector<2x16xf32>
    %368 = vector.shape_cast %367 : vector<2x16xf32> to vector<2x16x1xf32>
    %369 = vector.extract_strided_slice %40 {offsets = [0, 15, 0], sizes = [2, 1, 16], strides = [1, 1, 1]} : vector<2x32x16xf32> to vector<2x1x16xf32>
    %370 = vector.broadcast %369 : vector<2x1x16xf32> to vector<2x16x16xf32>
    %371 = arith.mulf %363, %370 : vector<2x16x16xf32>
    %cst_56 = arith.constant dense<0.000000e+00> : vector<2x16xf32>
    %372 = vector.multi_reduction <add>, %371, %cst_56 [2] : vector<2x16x16xf32> to vector<2x16xf32>
    %373 = vector.shape_cast %372 : vector<2x16xf32> to vector<2x16x1xf32>
    %374 = vector.extract_strided_slice %24 {offsets = [14, 0], sizes = [1, 32], strides = [1, 1]} : vector<32x32xf32> to vector<1x32xf32>
    %375 = vector.shape_cast %374 : vector<1x32xf32> to vector<1x1x32xf32>
    %376 = vector.broadcast %368 : vector<2x16x1xf32> to vector<2x16x32xf32>
    %377 = vector.broadcast %375 : vector<1x1x32xf32> to vector<2x16x32xf32>
    %378 = arith.mulf %376, %377 : vector<2x16x32xf32>
    %379 = arith.addf %342, %378 : vector<2x16x32xf32>
    %380 = vector.extract_strided_slice %24 {offsets = [15, 0], sizes = [1, 32], strides = [1, 1]} : vector<32x32xf32> to vector<1x32xf32>
    %381 = vector.shape_cast %380 : vector<1x32xf32> to vector<1x1x32xf32>
    %382 = vector.broadcast %373 : vector<2x16x1xf32> to vector<2x16x32xf32>
    %383 = vector.broadcast %381 : vector<1x1x32xf32> to vector<2x16x32xf32>
    %384 = arith.mulf %382, %383 : vector<2x16x32xf32>
    %385 = arith.addf %379, %384 : vector<2x16x32xf32>
    %386 = vector.extract_strided_slice %34 {offsets = [0, 0, 16], sizes = [2, 16, 1], strides = [1, 1, 1]} : vector<2x16x32xf32> to vector<2x16x1xf32>
    %387 = vector.extract_strided_slice %39 {offsets = [0, 16, 0], sizes = [2, 1, 16], strides = [1, 1, 1]} : vector<2x32x16xf32> to vector<2x1x16xf32>
    %388 = vector.broadcast %386 : vector<2x16x1xf32> to vector<2x16x16xf32>
    %389 = vector.broadcast %387 : vector<2x1x16xf32> to vector<2x16x16xf32>
    %390 = arith.mulf %388, %389 : vector<2x16x16xf32>
    %391 = vector.extract_strided_slice %34 {offsets = [0, 0, 17], sizes = [2, 16, 1], strides = [1, 1, 1]} : vector<2x16x32xf32> to vector<2x16x1xf32>
    %392 = vector.extract_strided_slice %39 {offsets = [0, 17, 0], sizes = [2, 1, 16], strides = [1, 1, 1]} : vector<2x32x16xf32> to vector<2x1x16xf32>
    %393 = vector.broadcast %391 : vector<2x16x1xf32> to vector<2x16x16xf32>
    %394 = vector.broadcast %392 : vector<2x1x16xf32> to vector<2x16x16xf32>
    %395 = arith.mulf %393, %394 : vector<2x16x16xf32>
    %396 = arith.addf %390, %395 : vector<2x16x16xf32>
    %cst_57 = arith.constant dense<0xFF800000> : vector<2x16xf32>
    %397 = vector.multi_reduction <maximumf>, %396, %cst_57 [2] : vector<2x16x16xf32> to vector<2x16xf32>
    %398 = vector.shape_cast %397 : vector<2x16xf32> to vector<2x16x1xf32>
    %399 = vector.broadcast %398 : vector<2x16x1xf32> to vector<2x16x16xf32>
    %400 = arith.subf %396, %399 : vector<2x16x16xf32>
    %401 = math.exp %400 : vector<2x16x16xf32>
    %cst_58 = arith.constant dense<0.000000e+00> : vector<2x16xf32>
    %402 = vector.multi_reduction <add>, %401, %cst_58 [2] : vector<2x16x16xf32> to vector<2x16xf32>
    %403 = vector.shape_cast %402 : vector<2x16xf32> to vector<2x16x1xf32>
    %404 = tpu.reciprocal %403 {approx = true} : vector<2x16x1xf32> -> vector<2x16x1xf32>
    %405 = vector.broadcast %404 : vector<2x16x1xf32> to vector<2x16x16xf32>
    %406 = arith.mulf %401, %405 : vector<2x16x16xf32>
    %407 = vector.extract_strided_slice %40 {offsets = [0, 16, 0], sizes = [2, 1, 16], strides = [1, 1, 1]} : vector<2x32x16xf32> to vector<2x1x16xf32>
    %408 = vector.broadcast %407 : vector<2x1x16xf32> to vector<2x16x16xf32>
    %409 = arith.mulf %406, %408 : vector<2x16x16xf32>
    %cst_59 = arith.constant dense<0.000000e+00> : vector<2x16xf32>
    %410 = vector.multi_reduction <add>, %409, %cst_59 [2] : vector<2x16x16xf32> to vector<2x16xf32>
    %411 = vector.shape_cast %410 : vector<2x16xf32> to vector<2x16x1xf32>
    %412 = vector.extract_strided_slice %40 {offsets = [0, 17, 0], sizes = [2, 1, 16], strides = [1, 1, 1]} : vector<2x32x16xf32> to vector<2x1x16xf32>
    %413 = vector.broadcast %412 : vector<2x1x16xf32> to vector<2x16x16xf32>
    %414 = arith.mulf %406, %413 : vector<2x16x16xf32>
    %cst_60 = arith.constant dense<0.000000e+00> : vector<2x16xf32>
    %415 = vector.multi_reduction <add>, %414, %cst_60 [2] : vector<2x16x16xf32> to vector<2x16xf32>
    %416 = vector.shape_cast %415 : vector<2x16xf32> to vector<2x16x1xf32>
    %417 = vector.extract_strided_slice %24 {offsets = [16, 0], sizes = [1, 32], strides = [1, 1]} : vector<32x32xf32> to vector<1x32xf32>
    %418 = vector.shape_cast %417 : vector<1x32xf32> to vector<1x1x32xf32>
    %419 = vector.broadcast %411 : vector<2x16x1xf32> to vector<2x16x32xf32>
    %420 = vector.broadcast %418 : vector<1x1x32xf32> to vector<2x16x32xf32>
    %421 = arith.mulf %419, %420 : vector<2x16x32xf32>
    %422 = arith.addf %385, %421 : vector<2x16x32xf32>
    %423 = vector.extract_strided_slice %24 {offsets = [17, 0], sizes = [1, 32], strides = [1, 1]} : vector<32x32xf32> to vector<1x32xf32>
    %424 = vector.shape_cast %423 : vector<1x32xf32> to vector<1x1x32xf32>
    %425 = vector.broadcast %416 : vector<2x16x1xf32> to vector<2x16x32xf32>
    %426 = vector.broadcast %424 : vector<1x1x32xf32> to vector<2x16x32xf32>
    %427 = arith.mulf %425, %426 : vector<2x16x32xf32>
    %428 = arith.addf %422, %427 : vector<2x16x32xf32>
    %429 = vector.extract_strided_slice %34 {offsets = [0, 0, 18], sizes = [2, 16, 1], strides = [1, 1, 1]} : vector<2x16x32xf32> to vector<2x16x1xf32>
    %430 = vector.extract_strided_slice %39 {offsets = [0, 18, 0], sizes = [2, 1, 16], strides = [1, 1, 1]} : vector<2x32x16xf32> to vector<2x1x16xf32>
    %431 = vector.broadcast %429 : vector<2x16x1xf32> to vector<2x16x16xf32>
    %432 = vector.broadcast %430 : vector<2x1x16xf32> to vector<2x16x16xf32>
    %433 = arith.mulf %431, %432 : vector<2x16x16xf32>
    %434 = vector.extract_strided_slice %34 {offsets = [0, 0, 19], sizes = [2, 16, 1], strides = [1, 1, 1]} : vector<2x16x32xf32> to vector<2x16x1xf32>
    %435 = vector.extract_strided_slice %39 {offsets = [0, 19, 0], sizes = [2, 1, 16], strides = [1, 1, 1]} : vector<2x32x16xf32> to vector<2x1x16xf32>
    %436 = vector.broadcast %434 : vector<2x16x1xf32> to vector<2x16x16xf32>
    %437 = vector.broadcast %435 : vector<2x1x16xf32> to vector<2x16x16xf32>
    %438 = arith.mulf %436, %437 : vector<2x16x16xf32>
    %439 = arith.addf %433, %438 : vector<2x16x16xf32>
    %cst_61 = arith.constant dense<0xFF800000> : vector<2x16xf32>
    %440 = vector.multi_reduction <maximumf>, %439, %cst_61 [2] : vector<2x16x16xf32> to vector<2x16xf32>
    %441 = vector.shape_cast %440 : vector<2x16xf32> to vector<2x16x1xf32>
    %442 = vector.broadcast %441 : vector<2x16x1xf32> to vector<2x16x16xf32>
    %443 = arith.subf %439, %442 : vector<2x16x16xf32>
    %444 = math.exp %443 : vector<2x16x16xf32>
    %cst_62 = arith.constant dense<0.000000e+00> : vector<2x16xf32>
    %445 = vector.multi_reduction <add>, %444, %cst_62 [2] : vector<2x16x16xf32> to vector<2x16xf32>
    %446 = vector.shape_cast %445 : vector<2x16xf32> to vector<2x16x1xf32>
    %447 = tpu.reciprocal %446 {approx = true} : vector<2x16x1xf32> -> vector<2x16x1xf32>
    %448 = vector.broadcast %447 : vector<2x16x1xf32> to vector<2x16x16xf32>
    %449 = arith.mulf %444, %448 : vector<2x16x16xf32>
    %450 = vector.extract_strided_slice %40 {offsets = [0, 18, 0], sizes = [2, 1, 16], strides = [1, 1, 1]} : vector<2x32x16xf32> to vector<2x1x16xf32>
    %451 = vector.broadcast %450 : vector<2x1x16xf32> to vector<2x16x16xf32>
    %452 = arith.mulf %449, %451 : vector<2x16x16xf32>
    %cst_63 = arith.constant dense<0.000000e+00> : vector<2x16xf32>
    %453 = vector.multi_reduction <add>, %452, %cst_63 [2] : vector<2x16x16xf32> to vector<2x16xf32>
    %454 = vector.shape_cast %453 : vector<2x16xf32> to vector<2x16x1xf32>
    %455 = vector.extract_strided_slice %40 {offsets = [0, 19, 0], sizes = [2, 1, 16], strides = [1, 1, 1]} : vector<2x32x16xf32> to vector<2x1x16xf32>
    %456 = vector.broadcast %455 : vector<2x1x16xf32> to vector<2x16x16xf32>
    %457 = arith.mulf %449, %456 : vector<2x16x16xf32>
    %cst_64 = arith.constant dense<0.000000e+00> : vector<2x16xf32>
    %458 = vector.multi_reduction <add>, %457, %cst_64 [2] : vector<2x16x16xf32> to vector<2x16xf32>
    %459 = vector.shape_cast %458 : vector<2x16xf32> to vector<2x16x1xf32>
    %460 = vector.extract_strided_slice %24 {offsets = [18, 0], sizes = [1, 32], strides = [1, 1]} : vector<32x32xf32> to vector<1x32xf32>
    %461 = vector.shape_cast %460 : vector<1x32xf32> to vector<1x1x32xf32>
    %462 = vector.broadcast %454 : vector<2x16x1xf32> to vector<2x16x32xf32>
    %463 = vector.broadcast %461 : vector<1x1x32xf32> to vector<2x16x32xf32>
    %464 = arith.mulf %462, %463 : vector<2x16x32xf32>
    %465 = arith.addf %428, %464 : vector<2x16x32xf32>
    %466 = vector.extract_strided_slice %24 {offsets = [19, 0], sizes = [1, 32], strides = [1, 1]} : vector<32x32xf32> to vector<1x32xf32>
    %467 = vector.shape_cast %466 : vector<1x32xf32> to vector<1x1x32xf32>
    %468 = vector.broadcast %459 : vector<2x16x1xf32> to vector<2x16x32xf32>
    %469 = vector.broadcast %467 : vector<1x1x32xf32> to vector<2x16x32xf32>
    %470 = arith.mulf %468, %469 : vector<2x16x32xf32>
    %471 = arith.addf %465, %470 : vector<2x16x32xf32>
    %472 = vector.extract_strided_slice %34 {offsets = [0, 0, 20], sizes = [2, 16, 1], strides = [1, 1, 1]} : vector<2x16x32xf32> to vector<2x16x1xf32>
    %473 = vector.extract_strided_slice %39 {offsets = [0, 20, 0], sizes = [2, 1, 16], strides = [1, 1, 1]} : vector<2x32x16xf32> to vector<2x1x16xf32>
    %474 = vector.broadcast %472 : vector<2x16x1xf32> to vector<2x16x16xf32>
    %475 = vector.broadcast %473 : vector<2x1x16xf32> to vector<2x16x16xf32>
    %476 = arith.mulf %474, %475 : vector<2x16x16xf32>
    %477 = vector.extract_strided_slice %34 {offsets = [0, 0, 21], sizes = [2, 16, 1], strides = [1, 1, 1]} : vector<2x16x32xf32> to vector<2x16x1xf32>
    %478 = vector.extract_strided_slice %39 {offsets = [0, 21, 0], sizes = [2, 1, 16], strides = [1, 1, 1]} : vector<2x32x16xf32> to vector<2x1x16xf32>
    %479 = vector.broadcast %477 : vector<2x16x1xf32> to vector<2x16x16xf32>
    %480 = vector.broadcast %478 : vector<2x1x16xf32> to vector<2x16x16xf32>
    %481 = arith.mulf %479, %480 : vector<2x16x16xf32>
    %482 = arith.addf %476, %481 : vector<2x16x16xf32>
    %cst_65 = arith.constant dense<0xFF800000> : vector<2x16xf32>
    %483 = vector.multi_reduction <maximumf>, %482, %cst_65 [2] : vector<2x16x16xf32> to vector<2x16xf32>
    %484 = vector.shape_cast %483 : vector<2x16xf32> to vector<2x16x1xf32>
    %485 = vector.broadcast %484 : vector<2x16x1xf32> to vector<2x16x16xf32>
    %486 = arith.subf %482, %485 : vector<2x16x16xf32>
    %487 = math.exp %486 : vector<2x16x16xf32>
    %cst_66 = arith.constant dense<0.000000e+00> : vector<2x16xf32>
    %488 = vector.multi_reduction <add>, %487, %cst_66 [2] : vector<2x16x16xf32> to vector<2x16xf32>
    %489 = vector.shape_cast %488 : vector<2x16xf32> to vector<2x16x1xf32>
    %490 = tpu.reciprocal %489 {approx = true} : vector<2x16x1xf32> -> vector<2x16x1xf32>
    %491 = vector.broadcast %490 : vector<2x16x1xf32> to vector<2x16x16xf32>
    %492 = arith.mulf %487, %491 : vector<2x16x16xf32>
    %493 = vector.extract_strided_slice %40 {offsets = [0, 20, 0], sizes = [2, 1, 16], strides = [1, 1, 1]} : vector<2x32x16xf32> to vector<2x1x16xf32>
    %494 = vector.broadcast %493 : vector<2x1x16xf32> to vector<2x16x16xf32>
    %495 = arith.mulf %492, %494 : vector<2x16x16xf32>
    %cst_67 = arith.constant dense<0.000000e+00> : vector<2x16xf32>
    %496 = vector.multi_reduction <add>, %495, %cst_67 [2] : vector<2x16x16xf32> to vector<2x16xf32>
    %497 = vector.shape_cast %496 : vector<2x16xf32> to vector<2x16x1xf32>
    %498 = vector.extract_strided_slice %40 {offsets = [0, 21, 0], sizes = [2, 1, 16], strides = [1, 1, 1]} : vector<2x32x16xf32> to vector<2x1x16xf32>
    %499 = vector.broadcast %498 : vector<2x1x16xf32> to vector<2x16x16xf32>
    %500 = arith.mulf %492, %499 : vector<2x16x16xf32>
    %cst_68 = arith.constant dense<0.000000e+00> : vector<2x16xf32>
    %501 = vector.multi_reduction <add>, %500, %cst_68 [2] : vector<2x16x16xf32> to vector<2x16xf32>
    %502 = vector.shape_cast %501 : vector<2x16xf32> to vector<2x16x1xf32>
    %503 = vector.extract_strided_slice %24 {offsets = [20, 0], sizes = [1, 32], strides = [1, 1]} : vector<32x32xf32> to vector<1x32xf32>
    %504 = vector.shape_cast %503 : vector<1x32xf32> to vector<1x1x32xf32>
    %505 = vector.broadcast %497 : vector<2x16x1xf32> to vector<2x16x32xf32>
    %506 = vector.broadcast %504 : vector<1x1x32xf32> to vector<2x16x32xf32>
    %507 = arith.mulf %505, %506 : vector<2x16x32xf32>
    %508 = arith.addf %471, %507 : vector<2x16x32xf32>
    %509 = vector.extract_strided_slice %24 {offsets = [21, 0], sizes = [1, 32], strides = [1, 1]} : vector<32x32xf32> to vector<1x32xf32>
    %510 = vector.shape_cast %509 : vector<1x32xf32> to vector<1x1x32xf32>
    %511 = vector.broadcast %502 : vector<2x16x1xf32> to vector<2x16x32xf32>
    %512 = vector.broadcast %510 : vector<1x1x32xf32> to vector<2x16x32xf32>
    %513 = arith.mulf %511, %512 : vector<2x16x32xf32>
    %514 = arith.addf %508, %513 : vector<2x16x32xf32>
    %515 = vector.extract_strided_slice %34 {offsets = [0, 0, 22], sizes = [2, 16, 1], strides = [1, 1, 1]} : vector<2x16x32xf32> to vector<2x16x1xf32>
    %516 = vector.extract_strided_slice %39 {offsets = [0, 22, 0], sizes = [2, 1, 16], strides = [1, 1, 1]} : vector<2x32x16xf32> to vector<2x1x16xf32>
    %517 = vector.broadcast %515 : vector<2x16x1xf32> to vector<2x16x16xf32>
    %518 = vector.broadcast %516 : vector<2x1x16xf32> to vector<2x16x16xf32>
    %519 = arith.mulf %517, %518 : vector<2x16x16xf32>
    %520 = vector.extract_strided_slice %34 {offsets = [0, 0, 23], sizes = [2, 16, 1], strides = [1, 1, 1]} : vector<2x16x32xf32> to vector<2x16x1xf32>
    %521 = vector.extract_strided_slice %39 {offsets = [0, 23, 0], sizes = [2, 1, 16], strides = [1, 1, 1]} : vector<2x32x16xf32> to vector<2x1x16xf32>
    %522 = vector.broadcast %520 : vector<2x16x1xf32> to vector<2x16x16xf32>
    %523 = vector.broadcast %521 : vector<2x1x16xf32> to vector<2x16x16xf32>
    %524 = arith.mulf %522, %523 : vector<2x16x16xf32>
    %525 = arith.addf %519, %524 : vector<2x16x16xf32>
    %cst_69 = arith.constant dense<0xFF800000> : vector<2x16xf32>
    %526 = vector.multi_reduction <maximumf>, %525, %cst_69 [2] : vector<2x16x16xf32> to vector<2x16xf32>
    %527 = vector.shape_cast %526 : vector<2x16xf32> to vector<2x16x1xf32>
    %528 = vector.broadcast %527 : vector<2x16x1xf32> to vector<2x16x16xf32>
    %529 = arith.subf %525, %528 : vector<2x16x16xf32>
    %530 = math.exp %529 : vector<2x16x16xf32>
    %cst_70 = arith.constant dense<0.000000e+00> : vector<2x16xf32>
    %531 = vector.multi_reduction <add>, %530, %cst_70 [2] : vector<2x16x16xf32> to vector<2x16xf32>
    %532 = vector.shape_cast %531 : vector<2x16xf32> to vector<2x16x1xf32>
    %533 = tpu.reciprocal %532 {approx = true} : vector<2x16x1xf32> -> vector<2x16x1xf32>
    %534 = vector.broadcast %533 : vector<2x16x1xf32> to vector<2x16x16xf32>
    %535 = arith.mulf %530, %534 : vector<2x16x16xf32>
    %536 = vector.extract_strided_slice %40 {offsets = [0, 22, 0], sizes = [2, 1, 16], strides = [1, 1, 1]} : vector<2x32x16xf32> to vector<2x1x16xf32>
    %537 = vector.broadcast %536 : vector<2x1x16xf32> to vector<2x16x16xf32>
    %538 = arith.mulf %535, %537 : vector<2x16x16xf32>
    %cst_71 = arith.constant dense<0.000000e+00> : vector<2x16xf32>
    %539 = vector.multi_reduction <add>, %538, %cst_71 [2] : vector<2x16x16xf32> to vector<2x16xf32>
    %540 = vector.shape_cast %539 : vector<2x16xf32> to vector<2x16x1xf32>
    %541 = vector.extract_strided_slice %40 {offsets = [0, 23, 0], sizes = [2, 1, 16], strides = [1, 1, 1]} : vector<2x32x16xf32> to vector<2x1x16xf32>
    %542 = vector.broadcast %541 : vector<2x1x16xf32> to vector<2x16x16xf32>
    %543 = arith.mulf %535, %542 : vector<2x16x16xf32>
    %cst_72 = arith.constant dense<0.000000e+00> : vector<2x16xf32>
    %544 = vector.multi_reduction <add>, %543, %cst_72 [2] : vector<2x16x16xf32> to vector<2x16xf32>
    %545 = vector.shape_cast %544 : vector<2x16xf32> to vector<2x16x1xf32>
    %546 = vector.extract_strided_slice %24 {offsets = [22, 0], sizes = [1, 32], strides = [1, 1]} : vector<32x32xf32> to vector<1x32xf32>
    %547 = vector.shape_cast %546 : vector<1x32xf32> to vector<1x1x32xf32>
    %548 = vector.broadcast %540 : vector<2x16x1xf32> to vector<2x16x32xf32>
    %549 = vector.broadcast %547 : vector<1x1x32xf32> to vector<2x16x32xf32>
    %550 = arith.mulf %548, %549 : vector<2x16x32xf32>
    %551 = arith.addf %514, %550 : vector<2x16x32xf32>
    %552 = vector.extract_strided_slice %24 {offsets = [23, 0], sizes = [1, 32], strides = [1, 1]} : vector<32x32xf32> to vector<1x32xf32>
    %553 = vector.shape_cast %552 : vector<1x32xf32> to vector<1x1x32xf32>
    %554 = vector.broadcast %545 : vector<2x16x1xf32> to vector<2x16x32xf32>
    %555 = vector.broadcast %553 : vector<1x1x32xf32> to vector<2x16x32xf32>
    %556 = arith.mulf %554, %555 : vector<2x16x32xf32>
    %557 = arith.addf %551, %556 : vector<2x16x32xf32>
    %558 = vector.extract_strided_slice %34 {offsets = [0, 0, 24], sizes = [2, 16, 1], strides = [1, 1, 1]} : vector<2x16x32xf32> to vector<2x16x1xf32>
    %559 = vector.extract_strided_slice %39 {offsets = [0, 24, 0], sizes = [2, 1, 16], strides = [1, 1, 1]} : vector<2x32x16xf32> to vector<2x1x16xf32>
    %560 = vector.broadcast %558 : vector<2x16x1xf32> to vector<2x16x16xf32>
    %561 = vector.broadcast %559 : vector<2x1x16xf32> to vector<2x16x16xf32>
    %562 = arith.mulf %560, %561 : vector<2x16x16xf32>
    %563 = vector.extract_strided_slice %34 {offsets = [0, 0, 25], sizes = [2, 16, 1], strides = [1, 1, 1]} : vector<2x16x32xf32> to vector<2x16x1xf32>
    %564 = vector.extract_strided_slice %39 {offsets = [0, 25, 0], sizes = [2, 1, 16], strides = [1, 1, 1]} : vector<2x32x16xf32> to vector<2x1x16xf32>
    %565 = vector.broadcast %563 : vector<2x16x1xf32> to vector<2x16x16xf32>
    %566 = vector.broadcast %564 : vector<2x1x16xf32> to vector<2x16x16xf32>
    %567 = arith.mulf %565, %566 : vector<2x16x16xf32>
    %568 = arith.addf %562, %567 : vector<2x16x16xf32>
    %cst_73 = arith.constant dense<0xFF800000> : vector<2x16xf32>
    %569 = vector.multi_reduction <maximumf>, %568, %cst_73 [2] : vector<2x16x16xf32> to vector<2x16xf32>
    %570 = vector.shape_cast %569 : vector<2x16xf32> to vector<2x16x1xf32>
    %571 = vector.broadcast %570 : vector<2x16x1xf32> to vector<2x16x16xf32>
    %572 = arith.subf %568, %571 : vector<2x16x16xf32>
    %573 = math.exp %572 : vector<2x16x16xf32>
    %cst_74 = arith.constant dense<0.000000e+00> : vector<2x16xf32>
    %574 = vector.multi_reduction <add>, %573, %cst_74 [2] : vector<2x16x16xf32> to vector<2x16xf32>
    %575 = vector.shape_cast %574 : vector<2x16xf32> to vector<2x16x1xf32>
    %576 = tpu.reciprocal %575 {approx = true} : vector<2x16x1xf32> -> vector<2x16x1xf32>
    %577 = vector.broadcast %576 : vector<2x16x1xf32> to vector<2x16x16xf32>
    %578 = arith.mulf %573, %577 : vector<2x16x16xf32>
    %579 = vector.extract_strided_slice %40 {offsets = [0, 24, 0], sizes = [2, 1, 16], strides = [1, 1, 1]} : vector<2x32x16xf32> to vector<2x1x16xf32>
    %580 = vector.broadcast %579 : vector<2x1x16xf32> to vector<2x16x16xf32>
    %581 = arith.mulf %578, %580 : vector<2x16x16xf32>
    %cst_75 = arith.constant dense<0.000000e+00> : vector<2x16xf32>
    %582 = vector.multi_reduction <add>, %581, %cst_75 [2] : vector<2x16x16xf32> to vector<2x16xf32>
    %583 = vector.shape_cast %582 : vector<2x16xf32> to vector<2x16x1xf32>
    %584 = vector.extract_strided_slice %40 {offsets = [0, 25, 0], sizes = [2, 1, 16], strides = [1, 1, 1]} : vector<2x32x16xf32> to vector<2x1x16xf32>
    %585 = vector.broadcast %584 : vector<2x1x16xf32> to vector<2x16x16xf32>
    %586 = arith.mulf %578, %585 : vector<2x16x16xf32>
    %cst_76 = arith.constant dense<0.000000e+00> : vector<2x16xf32>
    %587 = vector.multi_reduction <add>, %586, %cst_76 [2] : vector<2x16x16xf32> to vector<2x16xf32>
    %588 = vector.shape_cast %587 : vector<2x16xf32> to vector<2x16x1xf32>
    %589 = vector.extract_strided_slice %24 {offsets = [24, 0], sizes = [1, 32], strides = [1, 1]} : vector<32x32xf32> to vector<1x32xf32>
    %590 = vector.shape_cast %589 : vector<1x32xf32> to vector<1x1x32xf32>
    %591 = vector.broadcast %583 : vector<2x16x1xf32> to vector<2x16x32xf32>
    %592 = vector.broadcast %590 : vector<1x1x32xf32> to vector<2x16x32xf32>
    %593 = arith.mulf %591, %592 : vector<2x16x32xf32>
    %594 = arith.addf %557, %593 : vector<2x16x32xf32>
    %595 = vector.extract_strided_slice %24 {offsets = [25, 0], sizes = [1, 32], strides = [1, 1]} : vector<32x32xf32> to vector<1x32xf32>
    %596 = vector.shape_cast %595 : vector<1x32xf32> to vector<1x1x32xf32>
    %597 = vector.broadcast %588 : vector<2x16x1xf32> to vector<2x16x32xf32>
    %598 = vector.broadcast %596 : vector<1x1x32xf32> to vector<2x16x32xf32>
    %599 = arith.mulf %597, %598 : vector<2x16x32xf32>
    %600 = arith.addf %594, %599 : vector<2x16x32xf32>
    %601 = vector.extract_strided_slice %34 {offsets = [0, 0, 26], sizes = [2, 16, 1], strides = [1, 1, 1]} : vector<2x16x32xf32> to vector<2x16x1xf32>
    %602 = vector.extract_strided_slice %39 {offsets = [0, 26, 0], sizes = [2, 1, 16], strides = [1, 1, 1]} : vector<2x32x16xf32> to vector<2x1x16xf32>
    %603 = vector.broadcast %601 : vector<2x16x1xf32> to vector<2x16x16xf32>
    %604 = vector.broadcast %602 : vector<2x1x16xf32> to vector<2x16x16xf32>
    %605 = arith.mulf %603, %604 : vector<2x16x16xf32>
    %606 = vector.extract_strided_slice %34 {offsets = [0, 0, 27], sizes = [2, 16, 1], strides = [1, 1, 1]} : vector<2x16x32xf32> to vector<2x16x1xf32>
    %607 = vector.extract_strided_slice %39 {offsets = [0, 27, 0], sizes = [2, 1, 16], strides = [1, 1, 1]} : vector<2x32x16xf32> to vector<2x1x16xf32>
    %608 = vector.broadcast %606 : vector<2x16x1xf32> to vector<2x16x16xf32>
    %609 = vector.broadcast %607 : vector<2x1x16xf32> to vector<2x16x16xf32>
    %610 = arith.mulf %608, %609 : vector<2x16x16xf32>
    %611 = arith.addf %605, %610 : vector<2x16x16xf32>
    %cst_77 = arith.constant dense<0xFF800000> : vector<2x16xf32>
    %612 = vector.multi_reduction <maximumf>, %611, %cst_77 [2] : vector<2x16x16xf32> to vector<2x16xf32>
    %613 = vector.shape_cast %612 : vector<2x16xf32> to vector<2x16x1xf32>
    %614 = vector.broadcast %613 : vector<2x16x1xf32> to vector<2x16x16xf32>
    %615 = arith.subf %611, %614 : vector<2x16x16xf32>
    %616 = math.exp %615 : vector<2x16x16xf32>
    %cst_78 = arith.constant dense<0.000000e+00> : vector<2x16xf32>
    %617 = vector.multi_reduction <add>, %616, %cst_78 [2] : vector<2x16x16xf32> to vector<2x16xf32>
    %618 = vector.shape_cast %617 : vector<2x16xf32> to vector<2x16x1xf32>
    %619 = tpu.reciprocal %618 {approx = true} : vector<2x16x1xf32> -> vector<2x16x1xf32>
    %620 = vector.broadcast %619 : vector<2x16x1xf32> to vector<2x16x16xf32>
    %621 = arith.mulf %616, %620 : vector<2x16x16xf32>
    %622 = vector.extract_strided_slice %40 {offsets = [0, 26, 0], sizes = [2, 1, 16], strides = [1, 1, 1]} : vector<2x32x16xf32> to vector<2x1x16xf32>
    %623 = vector.broadcast %622 : vector<2x1x16xf32> to vector<2x16x16xf32>
    %624 = arith.mulf %621, %623 : vector<2x16x16xf32>
    %cst_79 = arith.constant dense<0.000000e+00> : vector<2x16xf32>
    %625 = vector.multi_reduction <add>, %624, %cst_79 [2] : vector<2x16x16xf32> to vector<2x16xf32>
    %626 = vector.shape_cast %625 : vector<2x16xf32> to vector<2x16x1xf32>
    %627 = vector.extract_strided_slice %40 {offsets = [0, 27, 0], sizes = [2, 1, 16], strides = [1, 1, 1]} : vector<2x32x16xf32> to vector<2x1x16xf32>
    %628 = vector.broadcast %627 : vector<2x1x16xf32> to vector<2x16x16xf32>
    %629 = arith.mulf %621, %628 : vector<2x16x16xf32>
    %cst_80 = arith.constant dense<0.000000e+00> : vector<2x16xf32>
    %630 = vector.multi_reduction <add>, %629, %cst_80 [2] : vector<2x16x16xf32> to vector<2x16xf32>
    %631 = vector.shape_cast %630 : vector<2x16xf32> to vector<2x16x1xf32>
    %632 = vector.extract_strided_slice %24 {offsets = [26, 0], sizes = [1, 32], strides = [1, 1]} : vector<32x32xf32> to vector<1x32xf32>
    %633 = vector.shape_cast %632 : vector<1x32xf32> to vector<1x1x32xf32>
    %634 = vector.broadcast %626 : vector<2x16x1xf32> to vector<2x16x32xf32>
    %635 = vector.broadcast %633 : vector<1x1x32xf32> to vector<2x16x32xf32>
    %636 = arith.mulf %634, %635 : vector<2x16x32xf32>
    %637 = arith.addf %600, %636 : vector<2x16x32xf32>
    %638 = vector.extract_strided_slice %24 {offsets = [27, 0], sizes = [1, 32], strides = [1, 1]} : vector<32x32xf32> to vector<1x32xf32>
    %639 = vector.shape_cast %638 : vector<1x32xf32> to vector<1x1x32xf32>
    %640 = vector.broadcast %631 : vector<2x16x1xf32> to vector<2x16x32xf32>
    %641 = vector.broadcast %639 : vector<1x1x32xf32> to vector<2x16x32xf32>
    %642 = arith.mulf %640, %641 : vector<2x16x32xf32>
    %643 = arith.addf %637, %642 : vector<2x16x32xf32>
    %644 = vector.extract_strided_slice %34 {offsets = [0, 0, 28], sizes = [2, 16, 1], strides = [1, 1, 1]} : vector<2x16x32xf32> to vector<2x16x1xf32>
    %645 = vector.extract_strided_slice %39 {offsets = [0, 28, 0], sizes = [2, 1, 16], strides = [1, 1, 1]} : vector<2x32x16xf32> to vector<2x1x16xf32>
    %646 = vector.broadcast %644 : vector<2x16x1xf32> to vector<2x16x16xf32>
    %647 = vector.broadcast %645 : vector<2x1x16xf32> to vector<2x16x16xf32>
    %648 = arith.mulf %646, %647 : vector<2x16x16xf32>
    %649 = vector.extract_strided_slice %34 {offsets = [0, 0, 29], sizes = [2, 16, 1], strides = [1, 1, 1]} : vector<2x16x32xf32> to vector<2x16x1xf32>
    %650 = vector.extract_strided_slice %39 {offsets = [0, 29, 0], sizes = [2, 1, 16], strides = [1, 1, 1]} : vector<2x32x16xf32> to vector<2x1x16xf32>
    %651 = vector.broadcast %649 : vector<2x16x1xf32> to vector<2x16x16xf32>
    %652 = vector.broadcast %650 : vector<2x1x16xf32> to vector<2x16x16xf32>
    %653 = arith.mulf %651, %652 : vector<2x16x16xf32>
    %654 = arith.addf %648, %653 : vector<2x16x16xf32>
    %cst_81 = arith.constant dense<0xFF800000> : vector<2x16xf32>
    %655 = vector.multi_reduction <maximumf>, %654, %cst_81 [2] : vector<2x16x16xf32> to vector<2x16xf32>
    %656 = vector.shape_cast %655 : vector<2x16xf32> to vector<2x16x1xf32>
    %657 = vector.broadcast %656 : vector<2x16x1xf32> to vector<2x16x16xf32>
    %658 = arith.subf %654, %657 : vector<2x16x16xf32>
    %659 = math.exp %658 : vector<2x16x16xf32>
    %cst_82 = arith.constant dense<0.000000e+00> : vector<2x16xf32>
    %660 = vector.multi_reduction <add>, %659, %cst_82 [2] : vector<2x16x16xf32> to vector<2x16xf32>
    %661 = vector.shape_cast %660 : vector<2x16xf32> to vector<2x16x1xf32>
    %662 = tpu.reciprocal %661 {approx = true} : vector<2x16x1xf32> -> vector<2x16x1xf32>
    %663 = vector.broadcast %662 : vector<2x16x1xf32> to vector<2x16x16xf32>
    %664 = arith.mulf %659, %663 : vector<2x16x16xf32>
    %665 = vector.extract_strided_slice %40 {offsets = [0, 28, 0], sizes = [2, 1, 16], strides = [1, 1, 1]} : vector<2x32x16xf32> to vector<2x1x16xf32>
    %666 = vector.broadcast %665 : vector<2x1x16xf32> to vector<2x16x16xf32>
    %667 = arith.mulf %664, %666 : vector<2x16x16xf32>
    %cst_83 = arith.constant dense<0.000000e+00> : vector<2x16xf32>
    %668 = vector.multi_reduction <add>, %667, %cst_83 [2] : vector<2x16x16xf32> to vector<2x16xf32>
    %669 = vector.shape_cast %668 : vector<2x16xf32> to vector<2x16x1xf32>
    %670 = vector.extract_strided_slice %40 {offsets = [0, 29, 0], sizes = [2, 1, 16], strides = [1, 1, 1]} : vector<2x32x16xf32> to vector<2x1x16xf32>
    %671 = vector.broadcast %670 : vector<2x1x16xf32> to vector<2x16x16xf32>
    %672 = arith.mulf %664, %671 : vector<2x16x16xf32>
    %cst_84 = arith.constant dense<0.000000e+00> : vector<2x16xf32>
    %673 = vector.multi_reduction <add>, %672, %cst_84 [2] : vector<2x16x16xf32> to vector<2x16xf32>
    %674 = vector.shape_cast %673 : vector<2x16xf32> to vector<2x16x1xf32>
    %675 = vector.extract_strided_slice %24 {offsets = [28, 0], sizes = [1, 32], strides = [1, 1]} : vector<32x32xf32> to vector<1x32xf32>
    %676 = vector.shape_cast %675 : vector<1x32xf32> to vector<1x1x32xf32>
    %677 = vector.broadcast %669 : vector<2x16x1xf32> to vector<2x16x32xf32>
    %678 = vector.broadcast %676 : vector<1x1x32xf32> to vector<2x16x32xf32>
    %679 = arith.mulf %677, %678 : vector<2x16x32xf32>
    %680 = arith.addf %643, %679 : vector<2x16x32xf32>
    %681 = vector.extract_strided_slice %24 {offsets = [29, 0], sizes = [1, 32], strides = [1, 1]} : vector<32x32xf32> to vector<1x32xf32>
    %682 = vector.shape_cast %681 : vector<1x32xf32> to vector<1x1x32xf32>
    %683 = vector.broadcast %674 : vector<2x16x1xf32> to vector<2x16x32xf32>
    %684 = vector.broadcast %682 : vector<1x1x32xf32> to vector<2x16x32xf32>
    %685 = arith.mulf %683, %684 : vector<2x16x32xf32>
    %686 = arith.addf %680, %685 : vector<2x16x32xf32>
    %687 = vector.extract_strided_slice %34 {offsets = [0, 0, 30], sizes = [2, 16, 1], strides = [1, 1, 1]} : vector<2x16x32xf32> to vector<2x16x1xf32>
    %688 = vector.extract_strided_slice %39 {offsets = [0, 30, 0], sizes = [2, 1, 16], strides = [1, 1, 1]} : vector<2x32x16xf32> to vector<2x1x16xf32>
    %689 = vector.broadcast %687 : vector<2x16x1xf32> to vector<2x16x16xf32>
    %690 = vector.broadcast %688 : vector<2x1x16xf32> to vector<2x16x16xf32>
    %691 = arith.mulf %689, %690 : vector<2x16x16xf32>
    %692 = vector.extract_strided_slice %34 {offsets = [0, 0, 31], sizes = [2, 16, 1], strides = [1, 1, 1]} : vector<2x16x32xf32> to vector<2x16x1xf32>
    %693 = vector.extract_strided_slice %39 {offsets = [0, 31, 0], sizes = [2, 1, 16], strides = [1, 1, 1]} : vector<2x32x16xf32> to vector<2x1x16xf32>
    %694 = vector.broadcast %692 : vector<2x16x1xf32> to vector<2x16x16xf32>
    %695 = vector.broadcast %693 : vector<2x1x16xf32> to vector<2x16x16xf32>
    %696 = arith.mulf %694, %695 : vector<2x16x16xf32>
    %697 = arith.addf %691, %696 : vector<2x16x16xf32>
    %cst_85 = arith.constant dense<0xFF800000> : vector<2x16xf32>
    %698 = vector.multi_reduction <maximumf>, %697, %cst_85 [2] : vector<2x16x16xf32> to vector<2x16xf32>
    %699 = vector.shape_cast %698 : vector<2x16xf32> to vector<2x16x1xf32>
    %700 = vector.broadcast %699 : vector<2x16x1xf32> to vector<2x16x16xf32>
    %701 = arith.subf %697, %700 : vector<2x16x16xf32>
    %702 = math.exp %701 : vector<2x16x16xf32>
    %cst_86 = arith.constant dense<0.000000e+00> : vector<2x16xf32>
    %703 = vector.multi_reduction <add>, %702, %cst_86 [2] : vector<2x16x16xf32> to vector<2x16xf32>
    %704 = vector.shape_cast %703 : vector<2x16xf32> to vector<2x16x1xf32>
    %705 = tpu.reciprocal %704 {approx = true} : vector<2x16x1xf32> -> vector<2x16x1xf32>
    %706 = vector.broadcast %705 : vector<2x16x1xf32> to vector<2x16x16xf32>
    %707 = arith.mulf %702, %706 : vector<2x16x16xf32>
    %708 = vector.extract_strided_slice %40 {offsets = [0, 30, 0], sizes = [2, 1, 16], strides = [1, 1, 1]} : vector<2x32x16xf32> to vector<2x1x16xf32>
    %709 = vector.broadcast %708 : vector<2x1x16xf32> to vector<2x16x16xf32>
    %710 = arith.mulf %707, %709 : vector<2x16x16xf32>
    %cst_87 = arith.constant dense<0.000000e+00> : vector<2x16xf32>
    %711 = vector.multi_reduction <add>, %710, %cst_87 [2] : vector<2x16x16xf32> to vector<2x16xf32>
    %712 = vector.shape_cast %711 : vector<2x16xf32> to vector<2x16x1xf32>
    %713 = vector.extract_strided_slice %40 {offsets = [0, 31, 0], sizes = [2, 1, 16], strides = [1, 1, 1]} : vector<2x32x16xf32> to vector<2x1x16xf32>
    %714 = vector.broadcast %713 : vector<2x1x16xf32> to vector<2x16x16xf32>
    %715 = arith.mulf %707, %714 : vector<2x16x16xf32>
    %cst_88 = arith.constant dense<0.000000e+00> : vector<2x16xf32>
    %716 = vector.multi_reduction <add>, %715, %cst_88 [2] : vector<2x16x16xf32> to vector<2x16xf32>
    %717 = vector.shape_cast %716 : vector<2x16xf32> to vector<2x16x1xf32>
    %718 = vector.extract_strided_slice %24 {offsets = [30, 0], sizes = [1, 32], strides = [1, 1]} : vector<32x32xf32> to vector<1x32xf32>
    %719 = vector.shape_cast %718 : vector<1x32xf32> to vector<1x1x32xf32>
    %720 = vector.broadcast %712 : vector<2x16x1xf32> to vector<2x16x32xf32>
    %721 = vector.broadcast %719 : vector<1x1x32xf32> to vector<2x16x32xf32>
    %722 = arith.mulf %720, %721 : vector<2x16x32xf32>
    %723 = arith.addf %686, %722 : vector<2x16x32xf32>
    %724 = vector.extract_strided_slice %24 {offsets = [31, 0], sizes = [1, 32], strides = [1, 1]} : vector<32x32xf32> to vector<1x32xf32>
    %725 = vector.shape_cast %724 : vector<1x32xf32> to vector<1x1x32xf32>
    %726 = vector.broadcast %717 : vector<2x16x1xf32> to vector<2x16x32xf32>
    %727 = vector.broadcast %725 : vector<1x1x32xf32> to vector<2x16x32xf32>
    %728 = arith.mulf %726, %727 : vector<2x16x32xf32>
    %729 = arith.addf %723, %728 : vector<2x16x32xf32>
    %730 = vector.shape_cast %729 : vector<2x16x32xf32> to vector<32x32xf32>
    %731 = arith.addf %13, %730 : vector<32x32xf32>
    %732 = vector.broadcast %15 : vector<1x32xf32> to vector<32x32xf32>
    %733 = arith.addf %731, %732 : vector<32x32xf32>
    %cst_89 = arith.constant dense<0.000000e+00> : vector<32xf32>
    %734 = vector.multi_reduction <add>, %733, %cst_89 [1] : vector<32x32xf32> to vector<32xf32>
    %735 = vector.shape_cast %734 : vector<32xf32> to vector<32x1xf32>
    %cst_90 = arith.constant 3.200000e+01 : f32
    %736 = vector.broadcast %cst_90 : f32 to vector<32x1xf32>
    %737 = arith.divf %735, %736 : vector<32x1xf32>
    %738 = vector.broadcast %737 : vector<32x1xf32> to vector<32x32xf32>
    %739 = arith.subf %733, %738 : vector<32x32xf32>
    %740 = arith.mulf %739, %739 : vector<32x32xf32>
    %cst_91 = arith.constant dense<0.000000e+00> : vector<32xf32>
    %741 = vector.multi_reduction <add>, %740, %cst_91 [1] : vector<32x32xf32> to vector<32xf32>
    %742 = vector.shape_cast %741 : vector<32xf32> to vector<32x1xf32>
    %cst_92 = arith.constant 3.200000e+01 : f32
    %743 = vector.broadcast %cst_92 : f32 to vector<32x1xf32>
    %744 = arith.divf %742, %743 : vector<32x1xf32>
    %745 = vector.broadcast %737 : vector<32x1xf32> to vector<32x32xf32>
    %746 = arith.subf %733, %745 : vector<32x32xf32>
    %cst_93 = arith.constant 9.99999974E-6 : f32
    %747 = vector.broadcast %cst_93 : f32 to vector<32x1xf32>
    %748 = arith.addf %744, %747 : vector<32x1xf32>
    %749 = math.rsqrt %748 : vector<32x1xf32>
    %750 = vector.broadcast %749 : vector<32x1xf32> to vector<32x32xf32>
    %751 = arith.mulf %746, %750 : vector<32x32xf32>
    %752 = vector.broadcast %16 : vector<1x32xf32> to vector<32x32xf32>
    %753 = arith.mulf %751, %752 : vector<32x32xf32>
    %754 = vector.broadcast %17 : vector<1x32xf32> to vector<32x32xf32>
    %755 = arith.addf %753, %754 : vector<32x32xf32>
    %c0_94 = arith.constant 0 : index
    %c0_95 = arith.constant 0 : index
    %c0_96 = arith.constant 0 : index
    %756 = vector.load %arg6[%c0_94, %c0_95, %c0_96] : memref<2x32x64xbf16, #tpu.memory_space<vmem>>, vector<1x32x64xbf16>
    %757 = vector.shape_cast %756 : vector<1x32x64xbf16> to vector<32x64xbf16>
    %758 = arith.truncf %755 : vector<32x32xf32> to vector<32x32xbf16>
    %cst_97 = arith.constant dense<0.000000e+00> : vector<32x64xf32>
    %759 = tpu.matmul %758, %757, %cst_97 {dimension_numbers = #tpu.dot_dimension_numbers<[1], [0], [0], [1], [0, 0, 1, 1], [], []>} : vector<32x32xbf16>, vector<32x64xbf16>, vector<32x64xf32> -> vector<32x64xf32>
    %760 = vector.broadcast %20 : vector<1x64xf32> to vector<32x64xf32>
    %761 = arith.addf %759, %760 : vector<32x64xf32>
    %cst_98 = arith.constant 0.000000e+00 : f32
    %762 = vector.broadcast %cst_98 : f32 to vector<32x64xf32>
    %763 = arith.maximumf %761, %762 : vector<32x64xf32>
    %c0_99 = arith.constant 0 : index
    %c0_100 = arith.constant 0 : index
    %c0_101 = arith.constant 0 : index
    %764 = vector.load %arg7[%c0_99, %c0_100, %c0_101] : memref<2x64x32xbf16, #tpu.memory_space<vmem>>, vector<1x64x32xbf16>
    %765 = vector.shape_cast %764 : vector<1x64x32xbf16> to vector<64x32xbf16>
    %766 = arith.truncf %763 : vector<32x64xf32> to vector<32x64xbf16>
    %cst_102 = arith.constant dense<0.000000e+00> : vector<32x32xf32>
    %767 = tpu.matmul %766, %765, %cst_102 {dimension_numbers = #tpu.dot_dimension_numbers<[1], [0], [0], [1], [0, 0, 1, 1], [], []>} : vector<32x64xbf16>, vector<64x32xbf16>, vector<32x32xf32> -> vector<32x32xf32>
    %768 = vector.broadcast %21 : vector<1x32xf32> to vector<32x32xf32>
    %769 = arith.addf %767, %768 : vector<32x32xf32>
    %770 = arith.addf %755, %769 : vector<32x32xf32>
    %cst_103 = arith.constant dense<0.000000e+00> : vector<32xf32>
    %771 = vector.multi_reduction <add>, %770, %cst_103 [1] : vector<32x32xf32> to vector<32xf32>
    %772 = vector.shape_cast %771 : vector<32xf32> to vector<32x1xf32>
    %cst_104 = arith.constant 3.200000e+01 : f32
    %773 = vector.broadcast %cst_104 : f32 to vector<32x1xf32>
    %774 = arith.divf %772, %773 : vector<32x1xf32>
    %775 = vector.broadcast %774 : vector<32x1xf32> to vector<32x32xf32>
    %776 = arith.subf %770, %775 : vector<32x32xf32>
    %777 = arith.mulf %776, %776 : vector<32x32xf32>
    %cst_105 = arith.constant dense<0.000000e+00> : vector<32xf32>
    %778 = vector.multi_reduction <add>, %777, %cst_105 [1] : vector<32x32xf32> to vector<32xf32>
    %779 = vector.shape_cast %778 : vector<32xf32> to vector<32x1xf32>
    %cst_106 = arith.constant 3.200000e+01 : f32
    %780 = vector.broadcast %cst_106 : f32 to vector<32x1xf32>
    %781 = arith.divf %779, %780 : vector<32x1xf32>
    %782 = vector.broadcast %774 : vector<32x1xf32> to vector<32x32xf32>
    %783 = arith.subf %770, %782 : vector<32x32xf32>
    %cst_107 = arith.constant 9.99999974E-6 : f32
    %784 = vector.broadcast %cst_107 : f32 to vector<32x1xf32>
    %785 = arith.addf %781, %784 : vector<32x1xf32>
    %786 = math.rsqrt %785 : vector<32x1xf32>
    %787 = vector.broadcast %786 : vector<32x1xf32> to vector<32x32xf32>
    %788 = arith.mulf %783, %787 : vector<32x32xf32>
    %789 = vector.broadcast %18 : vector<1x32xf32> to vector<32x32xf32>
    %790 = arith.mulf %788, %789 : vector<32x32xf32>
    %791 = vector.broadcast %19 : vector<1x32xf32> to vector<32x32xf32>
    %792 = arith.addf %790, %791 : vector<32x32xf32>
    %c12 = arith.constant 12 : index
    %c0_108 = arith.constant 0 : index
    %793 = vector.load %arg9[%c12, %c0_108] : memref<20x128xf32, #tpu.memory_space<vmem>>, vector<1x96xf32>
    %c13 = arith.constant 13 : index
    %c0_109 = arith.constant 0 : index
    %794 = vector.load %arg9[%c13, %c0_109] : memref<20x128xf32, #tpu.memory_space<vmem>>, vector<1x32xf32>
    %c14 = arith.constant 14 : index
    %c0_110 = arith.constant 0 : index
    %795 = vector.load %arg9[%c14, %c0_110] : memref<20x128xf32, #tpu.memory_space<vmem>>, vector<1x32xf32>
    %c15 = arith.constant 15 : index
    %c0_111 = arith.constant 0 : index
    %796 = vector.load %arg9[%c15, %c0_111] : memref<20x128xf32, #tpu.memory_space<vmem>>, vector<1x32xf32>
    %c16 = arith.constant 16 : index
    %c0_112 = arith.constant 0 : index
    %797 = vector.load %arg9[%c16, %c0_112] : memref<20x128xf32, #tpu.memory_space<vmem>>, vector<1x32xf32>
    %c17 = arith.constant 17 : index
    %c0_113 = arith.constant 0 : index
    %798 = vector.load %arg9[%c17, %c0_113] : memref<20x128xf32, #tpu.memory_space<vmem>>, vector<1x32xf32>
    %c18 = arith.constant 18 : index
    %c0_114 = arith.constant 0 : index
    %799 = vector.load %arg9[%c18, %c0_114] : memref<20x128xf32, #tpu.memory_space<vmem>>, vector<1x64xf32>
    %c19 = arith.constant 19 : index
    %c0_115 = arith.constant 0 : index
    %800 = vector.load %arg9[%c19, %c0_115] : memref<20x128xf32, #tpu.memory_space<vmem>>, vector<1x32xf32>
    %c1 = arith.constant 1 : index
    %c0_116 = arith.constant 0 : index
    %c0_117 = arith.constant 0 : index
    %801 = vector.load %arg5[%c1, %c0_116, %c0_117] : memref<2x32x32xbf16, #tpu.memory_space<vmem>>, vector<1x32x32xbf16>
    %802 = vector.shape_cast %801 : vector<1x32x32xbf16> to vector<32x32xbf16>
    %803 = arith.extf %802 : vector<32x32xbf16> to vector<32x32xf32>
    %c1_118 = arith.constant 1 : index
    %c0_119 = arith.constant 0 : index
    %c0_120 = arith.constant 0 : index
    %804 = vector.load %arg4[%c1_118, %c0_119, %c0_120] : memref<2x32x96xbf16, #tpu.memory_space<vmem>>, vector<1x32x96xbf16>
    %805 = vector.shape_cast %804 : vector<1x32x96xbf16> to vector<32x96xbf16>
    %806 = arith.truncf %792 : vector<32x32xf32> to vector<32x32xbf16>
    %cst_121 = arith.constant dense<0.000000e+00> : vector<32x96xf32>
    %807 = tpu.matmul %806, %805, %cst_121 {dimension_numbers = #tpu.dot_dimension_numbers<[1], [0], [0], [1], [0, 0, 1, 1], [], []>} : vector<32x32xbf16>, vector<32x96xbf16>, vector<32x96xf32> -> vector<32x96xf32>
    %808 = vector.broadcast %793 : vector<1x96xf32> to vector<32x96xf32>
    %809 = arith.addf %807, %808 : vector<32x96xf32>
    %810 = vector.extract_strided_slice %809 {offsets = [0, 0], sizes = [32, 32], strides = [1, 1]} : vector<32x96xf32> to vector<32x32xf32>
    %811 = vector.shape_cast %810 : vector<32x32xf32> to vector<2x16x32xf32>
    %cst_122 = arith.constant 0.707106769 : f32
    %812 = vector.broadcast %cst_122 : f32 to vector<2x16x32xf32>
    %813 = arith.mulf %811, %812 : vector<2x16x32xf32>
    %814 = vector.extract_strided_slice %809 {offsets = [0, 32], sizes = [32, 32], strides = [1, 1]} : vector<32x96xf32> to vector<32x32xf32>
    %815 = vector.shape_cast %814 : vector<32x32xf32> to vector<2x16x32xf32>
    %816 = vector.extract_strided_slice %809 {offsets = [0, 64], sizes = [32, 32], strides = [1, 1]} : vector<32x96xf32> to vector<32x32xf32>
    %817 = vector.shape_cast %816 : vector<32x32xf32> to vector<2x16x32xf32>
    %818 = tpu.transpose %815, [0, 2, 1] : vector<2x16x32xf32> -> vector<2x32x16xf32>
    %819 = tpu.transpose %817, [0, 2, 1] : vector<2x16x32xf32> -> vector<2x32x16xf32>
    %cst_123 = arith.constant 0.000000e+00 : f32
    %820 = vector.broadcast %cst_123 : f32 to vector<2x16x32xf32>
    %821 = vector.extract_strided_slice %813 {offsets = [0, 0, 0], sizes = [2, 16, 1], strides = [1, 1, 1]} : vector<2x16x32xf32> to vector<2x16x1xf32>
    %822 = vector.extract_strided_slice %818 {offsets = [0, 0, 0], sizes = [2, 1, 16], strides = [1, 1, 1]} : vector<2x32x16xf32> to vector<2x1x16xf32>
    %823 = vector.broadcast %821 : vector<2x16x1xf32> to vector<2x16x16xf32>
    %824 = vector.broadcast %822 : vector<2x1x16xf32> to vector<2x16x16xf32>
    %825 = arith.mulf %823, %824 : vector<2x16x16xf32>
    %826 = vector.extract_strided_slice %813 {offsets = [0, 0, 1], sizes = [2, 16, 1], strides = [1, 1, 1]} : vector<2x16x32xf32> to vector<2x16x1xf32>
    %827 = vector.extract_strided_slice %818 {offsets = [0, 1, 0], sizes = [2, 1, 16], strides = [1, 1, 1]} : vector<2x32x16xf32> to vector<2x1x16xf32>
    %828 = vector.broadcast %826 : vector<2x16x1xf32> to vector<2x16x16xf32>
    %829 = vector.broadcast %827 : vector<2x1x16xf32> to vector<2x16x16xf32>
    %830 = arith.mulf %828, %829 : vector<2x16x16xf32>
    %831 = arith.addf %825, %830 : vector<2x16x16xf32>
    %cst_124 = arith.constant dense<0xFF800000> : vector<2x16xf32>
    %832 = vector.multi_reduction <maximumf>, %831, %cst_124 [2] : vector<2x16x16xf32> to vector<2x16xf32>
    %833 = vector.shape_cast %832 : vector<2x16xf32> to vector<2x16x1xf32>
    %834 = vector.broadcast %833 : vector<2x16x1xf32> to vector<2x16x16xf32>
    %835 = arith.subf %831, %834 : vector<2x16x16xf32>
    %836 = math.exp %835 : vector<2x16x16xf32>
    %cst_125 = arith.constant dense<0.000000e+00> : vector<2x16xf32>
    %837 = vector.multi_reduction <add>, %836, %cst_125 [2] : vector<2x16x16xf32> to vector<2x16xf32>
    %838 = vector.shape_cast %837 : vector<2x16xf32> to vector<2x16x1xf32>
    %839 = tpu.reciprocal %838 {approx = true} : vector<2x16x1xf32> -> vector<2x16x1xf32>
    %840 = vector.broadcast %839 : vector<2x16x1xf32> to vector<2x16x16xf32>
    %841 = arith.mulf %836, %840 : vector<2x16x16xf32>
    %842 = vector.extract_strided_slice %819 {offsets = [0, 0, 0], sizes = [2, 1, 16], strides = [1, 1, 1]} : vector<2x32x16xf32> to vector<2x1x16xf32>
    %843 = vector.broadcast %842 : vector<2x1x16xf32> to vector<2x16x16xf32>
    %844 = arith.mulf %841, %843 : vector<2x16x16xf32>
    %cst_126 = arith.constant dense<0.000000e+00> : vector<2x16xf32>
    %845 = vector.multi_reduction <add>, %844, %cst_126 [2] : vector<2x16x16xf32> to vector<2x16xf32>
    %846 = vector.shape_cast %845 : vector<2x16xf32> to vector<2x16x1xf32>
    %847 = vector.extract_strided_slice %819 {offsets = [0, 1, 0], sizes = [2, 1, 16], strides = [1, 1, 1]} : vector<2x32x16xf32> to vector<2x1x16xf32>
    %848 = vector.broadcast %847 : vector<2x1x16xf32> to vector<2x16x16xf32>
    %849 = arith.mulf %841, %848 : vector<2x16x16xf32>
    %cst_127 = arith.constant dense<0.000000e+00> : vector<2x16xf32>
    %850 = vector.multi_reduction <add>, %849, %cst_127 [2] : vector<2x16x16xf32> to vector<2x16xf32>
    %851 = vector.shape_cast %850 : vector<2x16xf32> to vector<2x16x1xf32>
    %852 = vector.extract_strided_slice %803 {offsets = [0, 0], sizes = [1, 32], strides = [1, 1]} : vector<32x32xf32> to vector<1x32xf32>
    %853 = vector.shape_cast %852 : vector<1x32xf32> to vector<1x1x32xf32>
    %854 = vector.broadcast %846 : vector<2x16x1xf32> to vector<2x16x32xf32>
    %855 = vector.broadcast %853 : vector<1x1x32xf32> to vector<2x16x32xf32>
    %856 = arith.mulf %854, %855 : vector<2x16x32xf32>
    %857 = arith.addf %820, %856 : vector<2x16x32xf32>
    %858 = vector.extract_strided_slice %803 {offsets = [1, 0], sizes = [1, 32], strides = [1, 1]} : vector<32x32xf32> to vector<1x32xf32>
    %859 = vector.shape_cast %858 : vector<1x32xf32> to vector<1x1x32xf32>
    %860 = vector.broadcast %851 : vector<2x16x1xf32> to vector<2x16x32xf32>
    %861 = vector.broadcast %859 : vector<1x1x32xf32> to vector<2x16x32xf32>
    %862 = arith.mulf %860, %861 : vector<2x16x32xf32>
    %863 = arith.addf %857, %862 : vector<2x16x32xf32>
    %864 = vector.extract_strided_slice %813 {offsets = [0, 0, 2], sizes = [2, 16, 1], strides = [1, 1, 1]} : vector<2x16x32xf32> to vector<2x16x1xf32>
    %865 = vector.extract_strided_slice %818 {offsets = [0, 2, 0], sizes = [2, 1, 16], strides = [1, 1, 1]} : vector<2x32x16xf32> to vector<2x1x16xf32>
    %866 = vector.broadcast %864 : vector<2x16x1xf32> to vector<2x16x16xf32>
    %867 = vector.broadcast %865 : vector<2x1x16xf32> to vector<2x16x16xf32>
    %868 = arith.mulf %866, %867 : vector<2x16x16xf32>
    %869 = vector.extract_strided_slice %813 {offsets = [0, 0, 3], sizes = [2, 16, 1], strides = [1, 1, 1]} : vector<2x16x32xf32> to vector<2x16x1xf32>
    %870 = vector.extract_strided_slice %818 {offsets = [0, 3, 0], sizes = [2, 1, 16], strides = [1, 1, 1]} : vector<2x32x16xf32> to vector<2x1x16xf32>
    %871 = vector.broadcast %869 : vector<2x16x1xf32> to vector<2x16x16xf32>
    %872 = vector.broadcast %870 : vector<2x1x16xf32> to vector<2x16x16xf32>
    %873 = arith.mulf %871, %872 : vector<2x16x16xf32>
    %874 = arith.addf %868, %873 : vector<2x16x16xf32>
    %cst_128 = arith.constant dense<0xFF800000> : vector<2x16xf32>
    %875 = vector.multi_reduction <maximumf>, %874, %cst_128 [2] : vector<2x16x16xf32> to vector<2x16xf32>
    %876 = vector.shape_cast %875 : vector<2x16xf32> to vector<2x16x1xf32>
    %877 = vector.broadcast %876 : vector<2x16x1xf32> to vector<2x16x16xf32>
    %878 = arith.subf %874, %877 : vector<2x16x16xf32>
    %879 = math.exp %878 : vector<2x16x16xf32>
    %cst_129 = arith.constant dense<0.000000e+00> : vector<2x16xf32>
    %880 = vector.multi_reduction <add>, %879, %cst_129 [2] : vector<2x16x16xf32> to vector<2x16xf32>
    %881 = vector.shape_cast %880 : vector<2x16xf32> to vector<2x16x1xf32>
    %882 = tpu.reciprocal %881 {approx = true} : vector<2x16x1xf32> -> vector<2x16x1xf32>
    %883 = vector.broadcast %882 : vector<2x16x1xf32> to vector<2x16x16xf32>
    %884 = arith.mulf %879, %883 : vector<2x16x16xf32>
    %885 = vector.extract_strided_slice %819 {offsets = [0, 2, 0], sizes = [2, 1, 16], strides = [1, 1, 1]} : vector<2x32x16xf32> to vector<2x1x16xf32>
    %886 = vector.broadcast %885 : vector<2x1x16xf32> to vector<2x16x16xf32>
    %887 = arith.mulf %884, %886 : vector<2x16x16xf32>
    %cst_130 = arith.constant dense<0.000000e+00> : vector<2x16xf32>
    %888 = vector.multi_reduction <add>, %887, %cst_130 [2] : vector<2x16x16xf32> to vector<2x16xf32>
    %889 = vector.shape_cast %888 : vector<2x16xf32> to vector<2x16x1xf32>
    %890 = vector.extract_strided_slice %819 {offsets = [0, 3, 0], sizes = [2, 1, 16], strides = [1, 1, 1]} : vector<2x32x16xf32> to vector<2x1x16xf32>
    %891 = vector.broadcast %890 : vector<2x1x16xf32> to vector<2x16x16xf32>
    %892 = arith.mulf %884, %891 : vector<2x16x16xf32>
    %cst_131 = arith.constant dense<0.000000e+00> : vector<2x16xf32>
    %893 = vector.multi_reduction <add>, %892, %cst_131 [2] : vector<2x16x16xf32> to vector<2x16xf32>
    %894 = vector.shape_cast %893 : vector<2x16xf32> to vector<2x16x1xf32>
    %895 = vector.extract_strided_slice %803 {offsets = [2, 0], sizes = [1, 32], strides = [1, 1]} : vector<32x32xf32> to vector<1x32xf32>
    %896 = vector.shape_cast %895 : vector<1x32xf32> to vector<1x1x32xf32>
    %897 = vector.broadcast %889 : vector<2x16x1xf32> to vector<2x16x32xf32>
    %898 = vector.broadcast %896 : vector<1x1x32xf32> to vector<2x16x32xf32>
    %899 = arith.mulf %897, %898 : vector<2x16x32xf32>
    %900 = arith.addf %863, %899 : vector<2x16x32xf32>
    %901 = vector.extract_strided_slice %803 {offsets = [3, 0], sizes = [1, 32], strides = [1, 1]} : vector<32x32xf32> to vector<1x32xf32>
    %902 = vector.shape_cast %901 : vector<1x32xf32> to vector<1x1x32xf32>
    %903 = vector.broadcast %894 : vector<2x16x1xf32> to vector<2x16x32xf32>
    %904 = vector.broadcast %902 : vector<1x1x32xf32> to vector<2x16x32xf32>
    %905 = arith.mulf %903, %904 : vector<2x16x32xf32>
    %906 = arith.addf %900, %905 : vector<2x16x32xf32>
    %907 = vector.extract_strided_slice %813 {offsets = [0, 0, 4], sizes = [2, 16, 1], strides = [1, 1, 1]} : vector<2x16x32xf32> to vector<2x16x1xf32>
    %908 = vector.extract_strided_slice %818 {offsets = [0, 4, 0], sizes = [2, 1, 16], strides = [1, 1, 1]} : vector<2x32x16xf32> to vector<2x1x16xf32>
    %909 = vector.broadcast %907 : vector<2x16x1xf32> to vector<2x16x16xf32>
    %910 = vector.broadcast %908 : vector<2x1x16xf32> to vector<2x16x16xf32>
    %911 = arith.mulf %909, %910 : vector<2x16x16xf32>
    %912 = vector.extract_strided_slice %813 {offsets = [0, 0, 5], sizes = [2, 16, 1], strides = [1, 1, 1]} : vector<2x16x32xf32> to vector<2x16x1xf32>
    %913 = vector.extract_strided_slice %818 {offsets = [0, 5, 0], sizes = [2, 1, 16], strides = [1, 1, 1]} : vector<2x32x16xf32> to vector<2x1x16xf32>
    %914 = vector.broadcast %912 : vector<2x16x1xf32> to vector<2x16x16xf32>
    %915 = vector.broadcast %913 : vector<2x1x16xf32> to vector<2x16x16xf32>
    %916 = arith.mulf %914, %915 : vector<2x16x16xf32>
    %917 = arith.addf %911, %916 : vector<2x16x16xf32>
    %cst_132 = arith.constant dense<0xFF800000> : vector<2x16xf32>
    %918 = vector.multi_reduction <maximumf>, %917, %cst_132 [2] : vector<2x16x16xf32> to vector<2x16xf32>
    %919 = vector.shape_cast %918 : vector<2x16xf32> to vector<2x16x1xf32>
    %920 = vector.broadcast %919 : vector<2x16x1xf32> to vector<2x16x16xf32>
    %921 = arith.subf %917, %920 : vector<2x16x16xf32>
    %922 = math.exp %921 : vector<2x16x16xf32>
    %cst_133 = arith.constant dense<0.000000e+00> : vector<2x16xf32>
    %923 = vector.multi_reduction <add>, %922, %cst_133 [2] : vector<2x16x16xf32> to vector<2x16xf32>
    %924 = vector.shape_cast %923 : vector<2x16xf32> to vector<2x16x1xf32>
    %925 = tpu.reciprocal %924 {approx = true} : vector<2x16x1xf32> -> vector<2x16x1xf32>
    %926 = vector.broadcast %925 : vector<2x16x1xf32> to vector<2x16x16xf32>
    %927 = arith.mulf %922, %926 : vector<2x16x16xf32>
    %928 = vector.extract_strided_slice %819 {offsets = [0, 4, 0], sizes = [2, 1, 16], strides = [1, 1, 1]} : vector<2x32x16xf32> to vector<2x1x16xf32>
    %929 = vector.broadcast %928 : vector<2x1x16xf32> to vector<2x16x16xf32>
    %930 = arith.mulf %927, %929 : vector<2x16x16xf32>
    %cst_134 = arith.constant dense<0.000000e+00> : vector<2x16xf32>
    %931 = vector.multi_reduction <add>, %930, %cst_134 [2] : vector<2x16x16xf32> to vector<2x16xf32>
    %932 = vector.shape_cast %931 : vector<2x16xf32> to vector<2x16x1xf32>
    %933 = vector.extract_strided_slice %819 {offsets = [0, 5, 0], sizes = [2, 1, 16], strides = [1, 1, 1]} : vector<2x32x16xf32> to vector<2x1x16xf32>
    %934 = vector.broadcast %933 : vector<2x1x16xf32> to vector<2x16x16xf32>
    %935 = arith.mulf %927, %934 : vector<2x16x16xf32>
    %cst_135 = arith.constant dense<0.000000e+00> : vector<2x16xf32>
    %936 = vector.multi_reduction <add>, %935, %cst_135 [2] : vector<2x16x16xf32> to vector<2x16xf32>
    %937 = vector.shape_cast %936 : vector<2x16xf32> to vector<2x16x1xf32>
    %938 = vector.extract_strided_slice %803 {offsets = [4, 0], sizes = [1, 32], strides = [1, 1]} : vector<32x32xf32> to vector<1x32xf32>
    %939 = vector.shape_cast %938 : vector<1x32xf32> to vector<1x1x32xf32>
    %940 = vector.broadcast %932 : vector<2x16x1xf32> to vector<2x16x32xf32>
    %941 = vector.broadcast %939 : vector<1x1x32xf32> to vector<2x16x32xf32>
    %942 = arith.mulf %940, %941 : vector<2x16x32xf32>
    %943 = arith.addf %906, %942 : vector<2x16x32xf32>
    %944 = vector.extract_strided_slice %803 {offsets = [5, 0], sizes = [1, 32], strides = [1, 1]} : vector<32x32xf32> to vector<1x32xf32>
    %945 = vector.shape_cast %944 : vector<1x32xf32> to vector<1x1x32xf32>
    %946 = vector.broadcast %937 : vector<2x16x1xf32> to vector<2x16x32xf32>
    %947 = vector.broadcast %945 : vector<1x1x32xf32> to vector<2x16x32xf32>
    %948 = arith.mulf %946, %947 : vector<2x16x32xf32>
    %949 = arith.addf %943, %948 : vector<2x16x32xf32>
    %950 = vector.extract_strided_slice %813 {offsets = [0, 0, 6], sizes = [2, 16, 1], strides = [1, 1, 1]} : vector<2x16x32xf32> to vector<2x16x1xf32>
    %951 = vector.extract_strided_slice %818 {offsets = [0, 6, 0], sizes = [2, 1, 16], strides = [1, 1, 1]} : vector<2x32x16xf32> to vector<2x1x16xf32>
    %952 = vector.broadcast %950 : vector<2x16x1xf32> to vector<2x16x16xf32>
    %953 = vector.broadcast %951 : vector<2x1x16xf32> to vector<2x16x16xf32>
    %954 = arith.mulf %952, %953 : vector<2x16x16xf32>
    %955 = vector.extract_strided_slice %813 {offsets = [0, 0, 7], sizes = [2, 16, 1], strides = [1, 1, 1]} : vector<2x16x32xf32> to vector<2x16x1xf32>
    %956 = vector.extract_strided_slice %818 {offsets = [0, 7, 0], sizes = [2, 1, 16], strides = [1, 1, 1]} : vector<2x32x16xf32> to vector<2x1x16xf32>
    %957 = vector.broadcast %955 : vector<2x16x1xf32> to vector<2x16x16xf32>
    %958 = vector.broadcast %956 : vector<2x1x16xf32> to vector<2x16x16xf32>
    %959 = arith.mulf %957, %958 : vector<2x16x16xf32>
    %960 = arith.addf %954, %959 : vector<2x16x16xf32>
    %cst_136 = arith.constant dense<0xFF800000> : vector<2x16xf32>
    %961 = vector.multi_reduction <maximumf>, %960, %cst_136 [2] : vector<2x16x16xf32> to vector<2x16xf32>
    %962 = vector.shape_cast %961 : vector<2x16xf32> to vector<2x16x1xf32>
    %963 = vector.broadcast %962 : vector<2x16x1xf32> to vector<2x16x16xf32>
    %964 = arith.subf %960, %963 : vector<2x16x16xf32>
    %965 = math.exp %964 : vector<2x16x16xf32>
    %cst_137 = arith.constant dense<0.000000e+00> : vector<2x16xf32>
    %966 = vector.multi_reduction <add>, %965, %cst_137 [2] : vector<2x16x16xf32> to vector<2x16xf32>
    %967 = vector.shape_cast %966 : vector<2x16xf32> to vector<2x16x1xf32>
    %968 = tpu.reciprocal %967 {approx = true} : vector<2x16x1xf32> -> vector<2x16x1xf32>
    %969 = vector.broadcast %968 : vector<2x16x1xf32> to vector<2x16x16xf32>
    %970 = arith.mulf %965, %969 : vector<2x16x16xf32>
    %971 = vector.extract_strided_slice %819 {offsets = [0, 6, 0], sizes = [2, 1, 16], strides = [1, 1, 1]} : vector<2x32x16xf32> to vector<2x1x16xf32>
    %972 = vector.broadcast %971 : vector<2x1x16xf32> to vector<2x16x16xf32>
    %973 = arith.mulf %970, %972 : vector<2x16x16xf32>
    %cst_138 = arith.constant dense<0.000000e+00> : vector<2x16xf32>
    %974 = vector.multi_reduction <add>, %973, %cst_138 [2] : vector<2x16x16xf32> to vector<2x16xf32>
    %975 = vector.shape_cast %974 : vector<2x16xf32> to vector<2x16x1xf32>
    %976 = vector.extract_strided_slice %819 {offsets = [0, 7, 0], sizes = [2, 1, 16], strides = [1, 1, 1]} : vector<2x32x16xf32> to vector<2x1x16xf32>
    %977 = vector.broadcast %976 : vector<2x1x16xf32> to vector<2x16x16xf32>
    %978 = arith.mulf %970, %977 : vector<2x16x16xf32>
    %cst_139 = arith.constant dense<0.000000e+00> : vector<2x16xf32>
    %979 = vector.multi_reduction <add>, %978, %cst_139 [2] : vector<2x16x16xf32> to vector<2x16xf32>
    %980 = vector.shape_cast %979 : vector<2x16xf32> to vector<2x16x1xf32>
    %981 = vector.extract_strided_slice %803 {offsets = [6, 0], sizes = [1, 32], strides = [1, 1]} : vector<32x32xf32> to vector<1x32xf32>
    %982 = vector.shape_cast %981 : vector<1x32xf32> to vector<1x1x32xf32>
    %983 = vector.broadcast %975 : vector<2x16x1xf32> to vector<2x16x32xf32>
    %984 = vector.broadcast %982 : vector<1x1x32xf32> to vector<2x16x32xf32>
    %985 = arith.mulf %983, %984 : vector<2x16x32xf32>
    %986 = arith.addf %949, %985 : vector<2x16x32xf32>
    %987 = vector.extract_strided_slice %803 {offsets = [7, 0], sizes = [1, 32], strides = [1, 1]} : vector<32x32xf32> to vector<1x32xf32>
    %988 = vector.shape_cast %987 : vector<1x32xf32> to vector<1x1x32xf32>
    %989 = vector.broadcast %980 : vector<2x16x1xf32> to vector<2x16x32xf32>
    %990 = vector.broadcast %988 : vector<1x1x32xf32> to vector<2x16x32xf32>
    %991 = arith.mulf %989, %990 : vector<2x16x32xf32>
    %992 = arith.addf %986, %991 : vector<2x16x32xf32>
    %993 = vector.extract_strided_slice %813 {offsets = [0, 0, 8], sizes = [2, 16, 1], strides = [1, 1, 1]} : vector<2x16x32xf32> to vector<2x16x1xf32>
    %994 = vector.extract_strided_slice %818 {offsets = [0, 8, 0], sizes = [2, 1, 16], strides = [1, 1, 1]} : vector<2x32x16xf32> to vector<2x1x16xf32>
    %995 = vector.broadcast %993 : vector<2x16x1xf32> to vector<2x16x16xf32>
    %996 = vector.broadcast %994 : vector<2x1x16xf32> to vector<2x16x16xf32>
    %997 = arith.mulf %995, %996 : vector<2x16x16xf32>
    %998 = vector.extract_strided_slice %813 {offsets = [0, 0, 9], sizes = [2, 16, 1], strides = [1, 1, 1]} : vector<2x16x32xf32> to vector<2x16x1xf32>
    %999 = vector.extract_strided_slice %818 {offsets = [0, 9, 0], sizes = [2, 1, 16], strides = [1, 1, 1]} : vector<2x32x16xf32> to vector<2x1x16xf32>
    %1000 = vector.broadcast %998 : vector<2x16x1xf32> to vector<2x16x16xf32>
    %1001 = vector.broadcast %999 : vector<2x1x16xf32> to vector<2x16x16xf32>
    %1002 = arith.mulf %1000, %1001 : vector<2x16x16xf32>
    %1003 = arith.addf %997, %1002 : vector<2x16x16xf32>
    %cst_140 = arith.constant dense<0xFF800000> : vector<2x16xf32>
    %1004 = vector.multi_reduction <maximumf>, %1003, %cst_140 [2] : vector<2x16x16xf32> to vector<2x16xf32>
    %1005 = vector.shape_cast %1004 : vector<2x16xf32> to vector<2x16x1xf32>
    %1006 = vector.broadcast %1005 : vector<2x16x1xf32> to vector<2x16x16xf32>
    %1007 = arith.subf %1003, %1006 : vector<2x16x16xf32>
    %1008 = math.exp %1007 : vector<2x16x16xf32>
    %cst_141 = arith.constant dense<0.000000e+00> : vector<2x16xf32>
    %1009 = vector.multi_reduction <add>, %1008, %cst_141 [2] : vector<2x16x16xf32> to vector<2x16xf32>
    %1010 = vector.shape_cast %1009 : vector<2x16xf32> to vector<2x16x1xf32>
    %1011 = tpu.reciprocal %1010 {approx = true} : vector<2x16x1xf32> -> vector<2x16x1xf32>
    %1012 = vector.broadcast %1011 : vector<2x16x1xf32> to vector<2x16x16xf32>
    %1013 = arith.mulf %1008, %1012 : vector<2x16x16xf32>
    %1014 = vector.extract_strided_slice %819 {offsets = [0, 8, 0], sizes = [2, 1, 16], strides = [1, 1, 1]} : vector<2x32x16xf32> to vector<2x1x16xf32>
    %1015 = vector.broadcast %1014 : vector<2x1x16xf32> to vector<2x16x16xf32>
    %1016 = arith.mulf %1013, %1015 : vector<2x16x16xf32>
    %cst_142 = arith.constant dense<0.000000e+00> : vector<2x16xf32>
    %1017 = vector.multi_reduction <add>, %1016, %cst_142 [2] : vector<2x16x16xf32> to vector<2x16xf32>
    %1018 = vector.shape_cast %1017 : vector<2x16xf32> to vector<2x16x1xf32>
    %1019 = vector.extract_strided_slice %819 {offsets = [0, 9, 0], sizes = [2, 1, 16], strides = [1, 1, 1]} : vector<2x32x16xf32> to vector<2x1x16xf32>
    %1020 = vector.broadcast %1019 : vector<2x1x16xf32> to vector<2x16x16xf32>
    %1021 = arith.mulf %1013, %1020 : vector<2x16x16xf32>
    %cst_143 = arith.constant dense<0.000000e+00> : vector<2x16xf32>
    %1022 = vector.multi_reduction <add>, %1021, %cst_143 [2] : vector<2x16x16xf32> to vector<2x16xf32>
    %1023 = vector.shape_cast %1022 : vector<2x16xf32> to vector<2x16x1xf32>
    %1024 = vector.extract_strided_slice %803 {offsets = [8, 0], sizes = [1, 32], strides = [1, 1]} : vector<32x32xf32> to vector<1x32xf32>
    %1025 = vector.shape_cast %1024 : vector<1x32xf32> to vector<1x1x32xf32>
    %1026 = vector.broadcast %1018 : vector<2x16x1xf32> to vector<2x16x32xf32>
    %1027 = vector.broadcast %1025 : vector<1x1x32xf32> to vector<2x16x32xf32>
    %1028 = arith.mulf %1026, %1027 : vector<2x16x32xf32>
    %1029 = arith.addf %992, %1028 : vector<2x16x32xf32>
    %1030 = vector.extract_strided_slice %803 {offsets = [9, 0], sizes = [1, 32], strides = [1, 1]} : vector<32x32xf32> to vector<1x32xf32>
    %1031 = vector.shape_cast %1030 : vector<1x32xf32> to vector<1x1x32xf32>
    %1032 = vector.broadcast %1023 : vector<2x16x1xf32> to vector<2x16x32xf32>
    %1033 = vector.broadcast %1031 : vector<1x1x32xf32> to vector<2x16x32xf32>
    %1034 = arith.mulf %1032, %1033 : vector<2x16x32xf32>
    %1035 = arith.addf %1029, %1034 : vector<2x16x32xf32>
    %1036 = vector.extract_strided_slice %813 {offsets = [0, 0, 10], sizes = [2, 16, 1], strides = [1, 1, 1]} : vector<2x16x32xf32> to vector<2x16x1xf32>
    %1037 = vector.extract_strided_slice %818 {offsets = [0, 10, 0], sizes = [2, 1, 16], strides = [1, 1, 1]} : vector<2x32x16xf32> to vector<2x1x16xf32>
    %1038 = vector.broadcast %1036 : vector<2x16x1xf32> to vector<2x16x16xf32>
    %1039 = vector.broadcast %1037 : vector<2x1x16xf32> to vector<2x16x16xf32>
    %1040 = arith.mulf %1038, %1039 : vector<2x16x16xf32>
    %1041 = vector.extract_strided_slice %813 {offsets = [0, 0, 11], sizes = [2, 16, 1], strides = [1, 1, 1]} : vector<2x16x32xf32> to vector<2x16x1xf32>
    %1042 = vector.extract_strided_slice %818 {offsets = [0, 11, 0], sizes = [2, 1, 16], strides = [1, 1, 1]} : vector<2x32x16xf32> to vector<2x1x16xf32>
    %1043 = vector.broadcast %1041 : vector<2x16x1xf32> to vector<2x16x16xf32>
    %1044 = vector.broadcast %1042 : vector<2x1x16xf32> to vector<2x16x16xf32>
    %1045 = arith.mulf %1043, %1044 : vector<2x16x16xf32>
    %1046 = arith.addf %1040, %1045 : vector<2x16x16xf32>
    %cst_144 = arith.constant dense<0xFF800000> : vector<2x16xf32>
    %1047 = vector.multi_reduction <maximumf>, %1046, %cst_144 [2] : vector<2x16x16xf32> to vector<2x16xf32>
    %1048 = vector.shape_cast %1047 : vector<2x16xf32> to vector<2x16x1xf32>
    %1049 = vector.broadcast %1048 : vector<2x16x1xf32> to vector<2x16x16xf32>
    %1050 = arith.subf %1046, %1049 : vector<2x16x16xf32>
    %1051 = math.exp %1050 : vector<2x16x16xf32>
    %cst_145 = arith.constant dense<0.000000e+00> : vector<2x16xf32>
    %1052 = vector.multi_reduction <add>, %1051, %cst_145 [2] : vector<2x16x16xf32> to vector<2x16xf32>
    %1053 = vector.shape_cast %1052 : vector<2x16xf32> to vector<2x16x1xf32>
    %1054 = tpu.reciprocal %1053 {approx = true} : vector<2x16x1xf32> -> vector<2x16x1xf32>
    %1055 = vector.broadcast %1054 : vector<2x16x1xf32> to vector<2x16x16xf32>
    %1056 = arith.mulf %1051, %1055 : vector<2x16x16xf32>
    %1057 = vector.extract_strided_slice %819 {offsets = [0, 10, 0], sizes = [2, 1, 16], strides = [1, 1, 1]} : vector<2x32x16xf32> to vector<2x1x16xf32>
    %1058 = vector.broadcast %1057 : vector<2x1x16xf32> to vector<2x16x16xf32>
    %1059 = arith.mulf %1056, %1058 : vector<2x16x16xf32>
    %cst_146 = arith.constant dense<0.000000e+00> : vector<2x16xf32>
    %1060 = vector.multi_reduction <add>, %1059, %cst_146 [2] : vector<2x16x16xf32> to vector<2x16xf32>
    %1061 = vector.shape_cast %1060 : vector<2x16xf32> to vector<2x16x1xf32>
    %1062 = vector.extract_strided_slice %819 {offsets = [0, 11, 0], sizes = [2, 1, 16], strides = [1, 1, 1]} : vector<2x32x16xf32> to vector<2x1x16xf32>
    %1063 = vector.broadcast %1062 : vector<2x1x16xf32> to vector<2x16x16xf32>
    %1064 = arith.mulf %1056, %1063 : vector<2x16x16xf32>
    %cst_147 = arith.constant dense<0.000000e+00> : vector<2x16xf32>
    %1065 = vector.multi_reduction <add>, %1064, %cst_147 [2] : vector<2x16x16xf32> to vector<2x16xf32>
    %1066 = vector.shape_cast %1065 : vector<2x16xf32> to vector<2x16x1xf32>
    %1067 = vector.extract_strided_slice %803 {offsets = [10, 0], sizes = [1, 32], strides = [1, 1]} : vector<32x32xf32> to vector<1x32xf32>
    %1068 = vector.shape_cast %1067 : vector<1x32xf32> to vector<1x1x32xf32>
    %1069 = vector.broadcast %1061 : vector<2x16x1xf32> to vector<2x16x32xf32>
    %1070 = vector.broadcast %1068 : vector<1x1x32xf32> to vector<2x16x32xf32>
    %1071 = arith.mulf %1069, %1070 : vector<2x16x32xf32>
    %1072 = arith.addf %1035, %1071 : vector<2x16x32xf32>
    %1073 = vector.extract_strided_slice %803 {offsets = [11, 0], sizes = [1, 32], strides = [1, 1]} : vector<32x32xf32> to vector<1x32xf32>
    %1074 = vector.shape_cast %1073 : vector<1x32xf32> to vector<1x1x32xf32>
    %1075 = vector.broadcast %1066 : vector<2x16x1xf32> to vector<2x16x32xf32>
    %1076 = vector.broadcast %1074 : vector<1x1x32xf32> to vector<2x16x32xf32>
    %1077 = arith.mulf %1075, %1076 : vector<2x16x32xf32>
    %1078 = arith.addf %1072, %1077 : vector<2x16x32xf32>
    %1079 = vector.extract_strided_slice %813 {offsets = [0, 0, 12], sizes = [2, 16, 1], strides = [1, 1, 1]} : vector<2x16x32xf32> to vector<2x16x1xf32>
    %1080 = vector.extract_strided_slice %818 {offsets = [0, 12, 0], sizes = [2, 1, 16], strides = [1, 1, 1]} : vector<2x32x16xf32> to vector<2x1x16xf32>
    %1081 = vector.broadcast %1079 : vector<2x16x1xf32> to vector<2x16x16xf32>
    %1082 = vector.broadcast %1080 : vector<2x1x16xf32> to vector<2x16x16xf32>
    %1083 = arith.mulf %1081, %1082 : vector<2x16x16xf32>
    %1084 = vector.extract_strided_slice %813 {offsets = [0, 0, 13], sizes = [2, 16, 1], strides = [1, 1, 1]} : vector<2x16x32xf32> to vector<2x16x1xf32>
    %1085 = vector.extract_strided_slice %818 {offsets = [0, 13, 0], sizes = [2, 1, 16], strides = [1, 1, 1]} : vector<2x32x16xf32> to vector<2x1x16xf32>
    %1086 = vector.broadcast %1084 : vector<2x16x1xf32> to vector<2x16x16xf32>
    %1087 = vector.broadcast %1085 : vector<2x1x16xf32> to vector<2x16x16xf32>
    %1088 = arith.mulf %1086, %1087 : vector<2x16x16xf32>
    %1089 = arith.addf %1083, %1088 : vector<2x16x16xf32>
    %cst_148 = arith.constant dense<0xFF800000> : vector<2x16xf32>
    %1090 = vector.multi_reduction <maximumf>, %1089, %cst_148 [2] : vector<2x16x16xf32> to vector<2x16xf32>
    %1091 = vector.shape_cast %1090 : vector<2x16xf32> to vector<2x16x1xf32>
    %1092 = vector.broadcast %1091 : vector<2x16x1xf32> to vector<2x16x16xf32>
    %1093 = arith.subf %1089, %1092 : vector<2x16x16xf32>
    %1094 = math.exp %1093 : vector<2x16x16xf32>
    %cst_149 = arith.constant dense<0.000000e+00> : vector<2x16xf32>
    %1095 = vector.multi_reduction <add>, %1094, %cst_149 [2] : vector<2x16x16xf32> to vector<2x16xf32>
    %1096 = vector.shape_cast %1095 : vector<2x16xf32> to vector<2x16x1xf32>
    %1097 = tpu.reciprocal %1096 {approx = true} : vector<2x16x1xf32> -> vector<2x16x1xf32>
    %1098 = vector.broadcast %1097 : vector<2x16x1xf32> to vector<2x16x16xf32>
    %1099 = arith.mulf %1094, %1098 : vector<2x16x16xf32>
    %1100 = vector.extract_strided_slice %819 {offsets = [0, 12, 0], sizes = [2, 1, 16], strides = [1, 1, 1]} : vector<2x32x16xf32> to vector<2x1x16xf32>
    %1101 = vector.broadcast %1100 : vector<2x1x16xf32> to vector<2x16x16xf32>
    %1102 = arith.mulf %1099, %1101 : vector<2x16x16xf32>
    %cst_150 = arith.constant dense<0.000000e+00> : vector<2x16xf32>
    %1103 = vector.multi_reduction <add>, %1102, %cst_150 [2] : vector<2x16x16xf32> to vector<2x16xf32>
    %1104 = vector.shape_cast %1103 : vector<2x16xf32> to vector<2x16x1xf32>
    %1105 = vector.extract_strided_slice %819 {offsets = [0, 13, 0], sizes = [2, 1, 16], strides = [1, 1, 1]} : vector<2x32x16xf32> to vector<2x1x16xf32>
    %1106 = vector.broadcast %1105 : vector<2x1x16xf32> to vector<2x16x16xf32>
    %1107 = arith.mulf %1099, %1106 : vector<2x16x16xf32>
    %cst_151 = arith.constant dense<0.000000e+00> : vector<2x16xf32>
    %1108 = vector.multi_reduction <add>, %1107, %cst_151 [2] : vector<2x16x16xf32> to vector<2x16xf32>
    %1109 = vector.shape_cast %1108 : vector<2x16xf32> to vector<2x16x1xf32>
    %1110 = vector.extract_strided_slice %803 {offsets = [12, 0], sizes = [1, 32], strides = [1, 1]} : vector<32x32xf32> to vector<1x32xf32>
    %1111 = vector.shape_cast %1110 : vector<1x32xf32> to vector<1x1x32xf32>
    %1112 = vector.broadcast %1104 : vector<2x16x1xf32> to vector<2x16x32xf32>
    %1113 = vector.broadcast %1111 : vector<1x1x32xf32> to vector<2x16x32xf32>
    %1114 = arith.mulf %1112, %1113 : vector<2x16x32xf32>
    %1115 = arith.addf %1078, %1114 : vector<2x16x32xf32>
    %1116 = vector.extract_strided_slice %803 {offsets = [13, 0], sizes = [1, 32], strides = [1, 1]} : vector<32x32xf32> to vector<1x32xf32>
    %1117 = vector.shape_cast %1116 : vector<1x32xf32> to vector<1x1x32xf32>
    %1118 = vector.broadcast %1109 : vector<2x16x1xf32> to vector<2x16x32xf32>
    %1119 = vector.broadcast %1117 : vector<1x1x32xf32> to vector<2x16x32xf32>
    %1120 = arith.mulf %1118, %1119 : vector<2x16x32xf32>
    %1121 = arith.addf %1115, %1120 : vector<2x16x32xf32>
    %1122 = vector.extract_strided_slice %813 {offsets = [0, 0, 14], sizes = [2, 16, 1], strides = [1, 1, 1]} : vector<2x16x32xf32> to vector<2x16x1xf32>
    %1123 = vector.extract_strided_slice %818 {offsets = [0, 14, 0], sizes = [2, 1, 16], strides = [1, 1, 1]} : vector<2x32x16xf32> to vector<2x1x16xf32>
    %1124 = vector.broadcast %1122 : vector<2x16x1xf32> to vector<2x16x16xf32>
    %1125 = vector.broadcast %1123 : vector<2x1x16xf32> to vector<2x16x16xf32>
    %1126 = arith.mulf %1124, %1125 : vector<2x16x16xf32>
    %1127 = vector.extract_strided_slice %813 {offsets = [0, 0, 15], sizes = [2, 16, 1], strides = [1, 1, 1]} : vector<2x16x32xf32> to vector<2x16x1xf32>
    %1128 = vector.extract_strided_slice %818 {offsets = [0, 15, 0], sizes = [2, 1, 16], strides = [1, 1, 1]} : vector<2x32x16xf32> to vector<2x1x16xf32>
    %1129 = vector.broadcast %1127 : vector<2x16x1xf32> to vector<2x16x16xf32>
    %1130 = vector.broadcast %1128 : vector<2x1x16xf32> to vector<2x16x16xf32>
    %1131 = arith.mulf %1129, %1130 : vector<2x16x16xf32>
    %1132 = arith.addf %1126, %1131 : vector<2x16x16xf32>
    %cst_152 = arith.constant dense<0xFF800000> : vector<2x16xf32>
    %1133 = vector.multi_reduction <maximumf>, %1132, %cst_152 [2] : vector<2x16x16xf32> to vector<2x16xf32>
    %1134 = vector.shape_cast %1133 : vector<2x16xf32> to vector<2x16x1xf32>
    %1135 = vector.broadcast %1134 : vector<2x16x1xf32> to vector<2x16x16xf32>
    %1136 = arith.subf %1132, %1135 : vector<2x16x16xf32>
    %1137 = math.exp %1136 : vector<2x16x16xf32>
    %cst_153 = arith.constant dense<0.000000e+00> : vector<2x16xf32>
    %1138 = vector.multi_reduction <add>, %1137, %cst_153 [2] : vector<2x16x16xf32> to vector<2x16xf32>
    %1139 = vector.shape_cast %1138 : vector<2x16xf32> to vector<2x16x1xf32>
    %1140 = tpu.reciprocal %1139 {approx = true} : vector<2x16x1xf32> -> vector<2x16x1xf32>
    %1141 = vector.broadcast %1140 : vector<2x16x1xf32> to vector<2x16x16xf32>
    %1142 = arith.mulf %1137, %1141 : vector<2x16x16xf32>
    %1143 = vector.extract_strided_slice %819 {offsets = [0, 14, 0], sizes = [2, 1, 16], strides = [1, 1, 1]} : vector<2x32x16xf32> to vector<2x1x16xf32>
    %1144 = vector.broadcast %1143 : vector<2x1x16xf32> to vector<2x16x16xf32>
    %1145 = arith.mulf %1142, %1144 : vector<2x16x16xf32>
    %cst_154 = arith.constant dense<0.000000e+00> : vector<2x16xf32>
    %1146 = vector.multi_reduction <add>, %1145, %cst_154 [2] : vector<2x16x16xf32> to vector<2x16xf32>
    %1147 = vector.shape_cast %1146 : vector<2x16xf32> to vector<2x16x1xf32>
    %1148 = vector.extract_strided_slice %819 {offsets = [0, 15, 0], sizes = [2, 1, 16], strides = [1, 1, 1]} : vector<2x32x16xf32> to vector<2x1x16xf32>
    %1149 = vector.broadcast %1148 : vector<2x1x16xf32> to vector<2x16x16xf32>
    %1150 = arith.mulf %1142, %1149 : vector<2x16x16xf32>
    %cst_155 = arith.constant dense<0.000000e+00> : vector<2x16xf32>
    %1151 = vector.multi_reduction <add>, %1150, %cst_155 [2] : vector<2x16x16xf32> to vector<2x16xf32>
    %1152 = vector.shape_cast %1151 : vector<2x16xf32> to vector<2x16x1xf32>
    %1153 = vector.extract_strided_slice %803 {offsets = [14, 0], sizes = [1, 32], strides = [1, 1]} : vector<32x32xf32> to vector<1x32xf32>
    %1154 = vector.shape_cast %1153 : vector<1x32xf32> to vector<1x1x32xf32>
    %1155 = vector.broadcast %1147 : vector<2x16x1xf32> to vector<2x16x32xf32>
    %1156 = vector.broadcast %1154 : vector<1x1x32xf32> to vector<2x16x32xf32>
    %1157 = arith.mulf %1155, %1156 : vector<2x16x32xf32>
    %1158 = arith.addf %1121, %1157 : vector<2x16x32xf32>
    %1159 = vector.extract_strided_slice %803 {offsets = [15, 0], sizes = [1, 32], strides = [1, 1]} : vector<32x32xf32> to vector<1x32xf32>
    %1160 = vector.shape_cast %1159 : vector<1x32xf32> to vector<1x1x32xf32>
    %1161 = vector.broadcast %1152 : vector<2x16x1xf32> to vector<2x16x32xf32>
    %1162 = vector.broadcast %1160 : vector<1x1x32xf32> to vector<2x16x32xf32>
    %1163 = arith.mulf %1161, %1162 : vector<2x16x32xf32>
    %1164 = arith.addf %1158, %1163 : vector<2x16x32xf32>
    %1165 = vector.extract_strided_slice %813 {offsets = [0, 0, 16], sizes = [2, 16, 1], strides = [1, 1, 1]} : vector<2x16x32xf32> to vector<2x16x1xf32>
    %1166 = vector.extract_strided_slice %818 {offsets = [0, 16, 0], sizes = [2, 1, 16], strides = [1, 1, 1]} : vector<2x32x16xf32> to vector<2x1x16xf32>
    %1167 = vector.broadcast %1165 : vector<2x16x1xf32> to vector<2x16x16xf32>
    %1168 = vector.broadcast %1166 : vector<2x1x16xf32> to vector<2x16x16xf32>
    %1169 = arith.mulf %1167, %1168 : vector<2x16x16xf32>
    %1170 = vector.extract_strided_slice %813 {offsets = [0, 0, 17], sizes = [2, 16, 1], strides = [1, 1, 1]} : vector<2x16x32xf32> to vector<2x16x1xf32>
    %1171 = vector.extract_strided_slice %818 {offsets = [0, 17, 0], sizes = [2, 1, 16], strides = [1, 1, 1]} : vector<2x32x16xf32> to vector<2x1x16xf32>
    %1172 = vector.broadcast %1170 : vector<2x16x1xf32> to vector<2x16x16xf32>
    %1173 = vector.broadcast %1171 : vector<2x1x16xf32> to vector<2x16x16xf32>
    %1174 = arith.mulf %1172, %1173 : vector<2x16x16xf32>
    %1175 = arith.addf %1169, %1174 : vector<2x16x16xf32>
    %cst_156 = arith.constant dense<0xFF800000> : vector<2x16xf32>
    %1176 = vector.multi_reduction <maximumf>, %1175, %cst_156 [2] : vector<2x16x16xf32> to vector<2x16xf32>
    %1177 = vector.shape_cast %1176 : vector<2x16xf32> to vector<2x16x1xf32>
    %1178 = vector.broadcast %1177 : vector<2x16x1xf32> to vector<2x16x16xf32>
    %1179 = arith.subf %1175, %1178 : vector<2x16x16xf32>
    %1180 = math.exp %1179 : vector<2x16x16xf32>
    %cst_157 = arith.constant dense<0.000000e+00> : vector<2x16xf32>
    %1181 = vector.multi_reduction <add>, %1180, %cst_157 [2] : vector<2x16x16xf32> to vector<2x16xf32>
    %1182 = vector.shape_cast %1181 : vector<2x16xf32> to vector<2x16x1xf32>
    %1183 = tpu.reciprocal %1182 {approx = true} : vector<2x16x1xf32> -> vector<2x16x1xf32>
    %1184 = vector.broadcast %1183 : vector<2x16x1xf32> to vector<2x16x16xf32>
    %1185 = arith.mulf %1180, %1184 : vector<2x16x16xf32>
    %1186 = vector.extract_strided_slice %819 {offsets = [0, 16, 0], sizes = [2, 1, 16], strides = [1, 1, 1]} : vector<2x32x16xf32> to vector<2x1x16xf32>
    %1187 = vector.broadcast %1186 : vector<2x1x16xf32> to vector<2x16x16xf32>
    %1188 = arith.mulf %1185, %1187 : vector<2x16x16xf32>
    %cst_158 = arith.constant dense<0.000000e+00> : vector<2x16xf32>
    %1189 = vector.multi_reduction <add>, %1188, %cst_158 [2] : vector<2x16x16xf32> to vector<2x16xf32>
    %1190 = vector.shape_cast %1189 : vector<2x16xf32> to vector<2x16x1xf32>
    %1191 = vector.extract_strided_slice %819 {offsets = [0, 17, 0], sizes = [2, 1, 16], strides = [1, 1, 1]} : vector<2x32x16xf32> to vector<2x1x16xf32>
    %1192 = vector.broadcast %1191 : vector<2x1x16xf32> to vector<2x16x16xf32>
    %1193 = arith.mulf %1185, %1192 : vector<2x16x16xf32>
    %cst_159 = arith.constant dense<0.000000e+00> : vector<2x16xf32>
    %1194 = vector.multi_reduction <add>, %1193, %cst_159 [2] : vector<2x16x16xf32> to vector<2x16xf32>
    %1195 = vector.shape_cast %1194 : vector<2x16xf32> to vector<2x16x1xf32>
    %1196 = vector.extract_strided_slice %803 {offsets = [16, 0], sizes = [1, 32], strides = [1, 1]} : vector<32x32xf32> to vector<1x32xf32>
    %1197 = vector.shape_cast %1196 : vector<1x32xf32> to vector<1x1x32xf32>
    %1198 = vector.broadcast %1190 : vector<2x16x1xf32> to vector<2x16x32xf32>
    %1199 = vector.broadcast %1197 : vector<1x1x32xf32> to vector<2x16x32xf32>
    %1200 = arith.mulf %1198, %1199 : vector<2x16x32xf32>
    %1201 = arith.addf %1164, %1200 : vector<2x16x32xf32>
    %1202 = vector.extract_strided_slice %803 {offsets = [17, 0], sizes = [1, 32], strides = [1, 1]} : vector<32x32xf32> to vector<1x32xf32>
    %1203 = vector.shape_cast %1202 : vector<1x32xf32> to vector<1x1x32xf32>
    %1204 = vector.broadcast %1195 : vector<2x16x1xf32> to vector<2x16x32xf32>
    %1205 = vector.broadcast %1203 : vector<1x1x32xf32> to vector<2x16x32xf32>
    %1206 = arith.mulf %1204, %1205 : vector<2x16x32xf32>
    %1207 = arith.addf %1201, %1206 : vector<2x16x32xf32>
    %1208 = vector.extract_strided_slice %813 {offsets = [0, 0, 18], sizes = [2, 16, 1], strides = [1, 1, 1]} : vector<2x16x32xf32> to vector<2x16x1xf32>
    %1209 = vector.extract_strided_slice %818 {offsets = [0, 18, 0], sizes = [2, 1, 16], strides = [1, 1, 1]} : vector<2x32x16xf32> to vector<2x1x16xf32>
    %1210 = vector.broadcast %1208 : vector<2x16x1xf32> to vector<2x16x16xf32>
    %1211 = vector.broadcast %1209 : vector<2x1x16xf32> to vector<2x16x16xf32>
    %1212 = arith.mulf %1210, %1211 : vector<2x16x16xf32>
    %1213 = vector.extract_strided_slice %813 {offsets = [0, 0, 19], sizes = [2, 16, 1], strides = [1, 1, 1]} : vector<2x16x32xf32> to vector<2x16x1xf32>
    %1214 = vector.extract_strided_slice %818 {offsets = [0, 19, 0], sizes = [2, 1, 16], strides = [1, 1, 1]} : vector<2x32x16xf32> to vector<2x1x16xf32>
    %1215 = vector.broadcast %1213 : vector<2x16x1xf32> to vector<2x16x16xf32>
    %1216 = vector.broadcast %1214 : vector<2x1x16xf32> to vector<2x16x16xf32>
    %1217 = arith.mulf %1215, %1216 : vector<2x16x16xf32>
    %1218 = arith.addf %1212, %1217 : vector<2x16x16xf32>
    %cst_160 = arith.constant dense<0xFF800000> : vector<2x16xf32>
    %1219 = vector.multi_reduction <maximumf>, %1218, %cst_160 [2] : vector<2x16x16xf32> to vector<2x16xf32>
    %1220 = vector.shape_cast %1219 : vector<2x16xf32> to vector<2x16x1xf32>
    %1221 = vector.broadcast %1220 : vector<2x16x1xf32> to vector<2x16x16xf32>
    %1222 = arith.subf %1218, %1221 : vector<2x16x16xf32>
    %1223 = math.exp %1222 : vector<2x16x16xf32>
    %cst_161 = arith.constant dense<0.000000e+00> : vector<2x16xf32>
    %1224 = vector.multi_reduction <add>, %1223, %cst_161 [2] : vector<2x16x16xf32> to vector<2x16xf32>
    %1225 = vector.shape_cast %1224 : vector<2x16xf32> to vector<2x16x1xf32>
    %1226 = tpu.reciprocal %1225 {approx = true} : vector<2x16x1xf32> -> vector<2x16x1xf32>
    %1227 = vector.broadcast %1226 : vector<2x16x1xf32> to vector<2x16x16xf32>
    %1228 = arith.mulf %1223, %1227 : vector<2x16x16xf32>
    %1229 = vector.extract_strided_slice %819 {offsets = [0, 18, 0], sizes = [2, 1, 16], strides = [1, 1, 1]} : vector<2x32x16xf32> to vector<2x1x16xf32>
    %1230 = vector.broadcast %1229 : vector<2x1x16xf32> to vector<2x16x16xf32>
    %1231 = arith.mulf %1228, %1230 : vector<2x16x16xf32>
    %cst_162 = arith.constant dense<0.000000e+00> : vector<2x16xf32>
    %1232 = vector.multi_reduction <add>, %1231, %cst_162 [2] : vector<2x16x16xf32> to vector<2x16xf32>
    %1233 = vector.shape_cast %1232 : vector<2x16xf32> to vector<2x16x1xf32>
    %1234 = vector.extract_strided_slice %819 {offsets = [0, 19, 0], sizes = [2, 1, 16], strides = [1, 1, 1]} : vector<2x32x16xf32> to vector<2x1x16xf32>
    %1235 = vector.broadcast %1234 : vector<2x1x16xf32> to vector<2x16x16xf32>
    %1236 = arith.mulf %1228, %1235 : vector<2x16x16xf32>
    %cst_163 = arith.constant dense<0.000000e+00> : vector<2x16xf32>
    %1237 = vector.multi_reduction <add>, %1236, %cst_163 [2] : vector<2x16x16xf32> to vector<2x16xf32>
    %1238 = vector.shape_cast %1237 : vector<2x16xf32> to vector<2x16x1xf32>
    %1239 = vector.extract_strided_slice %803 {offsets = [18, 0], sizes = [1, 32], strides = [1, 1]} : vector<32x32xf32> to vector<1x32xf32>
    %1240 = vector.shape_cast %1239 : vector<1x32xf32> to vector<1x1x32xf32>
    %1241 = vector.broadcast %1233 : vector<2x16x1xf32> to vector<2x16x32xf32>
    %1242 = vector.broadcast %1240 : vector<1x1x32xf32> to vector<2x16x32xf32>
    %1243 = arith.mulf %1241, %1242 : vector<2x16x32xf32>
    %1244 = arith.addf %1207, %1243 : vector<2x16x32xf32>
    %1245 = vector.extract_strided_slice %803 {offsets = [19, 0], sizes = [1, 32], strides = [1, 1]} : vector<32x32xf32> to vector<1x32xf32>
    %1246 = vector.shape_cast %1245 : vector<1x32xf32> to vector<1x1x32xf32>
    %1247 = vector.broadcast %1238 : vector<2x16x1xf32> to vector<2x16x32xf32>
    %1248 = vector.broadcast %1246 : vector<1x1x32xf32> to vector<2x16x32xf32>
    %1249 = arith.mulf %1247, %1248 : vector<2x16x32xf32>
    %1250 = arith.addf %1244, %1249 : vector<2x16x32xf32>
    %1251 = vector.extract_strided_slice %813 {offsets = [0, 0, 20], sizes = [2, 16, 1], strides = [1, 1, 1]} : vector<2x16x32xf32> to vector<2x16x1xf32>
    %1252 = vector.extract_strided_slice %818 {offsets = [0, 20, 0], sizes = [2, 1, 16], strides = [1, 1, 1]} : vector<2x32x16xf32> to vector<2x1x16xf32>
    %1253 = vector.broadcast %1251 : vector<2x16x1xf32> to vector<2x16x16xf32>
    %1254 = vector.broadcast %1252 : vector<2x1x16xf32> to vector<2x16x16xf32>
    %1255 = arith.mulf %1253, %1254 : vector<2x16x16xf32>
    %1256 = vector.extract_strided_slice %813 {offsets = [0, 0, 21], sizes = [2, 16, 1], strides = [1, 1, 1]} : vector<2x16x32xf32> to vector<2x16x1xf32>
    %1257 = vector.extract_strided_slice %818 {offsets = [0, 21, 0], sizes = [2, 1, 16], strides = [1, 1, 1]} : vector<2x32x16xf32> to vector<2x1x16xf32>
    %1258 = vector.broadcast %1256 : vector<2x16x1xf32> to vector<2x16x16xf32>
    %1259 = vector.broadcast %1257 : vector<2x1x16xf32> to vector<2x16x16xf32>
    %1260 = arith.mulf %1258, %1259 : vector<2x16x16xf32>
    %1261 = arith.addf %1255, %1260 : vector<2x16x16xf32>
    %cst_164 = arith.constant dense<0xFF800000> : vector<2x16xf32>
    %1262 = vector.multi_reduction <maximumf>, %1261, %cst_164 [2] : vector<2x16x16xf32> to vector<2x16xf32>
    %1263 = vector.shape_cast %1262 : vector<2x16xf32> to vector<2x16x1xf32>
    %1264 = vector.broadcast %1263 : vector<2x16x1xf32> to vector<2x16x16xf32>
    %1265 = arith.subf %1261, %1264 : vector<2x16x16xf32>
    %1266 = math.exp %1265 : vector<2x16x16xf32>
    %cst_165 = arith.constant dense<0.000000e+00> : vector<2x16xf32>
    %1267 = vector.multi_reduction <add>, %1266, %cst_165 [2] : vector<2x16x16xf32> to vector<2x16xf32>
    %1268 = vector.shape_cast %1267 : vector<2x16xf32> to vector<2x16x1xf32>
    %1269 = tpu.reciprocal %1268 {approx = true} : vector<2x16x1xf32> -> vector<2x16x1xf32>
    %1270 = vector.broadcast %1269 : vector<2x16x1xf32> to vector<2x16x16xf32>
    %1271 = arith.mulf %1266, %1270 : vector<2x16x16xf32>
    %1272 = vector.extract_strided_slice %819 {offsets = [0, 20, 0], sizes = [2, 1, 16], strides = [1, 1, 1]} : vector<2x32x16xf32> to vector<2x1x16xf32>
    %1273 = vector.broadcast %1272 : vector<2x1x16xf32> to vector<2x16x16xf32>
    %1274 = arith.mulf %1271, %1273 : vector<2x16x16xf32>
    %cst_166 = arith.constant dense<0.000000e+00> : vector<2x16xf32>
    %1275 = vector.multi_reduction <add>, %1274, %cst_166 [2] : vector<2x16x16xf32> to vector<2x16xf32>
    %1276 = vector.shape_cast %1275 : vector<2x16xf32> to vector<2x16x1xf32>
    %1277 = vector.extract_strided_slice %819 {offsets = [0, 21, 0], sizes = [2, 1, 16], strides = [1, 1, 1]} : vector<2x32x16xf32> to vector<2x1x16xf32>
    %1278 = vector.broadcast %1277 : vector<2x1x16xf32> to vector<2x16x16xf32>
    %1279 = arith.mulf %1271, %1278 : vector<2x16x16xf32>
    %cst_167 = arith.constant dense<0.000000e+00> : vector<2x16xf32>
    %1280 = vector.multi_reduction <add>, %1279, %cst_167 [2] : vector<2x16x16xf32> to vector<2x16xf32>
    %1281 = vector.shape_cast %1280 : vector<2x16xf32> to vector<2x16x1xf32>
    %1282 = vector.extract_strided_slice %803 {offsets = [20, 0], sizes = [1, 32], strides = [1, 1]} : vector<32x32xf32> to vector<1x32xf32>
    %1283 = vector.shape_cast %1282 : vector<1x32xf32> to vector<1x1x32xf32>
    %1284 = vector.broadcast %1276 : vector<2x16x1xf32> to vector<2x16x32xf32>
    %1285 = vector.broadcast %1283 : vector<1x1x32xf32> to vector<2x16x32xf32>
    %1286 = arith.mulf %1284, %1285 : vector<2x16x32xf32>
    %1287 = arith.addf %1250, %1286 : vector<2x16x32xf32>
    %1288 = vector.extract_strided_slice %803 {offsets = [21, 0], sizes = [1, 32], strides = [1, 1]} : vector<32x32xf32> to vector<1x32xf32>
    %1289 = vector.shape_cast %1288 : vector<1x32xf32> to vector<1x1x32xf32>
    %1290 = vector.broadcast %1281 : vector<2x16x1xf32> to vector<2x16x32xf32>
    %1291 = vector.broadcast %1289 : vector<1x1x32xf32> to vector<2x16x32xf32>
    %1292 = arith.mulf %1290, %1291 : vector<2x16x32xf32>
    %1293 = arith.addf %1287, %1292 : vector<2x16x32xf32>
    %1294 = vector.extract_strided_slice %813 {offsets = [0, 0, 22], sizes = [2, 16, 1], strides = [1, 1, 1]} : vector<2x16x32xf32> to vector<2x16x1xf32>
    %1295 = vector.extract_strided_slice %818 {offsets = [0, 22, 0], sizes = [2, 1, 16], strides = [1, 1, 1]} : vector<2x32x16xf32> to vector<2x1x16xf32>
    %1296 = vector.broadcast %1294 : vector<2x16x1xf32> to vector<2x16x16xf32>
    %1297 = vector.broadcast %1295 : vector<2x1x16xf32> to vector<2x16x16xf32>
    %1298 = arith.mulf %1296, %1297 : vector<2x16x16xf32>
    %1299 = vector.extract_strided_slice %813 {offsets = [0, 0, 23], sizes = [2, 16, 1], strides = [1, 1, 1]} : vector<2x16x32xf32> to vector<2x16x1xf32>
    %1300 = vector.extract_strided_slice %818 {offsets = [0, 23, 0], sizes = [2, 1, 16], strides = [1, 1, 1]} : vector<2x32x16xf32> to vector<2x1x16xf32>
    %1301 = vector.broadcast %1299 : vector<2x16x1xf32> to vector<2x16x16xf32>
    %1302 = vector.broadcast %1300 : vector<2x1x16xf32> to vector<2x16x16xf32>
    %1303 = arith.mulf %1301, %1302 : vector<2x16x16xf32>
    %1304 = arith.addf %1298, %1303 : vector<2x16x16xf32>
    %cst_168 = arith.constant dense<0xFF800000> : vector<2x16xf32>
    %1305 = vector.multi_reduction <maximumf>, %1304, %cst_168 [2] : vector<2x16x16xf32> to vector<2x16xf32>
    %1306 = vector.shape_cast %1305 : vector<2x16xf32> to vector<2x16x1xf32>
    %1307 = vector.broadcast %1306 : vector<2x16x1xf32> to vector<2x16x16xf32>
    %1308 = arith.subf %1304, %1307 : vector<2x16x16xf32>
    %1309 = math.exp %1308 : vector<2x16x16xf32>
    %cst_169 = arith.constant dense<0.000000e+00> : vector<2x16xf32>
    %1310 = vector.multi_reduction <add>, %1309, %cst_169 [2] : vector<2x16x16xf32> to vector<2x16xf32>
    %1311 = vector.shape_cast %1310 : vector<2x16xf32> to vector<2x16x1xf32>
    %1312 = tpu.reciprocal %1311 {approx = true} : vector<2x16x1xf32> -> vector<2x16x1xf32>
    %1313 = vector.broadcast %1312 : vector<2x16x1xf32> to vector<2x16x16xf32>
    %1314 = arith.mulf %1309, %1313 : vector<2x16x16xf32>
    %1315 = vector.extract_strided_slice %819 {offsets = [0, 22, 0], sizes = [2, 1, 16], strides = [1, 1, 1]} : vector<2x32x16xf32> to vector<2x1x16xf32>
    %1316 = vector.broadcast %1315 : vector<2x1x16xf32> to vector<2x16x16xf32>
    %1317 = arith.mulf %1314, %1316 : vector<2x16x16xf32>
    %cst_170 = arith.constant dense<0.000000e+00> : vector<2x16xf32>
    %1318 = vector.multi_reduction <add>, %1317, %cst_170 [2] : vector<2x16x16xf32> to vector<2x16xf32>
    %1319 = vector.shape_cast %1318 : vector<2x16xf32> to vector<2x16x1xf32>
    %1320 = vector.extract_strided_slice %819 {offsets = [0, 23, 0], sizes = [2, 1, 16], strides = [1, 1, 1]} : vector<2x32x16xf32> to vector<2x1x16xf32>
    %1321 = vector.broadcast %1320 : vector<2x1x16xf32> to vector<2x16x16xf32>
    %1322 = arith.mulf %1314, %1321 : vector<2x16x16xf32>
    %cst_171 = arith.constant dense<0.000000e+00> : vector<2x16xf32>
    %1323 = vector.multi_reduction <add>, %1322, %cst_171 [2] : vector<2x16x16xf32> to vector<2x16xf32>
    %1324 = vector.shape_cast %1323 : vector<2x16xf32> to vector<2x16x1xf32>
    %1325 = vector.extract_strided_slice %803 {offsets = [22, 0], sizes = [1, 32], strides = [1, 1]} : vector<32x32xf32> to vector<1x32xf32>
    %1326 = vector.shape_cast %1325 : vector<1x32xf32> to vector<1x1x32xf32>
    %1327 = vector.broadcast %1319 : vector<2x16x1xf32> to vector<2x16x32xf32>
    %1328 = vector.broadcast %1326 : vector<1x1x32xf32> to vector<2x16x32xf32>
    %1329 = arith.mulf %1327, %1328 : vector<2x16x32xf32>
    %1330 = arith.addf %1293, %1329 : vector<2x16x32xf32>
    %1331 = vector.extract_strided_slice %803 {offsets = [23, 0], sizes = [1, 32], strides = [1, 1]} : vector<32x32xf32> to vector<1x32xf32>
    %1332 = vector.shape_cast %1331 : vector<1x32xf32> to vector<1x1x32xf32>
    %1333 = vector.broadcast %1324 : vector<2x16x1xf32> to vector<2x16x32xf32>
    %1334 = vector.broadcast %1332 : vector<1x1x32xf32> to vector<2x16x32xf32>
    %1335 = arith.mulf %1333, %1334 : vector<2x16x32xf32>
    %1336 = arith.addf %1330, %1335 : vector<2x16x32xf32>
    %1337 = vector.extract_strided_slice %813 {offsets = [0, 0, 24], sizes = [2, 16, 1], strides = [1, 1, 1]} : vector<2x16x32xf32> to vector<2x16x1xf32>
    %1338 = vector.extract_strided_slice %818 {offsets = [0, 24, 0], sizes = [2, 1, 16], strides = [1, 1, 1]} : vector<2x32x16xf32> to vector<2x1x16xf32>
    %1339 = vector.broadcast %1337 : vector<2x16x1xf32> to vector<2x16x16xf32>
    %1340 = vector.broadcast %1338 : vector<2x1x16xf32> to vector<2x16x16xf32>
    %1341 = arith.mulf %1339, %1340 : vector<2x16x16xf32>
    %1342 = vector.extract_strided_slice %813 {offsets = [0, 0, 25], sizes = [2, 16, 1], strides = [1, 1, 1]} : vector<2x16x32xf32> to vector<2x16x1xf32>
    %1343 = vector.extract_strided_slice %818 {offsets = [0, 25, 0], sizes = [2, 1, 16], strides = [1, 1, 1]} : vector<2x32x16xf32> to vector<2x1x16xf32>
    %1344 = vector.broadcast %1342 : vector<2x16x1xf32> to vector<2x16x16xf32>
    %1345 = vector.broadcast %1343 : vector<2x1x16xf32> to vector<2x16x16xf32>
    %1346 = arith.mulf %1344, %1345 : vector<2x16x16xf32>
    %1347 = arith.addf %1341, %1346 : vector<2x16x16xf32>
    %cst_172 = arith.constant dense<0xFF800000> : vector<2x16xf32>
    %1348 = vector.multi_reduction <maximumf>, %1347, %cst_172 [2] : vector<2x16x16xf32> to vector<2x16xf32>
    %1349 = vector.shape_cast %1348 : vector<2x16xf32> to vector<2x16x1xf32>
    %1350 = vector.broadcast %1349 : vector<2x16x1xf32> to vector<2x16x16xf32>
    %1351 = arith.subf %1347, %1350 : vector<2x16x16xf32>
    %1352 = math.exp %1351 : vector<2x16x16xf32>
    %cst_173 = arith.constant dense<0.000000e+00> : vector<2x16xf32>
    %1353 = vector.multi_reduction <add>, %1352, %cst_173 [2] : vector<2x16x16xf32> to vector<2x16xf32>
    %1354 = vector.shape_cast %1353 : vector<2x16xf32> to vector<2x16x1xf32>
    %1355 = tpu.reciprocal %1354 {approx = true} : vector<2x16x1xf32> -> vector<2x16x1xf32>
    %1356 = vector.broadcast %1355 : vector<2x16x1xf32> to vector<2x16x16xf32>
    %1357 = arith.mulf %1352, %1356 : vector<2x16x16xf32>
    %1358 = vector.extract_strided_slice %819 {offsets = [0, 24, 0], sizes = [2, 1, 16], strides = [1, 1, 1]} : vector<2x32x16xf32> to vector<2x1x16xf32>
    %1359 = vector.broadcast %1358 : vector<2x1x16xf32> to vector<2x16x16xf32>
    %1360 = arith.mulf %1357, %1359 : vector<2x16x16xf32>
    %cst_174 = arith.constant dense<0.000000e+00> : vector<2x16xf32>
    %1361 = vector.multi_reduction <add>, %1360, %cst_174 [2] : vector<2x16x16xf32> to vector<2x16xf32>
    %1362 = vector.shape_cast %1361 : vector<2x16xf32> to vector<2x16x1xf32>
    %1363 = vector.extract_strided_slice %819 {offsets = [0, 25, 0], sizes = [2, 1, 16], strides = [1, 1, 1]} : vector<2x32x16xf32> to vector<2x1x16xf32>
    %1364 = vector.broadcast %1363 : vector<2x1x16xf32> to vector<2x16x16xf32>
    %1365 = arith.mulf %1357, %1364 : vector<2x16x16xf32>
    %cst_175 = arith.constant dense<0.000000e+00> : vector<2x16xf32>
    %1366 = vector.multi_reduction <add>, %1365, %cst_175 [2] : vector<2x16x16xf32> to vector<2x16xf32>
    %1367 = vector.shape_cast %1366 : vector<2x16xf32> to vector<2x16x1xf32>
    %1368 = vector.extract_strided_slice %803 {offsets = [24, 0], sizes = [1, 32], strides = [1, 1]} : vector<32x32xf32> to vector<1x32xf32>
    %1369 = vector.shape_cast %1368 : vector<1x32xf32> to vector<1x1x32xf32>
    %1370 = vector.broadcast %1362 : vector<2x16x1xf32> to vector<2x16x32xf32>
    %1371 = vector.broadcast %1369 : vector<1x1x32xf32> to vector<2x16x32xf32>
    %1372 = arith.mulf %1370, %1371 : vector<2x16x32xf32>
    %1373 = arith.addf %1336, %1372 : vector<2x16x32xf32>
    %1374 = vector.extract_strided_slice %803 {offsets = [25, 0], sizes = [1, 32], strides = [1, 1]} : vector<32x32xf32> to vector<1x32xf32>
    %1375 = vector.shape_cast %1374 : vector<1x32xf32> to vector<1x1x32xf32>
    %1376 = vector.broadcast %1367 : vector<2x16x1xf32> to vector<2x16x32xf32>
    %1377 = vector.broadcast %1375 : vector<1x1x32xf32> to vector<2x16x32xf32>
    %1378 = arith.mulf %1376, %1377 : vector<2x16x32xf32>
    %1379 = arith.addf %1373, %1378 : vector<2x16x32xf32>
    %1380 = vector.extract_strided_slice %813 {offsets = [0, 0, 26], sizes = [2, 16, 1], strides = [1, 1, 1]} : vector<2x16x32xf32> to vector<2x16x1xf32>
    %1381 = vector.extract_strided_slice %818 {offsets = [0, 26, 0], sizes = [2, 1, 16], strides = [1, 1, 1]} : vector<2x32x16xf32> to vector<2x1x16xf32>
    %1382 = vector.broadcast %1380 : vector<2x16x1xf32> to vector<2x16x16xf32>
    %1383 = vector.broadcast %1381 : vector<2x1x16xf32> to vector<2x16x16xf32>
    %1384 = arith.mulf %1382, %1383 : vector<2x16x16xf32>
    %1385 = vector.extract_strided_slice %813 {offsets = [0, 0, 27], sizes = [2, 16, 1], strides = [1, 1, 1]} : vector<2x16x32xf32> to vector<2x16x1xf32>
    %1386 = vector.extract_strided_slice %818 {offsets = [0, 27, 0], sizes = [2, 1, 16], strides = [1, 1, 1]} : vector<2x32x16xf32> to vector<2x1x16xf32>
    %1387 = vector.broadcast %1385 : vector<2x16x1xf32> to vector<2x16x16xf32>
    %1388 = vector.broadcast %1386 : vector<2x1x16xf32> to vector<2x16x16xf32>
    %1389 = arith.mulf %1387, %1388 : vector<2x16x16xf32>
    %1390 = arith.addf %1384, %1389 : vector<2x16x16xf32>
    %cst_176 = arith.constant dense<0xFF800000> : vector<2x16xf32>
    %1391 = vector.multi_reduction <maximumf>, %1390, %cst_176 [2] : vector<2x16x16xf32> to vector<2x16xf32>
    %1392 = vector.shape_cast %1391 : vector<2x16xf32> to vector<2x16x1xf32>
    %1393 = vector.broadcast %1392 : vector<2x16x1xf32> to vector<2x16x16xf32>
    %1394 = arith.subf %1390, %1393 : vector<2x16x16xf32>
    %1395 = math.exp %1394 : vector<2x16x16xf32>
    %cst_177 = arith.constant dense<0.000000e+00> : vector<2x16xf32>
    %1396 = vector.multi_reduction <add>, %1395, %cst_177 [2] : vector<2x16x16xf32> to vector<2x16xf32>
    %1397 = vector.shape_cast %1396 : vector<2x16xf32> to vector<2x16x1xf32>
    %1398 = tpu.reciprocal %1397 {approx = true} : vector<2x16x1xf32> -> vector<2x16x1xf32>
    %1399 = vector.broadcast %1398 : vector<2x16x1xf32> to vector<2x16x16xf32>
    %1400 = arith.mulf %1395, %1399 : vector<2x16x16xf32>
    %1401 = vector.extract_strided_slice %819 {offsets = [0, 26, 0], sizes = [2, 1, 16], strides = [1, 1, 1]} : vector<2x32x16xf32> to vector<2x1x16xf32>
    %1402 = vector.broadcast %1401 : vector<2x1x16xf32> to vector<2x16x16xf32>
    %1403 = arith.mulf %1400, %1402 : vector<2x16x16xf32>
    %cst_178 = arith.constant dense<0.000000e+00> : vector<2x16xf32>
    %1404 = vector.multi_reduction <add>, %1403, %cst_178 [2] : vector<2x16x16xf32> to vector<2x16xf32>
    %1405 = vector.shape_cast %1404 : vector<2x16xf32> to vector<2x16x1xf32>
    %1406 = vector.extract_strided_slice %819 {offsets = [0, 27, 0], sizes = [2, 1, 16], strides = [1, 1, 1]} : vector<2x32x16xf32> to vector<2x1x16xf32>
    %1407 = vector.broadcast %1406 : vector<2x1x16xf32> to vector<2x16x16xf32>
    %1408 = arith.mulf %1400, %1407 : vector<2x16x16xf32>
    %cst_179 = arith.constant dense<0.000000e+00> : vector<2x16xf32>
    %1409 = vector.multi_reduction <add>, %1408, %cst_179 [2] : vector<2x16x16xf32> to vector<2x16xf32>
    %1410 = vector.shape_cast %1409 : vector<2x16xf32> to vector<2x16x1xf32>
    %1411 = vector.extract_strided_slice %803 {offsets = [26, 0], sizes = [1, 32], strides = [1, 1]} : vector<32x32xf32> to vector<1x32xf32>
    %1412 = vector.shape_cast %1411 : vector<1x32xf32> to vector<1x1x32xf32>
    %1413 = vector.broadcast %1405 : vector<2x16x1xf32> to vector<2x16x32xf32>
    %1414 = vector.broadcast %1412 : vector<1x1x32xf32> to vector<2x16x32xf32>
    %1415 = arith.mulf %1413, %1414 : vector<2x16x32xf32>
    %1416 = arith.addf %1379, %1415 : vector<2x16x32xf32>
    %1417 = vector.extract_strided_slice %803 {offsets = [27, 0], sizes = [1, 32], strides = [1, 1]} : vector<32x32xf32> to vector<1x32xf32>
    %1418 = vector.shape_cast %1417 : vector<1x32xf32> to vector<1x1x32xf32>
    %1419 = vector.broadcast %1410 : vector<2x16x1xf32> to vector<2x16x32xf32>
    %1420 = vector.broadcast %1418 : vector<1x1x32xf32> to vector<2x16x32xf32>
    %1421 = arith.mulf %1419, %1420 : vector<2x16x32xf32>
    %1422 = arith.addf %1416, %1421 : vector<2x16x32xf32>
    %1423 = vector.extract_strided_slice %813 {offsets = [0, 0, 28], sizes = [2, 16, 1], strides = [1, 1, 1]} : vector<2x16x32xf32> to vector<2x16x1xf32>
    %1424 = vector.extract_strided_slice %818 {offsets = [0, 28, 0], sizes = [2, 1, 16], strides = [1, 1, 1]} : vector<2x32x16xf32> to vector<2x1x16xf32>
    %1425 = vector.broadcast %1423 : vector<2x16x1xf32> to vector<2x16x16xf32>
    %1426 = vector.broadcast %1424 : vector<2x1x16xf32> to vector<2x16x16xf32>
    %1427 = arith.mulf %1425, %1426 : vector<2x16x16xf32>
    %1428 = vector.extract_strided_slice %813 {offsets = [0, 0, 29], sizes = [2, 16, 1], strides = [1, 1, 1]} : vector<2x16x32xf32> to vector<2x16x1xf32>
    %1429 = vector.extract_strided_slice %818 {offsets = [0, 29, 0], sizes = [2, 1, 16], strides = [1, 1, 1]} : vector<2x32x16xf32> to vector<2x1x16xf32>
    %1430 = vector.broadcast %1428 : vector<2x16x1xf32> to vector<2x16x16xf32>
    %1431 = vector.broadcast %1429 : vector<2x1x16xf32> to vector<2x16x16xf32>
    %1432 = arith.mulf %1430, %1431 : vector<2x16x16xf32>
    %1433 = arith.addf %1427, %1432 : vector<2x16x16xf32>
    %cst_180 = arith.constant dense<0xFF800000> : vector<2x16xf32>
    %1434 = vector.multi_reduction <maximumf>, %1433, %cst_180 [2] : vector<2x16x16xf32> to vector<2x16xf32>
    %1435 = vector.shape_cast %1434 : vector<2x16xf32> to vector<2x16x1xf32>
    %1436 = vector.broadcast %1435 : vector<2x16x1xf32> to vector<2x16x16xf32>
    %1437 = arith.subf %1433, %1436 : vector<2x16x16xf32>
    %1438 = math.exp %1437 : vector<2x16x16xf32>
    %cst_181 = arith.constant dense<0.000000e+00> : vector<2x16xf32>
    %1439 = vector.multi_reduction <add>, %1438, %cst_181 [2] : vector<2x16x16xf32> to vector<2x16xf32>
    %1440 = vector.shape_cast %1439 : vector<2x16xf32> to vector<2x16x1xf32>
    %1441 = tpu.reciprocal %1440 {approx = true} : vector<2x16x1xf32> -> vector<2x16x1xf32>
    %1442 = vector.broadcast %1441 : vector<2x16x1xf32> to vector<2x16x16xf32>
    %1443 = arith.mulf %1438, %1442 : vector<2x16x16xf32>
    %1444 = vector.extract_strided_slice %819 {offsets = [0, 28, 0], sizes = [2, 1, 16], strides = [1, 1, 1]} : vector<2x32x16xf32> to vector<2x1x16xf32>
    %1445 = vector.broadcast %1444 : vector<2x1x16xf32> to vector<2x16x16xf32>
    %1446 = arith.mulf %1443, %1445 : vector<2x16x16xf32>
    %cst_182 = arith.constant dense<0.000000e+00> : vector<2x16xf32>
    %1447 = vector.multi_reduction <add>, %1446, %cst_182 [2] : vector<2x16x16xf32> to vector<2x16xf32>
    %1448 = vector.shape_cast %1447 : vector<2x16xf32> to vector<2x16x1xf32>
    %1449 = vector.extract_strided_slice %819 {offsets = [0, 29, 0], sizes = [2, 1, 16], strides = [1, 1, 1]} : vector<2x32x16xf32> to vector<2x1x16xf32>
    %1450 = vector.broadcast %1449 : vector<2x1x16xf32> to vector<2x16x16xf32>
    %1451 = arith.mulf %1443, %1450 : vector<2x16x16xf32>
    %cst_183 = arith.constant dense<0.000000e+00> : vector<2x16xf32>
    %1452 = vector.multi_reduction <add>, %1451, %cst_183 [2] : vector<2x16x16xf32> to vector<2x16xf32>
    %1453 = vector.shape_cast %1452 : vector<2x16xf32> to vector<2x16x1xf32>
    %1454 = vector.extract_strided_slice %803 {offsets = [28, 0], sizes = [1, 32], strides = [1, 1]} : vector<32x32xf32> to vector<1x32xf32>
    %1455 = vector.shape_cast %1454 : vector<1x32xf32> to vector<1x1x32xf32>
    %1456 = vector.broadcast %1448 : vector<2x16x1xf32> to vector<2x16x32xf32>
    %1457 = vector.broadcast %1455 : vector<1x1x32xf32> to vector<2x16x32xf32>
    %1458 = arith.mulf %1456, %1457 : vector<2x16x32xf32>
    %1459 = arith.addf %1422, %1458 : vector<2x16x32xf32>
    %1460 = vector.extract_strided_slice %803 {offsets = [29, 0], sizes = [1, 32], strides = [1, 1]} : vector<32x32xf32> to vector<1x32xf32>
    %1461 = vector.shape_cast %1460 : vector<1x32xf32> to vector<1x1x32xf32>
    %1462 = vector.broadcast %1453 : vector<2x16x1xf32> to vector<2x16x32xf32>
    %1463 = vector.broadcast %1461 : vector<1x1x32xf32> to vector<2x16x32xf32>
    %1464 = arith.mulf %1462, %1463 : vector<2x16x32xf32>
    %1465 = arith.addf %1459, %1464 : vector<2x16x32xf32>
    %1466 = vector.extract_strided_slice %813 {offsets = [0, 0, 30], sizes = [2, 16, 1], strides = [1, 1, 1]} : vector<2x16x32xf32> to vector<2x16x1xf32>
    %1467 = vector.extract_strided_slice %818 {offsets = [0, 30, 0], sizes = [2, 1, 16], strides = [1, 1, 1]} : vector<2x32x16xf32> to vector<2x1x16xf32>
    %1468 = vector.broadcast %1466 : vector<2x16x1xf32> to vector<2x16x16xf32>
    %1469 = vector.broadcast %1467 : vector<2x1x16xf32> to vector<2x16x16xf32>
    %1470 = arith.mulf %1468, %1469 : vector<2x16x16xf32>
    %1471 = vector.extract_strided_slice %813 {offsets = [0, 0, 31], sizes = [2, 16, 1], strides = [1, 1, 1]} : vector<2x16x32xf32> to vector<2x16x1xf32>
    %1472 = vector.extract_strided_slice %818 {offsets = [0, 31, 0], sizes = [2, 1, 16], strides = [1, 1, 1]} : vector<2x32x16xf32> to vector<2x1x16xf32>
    %1473 = vector.broadcast %1471 : vector<2x16x1xf32> to vector<2x16x16xf32>
    %1474 = vector.broadcast %1472 : vector<2x1x16xf32> to vector<2x16x16xf32>
    %1475 = arith.mulf %1473, %1474 : vector<2x16x16xf32>
    %1476 = arith.addf %1470, %1475 : vector<2x16x16xf32>
    %cst_184 = arith.constant dense<0xFF800000> : vector<2x16xf32>
    %1477 = vector.multi_reduction <maximumf>, %1476, %cst_184 [2] : vector<2x16x16xf32> to vector<2x16xf32>
    %1478 = vector.shape_cast %1477 : vector<2x16xf32> to vector<2x16x1xf32>
    %1479 = vector.broadcast %1478 : vector<2x16x1xf32> to vector<2x16x16xf32>
    %1480 = arith.subf %1476, %1479 : vector<2x16x16xf32>
    %1481 = math.exp %1480 : vector<2x16x16xf32>
    %cst_185 = arith.constant dense<0.000000e+00> : vector<2x16xf32>
    %1482 = vector.multi_reduction <add>, %1481, %cst_185 [2] : vector<2x16x16xf32> to vector<2x16xf32>
    %1483 = vector.shape_cast %1482 : vector<2x16xf32> to vector<2x16x1xf32>
    %1484 = tpu.reciprocal %1483 {approx = true} : vector<2x16x1xf32> -> vector<2x16x1xf32>
    %1485 = vector.broadcast %1484 : vector<2x16x1xf32> to vector<2x16x16xf32>
    %1486 = arith.mulf %1481, %1485 : vector<2x16x16xf32>
    %1487 = vector.extract_strided_slice %819 {offsets = [0, 30, 0], sizes = [2, 1, 16], strides = [1, 1, 1]} : vector<2x32x16xf32> to vector<2x1x16xf32>
    %1488 = vector.broadcast %1487 : vector<2x1x16xf32> to vector<2x16x16xf32>
    %1489 = arith.mulf %1486, %1488 : vector<2x16x16xf32>
    %cst_186 = arith.constant dense<0.000000e+00> : vector<2x16xf32>
    %1490 = vector.multi_reduction <add>, %1489, %cst_186 [2] : vector<2x16x16xf32> to vector<2x16xf32>
    %1491 = vector.shape_cast %1490 : vector<2x16xf32> to vector<2x16x1xf32>
    %1492 = vector.extract_strided_slice %819 {offsets = [0, 31, 0], sizes = [2, 1, 16], strides = [1, 1, 1]} : vector<2x32x16xf32> to vector<2x1x16xf32>
    %1493 = vector.broadcast %1492 : vector<2x1x16xf32> to vector<2x16x16xf32>
    %1494 = arith.mulf %1486, %1493 : vector<2x16x16xf32>
    %cst_187 = arith.constant dense<0.000000e+00> : vector<2x16xf32>
    %1495 = vector.multi_reduction <add>, %1494, %cst_187 [2] : vector<2x16x16xf32> to vector<2x16xf32>
    %1496 = vector.shape_cast %1495 : vector<2x16xf32> to vector<2x16x1xf32>
    %1497 = vector.extract_strided_slice %803 {offsets = [30, 0], sizes = [1, 32], strides = [1, 1]} : vector<32x32xf32> to vector<1x32xf32>
    %1498 = vector.shape_cast %1497 : vector<1x32xf32> to vector<1x1x32xf32>
    %1499 = vector.broadcast %1491 : vector<2x16x1xf32> to vector<2x16x32xf32>
    %1500 = vector.broadcast %1498 : vector<1x1x32xf32> to vector<2x16x32xf32>
    %1501 = arith.mulf %1499, %1500 : vector<2x16x32xf32>
    %1502 = arith.addf %1465, %1501 : vector<2x16x32xf32>
    %1503 = vector.extract_strided_slice %803 {offsets = [31, 0], sizes = [1, 32], strides = [1, 1]} : vector<32x32xf32> to vector<1x32xf32>
    %1504 = vector.shape_cast %1503 : vector<1x32xf32> to vector<1x1x32xf32>
    %1505 = vector.broadcast %1496 : vector<2x16x1xf32> to vector<2x16x32xf32>
    %1506 = vector.broadcast %1504 : vector<1x1x32xf32> to vector<2x16x32xf32>
    %1507 = arith.mulf %1505, %1506 : vector<2x16x32xf32>
    %1508 = arith.addf %1502, %1507 : vector<2x16x32xf32>
    %1509 = vector.shape_cast %1508 : vector<2x16x32xf32> to vector<32x32xf32>
    %1510 = arith.addf %792, %1509 : vector<32x32xf32>
    %1511 = vector.broadcast %794 : vector<1x32xf32> to vector<32x32xf32>
    %1512 = arith.addf %1510, %1511 : vector<32x32xf32>
    %cst_188 = arith.constant dense<0.000000e+00> : vector<32xf32>
    %1513 = vector.multi_reduction <add>, %1512, %cst_188 [1] : vector<32x32xf32> to vector<32xf32>
    %1514 = vector.shape_cast %1513 : vector<32xf32> to vector<32x1xf32>
    %cst_189 = arith.constant 3.200000e+01 : f32
    %1515 = vector.broadcast %cst_189 : f32 to vector<32x1xf32>
    %1516 = arith.divf %1514, %1515 : vector<32x1xf32>
    %1517 = vector.broadcast %1516 : vector<32x1xf32> to vector<32x32xf32>
    %1518 = arith.subf %1512, %1517 : vector<32x32xf32>
    %1519 = arith.mulf %1518, %1518 : vector<32x32xf32>
    %cst_190 = arith.constant dense<0.000000e+00> : vector<32xf32>
    %1520 = vector.multi_reduction <add>, %1519, %cst_190 [1] : vector<32x32xf32> to vector<32xf32>
    %1521 = vector.shape_cast %1520 : vector<32xf32> to vector<32x1xf32>
    %cst_191 = arith.constant 3.200000e+01 : f32
    %1522 = vector.broadcast %cst_191 : f32 to vector<32x1xf32>
    %1523 = arith.divf %1521, %1522 : vector<32x1xf32>
    %1524 = vector.broadcast %1516 : vector<32x1xf32> to vector<32x32xf32>
    %1525 = arith.subf %1512, %1524 : vector<32x32xf32>
    %cst_192 = arith.constant 9.99999974E-6 : f32
    %1526 = vector.broadcast %cst_192 : f32 to vector<32x1xf32>
    %1527 = arith.addf %1523, %1526 : vector<32x1xf32>
    %1528 = math.rsqrt %1527 : vector<32x1xf32>
    %1529 = vector.broadcast %1528 : vector<32x1xf32> to vector<32x32xf32>
    %1530 = arith.mulf %1525, %1529 : vector<32x32xf32>
    %1531 = vector.broadcast %795 : vector<1x32xf32> to vector<32x32xf32>
    %1532 = arith.mulf %1530, %1531 : vector<32x32xf32>
    %1533 = vector.broadcast %796 : vector<1x32xf32> to vector<32x32xf32>
    %1534 = arith.addf %1532, %1533 : vector<32x32xf32>
    %c1_193 = arith.constant 1 : index
    %c0_194 = arith.constant 0 : index
    %c0_195 = arith.constant 0 : index
    %1535 = vector.load %arg6[%c1_193, %c0_194, %c0_195] : memref<2x32x64xbf16, #tpu.memory_space<vmem>>, vector<1x32x64xbf16>
    %1536 = vector.shape_cast %1535 : vector<1x32x64xbf16> to vector<32x64xbf16>
    %1537 = arith.truncf %1534 : vector<32x32xf32> to vector<32x32xbf16>
    %cst_196 = arith.constant dense<0.000000e+00> : vector<32x64xf32>
    %1538 = tpu.matmul %1537, %1536, %cst_196 {dimension_numbers = #tpu.dot_dimension_numbers<[1], [0], [0], [1], [0, 0, 1, 1], [], []>} : vector<32x32xbf16>, vector<32x64xbf16>, vector<32x64xf32> -> vector<32x64xf32>
    %1539 = vector.broadcast %799 : vector<1x64xf32> to vector<32x64xf32>
    %1540 = arith.addf %1538, %1539 : vector<32x64xf32>
    %cst_197 = arith.constant 0.000000e+00 : f32
    %1541 = vector.broadcast %cst_197 : f32 to vector<32x64xf32>
    %1542 = arith.maximumf %1540, %1541 : vector<32x64xf32>
    %c1_198 = arith.constant 1 : index
    %c0_199 = arith.constant 0 : index
    %c0_200 = arith.constant 0 : index
    %1543 = vector.load %arg7[%c1_198, %c0_199, %c0_200] : memref<2x64x32xbf16, #tpu.memory_space<vmem>>, vector<1x64x32xbf16>
    %1544 = vector.shape_cast %1543 : vector<1x64x32xbf16> to vector<64x32xbf16>
    %1545 = arith.truncf %1542 : vector<32x64xf32> to vector<32x64xbf16>
    %cst_201 = arith.constant dense<0.000000e+00> : vector<32x32xf32>
    %1546 = tpu.matmul %1545, %1544, %cst_201 {dimension_numbers = #tpu.dot_dimension_numbers<[1], [0], [0], [1], [0, 0, 1, 1], [], []>} : vector<32x64xbf16>, vector<64x32xbf16>, vector<32x32xf32> -> vector<32x32xf32>
    %1547 = vector.broadcast %800 : vector<1x32xf32> to vector<32x32xf32>
    %1548 = arith.addf %1546, %1547 : vector<32x32xf32>
    %1549 = arith.addf %1534, %1548 : vector<32x32xf32>
    %cst_202 = arith.constant dense<0.000000e+00> : vector<32xf32>
    %1550 = vector.multi_reduction <add>, %1549, %cst_202 [1] : vector<32x32xf32> to vector<32xf32>
    %1551 = vector.shape_cast %1550 : vector<32xf32> to vector<32x1xf32>
    %cst_203 = arith.constant 3.200000e+01 : f32
    %1552 = vector.broadcast %cst_203 : f32 to vector<32x1xf32>
    %1553 = arith.divf %1551, %1552 : vector<32x1xf32>
    %1554 = vector.broadcast %1553 : vector<32x1xf32> to vector<32x32xf32>
    %1555 = arith.subf %1549, %1554 : vector<32x32xf32>
    %1556 = arith.mulf %1555, %1555 : vector<32x32xf32>
    %cst_204 = arith.constant dense<0.000000e+00> : vector<32xf32>
    %1557 = vector.multi_reduction <add>, %1556, %cst_204 [1] : vector<32x32xf32> to vector<32xf32>
    %1558 = vector.shape_cast %1557 : vector<32xf32> to vector<32x1xf32>
    %cst_205 = arith.constant 3.200000e+01 : f32
    %1559 = vector.broadcast %cst_205 : f32 to vector<32x1xf32>
    %1560 = arith.divf %1558, %1559 : vector<32x1xf32>
    %1561 = vector.broadcast %1553 : vector<32x1xf32> to vector<32x32xf32>
    %1562 = arith.subf %1549, %1561 : vector<32x32xf32>
    %cst_206 = arith.constant 9.99999974E-6 : f32
    %1563 = vector.broadcast %cst_206 : f32 to vector<32x1xf32>
    %1564 = arith.addf %1560, %1563 : vector<32x1xf32>
    %1565 = math.rsqrt %1564 : vector<32x1xf32>
    %1566 = vector.broadcast %1565 : vector<32x1xf32> to vector<32x32xf32>
    %1567 = arith.mulf %1562, %1566 : vector<32x32xf32>
    %1568 = vector.broadcast %797 : vector<1x32xf32> to vector<32x32xf32>
    %1569 = arith.mulf %1567, %1568 : vector<32x32xf32>
    %1570 = vector.broadcast %798 : vector<1x32xf32> to vector<32x32xf32>
    %1571 = arith.addf %1569, %1570 : vector<32x32xf32>
    %1572 = vector.shape_cast %1571 : vector<32x32xf32> to vector<2x16x32xf32>
    %cst_207 = arith.constant dense<0.000000e+00> : vector<2x32xf32>
    %1573 = vector.multi_reduction <add>, %1572, %cst_207 [1] : vector<2x16x32xf32> to vector<2x32xf32>
    %cst_208 = arith.constant 6.250000e-02 : f32
    %1574 = vector.broadcast %cst_208 : f32 to vector<2x32xf32>
    %1575 = arith.mulf %1573, %1574 : vector<2x32xf32>
    %c1_209 = arith.constant 1 : index
    %c0_210 = arith.constant 0 : index
    %1576 = vector.load %arg9[%c1_209, %c0_210] : memref<20x128xf32, #tpu.memory_space<vmem>>, vector<1x32xf32>
    %c2 = arith.constant 2 : index
    %c0_211 = arith.constant 0 : index
    %1577 = vector.load %arg9[%c2, %c0_211] : memref<20x128xf32, #tpu.memory_space<vmem>>, vector<1x32xf32>
    %cst_212 = arith.constant dense<0.000000e+00> : vector<2xf32>
    %1578 = vector.multi_reduction <add>, %1575, %cst_212 [1] : vector<2x32xf32> to vector<2xf32>
    %1579 = vector.shape_cast %1578 : vector<2xf32> to vector<2x1xf32>
    %cst_213 = arith.constant 3.200000e+01 : f32
    %1580 = vector.broadcast %cst_213 : f32 to vector<2x1xf32>
    %1581 = arith.divf %1579, %1580 : vector<2x1xf32>
    %1582 = vector.broadcast %1581 : vector<2x1xf32> to vector<2x32xf32>
    %1583 = arith.subf %1575, %1582 : vector<2x32xf32>
    %1584 = arith.mulf %1583, %1583 : vector<2x32xf32>
    %cst_214 = arith.constant dense<0.000000e+00> : vector<2xf32>
    %1585 = vector.multi_reduction <add>, %1584, %cst_214 [1] : vector<2x32xf32> to vector<2xf32>
    %1586 = vector.shape_cast %1585 : vector<2xf32> to vector<2x1xf32>
    %cst_215 = arith.constant 3.200000e+01 : f32
    %1587 = vector.broadcast %cst_215 : f32 to vector<2x1xf32>
    %1588 = arith.divf %1586, %1587 : vector<2x1xf32>
    %1589 = vector.broadcast %1581 : vector<2x1xf32> to vector<2x32xf32>
    %1590 = arith.subf %1575, %1589 : vector<2x32xf32>
    %cst_216 = arith.constant 9.99999974E-6 : f32
    %1591 = vector.broadcast %cst_216 : f32 to vector<2x1xf32>
    %1592 = arith.addf %1588, %1591 : vector<2x1xf32>
    %1593 = math.rsqrt %1592 : vector<2x1xf32>
    %1594 = vector.broadcast %1593 : vector<2x1xf32> to vector<2x32xf32>
    %1595 = arith.mulf %1590, %1594 : vector<2x32xf32>
    %1596 = vector.broadcast %1576 : vector<1x32xf32> to vector<2x32xf32>
    %1597 = arith.mulf %1595, %1596 : vector<2x32xf32>
    %1598 = vector.broadcast %1577 : vector<1x32xf32> to vector<2x32xf32>
    %1599 = arith.addf %1597, %1598 : vector<2x32xf32>
    %c0_217 = arith.constant 0 : index
    %c0_218 = arith.constant 0 : index
    %1600 = vector.load %arg8[%c0_217, %c0_218] : memref<32x128xbf16, #tpu.memory_space<vmem>>, vector<32x128xbf16>
    %1601 = arith.truncf %1599 : vector<2x32xf32> to vector<2x32xbf16>
    %cst_219 = arith.constant dense<0.000000e+00> : vector<2x128xf32>
    %1602 = tpu.matmul %1601, %1600, %cst_219 {dimension_numbers = #tpu.dot_dimension_numbers<[1], [0], [0], [1], [0, 0, 1, 1], [], []>} : vector<2x32xbf16>, vector<32x128xbf16>, vector<2x128xf32> -> vector<2x128xf32>
    %c3 = arith.constant 3 : index
    %c0_220 = arith.constant 0 : index
    %1603 = vector.load %arg9[%c3, %c0_220] : memref<20x128xf32, #tpu.memory_space<vmem>>, vector<1x128xf32>
    %1604 = vector.broadcast %1603 : vector<1x128xf32> to vector<2x128xf32>
    %1605 = arith.addf %1602, %1604 : vector<2x128xf32>
    %c0_221 = arith.constant 0 : index
    %c0_222 = arith.constant 0 : index
    %1606 = vector.load %arg10[%c0_221, %c0_222] : memref<2x128xf32, #tpu.memory_space<vmem>>, vector<2x128xf32>
    tpu.vector_store %arg10[%c0_221, %c0_222], %1605 {strides = array<i32>} : memref<2x128xf32, #tpu.memory_space<vmem>>, vector<2x128xf32>,
    return
  }
  func.func @transform_0(%arg0: i32) -> (i32, i32, i32) {
    %c0_i32 = arith.constant 0 : i32
    %c0_i32_0 = arith.constant 0 : i32
    %c0_i32_1 = arith.constant 0 : i32
    return %arg0, %c0_i32, %c0_i32_0 : i32, i32, i32
  }
  func.func @transform_1(%arg0: i32) -> (i32, i32) {
    %c0_i32 = arith.constant 0 : i32
    %c0_i32_0 = arith.constant 0 : i32
    %c0_i32_1 = arith.constant 0 : i32
    return %c0_i32, %c0_i32_0 : i32, i32
  }
  func.func @transform_2(%arg0: i32) -> (i32, i32) {
    %c0_i32 = arith.constant 0 : i32
    %c0_i32_0 = arith.constant 0 : i32
    %c0_i32_1 = arith.constant 0 : i32
    return %c0_i32, %c0_i32_0 : i32, i32
  }
  func.func @transform_3(%arg0: i32) -> (i32, i32, i32) {
    %c0_i32 = arith.constant 0 : i32
    %c0_i32_0 = arith.constant 0 : i32
    %c0_i32_1 = arith.constant 0 : i32
    %c0_i32_2 = arith.constant 0 : i32
    return %c0_i32, %c0_i32_0, %c0_i32_1 : i32, i32, i32
  }
  func.func @transform_4(%arg0: i32) -> (i32, i32, i32) {
    %c0_i32 = arith.constant 0 : i32
    %c0_i32_0 = arith.constant 0 : i32
    %c0_i32_1 = arith.constant 0 : i32
    %c0_i32_2 = arith.constant 0 : i32
    return %c0_i32, %c0_i32_0, %c0_i32_1 : i32, i32, i32
  }
  func.func @transform_5(%arg0: i32) -> (i32, i32, i32) {
    %c0_i32 = arith.constant 0 : i32
    %c0_i32_0 = arith.constant 0 : i32
    %c0_i32_1 = arith.constant 0 : i32
    %c0_i32_2 = arith.constant 0 : i32
    return %c0_i32, %c0_i32_0, %c0_i32_1 : i32, i32, i32
  }
  func.func @transform_6(%arg0: i32) -> (i32, i32, i32) {
    %c0_i32 = arith.constant 0 : i32
    %c0_i32_0 = arith.constant 0 : i32
    %c0_i32_1 = arith.constant 0 : i32
    %c0_i32_2 = arith.constant 0 : i32
    return %c0_i32, %c0_i32_0, %c0_i32_1 : i32, i32, i32
  }
  func.func @transform_7(%arg0: i32) -> (i32, i32) {
    %c0_i32 = arith.constant 0 : i32
    %c0_i32_0 = arith.constant 0 : i32
    %c0_i32_1 = arith.constant 0 : i32
    return %c0_i32, %c0_i32_0 : i32, i32
  }
  func.func @transform_8(%arg0: i32) -> (i32, i32) {
    %c0_i32 = arith.constant 0 : i32
    %c0_i32_0 = arith.constant 0 : i32
    %c0_i32_1 = arith.constant 0 : i32
    return %c0_i32, %c0_i32_0 : i32, i32
  }
  func.func @transform_9(%arg0: i32) -> (i32, i32) {
    %c0_i32 = arith.constant 0 : i32
    %c0_i32_0 = arith.constant 0 : i32
    return %arg0, %c0_i32 : i32, i32
  }
}

</mosaic_0001>

<llo_original>
// kernel: tpu_custom_call.1
$region0: #{tpu_custom_call.1}
  #allocation0 [shape = 'u32[]', space=smem, size = 0x4, offset = 0x4, fixed_abs, tag = 'smem constant byte address 0x4 - core index']
  #allocation1 [shape = 'u32[144,128]{1,0:T(1,128)}', space=vmem, size = 0x12000, scoped, tag = 'internal scratch']
  %s0 = inlined_call_operand.vmem [shape: f32[2,16,4], index: 0, kind: input, shape index: {}]
  %s1 = inlined_call_operand.vmem [shape: bf16[4,32], index: 1, kind: input, shape index: {}]
  %s2 = inlined_call_operand.vmem [shape: f32[16,32], index: 2, kind: input, shape index: {}]
  %s3 = inlined_call_operand.vmem [shape: bf16[2,32,96], index: 3, kind: input, shape index: {}]
  %s4 = inlined_call_operand.vmem [shape: bf16[2,32,32], index: 4, kind: input, shape index: {}]
  %s5 = inlined_call_operand.vmem [shape: bf16[2,32,64], index: 5, kind: input, shape index: {}]
  %s6 = inlined_call_operand.vmem [shape: bf16[2,64,32], index: 6, kind: input, shape index: {}]
  %s7 = inlined_call_operand.hbm [shape: bf16[32,128], index: 7, kind: input, shape index: {}]
  %s8 = inlined_call_operand.hbm [shape: f32[20,128], index: 8, kind: input, shape index: {}]
  %s9 = inlined_call_operand.hbm [shape: f32[2,128], index: 9, kind: output, shape index: {}]
  %s10 = sld [smem:[#allocation0]]
  $region54: #{tpu_custom_call.1} parent=0
    _
  %s12 = ssub.s32 1, %s10
  %s13 = scalar_select 0, %s12, %s10
  $region1: #{tpu_custom_call.1} parent=0
    #allocation2 [shape = 'u8[8192]{0}', space=vmem, size = 0x2000, scoped, tag = 'input window, operand 7, single buffered']
    #allocation3 [shape = 's32[1]{0}', space=sflag, size = 0x4, scoped, tag = 'scoped memory for tpu_custom_call.1']
    #allocation4 [shape = 's32[1]{0}', space=sflag, size = 0x4, scoped, tag = 'scoped memory for tpu_custom_call.1']
    #allocation5 [shape = 'u8[12288]{0}', space=vmem, size = 0x3000, scoped, tag = 'input window, operand 8, single buffered']
    #allocation6 [shape = 's32[1]{0}', space=sflag, size = 0x4, scoped, tag = 'scoped memory for tpu_custom_call.1']
    #allocation7 [shape = 'u8[1024]{0}', space=vmem, size = 0x400, scoped, tag = 'output window, operand 0, single buffered']
    %14 = vsyncpa [#allocation3], 0
    %15 = vsyncpa [#allocation6], 0
    %16 = vsyncpa [#allocation4], 0
    // Predicated region
    $region2: #{tpu_custom_call.1} parent=1 // pred_check
      _
    $region3: #{tpu_custom_call.1} parent=1 // pred_check_branch
      %18 = sbr.rel (0) target = $region5
    $region4: #{tpu_custom_call.1} parent=1 // pred_region
      _
    $region5: #{tpu_custom_call.1} parent=1 // pred_fallthru
      _
    // Predicated region
    $region6: #{tpu_custom_call.1} parent=1 // pred_check
      _
    $region7: #{tpu_custom_call.1} parent=1 // pred_check_branch
      %20 = sbr.rel (0) target = $region9
    $region8: #{tpu_custom_call.1} parent=1 // pred_region
      _
    $region9: #{tpu_custom_call.1} parent=1 // pred_fallthru
      _
    // Predicated region
    $region10: #{tpu_custom_call.1} parent=1 // pred_check
      _
    $region11: #{tpu_custom_call.1} parent=1 // pred_check_branch
      %22 = sbr.rel (0) target = $region13
    $region12: #{tpu_custom_call.1} parent=1 // pred_region
      _
    $region13: #{tpu_custom_call.1} parent=1 // pred_fallthru
      _
    // Predicated region
    $region14: #{tpu_custom_call.1} parent=1 // pred_check
      _
    $region15: #{tpu_custom_call.1} parent=1 // pred_check_branch
      %24 = sbr.rel (0) target = $region17
    $region16: #{tpu_custom_call.1} parent=1 // pred_region
      _
    $region17: #{tpu_custom_call.1} parent=1 // pred_fallthru
      _
    // Predicated region
    $region18: #{tpu_custom_call.1} parent=1 // pred_check
      _
    $region19: #{tpu_custom_call.1} parent=1 // pred_check_branch
      %26 = sbr.rel (0) target = $region21
    $region20: #{tpu_custom_call.1} parent=1 // pred_region
      _
    $region21: #{tpu_custom_call.1} parent=1 // pred_fallthru
      _
    // Predicated region
    $region22: #{tpu_custom_call.1} parent=1 // pred_check
      _
    $region23: #{tpu_custom_call.1} parent=1 // pred_check_branch
      %28 = sbr.rel (0) target = $region25
    $region24: #{tpu_custom_call.1} parent=1 // pred_region
      _
    $region25: #{tpu_custom_call.1} parent=1 // pred_fallthru
      _
    // Predicated region
    $region26: #{tpu_custom_call.1} parent=1 // pred_check
      _
    $region27: #{tpu_custom_call.1} parent=1 // pred_check_branch
      %30 = sbr.rel (0) target = $region29
    $region28: #{tpu_custom_call.1} parent=1 // pred_region
      _
    $region29: #{tpu_custom_call.1} parent=1 // pred_fallthru
      _
    // Predicated region
    $region30: #{tpu_custom_call.1} parent=1 // pred_check
      _
    $region31: #{tpu_custom_call.1} parent=1 // pred_check_branch
      %32 = sbr.rel (0) target = $region33
    $region32: #{tpu_custom_call.1} parent=1 // pred_region
      %s34 = ssub.s32 256, 256
      %35 = vsyncadd [#allocation3], %s34
      %s36 = sshll.u32 [#allocation2], 4
      %s37 = int_to_ptr.vmem [resolvable:$true] %s36
      %42 = dma.hbm_to_vmem [thread:$0]  %s7, 256, %s37, [#allocation3], 64, 64, 4
    $region33: #{tpu_custom_call.1} parent=1 // pred_fallthru
      _
    // Predicated region
    $region34: #{tpu_custom_call.1} parent=1 // pred_check
      _
    $region35: #{tpu_custom_call.1} parent=1 // pred_check_branch
      %44 = sbr.rel (0) target = $region37
    $region36: #{tpu_custom_call.1} parent=1 // pred_region
      %s46 = ssub.s32 384, 384
      %47 = vsyncadd [#allocation6], %s46
      %s48 = sshll.u32 [#allocation5], 4
      %s49 = int_to_ptr.vmem [resolvable:$true] %s48
      %54 = dma.hbm_to_vmem [thread:$0]  %s8, 384, %s49, [#allocation6], 128, 128, 8
    $region37: #{tpu_custom_call.1} parent=1 // pred_fallthru
      _
    // Predicated region
    $region38: #{tpu_custom_call.1} parent=1 // pred_check
      _
    $region39: #{tpu_custom_call.1} parent=1 // pred_check_branch
      %56 = sbr.rel (0) target = $region41
    $region40: #{tpu_custom_call.1} parent=1 // pred_region
      %57 = dma.done [#allocation3], 256
    $region41: #{tpu_custom_call.1} parent=1 // pred_fallthru
      _
    // Predicated region
    $region42: #{tpu_custom_call.1} parent=1 // pred_check
      _
    $region43: #{tpu_custom_call.1} parent=1 // pred_check_branch
      %59 = sbr.rel (0) target = $region45
    $region44: #{tpu_custom_call.1} parent=1 // pred_region
      %60 = dma.done [#allocation6], 384
    $region45: #{tpu_custom_call.1} parent=1 // pred_fallthru
      _
    %v62 = vld [vmem:[%s0] sm:$0xff]
    %v63 = vld [vmem:[%s0 + $0x8] sm:$0xff]
    %v64 = vld [vmem:[%s0 + $0x10] sm:$0xff]
    %v65 = vld [vmem:[%s0 + $0x18] sm:$0xff]
    %v66 = vld [vmem:[%s1] sm:$0x3]
    %v67 = vpack.c.bf16 %v63, %v62
    %v68 = vpack.c.bf16 %v65, %v64
    %v69 = vld [vmem:[#allocation5] sm:$0x1]
    %v70 = vlaneseq
    %v71 = vshrl.u32 %v70, 7
    %v72 = vsub.s32 0, %v71
    %v73 = vrot.slane %v69, %v72
    %vm74 = vcmask 31744
    %v76 = vsel %vm74, %v67, 0
    %v79 = vsel %vm74, %v68, 0
    %vm81 = vcmask 1041408
    %v83 = vsel %vm81, %v66, 0
    %85 = vmatprep.subr.bf16.mxu0 0
    %86 = vmatpush1.bf16.msra.mxu0 0
    %87 = vmatprep.subr.bf16.mxu0 0
    %88 = vmatpush1.bf16.msra.mxu0 0
    %89 = vmatprep.subr.bf16.mxu0 0
    %90 = vmatpush1.bf16.msra.mxu0 0
    %91 = vmatprep.subr.bf16.mxu0 0
    %92 = vmatpush1.bf16.msra.mxu0 0
    %93 = vmatprep.subr.bf16.mxu0 0
    %94 = vmatpush1.bf16.msra.mxu0 0
    %95 = vmatprep.subr.bf16.mxu0 0
    %96 = vmatpush1.bf16.msra.mxu0 0
    %97 = vmatprep.subr.bf16.mxu0 0
    %98 = vmatpush1.bf16.msra.mxu0 0
    %99 = vmatprep.subr.bf16.mxu0 0
    %100 = vmatpush1.bf16.msra.mxu0 %v83
    %101 = vmatprep.subr.bf16.mxu0 0
    %102 = vmatpush2.bf16.msra.mxu0 0
    %103 = vmatprep.subr.bf16.mxu0 0
    %104 = vmatpush2.bf16.msra.mxu0 0
    %105 = vmatprep.subr.bf16.mxu0 0
    %106 = vmatpush2.bf16.msra.mxu0 0
    %107 = vmatprep.subr.bf16.mxu0 0
    %108 = vmatpush2.bf16.msra.mxu0 0
    %109 = vmatprep.subr.bf16.mxu0 0
    %110 = vmatpush2.bf16.msra.mxu0 0
    %111 = vmatprep.subr.bf16.mxu0 0
    %112 = vmatpush2.bf16.msra.mxu0 0
    %113 = vmatprep.subr.bf16.mxu0 0
    %114 = vmatpush2.bf16.msra.mxu0 0
    %115 = vmatprep.subr.bf16.mxu0 0
    %116 = vmatpush2.bf16.msra.mxu0 0
    %117 = vmatprep.mubr.bf16.mxu0 0
    %118 = vmatmul.mubr.bf16.gmra.mxu0 %v76
    %v119 = vpop.f32.mrf.mxu0
    %v120 = vadd.f32 %v73, %v119
    %v121 = vpop.f32.mrf.mxu0
    %v122 = vpop.f32.mrf.mxu0
    %v123 = vadd.f32 %v73, %v122
    %v124 = vpop.f32.mrf.mxu0
    %125 = vmatprep.mubr.bf16.mxu0 0
    %126 = vmatmul.mubr.bf16.gmra.mxu0 %v79
    %v127 = vpop.f32.mrf.mxu0
    %v128 = vadd.f32 %v73, %v127
    %v129 = vpop.f32.mrf.mxu0
    %v130 = vpop.f32.mrf.mxu0
    %v131 = vadd.f32 %v73, %v130
    %v132 = vpop.f32.mrf.mxu0
    %133 = vdwg.mxu0
    %v134 = vld [vmem:[%s2] sm:$0xff]
    %v135 = vld [vmem:[%s2 + $0x8] sm:$0xff]
    %v136 = vadd.f32 %v120, %v134
    %v137 = vadd.f32 %v123, %v135
    %v138 = vadd.f32 %v128, %v134
    %v139 = vadd.f32 %v131, %v135
    %v140 = vld [vmem:[#allocation5 + $0x4] sm:$0x1]
    %v141 = vld [vmem:[#allocation5 + $0x5] sm:$0x1]
    %v142 = vld [vmem:[#allocation5 + $0x6] sm:$0x1]
    %v143 = vld [vmem:[#allocation5 + $0x7] sm:$0x1]
    %v144 = vld [vmem:[#allocation5 + $0x8] sm:$0x1]
    %v145 = vld [vmem:[#allocation5 + $0x9] sm:$0x1]
    %v146 = vld [vmem:[#allocation5 + $0xa] sm:$0x1]
    %v147 = vld [vmem:[#allocation5 + $0xb] sm:$0x1]
    %v148 = vld [vmem:[%s4] sm:$0xf]
    %v149 = vld [vmem:[%s4 + $0x4] sm:$0xf]
    %v150 = vld [vmem:[%s4 + $0x8] sm:$0xf]
    %v151 = vld [vmem:[%s4 + $0xc] sm:$0xf]
    %v152 = vunpack.c.l.bf16 %v148
    %v153 = vunpack.c.l.bf16 %v149
    %v154 = vunpack.c.l.bf16 %v150
    %v155 = vunpack.c.l.bf16 %v151
    %v156 = vld [vmem:[%s3] sm:$0xf]
    %v157 = vld [vmem:[%s3 + $0x4] sm:$0xf]
    %v158 = vld [vmem:[%s3 + $0x8] sm:$0xf]
    %v159 = vld [vmem:[%s3 + $0xc] sm:$0xf]
    %v160 = vpack.c.bf16 %v137, %v136
    %v161 = vpack.c.bf16 %v139, %v138
    %v162 = vlaneseq
    %v163 = vshrl.u32 %v162, 7
    %v164 = vsub.s32 0, %v163
    %v165 = vrot.slane %v140, %v164
    %v170 = vunpack.c.l.b16 %v156
    %v171 = vunpack.c.l.b16 %v157
    %v172 = vunpack.c.l.b16 %v158
    %v173 = vunpack.c.l.b16 %v159
    %v174 = vpack.c.b16 %v171, %v170
    %v175 = vpack.c.b16 %v173, %v172
    %vm178 = vcmask 261120
    %v180 = vsel %vm178, %v160, 0
    %v183 = vsel %vm178, %v161, 0
    %185 = vmatprep.subr.bf16.mxu0 0
    %186 = vmatpush1.bf16.msra.mxu0 0
    %187 = vmatprep.subr.bf16.mxu0 0
    %188 = vmatpush1.bf16.msra.mxu0 0
    %189 = vmatprep.subr.bf16.mxu0 0
    %190 = vmatpush1.bf16.msra.mxu0 0
    %191 = vmatprep.subr.bf16.mxu0 0
    %192 = vmatpush1.bf16.msra.mxu0 0
    %193 = vmatprep.subr.bf16.mxu0 0
    %194 = vmatpush1.bf16.msra.mxu0 0
    %195 = vmatprep.subr.bf16.mxu0 0
    %196 = vmatpush1.bf16.msra.mxu0 0
    %197 = vmatprep.subr.bf16.mxu0 0
    %198 = vmatpush1.bf16.msra.mxu0 %v175
    %199 = vmatprep.subr.bf16.mxu0 0
    %200 = vmatpush1.bf16.msra.mxu0 %v174
    %201 = vmatprep.subr.bf16.mxu0 0
    %202 = vmatpush2.bf16.msra.mxu0 0
    %203 = vmatprep.subr.bf16.mxu0 0
    %204 = vmatpush2.bf16.msra.mxu0 0
    %205 = vmatprep.subr.bf16.mxu0 0
    %206 = vmatpush2.bf16.msra.mxu0 0
    %207 = vmatprep.subr.bf16.mxu0 0
    %208 = vmatpush2.bf16.msra.mxu0 0
    %209 = vmatprep.subr.bf16.mxu0 0
    %210 = vmatpush2.bf16.msra.mxu0 0
    %211 = vmatprep.subr.bf16.mxu0 0
    %212 = vmatpush2.bf16.msra.mxu0 0
    %213 = vmatprep.subr.bf16.mxu0 0
    %214 = vmatpush2.bf16.msra.mxu0 0
    %215 = vmatprep.subr.bf16.mxu0 0
    %216 = vmatpush2.bf16.msra.mxu0 0
    %217 = vmatprep.mubr.bf16.mxu0 0
    %218 = vmatmul.mubr.bf16.gmra.mxu0 %v180
    %v219 = vpop.f32.mrf.mxu0
    %v220 = vadd.f32 %v165, %v219
    %v221 = vpop.f32.mrf.mxu0
    %v222 = vpop.f32.mrf.mxu0
    %v223 = vadd.f32 %v165, %v222
    %v224 = vpop.f32.mrf.mxu0
    %225 = vmatprep.mubr.bf16.mxu0 0
    %226 = vmatmul.mubr.bf16.gmra.mxu0 %v183
    %v227 = vpop.f32.mrf.mxu0
    %v228 = vadd.f32 %v165, %v227
    %v229 = vpop.f32.mrf.mxu0
    %v230 = vpop.f32.mrf.mxu0
    %v231 = vadd.f32 %v165, %v230
    %v232 = vpop.f32.mrf.mxu0
    %233 = vdwg.mxu0
    %v234 = vmul.f32 %v220, 0.70710677
    %v235 = vmul.f32 %v223, 0.70710677
    %v236 = vmul.f32 %v228, 0.70710677
    %v237 = vmul.f32 %v231, 0.70710677
    %242 = vrot.lane.b32.xlu0 %v220, 96
    %v243 = vpop.permute.xlu0 %242
    %244 = vrot.lane.b32.xlu0 %v223, 96
    %v245 = vpop.permute.xlu0 %244
    %246 = vrot.lane.b32.xlu0 %v228, 96
    %v247 = vpop.permute.xlu0 %246
    %248 = vrot.lane.b32.xlu0 %v231, 96
    %v249 = vpop.permute.xlu0 %248
    %254 = vxpose.xlu0.b32.start [1/16] %v243, 128
    %255 = vxpose.xlu0.b32.cont [2/16] %v245, 128
    %256 = vxpose.xlu0.b32.cont [3/16] 0.0, 128
    %257 = vxpose.xlu0.b32.cont [4/16] 0.0, 128
    %258 = vxpose.xlu0.b32.cont [5/16] 0.0, 128
    %259 = vxpose.xlu0.b32.cont [6/16] 0.0, 128
    %260 = vxpose.xlu0.b32.cont [7/16] 0.0, 128
    %261 = vxpose.xlu0.b32.cont [8/16] 0.0, 128
    %262 = vxpose.xlu0.b32.cont [9/16] 0.0, 128
    %263 = vxpose.xlu0.b32.cont [10/16] 0.0, 128
    %264 = vxpose.xlu0.b32.cont [11/16] 0.0, 128
    %265 = vxpose.xlu0.b32.cont [12/16] 0.0, 128
    %266 = vxpose.xlu0.b32.cont [13/16] 0.0, 128
    %267 = vxpose.xlu0.b32.cont [14/16] 0.0, 128
    %268 = vxpose.xlu0.b32.cont [15/16] 0.0, 128
    %269 = vxpose.xlu0.b32.end [16/16] 0.0, 128
    %v270 = vpop.trf.xlu0
    %v271 = vpop.trf.xlu0
    %v272 = vpop.trf.xlu0
    %v273 = vpop.trf.xlu0
    %v274 = vpop.trf.xlu0
    %v275 = vpop.trf.xlu0
    %v276 = vpop.trf.xlu0
    %v277 = vpop.trf.xlu0
    %v278 = vpop.trf.xlu0
    %v279 = vpop.trf.xlu0
    %v280 = vpop.trf.xlu0
    %v281 = vpop.trf.xlu0
    %v282 = vpop.trf.xlu0
    %v283 = vpop.trf.xlu0
    %v284 = vpop.trf.xlu0
    %v285 = vpop.trf.xlu0
    %286 = vxpose.xlu0.b32.start [1/16] %v247, 128
    %287 = vxpose.xlu0.b32.cont [2/16] %v249, 128
    %288 = vxpose.xlu0.b32.cont [3/16] 0.0, 128
    %289 = vxpose.xlu0.b32.cont [4/16] 0.0, 128
    %290 = vxpose.xlu0.b32.cont [5/16] 0.0, 128
    %291 = vxpose.xlu0.b32.cont [6/16] 0.0, 128
    %292 = vxpose.xlu0.b32.cont [7/16] 0.0, 128
    %293 = vxpose.xlu0.b32.cont [8/16] 0.0, 128
    %294 = vxpose.xlu0.b32.cont [9/16] 0.0, 128
    %295 = vxpose.xlu0.b32.cont [10/16] 0.0, 128
    %296 = vxpose.xlu0.b32.cont [11/16] 0.0, 128
    %297 = vxpose.xlu0.b32.cont [12/16] 0.0, 128
    %298 = vxpose.xlu0.b32.cont [13/16] 0.0, 128
    %299 = vxpose.xlu0.b32.cont [14/16] 0.0, 128
    %300 = vxpose.xlu0.b32.cont [15/16] 0.0, 128
    %301 = vxpose.xlu0.b32.end [16/16] 0.0, 128
    %v302 = vpop.trf.xlu0
    %v303 = vpop.trf.xlu0
    %v304 = vpop.trf.xlu0
    %v305 = vpop.trf.xlu0
    %v306 = vpop.trf.xlu0
    %v307 = vpop.trf.xlu0
    %v308 = vpop.trf.xlu0
    %v309 = vpop.trf.xlu0
    %v310 = vpop.trf.xlu0
    %v311 = vpop.trf.xlu0
    %v312 = vpop.trf.xlu0
    %v313 = vpop.trf.xlu0
    %v314 = vpop.trf.xlu0
    %v315 = vpop.trf.xlu0
    %v316 = vpop.trf.xlu0
    %v317 = vpop.trf.xlu0
    %318 = vrot.lane.b32.xlu0 %v220, 64
    %v319 = vpop.permute.xlu0 %318
    %320 = vrot.lane.b32.xlu0 %v223, 64
    %v321 = vpop.permute.xlu0 %320
    %322 = vrot.lane.b32.xlu0 %v228, 64
    %v323 = vpop.permute.xlu0 %322
    %324 = vrot.lane.b32.xlu0 %v231, 64
    %v325 = vpop.permute.xlu0 %324
    %330 = vxpose.xlu0.b32.start [1/16] %v319, 128
    %331 = vxpose.xlu0.b32.cont [2/16] %v321, 128
    %332 = vxpose.xlu0.b32.cont [3/16] 0.0, 128
    %333 = vxpose.xlu0.b32.cont [4/16] 0.0, 128
    %334 = vxpose.xlu0.b32.cont [5/16] 0.0, 128
    %335 = vxpose.xlu0.b32.cont [6/16] 0.0, 128
    %336 = vxpose.xlu0.b32.cont [7/16] 0.0, 128
    %337 = vxpose.xlu0.b32.cont [8/16] 0.0, 128
    %338 = vxpose.xlu0.b32.cont [9/16] 0.0, 128
    %339 = vxpose.xlu0.b32.cont [10/16] 0.0, 128
    %340 = vxpose.xlu0.b32.cont [11/16] 0.0, 128
    %341 = vxpose.xlu0.b32.cont [12/16] 0.0, 128
    %342 = vxpose.xlu0.b32.cont [13/16] 0.0, 128
    %343 = vxpose.xlu0.b32.cont [14/16] 0.0, 128
    %344 = vxpose.xlu0.b32.cont [15/16] 0.0, 128
    %345 = vxpose.xlu0.b32.end [16/16] 0.0, 128
    %v346 = vpop.trf.xlu0
    %v347 = vpop.trf.xlu0
    %v348 = vpop.trf.xlu0
    %v349 = vpop.trf.xlu0
    %v350 = vpop.trf.xlu0
    %v351 = vpop.trf.xlu0
    %v352 = vpop.trf.xlu0
    %v353 = vpop.trf.xlu0
    %v354 = vpop.trf.xlu0
    %v355 = vpop.trf.xlu0
    %v356 = vpop.trf.xlu0
    %v357 = vpop.trf.xlu0
    %v358 = vpop.trf.xlu0
    %v359 = vpop.trf.xlu0
    %v360 = vpop.trf.xlu0
    %v361 = vpop.trf.xlu0
    %362 = vxpose.xlu0.b32.start [1/16] %v323, 128
    %363 = vxpose.xlu0.b32.cont [2/16] %v325, 128
    %364 = vxpose.xlu0.b32.cont [3/16] 0.0, 128
    %365 = vxpose.xlu0.b32.cont [4/16] 0.0, 128
    %366 = vxpose.xlu0.b32.cont [5/16] 0.0, 128
    %367 = vxpose.xlu0.b32.cont [6/16] 0.0, 128
    %368 = vxpose.xlu0.b32.cont [7/16] 0.0, 128
    %369 = vxpose.xlu0.b32.cont [8/16] 0.0, 128
    %370 = vxpose.xlu0.b32.cont [9/16] 0.0, 128
    %371 = vxpose.xlu0.b32.cont [10/16] 0.0, 128
    %372 = vxpose.xlu0.b32.cont [11/16] 0.0, 128
    %373 = vxpose.xlu0.b32.cont [12/16] 0.0, 128
    %374 = vxpose.xlu0.b32.cont [13/16] 0.0, 128
    %375 = vxpose.xlu0.b32.cont [14/16] 0.0, 128
    %376 = vxpose.xlu0.b32.cont [15/16] 0.0, 128
    %377 = vxpose.xlu0.b32.end [16/16] 0.0, 128
    %v378 = vpop.trf.xlu0
    %v379 = vpop.trf.xlu0
    %v380 = vpop.trf.xlu0
    %v381 = vpop.trf.xlu0
    %v382 = vpop.trf.xlu0
    %v383 = vpop.trf.xlu0
    %v384 = vpop.trf.xlu0
    %v385 = vpop.trf.xlu0
    %v386 = vpop.trf.xlu0
    %v387 = vpop.trf.xlu0
    %v388 = vpop.trf.xlu0
    %v389 = vpop.trf.xlu0
    %v390 = vpop.trf.xlu0
    %v391 = vpop.trf.xlu0
    %v392 = vpop.trf.xlu0
    %v393 = vpop.trf.xlu0
    %395 = vset.pattern.permute.xlu0 0
    %396 = vperm.xlu0 %395, %v234
    %v397 = vpop.permute.xlu0 %396
    %400 = vset.pattern.permute.xlu0 0
    %401 = vperm.xlu0 %400, %v235
    %v402 = vpop.permute.xlu0 %401
    %405 = vset.pattern.permute.xlu0 0
    %406 = vperm.xlu0 %405, %v236
    %v407 = vpop.permute.xlu0 %406
    %410 = vset.pattern.permute.xlu0 0
    %411 = vperm.xlu0 %410, %v237
    %v412 = vpop.permute.xlu0 %411
    %v414 = vlaneseq
    %v415 = vshrl.u32 %v414, 7
    %v416 = vsub.s32 0, %v415
    %v417 = vrot.slane %v270, %v416
    %v418 = vlaneseq
    %v419 = vshrl.u32 %v418, 7
    %v420 = vsub.s32 0, %v419
    %v421 = vrot.slane %v302, %v420
    %v422 = vmul.f32 %v397, %v417
    %v423 = vmul.f32 %v402, %v417
    %v424 = vmul.f32 %v407, %v421
    %v425 = vmul.f32 %v412, %v421
    %426 = vset.pattern.permute.xlu0 1
    %427 = vperm.xlu0 %426, %v234
    %v428 = vpop.permute.xlu0 %427
    %430 = vset.pattern.permute.xlu0 1
    %431 = vperm.xlu0 %430, %v235
    %v432 = vpop.permute.xlu0 %431
    %434 = vset.pattern.permute.xlu0 1
    %435 = vperm.xlu0 %434, %v236
    %v436 = vpop.permute.xlu0 %435
    %438 = vset.pattern.permute.xlu0 1
    %439 = vperm.xlu0 %438, %v237
    %v440 = vpop.permute.xlu0 %439
    %v442 = vlaneseq
    %v443 = vshrl.u32 %v442, 7
    %v444 = vsub.s32 1, %v443
    %v445 = vrot.slane %v270, %v444
    %v446 = vlaneseq
    %v447 = vshrl.u32 %v446, 7
    %v448 = vsub.s32 1, %v447
    %v449 = vrot.slane %v302, %v448
    %v450 = vmul.f32 %v428, %v445
    %v451 = vmul.f32 %v432, %v445
    %v452 = vmul.f32 %v436, %v449
    %v453 = vmul.f32 %v440, %v449
    %v454 = vadd.f32 %v422, %v450
    %v455 = vadd.f32 %v423, %v451
    %v456 = vadd.f32 %v424, %v452
    %v457 = vadd.f32 %v425, %v453
    %vm458 = vcmask 130048
    %v459 = vsel %vm458, %v454, -inf
    %460 = vmax.xlane.f32.xlu0 %v459
    %v461 = vpop.xlane.xlu0 %460
    %v462 = vsel %vm458, %v455, -inf
    %463 = vmax.xlane.f32.xlu0 %v462
    %v464 = vpop.xlane.xlu0 %463
    %v465 = vsel %vm458, %v456, -inf
    %466 = vmax.xlane.f32.xlu0 %v465
    %v467 = vpop.xlane.xlu0 %466
    %v468 = vsel %vm458, %v457, -inf
    %469 = vmax.xlane.f32.xlu0 %v468
    %v470 = vpop.xlane.xlu0 %469
    %v471 = vsub.f32 %v454, %v461
    %v472 = vsub.f32 %v455, %v464
    %v473 = vsub.f32 %v456, %v467
    %v474 = vsub.f32 %v457, %v470
    %v475 = vmul.f32 %v471, 1.442695
    %v476 = vpow.pop %v475
    %v477 = vmul.f32 %v472, 1.442695
    %v478 = vpow.pop %v477
    %v479 = vmul.f32 %v473, 1.442695
    %v480 = vpow.pop %v479
    %v481 = vmul.f32 %v474, 1.442695
    %v482 = vpow.pop %v481
    %v483 = vsel %vm458, %v476, 0.0
    %484 = vadd.xlane.f32.xlu0 %v483
    %v485 = vpop.xlane.xlu0 %484
    %v486 = vsel %vm458, %v478, 0.0
    %487 = vadd.xlane.f32.xlu0 %v486
    %v488 = vpop.xlane.xlu0 %487
    %v489 = vsel %vm458, %v480, 0.0
    %490 = vadd.xlane.f32.xlu0 %v489
    %v491 = vpop.xlane.xlu0 %490
    %v492 = vsel %vm458, %v482, 0.0
    %493 = vadd.xlane.f32.xlu0 %v492
    %v494 = vpop.xlane.xlu0 %493
    %v495 = vrcp.pop %v485
    %v496 = vrcp.pop %v488
    %v497 = vrcp.pop %v491
    %v498 = vrcp.pop %v494
    %v499 = vmul.f32 %v476, %v495
    %v500 = vmul.f32 %v478, %v496
    %v501 = vmul.f32 %v480, %v497
    %v502 = vmul.f32 %v482, %v498
    %v503 = vlaneseq
    %v504 = vshrl.u32 %v503, 7
    %v505 = vsub.s32 0, %v504
    %v506 = vrot.slane %v346, %v505
    %v507 = vlaneseq
    %v508 = vshrl.u32 %v507, 7
    %v509 = vsub.s32 0, %v508
    %v510 = vrot.slane %v378, %v509
    %v511 = vmul.f32 %v499, %v506
    %v512 = vmul.f32 %v500, %v506
    %v513 = vmul.f32 %v501, %v510
    %v514 = vmul.f32 %v502, %v510
    %v515 = vsel %vm458, %v511, 0.0
    %516 = vadd.xlane.f32.xlu0 %v515
    %v517 = vpop.xlane.xlu0 %516
    %v518 = vsel %vm458, %v512, 0.0
    %519 = vadd.xlane.f32.xlu0 %v518
    %v520 = vpop.xlane.xlu0 %519
    %v521 = vsel %vm458, %v513, 0.0
    %522 = vadd.xlane.f32.xlu0 %v521
    %v523 = vpop.xlane.xlu0 %522
    %v524 = vsel %vm458, %v514, 0.0
    %525 = vadd.xlane.f32.xlu0 %v524
    %v526 = vpop.xlane.xlu0 %525
    %v527 = vlaneseq
    %v528 = vshrl.u32 %v527, 7
    %v529 = vsub.s32 1, %v528
    %v530 = vrot.slane %v346, %v529
    %v531 = vlaneseq
    %v532 = vshrl.u32 %v531, 7
    %v533 = vsub.s32 1, %v532
    %v534 = vrot.slane %v378, %v533
    %v535 = vmul.f32 %v499, %v530
    %v536 = vmul.f32 %v500, %v530
    %v537 = vmul.f32 %v501, %v534
    %v538 = vmul.f32 %v502, %v534
    %v539 = vsel %vm458, %v535, 0.0
    %540 = vadd.xlane.f32.xlu0 %v539
    %v541 = vpop.xlane.xlu0 %540
    %v542 = vsel %vm458, %v536, 0.0
    %543 = vadd.xlane.f32.xlu0 %v542
    %v544 = vpop.xlane.xlu0 %543
    %v545 = vsel %vm458, %v537, 0.0
    %546 = vadd.xlane.f32.xlu0 %v545
    %v547 = vpop.xlane.xlu0 %546
    %v548 = vsel %vm458, %v538, 0.0
    %549 = vadd.xlane.f32.xlu0 %v548
    %v550 = vpop.xlane.xlu0 %549
    %v551 = vlaneseq
    %v552 = vshrl.u32 %v551, 7
    %v553 = vsub.s32 0, %v552
    %v554 = vrot.slane %v152, %v553
    %v555 = vmul.f32 %v517, %v554
    %v556 = vmul.f32 %v520, %v554
    %v557 = vmul.f32 %v523, %v554
    %v558 = vmul.f32 %v526, %v554
    %v559 = vadd.f32 %v555, 0.0
    %v560 = vadd.f32 %v556, 0.0
    %v561 = vadd.f32 %v557, 0.0
    %v562 = vadd.f32 %v558, 0.0
    %v563 = vlaneseq
    %v564 = vshrl.u32 %v563, 7
    %v565 = vsub.s32 1, %v564
    %v566 = vrot.slane %v152, %v565
    %v567 = vmul.f32 %v541, %v566
    %v568 = vmul.f32 %v544, %v566
    %v569 = vmul.f32 %v547, %v566
    %v570 = vmul.f32 %v550, %v566
    %v571 = vadd.f32 %v559, %v567
    %v572 = vadd.f32 %v560, %v568
    %v573 = vadd.f32 %v561, %v569
    %v574 = vadd.f32 %v562, %v570
    %575 = vset.pattern.permute.xlu0 2
    %576 = vperm.xlu0 %575, %v234
    %v577 = vpop.permute.xlu0 %576
    %579 = vset.pattern.permute.xlu0 2
    %580 = vperm.xlu0 %579, %v235
    %v581 = vpop.permute.xlu0 %580
    %583 = vset.pattern.permute.xlu0 2
    %584 = vperm.xlu0 %583, %v236
    %v585 = vpop.permute.xlu0 %584
    %587 = vset.pattern.permute.xlu0 2
    %588 = vperm.xlu0 %587, %v237
    %v589 = vpop.permute.xlu0 %588
    %v591 = vlaneseq
    %v592 = vshrl.u32 %v591, 7
    %v593 = vsub.s32 2, %v592
    %v594 = vrot.slane %v270, %v593
    %v595 = vlaneseq
    %v596 = vshrl.u32 %v595, 7
    %v597 = vsub.s32 2, %v596
    %v598 = vrot.slane %v302, %v597
    %v599 = vmul.f32 %v577, %v594
    %v600 = vmul.f32 %v581, %v594
    %v601 = vmul.f32 %v585, %v598
    %v602 = vmul.f32 %v589, %v598
    %603 = vset.pattern.permute.xlu0 3
    %604 = vperm.xlu0 %603, %v234
    %v605 = vpop.permute.xlu0 %604
    %607 = vset.pattern.permute.xlu0 3
    %608 = vperm.xlu0 %607, %v235
    %v609 = vpop.permute.xlu0 %608
    %611 = vset.pattern.permute.xlu0 3
    %612 = vperm.xlu0 %611, %v236
    %v613 = vpop.permute.xlu0 %612
    %615 = vset.pattern.permute.xlu0 3
    %616 = vperm.xlu0 %615, %v237
    %v617 = vpop.permute.xlu0 %616
    %v619 = vlaneseq
    %v620 = vshrl.u32 %v619, 7
    %v621 = vsub.s32 3, %v620
    %v622 = vrot.slane %v270, %v621
    %v623 = vlaneseq
    %v624 = vshrl.u32 %v623, 7
    %v625 = vsub.s32 3, %v624
    %v626 = vrot.slane %v302, %v625
    %v627 = vmul.f32 %v605, %v622
    %v628 = vmul.f32 %v609, %v622
    %v629 = vmul.f32 %v613, %v626
    %v630 = vmul.f32 %v617, %v626
    %v631 = vadd.f32 %v599, %v627
    %v632 = vadd.f32 %v600, %v628
    %v633 = vadd.f32 %v601, %v629
    %v634 = vadd.f32 %v602, %v630
    %v635 = vsel %vm458, %v631, -inf
    %636 = vmax.xlane.f32.xlu0 %v635
    %v637 = vpop.xlane.xlu0 %636
    %v638 = vsel %vm458, %v632, -inf
    %639 = vmax.xlane.f32.xlu0 %v638
    %v640 = vpop.xlane.xlu0 %639
    %v641 = vsel %vm458, %v633, -inf
    %642 = vmax.xlane.f32.xlu0 %v641
    %v643 = vpop.xlane.xlu0 %642
    %v644 = vsel %vm458, %v634, -inf
    %645 = vmax.xlane.f32.xlu0 %v644
    %v646 = vpop.xlane.xlu0 %645
    %v647 = vsub.f32 %v631, %v637
    %v648 = vsub.f32 %v632, %v640
    %v649 = vsub.f32 %v633, %v643
    %v650 = vsub.f32 %v634, %v646
    %v651 = vmul.f32 %v647, 1.442695
    %v652 = vpow.pop %v651
    %v653 = vmul.f32 %v648, 1.442695
    %v654 = vpow.pop %v653
    %v655 = vmul.f32 %v649, 1.442695
    %v656 = vpow.pop %v655
    %v657 = vmul.f32 %v650, 1.442695
    %v658 = vpow.pop %v657
    %v659 = vsel %vm458, %v652, 0.0
    %660 = vadd.xlane.f32.xlu0 %v659
    %v661 = vpop.xlane.xlu0 %660
    %v662 = vsel %vm458, %v654, 0.0
    %663 = vadd.xlane.f32.xlu0 %v662
    %v664 = vpop.xlane.xlu0 %663
    %v665 = vsel %vm458, %v656, 0.0
    %666 = vadd.xlane.f32.xlu0 %v665
    %v667 = vpop.xlane.xlu0 %666
    %v668 = vsel %vm458, %v658, 0.0
    %669 = vadd.xlane.f32.xlu0 %v668
    %v670 = vpop.xlane.xlu0 %669
    %v671 = vrcp.pop %v661
    %v672 = vrcp.pop %v664
    %v673 = vrcp.pop %v667
    %v674 = vrcp.pop %v670
    %v675 = vmul.f32 %v652, %v671
    %v676 = vmul.f32 %v654, %v672
    %v677 = vmul.f32 %v656, %v673
    %v678 = vmul.f32 %v658, %v674
    %v679 = vlaneseq
    %v680 = vshrl.u32 %v679, 7
    %v681 = vsub.s32 2, %v680
    %v682 = vrot.slane %v346, %v681
    %v683 = vlaneseq
    %v684 = vshrl.u32 %v683, 7
    %v685 = vsub.s32 2, %v684
    %v686 = vrot.slane %v378, %v685
    %v687 = vmul.f32 %v675, %v682
    %v688 = vmul.f32 %v676, %v682
    %v689 = vmul.f32 %v677, %v686
    %v690 = vmul.f32 %v678, %v686
    %v691 = vsel %vm458, %v687, 0.0
    %692 = vadd.xlane.f32.xlu0 %v691
    %v693 = vpop.xlane.xlu0 %692
    %v694 = vsel %vm458, %v688, 0.0
    %695 = vadd.xlane.f32.xlu0 %v694
    %v696 = vpop.xlane.xlu0 %695
    %v697 = vsel %vm458, %v689, 0.0
    %698 = vadd.xlane.f32.xlu0 %v697
    %v699 = vpop.xlane.xlu0 %698
    %v700 = vsel %vm458, %v690, 0.0
    %701 = vadd.xlane.f32.xlu0 %v700
    %v702 = vpop.xlane.xlu0 %701
    %v703 = vlaneseq
    %v704 = vshrl.u32 %v703, 7
    %v705 = vsub.s32 3, %v704
    %v706 = vrot.slane %v346, %v705
    %v707 = vlaneseq
    %v708 = vshrl.u32 %v707, 7
    %v709 = vsub.s32 3, %v708
    %v710 = vrot.slane %v378, %v709
    %v711 = vmul.f32 %v675, %v706
    %v712 = vmul.f32 %v676, %v706
    %v713 = vmul.f32 %v677, %v710
    %v714 = vmul.f32 %v678, %v710
    %v715 = vsel %vm458, %v711, 0.0
    %716 = vadd.xlane.f32.xlu0 %v715
    %v717 = vpop.xlane.xlu0 %716
    %v718 = vsel %vm458, %v712, 0.0
    %719 = vadd.xlane.f32.xlu0 %v718
    %v720 = vpop.xlane.xlu0 %719
    %v721 = vsel %vm458, %v713, 0.0
    %722 = vadd.xlane.f32.xlu0 %v721
    %v723 = vpop.xlane.xlu0 %722
    %v724 = vsel %vm458, %v714, 0.0
    %725 = vadd.xlane.f32.xlu0 %v724
    %v726 = vpop.xlane.xlu0 %725
    %v727 = vlaneseq
    %v728 = vshrl.u32 %v727, 7
    %v729 = vsub.s32 2, %v728
    %v730 = vrot.slane %v152, %v729
    %v731 = vmul.f32 %v693, %v730
    %v732 = vmul.f32 %v696, %v730
    %v733 = vmul.f32 %v699, %v730
    %v734 = vmul.f32 %v702, %v730
    %v735 = vadd.f32 %v571, %v731
    %v736 = vadd.f32 %v572, %v732
    %v737 = vadd.f32 %v573, %v733
    %v738 = vadd.f32 %v574, %v734
    %v739 = vlaneseq
    %v740 = vshrl.u32 %v739, 7
    %v741 = vsub.s32 3, %v740
    %v742 = vrot.slane %v152, %v741
    %v743 = vmul.f32 %v717, %v742
    %v744 = vmul.f32 %v720, %v742
    %v745 = vmul.f32 %v723, %v742
    %v746 = vmul.f32 %v726, %v742
    %v747 = vadd.f32 %v735, %v743
    %v748 = vadd.f32 %v736, %v744
    %v749 = vadd.f32 %v737, %v745
    %v750 = vadd.f32 %v738, %v746
    %751 = vset.pattern.permute.xlu0 4
    %752 = vperm.xlu0 %751, %v234
    %v753 = vpop.permute.xlu0 %752
    %755 = vset.pattern.permute.xlu0 4
    %756 = vperm.xlu0 %755, %v235
    %v757 = vpop.permute.xlu0 %756
    %759 = vset.pattern.permute.xlu0 4
    %760 = vperm.xlu0 %759, %v236
    %v761 = vpop.permute.xlu0 %760
    %763 = vset.pattern.permute.xlu0 4
    %764 = vperm.xlu0 %763, %v237
    %v765 = vpop.permute.xlu0 %764
    %v767 = vlaneseq
    %v768 = vshrl.u32 %v767, 7
    %v769 = vsub.s32 4, %v768
    %v770 = vrot.slane %v270, %v769
    %v771 = vlaneseq
    %v772 = vshrl.u32 %v771, 7
    %v773 = vsub.s32 4, %v772
    %v774 = vrot.slane %v302, %v773
    %v775 = vmul.f32 %v753, %v770
    %v776 = vmul.f32 %v757, %v770
    %v777 = vmul.f32 %v761, %v774
    %v778 = vmul.f32 %v765, %v774
    %779 = vset.pattern.permute.xlu0 5
    %780 = vperm.xlu0 %779, %v234
    %v781 = vpop.permute.xlu0 %780
    %783 = vset.pattern.permute.xlu0 5
    %784 = vperm.xlu0 %783, %v235
    %v785 = vpop.permute.xlu0 %784
    %787 = vset.pattern.permute.xlu0 5
    %788 = vperm.xlu0 %787, %v236
    %v789 = vpop.permute.xlu0 %788
    %791 = vset.pattern.permute.xlu0 5
    %792 = vperm.xlu0 %791, %v237
    %v793 = vpop.permute.xlu0 %792
    %v795 = vlaneseq
    %v796 = vshrl.u32 %v795, 7
    %v797 = vsub.s32 5, %v796
    %v798 = vrot.slane %v270, %v797
    %v799 = vlaneseq
    %v800 = vshrl.u32 %v799, 7
    %v801 = vsub.s32 5, %v800
    %v802 = vrot.slane %v302, %v801
    %v803 = vmul.f32 %v781, %v798
    %v804 = vmul.f32 %v785, %v798
    %v805 = vmul.f32 %v789, %v802
    %v806 = vmul.f32 %v793, %v802
    %v807 = vadd.f32 %v775, %v803
    %v808 = vadd.f32 %v776, %v804
    %v809 = vadd.f32 %v777, %v805
    %v810 = vadd.f32 %v778, %v806
    %v811 = vsel %vm458, %v807, -inf
    %812 = vmax.xlane.f32.xlu0 %v811
    %v813 = vpop.xlane.xlu0 %812
    %v814 = vsel %vm458, %v808, -inf
    %815 = vmax.xlane.f32.xlu0 %v814
    %v816 = vpop.xlane.xlu0 %815
    %v817 = vsel %vm458, %v809, -inf
    %818 = vmax.xlane.f32.xlu0 %v817
    %v819 = vpop.xlane.xlu0 %818
    %v820 = vsel %vm458, %v810, -inf
    %821 = vmax.xlane.f32.xlu0 %v820
    %v822 = vpop.xlane.xlu0 %821
    %v823 = vsub.f32 %v807, %v813
    %v824 = vsub.f32 %v808, %v816
    %v825 = vsub.f32 %v809, %v819
    %v826 = vsub.f32 %v810, %v822
    %v827 = vmul.f32 %v823, 1.442695
    %v828 = vpow.pop %v827
    %v829 = vmul.f32 %v824, 1.442695
    %v830 = vpow.pop %v829
    %v831 = vmul.f32 %v825, 1.442695
    %v832 = vpow.pop %v831
    %v833 = vmul.f32 %v826, 1.442695
    %v834 = vpow.pop %v833
    %v835 = vsel %vm458, %v828, 0.0
    %836 = vadd.xlane.f32.xlu0 %v835
    %v837 = vpop.xlane.xlu0 %836
    %v838 = vsel %vm458, %v830, 0.0
    %839 = vadd.xlane.f32.xlu0 %v838
    %v840 = vpop.xlane.xlu0 %839
    %v841 = vsel %vm458, %v832, 0.0
    %842 = vadd.xlane.f32.xlu0 %v841
    %v843 = vpop.xlane.xlu0 %842
    %v844 = vsel %vm458, %v834, 0.0
    %845 = vadd.xlane.f32.xlu0 %v844
    %v846 = vpop.xlane.xlu0 %845
    %v847 = vrcp.pop %v837
    %v848 = vrcp.pop %v840
    %v849 = vrcp.pop %v843
    %v850 = vrcp.pop %v846
    %v851 = vmul.f32 %v828, %v847
    %v852 = vmul.f32 %v830, %v848
    %v853 = vmul.f32 %v832, %v849
    %v854 = vmul.f32 %v834, %v850
    %v855 = vlaneseq
    %v856 = vshrl.u32 %v855, 7
    %v857 = vsub.s32 4, %v856
    %v858 = vrot.slane %v346, %v857
    %v859 = vlaneseq
    %v860 = vshrl.u32 %v859, 7
    %v861 = vsub.s32 4, %v860
    %v862 = vrot.slane %v378, %v861
    %v863 = vmul.f32 %v851, %v858
    %v864 = vmul.f32 %v852, %v858
    %v865 = vmul.f32 %v853, %v862
    %v866 = vmul.f32 %v854, %v862
    %v867 = vsel %vm458, %v863, 0.0
    %868 = vadd.xlane.f32.xlu0 %v867
    %v869 = vpop.xlane.xlu0 %868
    %v870 = vsel %vm458, %v864, 0.0
    %871 = vadd.xlane.f32.xlu0 %v870
    %v872 = vpop.xlane.xlu0 %871
    %v873 = vsel %vm458, %v865, 0.0
    %874 = vadd.xlane.f32.xlu0 %v873
    %v875 = vpop.xlane.xlu0 %874
    %v876 = vsel %vm458, %v866, 0.0
    %877 = vadd.xlane.f32.xlu0 %v876
    %v878 = vpop.xlane.xlu0 %877
    %v879 = vlaneseq
    %v880 = vshrl.u32 %v879, 7
    %v881 = vsub.s32 5, %v880
    %v882 = vrot.slane %v346, %v881
    %v883 = vlaneseq
    %v884 = vshrl.u32 %v883, 7
    %v885 = vsub.s32 5, %v884
    %v886 = vrot.slane %v378, %v885
    %v887 = vmul.f32 %v851, %v882
    %v888 = vmul.f32 %v852, %v882
    %v889 = vmul.f32 %v853, %v886
    %v890 = vmul.f32 %v854, %v886
    %v891 = vsel %vm458, %v887, 0.0
    %892 = vadd.xlane.f32.xlu0 %v891
    %v893 = vpop.xlane.xlu0 %892
    %v894 = vsel %vm458, %v888, 0.0
    %895 = vadd.xlane.f32.xlu0 %v894
    %v896 = vpop.xlane.xlu0 %895
    %v897 = vsel %vm458, %v889, 0.0
    %898 = vadd.xlane.f32.xlu0 %v897
    %v899 = vpop.xlane.xlu0 %898
    %v900 = vsel %vm458, %v890, 0.0
    %901 = vadd.xlane.f32.xlu0 %v900
    %v902 = vpop.xlane.xlu0 %901
    %v903 = vlaneseq
    %v904 = vshrl.u32 %v903, 7
    %v905 = vsub.s32 4, %v904
    %v906 = vrot.slane %v152, %v905
    %v907 = vmul.f32 %v869, %v906
    %v908 = vmul.f32 %v872, %v906
    %v909 = vmul.f32 %v875, %v906
    %v910 = vmul.f32 %v878, %v906
    %v911 = vadd.f32 %v747, %v907
    %v912 = vadd.f32 %v748, %v908
    %v913 = vadd.f32 %v749, %v909
    %v914 = vadd.f32 %v750, %v910
    %v915 = vlaneseq
    %v916 = vshrl.u32 %v915, 7
    %v917 = vsub.s32 5, %v916
    %v918 = vrot.slane %v152, %v917
    %v919 = vmul.f32 %v893, %v918
    %v920 = vmul.f32 %v896, %v918
    %v921 = vmul.f32 %v899, %v918
    %v922 = vmul.f32 %v902, %v918
    %v923 = vadd.f32 %v911, %v919
    %v924 = vadd.f32 %v912, %v920
    %v925 = vadd.f32 %v913, %v921
    %v926 = vadd.f32 %v914, %v922
    %927 = vset.pattern.permute.xlu0 6
    %928 = vperm.xlu0 %927, %v234
    %v929 = vpop.permute.xlu0 %928
    %931 = vset.pattern.permute.xlu0 6
    %932 = vperm.xlu0 %931, %v235
    %v933 = vpop.permute.xlu0 %932
    %935 = vset.pattern.permute.xlu0 6
    %936 = vperm.xlu0 %935, %v236
    %v937 = vpop.permute.xlu0 %936
    %939 = vset.pattern.permute.xlu0 6
    %940 = vperm.xlu0 %939, %v237
    %v941 = vpop.permute.xlu0 %940
    %v943 = vlaneseq
    %v944 = vshrl.u32 %v943, 7
    %v945 = vsub.s32 6, %v944
    %v946 = vrot.slane %v270, %v945
    %v947 = vlaneseq
    %v948 = vshrl.u32 %v947, 7
    %v949 = vsub.s32 6, %v948
    %v950 = vrot.slane %v302, %v949
    %v951 = vmul.f32 %v929, %v946
    %v952 = vmul.f32 %v933, %v946
    %v953 = vmul.f32 %v937, %v950
    %v954 = vmul.f32 %v941, %v950
    %955 = vset.pattern.permute.xlu0 7
    %956 = vperm.xlu0 %955, %v234
    %v957 = vpop.permute.xlu0 %956
    %959 = vset.pattern.permute.xlu0 7
    %960 = vperm.xlu0 %959, %v235
    %v961 = vpop.permute.xlu0 %960
    %963 = vset.pattern.permute.xlu0 7
    %964 = vperm.xlu0 %963, %v236
    %v965 = vpop.permute.xlu0 %964
    %967 = vset.pattern.permute.xlu0 7
    %968 = vperm.xlu0 %967, %v237
    %v969 = vpop.permute.xlu0 %968
    %v971 = vlaneseq
    %v972 = vshrl.u32 %v971, 7
    %v973 = vsub.s32 7, %v972
    %v974 = vrot.slane %v270, %v973
    %v975 = vlaneseq
    %v976 = vshrl.u32 %v975, 7
    %v977 = vsub.s32 7, %v976
    %v978 = vrot.slane %v302, %v977
    %v979 = vmul.f32 %v957, %v974
    %v980 = vmul.f32 %v961, %v974
    %v981 = vmul.f32 %v965, %v978
    %v982 = vmul.f32 %v969, %v978
    %v983 = vadd.f32 %v951, %v979
    %v984 = vadd.f32 %v952, %v980
    %v985 = vadd.f32 %v953, %v981
    %v986 = vadd.f32 %v954, %v982
    %v987 = vsel %vm458, %v983, -inf
    %988 = vmax.xlane.f32.xlu0 %v987
    %v989 = vpop.xlane.xlu0 %988
    %v990 = vsel %vm458, %v984, -inf
    %991 = vmax.xlane.f32.xlu0 %v990
    %v992 = vpop.xlane.xlu0 %991
    %v993 = vsel %vm458, %v985, -inf
    %994 = vmax.xlane.f32.xlu0 %v993
    %v995 = vpop.xlane.xlu0 %994
    %v996 = vsel %vm458, %v986, -inf
    %997 = vmax.xlane.f32.xlu0 %v996
    %v998 = vpop.xlane.xlu0 %997
    %v999 = vsub.f32 %v983, %v989
    %v1000 = vsub.f32 %v984, %v992
    %v1001 = vsub.f32 %v985, %v995
    %v1002 = vsub.f32 %v986, %v998
    %v1003 = vmul.f32 %v999, 1.442695
    %v1004 = vpow.pop %v1003
    %v1005 = vmul.f32 %v1000, 1.442695
    %v1006 = vpow.pop %v1005
    %v1007 = vmul.f32 %v1001, 1.442695
    %v1008 = vpow.pop %v1007
    %v1009 = vmul.f32 %v1002, 1.442695
    %v1010 = vpow.pop %v1009
    %v1011 = vsel %vm458, %v1004, 0.0
    %1012 = vadd.xlane.f32.xlu0 %v1011
    %v1013 = vpop.xlane.xlu0 %1012
    %v1014 = vsel %vm458, %v1006, 0.0
    %1015 = vadd.xlane.f32.xlu0 %v1014
    %v1016 = vpop.xlane.xlu0 %1015
    %v1017 = vsel %vm458, %v1008, 0.0
    %1018 = vadd.xlane.f32.xlu0 %v1017
    %v1019 = vpop.xlane.xlu0 %1018
    %v1020 = vsel %vm458, %v1010, 0.0
    %1021 = vadd.xlane.f32.xlu0 %v1020
    %v1022 = vpop.xlane.xlu0 %1021
    %v1023 = vrcp.pop %v1013
    %v1024 = vrcp.pop %v1016
    %v1025 = vrcp.pop %v1019
    %v1026 = vrcp.pop %v1022
    %v1027 = vmul.f32 %v1004, %v1023
    %v1028 = vmul.f32 %v1006, %v1024
    %v1029 = vmul.f32 %v1008, %v1025
    %v1030 = vmul.f32 %v1010, %v1026
    %v1031 = vlaneseq
    %v1032 = vshrl.u32 %v1031, 7
    %v1033 = vsub.s32 6, %v1032
    %v1034 = vrot.slane %v346, %v1033
    %v1035 = vlaneseq
    %v1036 = vshrl.u32 %v1035, 7
    %v1037 = vsub.s32 6, %v1036
    %v1038 = vrot.slane %v378, %v1037
    %v1039 = vmul.f32 %v1027, %v1034
    %v1040 = vmul.f32 %v1028, %v1034
    %v1041 = vmul.f32 %v1029, %v1038
    %v1042 = vmul.f32 %v1030, %v1038
    %v1043 = vsel %vm458, %v1039, 0.0
    %1044 = vadd.xlane.f32.xlu0 %v1043
    %v1045 = vpop.xlane.xlu0 %1044
    %v1046 = vsel %vm458, %v1040, 0.0
    %1047 = vadd.xlane.f32.xlu0 %v1046
    %v1048 = vpop.xlane.xlu0 %1047
    %v1049 = vsel %vm458, %v1041, 0.0
    %1050 = vadd.xlane.f32.xlu0 %v1049
    %v1051 = vpop.xlane.xlu0 %1050
    %v1052 = vsel %vm458, %v1042, 0.0
    %1053 = vadd.xlane.f32.xlu0 %v1052
    %v1054 = vpop.xlane.xlu0 %1053
    %v1055 = vlaneseq
    %v1056 = vshrl.u32 %v1055, 7
    %v1057 = vsub.s32 7, %v1056
    %v1058 = vrot.slane %v346, %v1057
    %v1059 = vlaneseq
    %v1060 = vshrl.u32 %v1059, 7
    %v1061 = vsub.s32 7, %v1060
    %v1062 = vrot.slane %v378, %v1061
    %v1063 = vmul.f32 %v1027, %v1058
    %v1064 = vmul.f32 %v1028, %v1058
    %v1065 = vmul.f32 %v1029, %v1062
    %v1066 = vmul.f32 %v1030, %v1062
    %v1067 = vsel %vm458, %v1063, 0.0
    %1068 = vadd.xlane.f32.xlu0 %v1067
    %v1069 = vpop.xlane.xlu0 %1068
    %v1070 = vsel %vm458, %v1064, 0.0
    %1071 = vadd.xlane.f32.xlu0 %v1070
    %v1072 = vpop.xlane.xlu0 %1071
    %v1073 = vsel %vm458, %v1065, 0.0
    %1074 = vadd.xlane.f32.xlu0 %v1073
    %v1075 = vpop.xlane.xlu0 %1074
    %v1076 = vsel %vm458, %v1066, 0.0
    %1077 = vadd.xlane.f32.xlu0 %v1076
    %v1078 = vpop.xlane.xlu0 %1077
    %v1079 = vlaneseq
    %v1080 = vshrl.u32 %v1079, 7
    %v1081 = vsub.s32 6, %v1080
    %v1082 = vrot.slane %v152, %v1081
    %v1083 = vmul.f32 %v1045, %v1082
    %v1084 = vmul.f32 %v1048, %v1082
    %v1085 = vmul.f32 %v1051, %v1082
    %v1086 = vmul.f32 %v1054, %v1082
    %v1087 = vadd.f32 %v923, %v1083
    %v1088 = vadd.f32 %v924, %v1084
    %v1089 = vadd.f32 %v925, %v1085
    %v1090 = vadd.f32 %v926, %v1086
    %v1091 = vlaneseq
    %v1092 = vshrl.u32 %v1091, 7
    %v1093 = vsub.s32 7, %v1092
    %v1094 = vrot.slane %v152, %v1093
    %v1095 = vmul.f32 %v1069, %v1094
    %v1096 = vmul.f32 %v1072, %v1094
    %v1097 = vmul.f32 %v1075, %v1094
    %v1098 = vmul.f32 %v1078, %v1094
    %v1099 = vadd.f32 %v1087, %v1095
    %v1100 = vadd.f32 %v1088, %v1096
    %v1101 = vadd.f32 %v1089, %v1097
    %v1102 = vadd.f32 %v1090, %v1098
    %1103 = vset.pattern.permute.xlu0 8
    %1104 = vperm.xlu0 %1103, %v234
    %v1105 = vpop.permute.xlu0 %1104
    %1107 = vset.pattern.permute.xlu0 8
    %1108 = vperm.xlu0 %1107, %v235
    %v1109 = vpop.permute.xlu0 %1108
    %1111 = vset.pattern.permute.xlu0 8
    %1112 = vperm.xlu0 %1111, %v236
    %v1113 = vpop.permute.xlu0 %1112
    %1115 = vset.pattern.permute.xlu0 8
    %1116 = vperm.xlu0 %1115, %v237
    %v1117 = vpop.permute.xlu0 %1116
    %v1119 = vlaneseq
    %v1120 = vshrl.u32 %v1119, 7
    %v1121 = vsub.s32 0, %v1120
    %v1122 = vrot.slane %v271, %v1121
    %v1123 = vlaneseq
    %v1124 = vshrl.u32 %v1123, 7
    %v1125 = vsub.s32 0, %v1124
    %v1126 = vrot.slane %v303, %v1125
    %v1127 = vmul.f32 %v1105, %v1122
    %v1128 = vmul.f32 %v1109, %v1122
    %v1129 = vmul.f32 %v1113, %v1126
    %v1130 = vmul.f32 %v1117, %v1126
    %1131 = vset.pattern.permute.xlu0 9
    %1132 = vperm.xlu0 %1131, %v234
    %v1133 = vpop.permute.xlu0 %1132
    %1135 = vset.pattern.permute.xlu0 9
    %1136 = vperm.xlu0 %1135, %v235
    %v1137 = vpop.permute.xlu0 %1136
    %1139 = vset.pattern.permute.xlu0 9
    %1140 = vperm.xlu0 %1139, %v236
    %v1141 = vpop.permute.xlu0 %1140
    %1143 = vset.pattern.permute.xlu0 9
    %1144 = vperm.xlu0 %1143, %v237
    %v1145 = vpop.permute.xlu0 %1144
    %v1147 = vlaneseq
    %v1148 = vshrl.u32 %v1147, 7
    %v1149 = vsub.s32 1, %v1148
    %v1150 = vrot.slane %v271, %v1149
    %v1151 = vlaneseq
    %v1152 = vshrl.u32 %v1151, 7
    %v1153 = vsub.s32 1, %v1152
    %v1154 = vrot.slane %v303, %v1153
    %v1155 = vmul.f32 %v1133, %v1150
    %v1156 = vmul.f32 %v1137, %v1150
    %v1157 = vmul.f32 %v1141, %v1154
    %v1158 = vmul.f32 %v1145, %v1154
    %v1159 = vadd.f32 %v1127, %v1155
    %v1160 = vadd.f32 %v1128, %v1156
    %v1161 = vadd.f32 %v1129, %v1157
    %v1162 = vadd.f32 %v1130, %v1158
    %v1163 = vsel %vm458, %v1159, -inf
    %1164 = vmax.xlane.f32.xlu0 %v1163
    %v1165 = vpop.xlane.xlu0 %1164
    %v1166 = vsel %vm458, %v1160, -inf
    %1167 = vmax.xlane.f32.xlu0 %v1166
    %v1168 = vpop.xlane.xlu0 %1167
    %v1169 = vsel %vm458, %v1161, -inf
    %1170 = vmax.xlane.f32.xlu0 %v1169
    %v1171 = vpop.xlane.xlu0 %1170
    %v1172 = vsel %vm458, %v1162, -inf
    %1173 = vmax.xlane.f32.xlu0 %v1172
    %v1174 = vpop.xlane.xlu0 %1173
    %v1175 = vsub.f32 %v1159, %v1165
    %v1176 = vsub.f32 %v1160, %v1168
    %v1177 = vsub.f32 %v1161, %v1171
    %v1178 = vsub.f32 %v1162, %v1174
    %v1179 = vmul.f32 %v1175, 1.442695
    %v1180 = vpow.pop %v1179
    %v1181 = vmul.f32 %v1176, 1.442695
    %v1182 = vpow.pop %v1181
    %v1183 = vmul.f32 %v1177, 1.442695
    %v1184 = vpow.pop %v1183
    %v1185 = vmul.f32 %v1178, 1.442695
    %v1186 = vpow.pop %v1185
    %v1187 = vsel %vm458, %v1180, 0.0
    %1188 = vadd.xlane.f32.xlu0 %v1187
    %v1189 = vpop.xlane.xlu0 %1188
    %v1190 = vsel %vm458, %v1182, 0.0
    %1191 = vadd.xlane.f32.xlu0 %v1190
    %v1192 = vpop.xlane.xlu0 %1191
    %v1193 = vsel %vm458, %v1184, 0.0
    %1194 = vadd.xlane.f32.xlu0 %v1193
    %v1195 = vpop.xlane.xlu0 %1194
    %v1196 = vsel %vm458, %v1186, 0.0
    %1197 = vadd.xlane.f32.xlu0 %v1196
    %v1198 = vpop.xlane.xlu0 %1197
    %v1199 = vrcp.pop %v1189
    %v1200 = vrcp.pop %v1192
    %v1201 = vrcp.pop %v1195
    %v1202 = vrcp.pop %v1198
    %v1203 = vmul.f32 %v1180, %v1199
    %v1204 = vmul.f32 %v1182, %v1200
    %v1205 = vmul.f32 %v1184, %v1201
    %v1206 = vmul.f32 %v1186, %v1202
    %v1207 = vlaneseq
    %v1208 = vshrl.u32 %v1207, 7
    %v1209 = vsub.s32 0, %v1208
    %v1210 = vrot.slane %v347, %v1209
    %v1211 = vlaneseq
    %v1212 = vshrl.u32 %v1211, 7
    %v1213 = vsub.s32 0, %v1212
    %v1214 = vrot.slane %v379, %v1213
    %v1215 = vmul.f32 %v1203, %v1210
    %v1216 = vmul.f32 %v1204, %v1210
    %v1217 = vmul.f32 %v1205, %v1214
    %v1218 = vmul.f32 %v1206, %v1214
    %v1219 = vsel %vm458, %v1215, 0.0
    %1220 = vadd.xlane.f32.xlu0 %v1219
    %v1221 = vpop.xlane.xlu0 %1220
    %v1222 = vsel %vm458, %v1216, 0.0
    %1223 = vadd.xlane.f32.xlu0 %v1222
    %v1224 = vpop.xlane.xlu0 %1223
    %v1225 = vsel %vm458, %v1217, 0.0
    %1226 = vadd.xlane.f32.xlu0 %v1225
    %v1227 = vpop.xlane.xlu0 %1226
    %v1228 = vsel %vm458, %v1218, 0.0
    %1229 = vadd.xlane.f32.xlu0 %v1228
    %v1230 = vpop.xlane.xlu0 %1229
    %v1231 = vlaneseq
    %v1232 = vshrl.u32 %v1231, 7
    %v1233 = vsub.s32 1, %v1232
    %v1234 = vrot.slane %v347, %v1233
    %v1235 = vlaneseq
    %v1236 = vshrl.u32 %v1235, 7
    %v1237 = vsub.s32 1, %v1236
    %v1238 = vrot.slane %v379, %v1237
    %v1239 = vmul.f32 %v1203, %v1234
    %v1240 = vmul.f32 %v1204, %v1234
    %v1241 = vmul.f32 %v1205, %v1238
    %v1242 = vmul.f32 %v1206, %v1238
    %v1243 = vsel %vm458, %v1239, 0.0
    %1244 = vadd.xlane.f32.xlu0 %v1243
    %v1245 = vpop.xlane.xlu0 %1244
    %v1246 = vsel %vm458, %v1240, 0.0
    %1247 = vadd.xlane.f32.xlu0 %v1246
    %v1248 = vpop.xlane.xlu0 %1247
    %v1249 = vsel %vm458, %v1241, 0.0
    %1250 = vadd.xlane.f32.xlu0 %v1249
    %v1251 = vpop.xlane.xlu0 %1250
    %v1252 = vsel %vm458, %v1242, 0.0
    %1253 = vadd.xlane.f32.xlu0 %v1252
    %v1254 = vpop.xlane.xlu0 %1253
    %v1255 = vlaneseq
    %v1256 = vshrl.u32 %v1255, 7
    %v1257 = vsub.s32 0, %v1256
    %v1258 = vrot.slane %v153, %v1257
    %v1259 = vmul.f32 %v1221, %v1258
    %v1260 = vmul.f32 %v1224, %v1258
    %v1261 = vmul.f32 %v1227, %v1258
    %v1262 = vmul.f32 %v1230, %v1258
    %v1263 = vadd.f32 %v1099, %v1259
    %v1264 = vadd.f32 %v1100, %v1260
    %v1265 = vadd.f32 %v1101, %v1261
    %v1266 = vadd.f32 %v1102, %v1262
    %v1267 = vlaneseq
    %v1268 = vshrl.u32 %v1267, 7
    %v1269 = vsub.s32 1, %v1268
    %v1270 = vrot.slane %v153, %v1269
    %v1271 = vmul.f32 %v1245, %v1270
    %v1272 = vmul.f32 %v1248, %v1270
    %v1273 = vmul.f32 %v1251, %v1270
    %v1274 = vmul.f32 %v1254, %v1270
    %v1275 = vadd.f32 %v1263, %v1271
    %v1276 = vadd.f32 %v1264, %v1272
    %v1277 = vadd.f32 %v1265, %v1273
    %v1278 = vadd.f32 %v1266, %v1274
    %1279 = vset.pattern.permute.xlu0 10
    %1280 = vperm.xlu0 %1279, %v234
    %v1281 = vpop.permute.xlu0 %1280
    %1283 = vset.pattern.permute.xlu0 10
    %1284 = vperm.xlu0 %1283, %v235
    %v1285 = vpop.permute.xlu0 %1284
    %1287 = vset.pattern.permute.xlu0 10
    %1288 = vperm.xlu0 %1287, %v236
    %v1289 = vpop.permute.xlu0 %1288
    %1291 = vset.pattern.permute.xlu0 10
    %1292 = vperm.xlu0 %1291, %v237
    %v1293 = vpop.permute.xlu0 %1292
    %v1295 = vlaneseq
    %v1296 = vshrl.u32 %v1295, 7
    %v1297 = vsub.s32 2, %v1296
    %v1298 = vrot.slane %v271, %v1297
    %v1299 = vlaneseq
    %v1300 = vshrl.u32 %v1299, 7
    %v1301 = vsub.s32 2, %v1300
    %v1302 = vrot.slane %v303, %v1301
    %v1303 = vmul.f32 %v1281, %v1298
    %v1304 = vmul.f32 %v1285, %v1298
    %v1305 = vmul.f32 %v1289, %v1302
    %v1306 = vmul.f32 %v1293, %v1302
    %1307 = vset.pattern.permute.xlu0 11
    %1308 = vperm.xlu0 %1307, %v234
    %v1309 = vpop.permute.xlu0 %1308
    %1311 = vset.pattern.permute.xlu0 11
    %1312 = vperm.xlu0 %1311, %v235
    %v1313 = vpop.permute.xlu0 %1312
    %1315 = vset.pattern.permute.xlu0 11
    %1316 = vperm.xlu0 %1315, %v236
    %v1317 = vpop.permute.xlu0 %1316
    %1319 = vset.pattern.permute.xlu0 11
    %1320 = vperm.xlu0 %1319, %v237
    %v1321 = vpop.permute.xlu0 %1320
    %v1323 = vlaneseq
    %v1324 = vshrl.u32 %v1323, 7
    %v1325 = vsub.s32 3, %v1324
    %v1326 = vrot.slane %v271, %v1325
    %v1327 = vlaneseq
    %v1328 = vshrl.u32 %v1327, 7
    %v1329 = vsub.s32 3, %v1328
    %v1330 = vrot.slane %v303, %v1329
    %v1331 = vmul.f32 %v1309, %v1326
    %v1332 = vmul.f32 %v1313, %v1326
    %v1333 = vmul.f32 %v1317, %v1330
    %v1334 = vmul.f32 %v1321, %v1330
    %v1335 = vadd.f32 %v1303, %v1331
    %v1336 = vadd.f32 %v1304, %v1332
    %v1337 = vadd.f32 %v1305, %v1333
    %v1338 = vadd.f32 %v1306, %v1334
    %v1339 = vsel %vm458, %v1335, -inf
    %1340 = vmax.xlane.f32.xlu0 %v1339
    %v1341 = vpop.xlane.xlu0 %1340
    %v1342 = vsel %vm458, %v1336, -inf
    %1343 = vmax.xlane.f32.xlu0 %v1342
    %v1344 = vpop.xlane.xlu0 %1343
    %v1345 = vsel %vm458, %v1337, -inf
    %1346 = vmax.xlane.f32.xlu0 %v1345
    %v1347 = vpop.xlane.xlu0 %1346
    %v1348 = vsel %vm458, %v1338, -inf
    %1349 = vmax.xlane.f32.xlu0 %v1348
    %v1350 = vpop.xlane.xlu0 %1349
    %v1351 = vsub.f32 %v1335, %v1341
    %v1352 = vsub.f32 %v1336, %v1344
    %v1353 = vsub.f32 %v1337, %v1347
    %v1354 = vsub.f32 %v1338, %v1350
    %v1355 = vmul.f32 %v1351, 1.442695
    %v1356 = vpow.pop %v1355
    %v1357 = vmul.f32 %v1352, 1.442695
    %v1358 = vpow.pop %v1357
    %v1359 = vmul.f32 %v1353, 1.442695
    %v1360 = vpow.pop %v1359
    %v1361 = vmul.f32 %v1354, 1.442695
    %v1362 = vpow.pop %v1361
    %v1363 = vsel %vm458, %v1356, 0.0
    %1364 = vadd.xlane.f32.xlu0 %v1363
    %v1365 = vpop.xlane.xlu0 %1364
    %v1366 = vsel %vm458, %v1358, 0.0
    %1367 = vadd.xlane.f32.xlu0 %v1366
    %v1368 = vpop.xlane.xlu0 %1367
    %v1369 = vsel %vm458, %v1360, 0.0
    %1370 = vadd.xlane.f32.xlu0 %v1369
    %v1371 = vpop.xlane.xlu0 %1370
    %v1372 = vsel %vm458, %v1362, 0.0
    %1373 = vadd.xlane.f32.xlu0 %v1372
    %v1374 = vpop.xlane.xlu0 %1373
    %v1375 = vrcp.pop %v1365
    %v1376 = vrcp.pop %v1368
    %v1377 = vrcp.pop %v1371
    %v1378 = vrcp.pop %v1374
    %v1379 = vmul.f32 %v1356, %v1375
    %v1380 = vmul.f32 %v1358, %v1376
    %v1381 = vmul.f32 %v1360, %v1377
    %v1382 = vmul.f32 %v1362, %v1378
    %v1383 = vlaneseq
    %v1384 = vshrl.u32 %v1383, 7
    %v1385 = vsub.s32 2, %v1384
    %v1386 = vrot.slane %v347, %v1385
    %v1387 = vlaneseq
    %v1388 = vshrl.u32 %v1387, 7
    %v1389 = vsub.s32 2, %v1388
    %v1390 = vrot.slane %v379, %v1389
    %v1391 = vmul.f32 %v1379, %v1386
    %v1392 = vmul.f32 %v1380, %v1386
    %v1393 = vmul.f32 %v1381, %v1390
    %v1394 = vmul.f32 %v1382, %v1390
    %v1395 = vsel %vm458, %v1391, 0.0
    %1396 = vadd.xlane.f32.xlu0 %v1395
    %v1397 = vpop.xlane.xlu0 %1396
    %v1398 = vsel %vm458, %v1392, 0.0
    %1399 = vadd.xlane.f32.xlu0 %v1398
    %v1400 = vpop.xlane.xlu0 %1399
    %v1401 = vsel %vm458, %v1393, 0.0
    %1402 = vadd.xlane.f32.xlu0 %v1401
    %v1403 = vpop.xlane.xlu0 %1402
    %v1404 = vsel %vm458, %v1394, 0.0
    %1405 = vadd.xlane.f32.xlu0 %v1404
    %v1406 = vpop.xlane.xlu0 %1405
    %v1407 = vlaneseq
    %v1408 = vshrl.u32 %v1407, 7
    %v1409 = vsub.s32 3, %v1408
    %v1410 = vrot.slane %v347, %v1409
    %v1411 = vlaneseq
    %v1412 = vshrl.u32 %v1411, 7
    %v1413 = vsub.s32 3, %v1412
    %v1414 = vrot.slane %v379, %v1413
    %v1415 = vmul.f32 %v1379, %v1410
    %v1416 = vmul.f32 %v1380, %v1410
    %v1417 = vmul.f32 %v1381, %v1414
    %v1418 = vmul.f32 %v1382, %v1414
    %v1419 = vsel %vm458, %v1415, 0.0
    %1420 = vadd.xlane.f32.xlu0 %v1419
    %v1421 = vpop.xlane.xlu0 %1420
    %v1422 = vsel %vm458, %v1416, 0.0
    %1423 = vadd.xlane.f32.xlu0 %v1422
    %v1424 = vpop.xlane.xlu0 %1423
    %v1425 = vsel %vm458, %v1417, 0.0
    %1426 = vadd.xlane.f32.xlu0 %v1425
    %v1427 = vpop.xlane.xlu0 %1426
    %v1428 = vsel %vm458, %v1418, 0.0
    %1429 = vadd.xlane.f32.xlu0 %v1428
    %v1430 = vpop.xlane.xlu0 %1429
    %v1431 = vlaneseq
    %v1432 = vshrl.u32 %v1431, 7
    %v1433 = vsub.s32 2, %v1432
    %v1434 = vrot.slane %v153, %v1433
    %v1435 = vmul.f32 %v1397, %v1434
    %v1436 = vmul.f32 %v1400, %v1434
    %v1437 = vmul.f32 %v1403, %v1434
    %v1438 = vmul.f32 %v1406, %v1434
    %v1439 = vadd.f32 %v1275, %v1435
    %v1440 = vadd.f32 %v1276, %v1436
    %v1441 = vadd.f32 %v1277, %v1437
    %v1442 = vadd.f32 %v1278, %v1438
    %v1443 = vlaneseq
    %v1444 = vshrl.u32 %v1443, 7
    %v1445 = vsub.s32 3, %v1444
    %v1446 = vrot.slane %v153, %v1445
    %v1447 = vmul.f32 %v1421, %v1446
    %v1448 = vmul.f32 %v1424, %v1446
    %v1449 = vmul.f32 %v1427, %v1446
    %v1450 = vmul.f32 %v1430, %v1446
    %v1451 = vadd.f32 %v1439, %v1447
    %v1452 = vadd.f32 %v1440, %v1448
    %v1453 = vadd.f32 %v1441, %v1449
    %v1454 = vadd.f32 %v1442, %v1450
    %1455 = vset.pattern.permute.xlu0 12
    %1456 = vperm.xlu0 %1455, %v234
    %v1457 = vpop.permute.xlu0 %1456
    %1459 = vset.pattern.permute.xlu0 12
    %1460 = vperm.xlu0 %1459, %v235
    %v1461 = vpop.permute.xlu0 %1460
    %1463 = vset.pattern.permute.xlu0 12
    %1464 = vperm.xlu0 %1463, %v236
    %v1465 = vpop.permute.xlu0 %1464
    %1467 = vset.pattern.permute.xlu0 12
    %1468 = vperm.xlu0 %1467, %v237
    %v1469 = vpop.permute.xlu0 %1468
    %v1471 = vlaneseq
    %v1472 = vshrl.u32 %v1471, 7
    %v1473 = vsub.s32 4, %v1472
    %v1474 = vrot.slane %v271, %v1473
    %v1475 = vlaneseq
    %v1476 = vshrl.u32 %v1475, 7
    %v1477 = vsub.s32 4, %v1476
    %v1478 = vrot.slane %v303, %v1477
    %v1479 = vmul.f32 %v1457, %v1474
    %v1480 = vmul.f32 %v1461, %v1474
    %v1481 = vmul.f32 %v1465, %v1478
    %v1482 = vmul.f32 %v1469, %v1478
    %1483 = vset.pattern.permute.xlu0 13
    %1484 = vperm.xlu0 %1483, %v234
    %v1485 = vpop.permute.xlu0 %1484
    %1487 = vset.pattern.permute.xlu0 13
    %1488 = vperm.xlu0 %1487, %v235
    %v1489 = vpop.permute.xlu0 %1488
    %1491 = vset.pattern.permute.xlu0 13
    %1492 = vperm.xlu0 %1491, %v236
    %v1493 = vpop.permute.xlu0 %1492
    %1495 = vset.pattern.permute.xlu0 13
    %1496 = vperm.xlu0 %1495, %v237
    %v1497 = vpop.permute.xlu0 %1496
    %v1499 = vlaneseq
    %v1500 = vshrl.u32 %v1499, 7
    %v1501 = vsub.s32 5, %v1500
    %v1502 = vrot.slane %v271, %v1501
    %v1503 = vlaneseq
    %v1504 = vshrl.u32 %v1503, 7
    %v1505 = vsub.s32 5, %v1504
    %v1506 = vrot.slane %v303, %v1505
    %v1507 = vmul.f32 %v1485, %v1502
    %v1508 = vmul.f32 %v1489, %v1502
    %v1509 = vmul.f32 %v1493, %v1506
    %v1510 = vmul.f32 %v1497, %v1506
    %v1511 = vadd.f32 %v1479, %v1507
    %v1512 = vadd.f32 %v1480, %v1508
    %v1513 = vadd.f32 %v1481, %v1509
    %v1514 = vadd.f32 %v1482, %v1510
    %v1515 = vsel %vm458, %v1511, -inf
    %1516 = vmax.xlane.f32.xlu0 %v1515
    %v1517 = vpop.xlane.xlu0 %1516
    %v1518 = vsel %vm458, %v1512, -inf
    %1519 = vmax.xlane.f32.xlu0 %v1518
    %v1520 = vpop.xlane.xlu0 %1519
    %v1521 = vsel %vm458, %v1513, -inf
    %1522 = vmax.xlane.f32.xlu0 %v1521
    %v1523 = vpop.xlane.xlu0 %1522
    %v1524 = vsel %vm458, %v1514, -inf
    %1525 = vmax.xlane.f32.xlu0 %v1524
    %v1526 = vpop.xlane.xlu0 %1525
    %v1527 = vsub.f32 %v1511, %v1517
    %v1528 = vsub.f32 %v1512, %v1520
    %v1529 = vsub.f32 %v1513, %v1523
    %v1530 = vsub.f32 %v1514, %v1526
    %v1531 = vmul.f32 %v1527, 1.442695
    %v1532 = vpow.pop %v1531
    %v1533 = vmul.f32 %v1528, 1.442695
    %v1534 = vpow.pop %v1533
    %v1535 = vmul.f32 %v1529, 1.442695
    %v1536 = vpow.pop %v1535
    %v1537 = vmul.f32 %v1530, 1.442695
    %v1538 = vpow.pop %v1537
    %v1539 = vsel %vm458, %v1532, 0.0
    %1540 = vadd.xlane.f32.xlu0 %v1539
    %v1541 = vpop.xlane.xlu0 %1540
    %v1542 = vsel %vm458, %v1534, 0.0
    %1543 = vadd.xlane.f32.xlu0 %v1542
    %v1544 = vpop.xlane.xlu0 %1543
    %v1545 = vsel %vm458, %v1536, 0.0
    %1546 = vadd.xlane.f32.xlu0 %v1545
    %v1547 = vpop.xlane.xlu0 %1546
    %v1548 = vsel %vm458, %v1538, 0.0
    %1549 = vadd.xlane.f32.xlu0 %v1548
    %v1550 = vpop.xlane.xlu0 %1549
    %v1551 = vrcp.pop %v1541
    %v1552 = vrcp.pop %v1544
    %v1553 = vrcp.pop %v1547
    %v1554 = vrcp.pop %v1550
    %v1555 = vmul.f32 %v1532, %v1551
    %v1556 = vmul.f32 %v1534, %v1552
    %v1557 = vmul.f32 %v1536, %v1553
    %v1558 = vmul.f32 %v1538, %v1554
    %v1559 = vlaneseq
    %v1560 = vshrl.u32 %v1559, 7
    %v1561 = vsub.s32 4, %v1560
    %v1562 = vrot.slane %v347, %v1561
    %v1563 = vlaneseq
    %v1564 = vshrl.u32 %v1563, 7
    %v1565 = vsub.s32 4, %v1564
    %v1566 = vrot.slane %v379, %v1565
    %v1567 = vmul.f32 %v1555, %v1562
    %v1568 = vmul.f32 %v1556, %v1562
    %v1569 = vmul.f32 %v1557, %v1566
    %v1570 = vmul.f32 %v1558, %v1566
    %v1571 = vsel %vm458, %v1567, 0.0
    %1572 = vadd.xlane.f32.xlu0 %v1571
    %v1573 = vpop.xlane.xlu0 %1572
    %v1574 = vsel %vm458, %v1568, 0.0
    %1575 = vadd.xlane.f32.xlu0 %v1574
    %v1576 = vpop.xlane.xlu0 %1575
    %v1577 = vsel %vm458, %v1569, 0.0
    %1578 = vadd.xlane.f32.xlu0 %v1577
    %v1579 = vpop.xlane.xlu0 %1578
    %v1580 = vsel %vm458, %v1570, 0.0
    %1581 = vadd.xlane.f32.xlu0 %v1580
    %v1582 = vpop.xlane.xlu0 %1581
    %v1583 = vlaneseq
    %v1584 = vshrl.u32 %v1583, 7
    %v1585 = vsub.s32 5, %v1584
    %v1586 = vrot.slane %v347, %v1585
    %v1587 = vlaneseq
    %v1588 = vshrl.u32 %v1587, 7
    %v1589 = vsub.s32 5, %v1588
    %v1590 = vrot.slane %v379, %v1589
    %v1591 = vmul.f32 %v1555, %v1586
    %v1592 = vmul.f32 %v1556, %v1586
    %v1593 = vmul.f32 %v1557, %v1590
    %v1594 = vmul.f32 %v1558, %v1590
    %v1595 = vsel %vm458, %v1591, 0.0
    %1596 = vadd.xlane.f32.xlu0 %v1595
    %v1597 = vpop.xlane.xlu0 %1596
    %v1598 = vsel %vm458, %v1592, 0.0
    %1599 = vadd.xlane.f32.xlu0 %v1598
    %v1600 = vpop.xlane.xlu0 %1599
    %v1601 = vsel %vm458, %v1593, 0.0
    %1602 = vadd.xlane.f32.xlu0 %v1601
    %v1603 = vpop.xlane.xlu0 %1602
    %v1604 = vsel %vm458, %v1594, 0.0
    %1605 = vadd.xlane.f32.xlu0 %v1604
    %v1606 = vpop.xlane.xlu0 %1605
    %v1607 = vlaneseq
    %v1608 = vshrl.u32 %v1607, 7
    %v1609 = vsub.s32 4, %v1608
    %v1610 = vrot.slane %v153, %v1609
    %v1611 = vmul.f32 %v1573, %v1610
    %v1612 = vmul.f32 %v1576, %v1610
    %v1613 = vmul.f32 %v1579, %v1610
    %v1614 = vmul.f32 %v1582, %v1610
    %v1615 = vadd.f32 %v1451, %v1611
    %v1616 = vadd.f32 %v1452, %v1612
    %v1617 = vadd.f32 %v1453, %v1613
    %v1618 = vadd.f32 %v1454, %v1614
    %v1619 = vlaneseq
    %v1620 = vshrl.u32 %v1619, 7
    %v1621 = vsub.s32 5, %v1620
    %v1622 = vrot.slane %v153, %v1621
    %v1623 = vmul.f32 %v1597, %v1622
    %v1624 = vmul.f32 %v1600, %v1622
    %v1625 = vmul.f32 %v1603, %v1622
    %v1626 = vmul.f32 %v1606, %v1622
    %v1627 = vadd.f32 %v1615, %v1623
    %v1628 = vadd.f32 %v1616, %v1624
    %v1629 = vadd.f32 %v1617, %v1625
    %v1630 = vadd.f32 %v1618, %v1626
    %1631 = vset.pattern.permute.xlu0 14
    %1632 = vperm.xlu0 %1631, %v234
    %v1633 = vpop.permute.xlu0 %1632
    %1635 = vset.pattern.permute.xlu0 14
    %1636 = vperm.xlu0 %1635, %v235
    %v1637 = vpop.permute.xlu0 %1636
    %1639 = vset.pattern.permute.xlu0 14
    %1640 = vperm.xlu0 %1639, %v236
    %v1641 = vpop.permute.xlu0 %1640
    %1643 = vset.pattern.permute.xlu0 14
    %1644 = vperm.xlu0 %1643, %v237
    %v1645 = vpop.permute.xlu0 %1644
    %v1647 = vlaneseq
    %v1648 = vshrl.u32 %v1647, 7
    %v1649 = vsub.s32 6, %v1648
    %v1650 = vrot.slane %v271, %v1649
    %v1651 = vlaneseq
    %v1652 = vshrl.u32 %v1651, 7
    %v1653 = vsub.s32 6, %v1652
    %v1654 = vrot.slane %v303, %v1653
    %v1655 = vmul.f32 %v1633, %v1650
    %v1656 = vmul.f32 %v1637, %v1650
    %v1657 = vmul.f32 %v1641, %v1654
    %v1658 = vmul.f32 %v1645, %v1654
    %1659 = vset.pattern.permute.xlu0 15
    %1660 = vperm.xlu0 %1659, %v234
    %v1661 = vpop.permute.xlu0 %1660
    %1663 = vset.pattern.permute.xlu0 15
    %1664 = vperm.xlu0 %1663, %v235
    %v1665 = vpop.permute.xlu0 %1664
    %1667 = vset.pattern.permute.xlu0 15
    %1668 = vperm.xlu0 %1667, %v236
    %v1669 = vpop.permute.xlu0 %1668
    %1671 = vset.pattern.permute.xlu0 15
    %1672 = vperm.xlu0 %1671, %v237
    %v1673 = vpop.permute.xlu0 %1672
    %v1675 = vlaneseq
    %v1676 = vshrl.u32 %v1675, 7
    %v1677 = vsub.s32 7, %v1676
    %v1678 = vrot.slane %v271, %v1677
    %v1679 = vlaneseq
    %v1680 = vshrl.u32 %v1679, 7
    %v1681 = vsub.s32 7, %v1680
    %v1682 = vrot.slane %v303, %v1681
    %v1683 = vmul.f32 %v1661, %v1678
    %v1684 = vmul.f32 %v1665, %v1678
    %v1685 = vmul.f32 %v1669, %v1682
    %v1686 = vmul.f32 %v1673, %v1682
    %v1687 = vadd.f32 %v1655, %v1683
    %v1688 = vadd.f32 %v1656, %v1684
    %v1689 = vadd.f32 %v1657, %v1685
    %v1690 = vadd.f32 %v1658, %v1686
    %v1691 = vsel %vm458, %v1687, -inf
    %1692 = vmax.xlane.f32.xlu0 %v1691
    %v1693 = vpop.xlane.xlu0 %1692
    %v1694 = vsel %vm458, %v1688, -inf
    %1695 = vmax.xlane.f32.xlu0 %v1694
    %v1696 = vpop.xlane.xlu0 %1695
    %v1697 = vsel %vm458, %v1689, -inf
    %1698 = vmax.xlane.f32.xlu0 %v1697
    %v1699 = vpop.xlane.xlu0 %1698
    %v1700 = vsel %vm458, %v1690, -inf
    %1701 = vmax.xlane.f32.xlu0 %v1700
    %v1702 = vpop.xlane.xlu0 %1701
    %v1703 = vsub.f32 %v1687, %v1693
    %v1704 = vsub.f32 %v1688, %v1696
    %v1705 = vsub.f32 %v1689, %v1699
    %v1706 = vsub.f32 %v1690, %v1702
    %v1707 = vmul.f32 %v1703, 1.442695
    %v1708 = vpow.pop %v1707
    %v1709 = vmul.f32 %v1704, 1.442695
    %v1710 = vpow.pop %v1709
    %v1711 = vmul.f32 %v1705, 1.442695
    %v1712 = vpow.pop %v1711
    %v1713 = vmul.f32 %v1706, 1.442695
    %v1714 = vpow.pop %v1713
    %v1715 = vsel %vm458, %v1708, 0.0
    %1716 = vadd.xlane.f32.xlu0 %v1715
    %v1717 = vpop.xlane.xlu0 %1716
    %v1718 = vsel %vm458, %v1710, 0.0
    %1719 = vadd.xlane.f32.xlu0 %v1718
    %v1720 = vpop.xlane.xlu0 %1719
    %v1721 = vsel %vm458, %v1712, 0.0
    %1722 = vadd.xlane.f32.xlu0 %v1721
    %v1723 = vpop.xlane.xlu0 %1722
    %v1724 = vsel %vm458, %v1714, 0.0
    %1725 = vadd.xlane.f32.xlu0 %v1724
    %v1726 = vpop.xlane.xlu0 %1725
    %v1727 = vrcp.pop %v1717
    %v1728 = vrcp.pop %v1720
    %v1729 = vrcp.pop %v1723
    %v1730 = vrcp.pop %v1726
    %v1731 = vmul.f32 %v1708, %v1727
    %v1732 = vmul.f32 %v1710, %v1728
    %v1733 = vmul.f32 %v1712, %v1729
    %v1734 = vmul.f32 %v1714, %v1730
    %v1735 = vlaneseq
    %v1736 = vshrl.u32 %v1735, 7
    %v1737 = vsub.s32 6, %v1736
    %v1738 = vrot.slane %v347, %v1737
    %v1739 = vlaneseq
    %v1740 = vshrl.u32 %v1739, 7
    %v1741 = vsub.s32 6, %v1740
    %v1742 = vrot.slane %v379, %v1741
    %v1743 = vmul.f32 %v1731, %v1738
    %v1744 = vmul.f32 %v1732, %v1738
    %v1745 = vmul.f32 %v1733, %v1742
    %v1746 = vmul.f32 %v1734, %v1742
    %v1747 = vsel %vm458, %v1743, 0.0
    %1748 = vadd.xlane.f32.xlu0 %v1747
    %v1749 = vpop.xlane.xlu0 %1748
    %v1750 = vsel %vm458, %v1744, 0.0
    %1751 = vadd.xlane.f32.xlu0 %v1750
    %v1752 = vpop.xlane.xlu0 %1751
    %v1753 = vsel %vm458, %v1745, 0.0
    %1754 = vadd.xlane.f32.xlu0 %v1753
    %v1755 = vpop.xlane.xlu0 %1754
    %v1756 = vsel %vm458, %v1746, 0.0
    %1757 = vadd.xlane.f32.xlu0 %v1756
    %v1758 = vpop.xlane.xlu0 %1757
    %v1759 = vlaneseq
    %v1760 = vshrl.u32 %v1759, 7
    %v1761 = vsub.s32 7, %v1760
    %v1762 = vrot.slane %v347, %v1761
    %v1763 = vlaneseq
    %v1764 = vshrl.u32 %v1763, 7
    %v1765 = vsub.s32 7, %v1764
    %v1766 = vrot.slane %v379, %v1765
    %v1767 = vmul.f32 %v1731, %v1762
    %v1768 = vmul.f32 %v1732, %v1762
    %v1769 = vmul.f32 %v1733, %v1766
    %v1770 = vmul.f32 %v1734, %v1766
    %v1771 = vsel %vm458, %v1767, 0.0
    %1772 = vadd.xlane.f32.xlu0 %v1771
    %v1773 = vpop.xlane.xlu0 %1772
    %v1774 = vsel %vm458, %v1768, 0.0
    %1775 = vadd.xlane.f32.xlu0 %v1774
    %v1776 = vpop.xlane.xlu0 %1775
    %v1777 = vsel %vm458, %v1769, 0.0
    %1778 = vadd.xlane.f32.xlu0 %v1777
    %v1779 = vpop.xlane.xlu0 %1778
    %v1780 = vsel %vm458, %v1770, 0.0
    %1781 = vadd.xlane.f32.xlu0 %v1780
    %v1782 = vpop.xlane.xlu0 %1781
    %v1783 = vlaneseq
    %v1784 = vshrl.u32 %v1783, 7
    %v1785 = vsub.s32 6, %v1784
    %v1786 = vrot.slane %v153, %v1785
    %v1787 = vmul.f32 %v1749, %v1786
    %v1788 = vmul.f32 %v1752, %v1786
    %v1789 = vmul.f32 %v1755, %v1786
    %v1790 = vmul.f32 %v1758, %v1786
    %v1791 = vadd.f32 %v1627, %v1787
    %v1792 = vadd.f32 %v1628, %v1788
    %v1793 = vadd.f32 %v1629, %v1789
    %v1794 = vadd.f32 %v1630, %v1790
    %v1795 = vlaneseq
    %v1796 = vshrl.u32 %v1795, 7
    %v1797 = vsub.s32 7, %v1796
    %v1798 = vrot.slane %v153, %v1797
    %v1799 = vmul.f32 %v1773, %v1798
    %v1800 = vmul.f32 %v1776, %v1798
    %v1801 = vmul.f32 %v1779, %v1798
    %v1802 = vmul.f32 %v1782, %v1798
    %v1803 = vadd.f32 %v1791, %v1799
    %v1804 = vadd.f32 %v1792, %v1800
    %v1805 = vadd.f32 %v1793, %v1801
    %v1806 = vadd.f32 %v1794, %v1802
    %1807 = vset.pattern.permute.xlu0 16
    %1808 = vperm.xlu0 %1807, %v234
    %v1809 = vpop.permute.xlu0 %1808
    %1811 = vset.pattern.permute.xlu0 16
    %1812 = vperm.xlu0 %1811, %v235
    %v1813 = vpop.permute.xlu0 %1812
    %1815 = vset.pattern.permute.xlu0 16
    %1816 = vperm.xlu0 %1815, %v236
    %v1817 = vpop.permute.xlu0 %1816
    %1819 = vset.pattern.permute.xlu0 16
    %1820 = vperm.xlu0 %1819, %v237
    %v1821 = vpop.permute.xlu0 %1820
    %v1823 = vlaneseq
    %v1824 = vshrl.u32 %v1823, 7
    %v1825 = vsub.s32 0, %v1824
    %v1826 = vrot.slane %v272, %v1825
    %v1827 = vlaneseq
    %v1828 = vshrl.u32 %v1827, 7
    %v1829 = vsub.s32 0, %v1828
    %v1830 = vrot.slane %v304, %v1829
    %v1831 = vmul.f32 %v1809, %v1826
    %v1832 = vmul.f32 %v1813, %v1826
    %v1833 = vmul.f32 %v1817, %v1830
    %v1834 = vmul.f32 %v1821, %v1830
    %1835 = vset.pattern.permute.xlu0 17
    %1836 = vperm.xlu0 %1835, %v234
    %v1837 = vpop.permute.xlu0 %1836
    %1839 = vset.pattern.permute.xlu0 17
    %1840 = vperm.xlu0 %1839, %v235
    %v1841 = vpop.permute.xlu0 %1840
    %1843 = vset.pattern.permute.xlu0 17
    %1844 = vperm.xlu0 %1843, %v236
    %v1845 = vpop.permute.xlu0 %1844
    %1847 = vset.pattern.permute.xlu0 17
    %1848 = vperm.xlu0 %1847, %v237
    %v1849 = vpop.permute.xlu0 %1848
    %v1851 = vlaneseq
    %v1852 = vshrl.u32 %v1851, 7
    %v1853 = vsub.s32 1, %v1852
    %v1854 = vrot.slane %v272, %v1853
    %v1855 = vlaneseq
    %v1856 = vshrl.u32 %v1855, 7
    %v1857 = vsub.s32 1, %v1856
    %v1858 = vrot.slane %v304, %v1857
    %v1859 = vmul.f32 %v1837, %v1854
    %v1860 = vmul.f32 %v1841, %v1854
    %v1861 = vmul.f32 %v1845, %v1858
    %v1862 = vmul.f32 %v1849, %v1858
    %v1863 = vadd.f32 %v1831, %v1859
    %v1864 = vadd.f32 %v1832, %v1860
    %v1865 = vadd.f32 %v1833, %v1861
    %v1866 = vadd.f32 %v1834, %v1862
    %v1867 = vsel %vm458, %v1863, -inf
    %1868 = vmax.xlane.f32.xlu0 %v1867
    %v1869 = vpop.xlane.xlu0 %1868
    %v1870 = vsel %vm458, %v1864, -inf
    %1871 = vmax.xlane.f32.xlu0 %v1870
    %v1872 = vpop.xlane.xlu0 %1871
    %v1873 = vsel %vm458, %v1865, -inf
    %1874 = vmax.xlane.f32.xlu0 %v1873
    %v1875 = vpop.xlane.xlu0 %1874
    %v1876 = vsel %vm458, %v1866, -inf
    %1877 = vmax.xlane.f32.xlu0 %v1876
    %v1878 = vpop.xlane.xlu0 %1877
    %v1879 = vsub.f32 %v1863, %v1869
    %v1880 = vsub.f32 %v1864, %v1872
    %v1881 = vsub.f32 %v1865, %v1875
    %v1882 = vsub.f32 %v1866, %v1878
    %v1883 = vmul.f32 %v1879, 1.442695
    %v1884 = vpow.pop %v1883
    %v1885 = vmul.f32 %v1880, 1.442695
    %v1886 = vpow.pop %v1885
    %v1887 = vmul.f32 %v1881, 1.442695
    %v1888 = vpow.pop %v1887
    %v1889 = vmul.f32 %v1882, 1.442695
    %v1890 = vpow.pop %v1889
    %v1891 = vsel %vm458, %v1884, 0.0
    %1892 = vadd.xlane.f32.xlu0 %v1891
    %v1893 = vpop.xlane.xlu0 %1892
    %v1894 = vsel %vm458, %v1886, 0.0
    %1895 = vadd.xlane.f32.xlu0 %v1894
    %v1896 = vpop.xlane.xlu0 %1895
    %v1897 = vsel %vm458, %v1888, 0.0
    %1898 = vadd.xlane.f32.xlu0 %v1897
    %v1899 = vpop.xlane.xlu0 %1898
    %v1900 = vsel %vm458, %v1890, 0.0
    %1901 = vadd.xlane.f32.xlu0 %v1900
    %v1902 = vpop.xlane.xlu0 %1901
    %v1903 = vrcp.pop %v1893
    %v1904 = vrcp.pop %v1896
    %v1905 = vrcp.pop %v1899
    %v1906 = vrcp.pop %v1902
    %v1907 = vmul.f32 %v1884, %v1903
    %v1908 = vmul.f32 %v1886, %v1904
    %v1909 = vmul.f32 %v1888, %v1905
    %v1910 = vmul.f32 %v1890, %v1906
    %v1911 = vlaneseq
    %v1912 = vshrl.u32 %v1911, 7
    %v1913 = vsub.s32 0, %v1912
    %v1914 = vrot.slane %v348, %v1913
    %v1915 = vlaneseq
    %v1916 = vshrl.u32 %v1915, 7
    %v1917 = vsub.s32 0, %v1916
    %v1918 = vrot.slane %v380, %v1917
    %v1919 = vmul.f32 %v1907, %v1914
    %v1920 = vmul.f32 %v1908, %v1914
    %v1921 = vmul.f32 %v1909, %v1918
    %v1922 = vmul.f32 %v1910, %v1918
    %v1923 = vsel %vm458, %v1919, 0.0
    %1924 = vadd.xlane.f32.xlu0 %v1923
    %v1925 = vpop.xlane.xlu0 %1924
    %v1926 = vsel %vm458, %v1920, 0.0
    %1927 = vadd.xlane.f32.xlu0 %v1926
    %v1928 = vpop.xlane.xlu0 %1927
    %v1929 = vsel %vm458, %v1921, 0.0
    %1930 = vadd.xlane.f32.xlu0 %v1929
    %v1931 = vpop.xlane.xlu0 %1930
    %v1932 = vsel %vm458, %v1922, 0.0
    %1933 = vadd.xlane.f32.xlu0 %v1932
    %v1934 = vpop.xlane.xlu0 %1933
    %v1935 = vlaneseq
    %v1936 = vshrl.u32 %v1935, 7
    %v1937 = vsub.s32 1, %v1936
    %v1938 = vrot.slane %v348, %v1937
    %v1939 = vlaneseq
    %v1940 = vshrl.u32 %v1939, 7
    %v1941 = vsub.s32 1, %v1940
    %v1942 = vrot.slane %v380, %v1941
    %v1943 = vmul.f32 %v1907, %v1938
    %v1944 = vmul.f32 %v1908, %v1938
    %v1945 = vmul.f32 %v1909, %v1942
    %v1946 = vmul.f32 %v1910, %v1942
    %v1947 = vsel %vm458, %v1943, 0.0
    %1948 = vadd.xlane.f32.xlu0 %v1947
    %v1949 = vpop.xlane.xlu0 %1948
    %v1950 = vsel %vm458, %v1944, 0.0
    %1951 = vadd.xlane.f32.xlu0 %v1950
    %v1952 = vpop.xlane.xlu0 %1951
    %v1953 = vsel %vm458, %v1945, 0.0
    %1954 = vadd.xlane.f32.xlu0 %v1953
    %v1955 = vpop.xlane.xlu0 %1954
    %v1956 = vsel %vm458, %v1946, 0.0
    %1957 = vadd.xlane.f32.xlu0 %v1956
    %v1958 = vpop.xlane.xlu0 %1957
    %v1959 = vlaneseq
    %v1960 = vshrl.u32 %v1959, 7
    %v1961 = vsub.s32 0, %v1960
    %v1962 = vrot.slane %v154, %v1961
    %v1963 = vmul.f32 %v1925, %v1962
    %v1964 = vmul.f32 %v1928, %v1962
    %v1965 = vmul.f32 %v1931, %v1962
    %v1966 = vmul.f32 %v1934, %v1962
    %v1967 = vadd.f32 %v1803, %v1963
    %v1968 = vadd.f32 %v1804, %v1964
    %v1969 = vadd.f32 %v1805, %v1965
    %v1970 = vadd.f32 %v1806, %v1966
    %v1971 = vlaneseq
    %v1972 = vshrl.u32 %v1971, 7
    %v1973 = vsub.s32 1, %v1972
    %v1974 = vrot.slane %v154, %v1973
    %v1975 = vmul.f32 %v1949, %v1974
    %v1976 = vmul.f32 %v1952, %v1974
    %v1977 = vmul.f32 %v1955, %v1974
    %v1978 = vmul.f32 %v1958, %v1974
    %v1979 = vadd.f32 %v1967, %v1975
    %v1980 = vadd.f32 %v1968, %v1976
    %v1981 = vadd.f32 %v1969, %v1977
    %v1982 = vadd.f32 %v1970, %v1978
    %1983 = vset.pattern.permute.xlu0 18
    %1984 = vperm.xlu0 %1983, %v234
    %v1985 = vpop.permute.xlu0 %1984
    %1987 = vset.pattern.permute.xlu0 18
    %1988 = vperm.xlu0 %1987, %v235
    %v1989 = vpop.permute.xlu0 %1988
    %1991 = vset.pattern.permute.xlu0 18
    %1992 = vperm.xlu0 %1991, %v236
    %v1993 = vpop.permute.xlu0 %1992
    %1995 = vset.pattern.permute.xlu0 18
    %1996 = vperm.xlu0 %1995, %v237
    %v1997 = vpop.permute.xlu0 %1996
    %v1999 = vlaneseq
    %v2000 = vshrl.u32 %v1999, 7
    %v2001 = vsub.s32 2, %v2000
    %v2002 = vrot.slane %v272, %v2001
    %v2003 = vlaneseq
    %v2004 = vshrl.u32 %v2003, 7
    %v2005 = vsub.s32 2, %v2004
    %v2006 = vrot.slane %v304, %v2005
    %v2007 = vmul.f32 %v1985, %v2002
    %v2008 = vmul.f32 %v1989, %v2002
    %v2009 = vmul.f32 %v1993, %v2006
    %v2010 = vmul.f32 %v1997, %v2006
    %2011 = vset.pattern.permute.xlu0 19
    %2012 = vperm.xlu0 %2011, %v234
    %v2013 = vpop.permute.xlu0 %2012
    %2015 = vset.pattern.permute.xlu0 19
    %2016 = vperm.xlu0 %2015, %v235
    %v2017 = vpop.permute.xlu0 %2016
    %2019 = vset.pattern.permute.xlu0 19
    %2020 = vperm.xlu0 %2019, %v236
    %v2021 = vpop.permute.xlu0 %2020
    %2023 = vset.pattern.permute.xlu0 19
    %2024 = vperm.xlu0 %2023, %v237
    %v2025 = vpop.permute.xlu0 %2024
    %v2027 = vlaneseq
    %v2028 = vshrl.u32 %v2027, 7
    %v2029 = vsub.s32 3, %v2028
    %v2030 = vrot.slane %v272, %v2029
    %v2031 = vlaneseq
    %v2032 = vshrl.u32 %v2031, 7
    %v2033 = vsub.s32 3, %v2032
    %v2034 = vrot.slane %v304, %v2033
    %v2035 = vmul.f32 %v2013, %v2030
    %v2036 = vmul.f32 %v2017, %v2030
    %v2037 = vmul.f32 %v2021, %v2034
    %v2038 = vmul.f32 %v2025, %v2034
    %v2039 = vadd.f32 %v2007, %v2035
    %v2040 = vadd.f32 %v2008, %v2036
    %v2041 = vadd.f32 %v2009, %v2037
    %v2042 = vadd.f32 %v2010, %v2038
    %v2043 = vsel %vm458, %v2039, -inf
    %2044 = vmax.xlane.f32.xlu0 %v2043
    %v2045 = vpop.xlane.xlu0 %2044
    %v2046 = vsel %vm458, %v2040, -inf
    %2047 = vmax.xlane.f32.xlu0 %v2046
    %v2048 = vpop.xlane.xlu0 %2047
    %v2049 = vsel %vm458, %v2041, -inf
    %2050 = vmax.xlane.f32.xlu0 %v2049
    %v2051 = vpop.xlane.xlu0 %2050
    %v2052 = vsel %vm458, %v2042, -inf
    %2053 = vmax.xlane.f32.xlu0 %v2052
    %v2054 = vpop.xlane.xlu0 %2053
    %v2055 = vsub.f32 %v2039, %v2045
    %v2056 = vsub.f32 %v2040, %v2048
    %v2057 = vsub.f32 %v2041, %v2051
    %v2058 = vsub.f32 %v2042, %v2054
    %v2059 = vmul.f32 %v2055, 1.442695
    %v2060 = vpow.pop %v2059
    %v2061 = vmul.f32 %v2056, 1.442695
    %v2062 = vpow.pop %v2061
    %v2063 = vmul.f32 %v2057, 1.442695
    %v2064 = vpow.pop %v2063
    %v2065 = vmul.f32 %v2058, 1.442695
    %v2066 = vpow.pop %v2065
    %v2067 = vsel %vm458, %v2060, 0.0
    %2068 = vadd.xlane.f32.xlu0 %v2067
    %v2069 = vpop.xlane.xlu0 %2068
    %v2070 = vsel %vm458, %v2062, 0.0
    %2071 = vadd.xlane.f32.xlu0 %v2070
    %v2072 = vpop.xlane.xlu0 %2071
    %v2073 = vsel %vm458, %v2064, 0.0
    %2074 = vadd.xlane.f32.xlu0 %v2073
    %v2075 = vpop.xlane.xlu0 %2074
    %v2076 = vsel %vm458, %v2066, 0.0
    %2077 = vadd.xlane.f32.xlu0 %v2076
    %v2078 = vpop.xlane.xlu0 %2077
    %v2079 = vrcp.pop %v2069
    %v2080 = vrcp.pop %v2072
    %v2081 = vrcp.pop %v2075
    %v2082 = vrcp.pop %v2078
    %v2083 = vmul.f32 %v2060, %v2079
    %v2084 = vmul.f32 %v2062, %v2080
    %v2085 = vmul.f32 %v2064, %v2081
    %v2086 = vmul.f32 %v2066, %v2082
    %v2087 = vlaneseq
    %v2088 = vshrl.u32 %v2087, 7
    %v2089 = vsub.s32 2, %v2088
    %v2090 = vrot.slane %v348, %v2089
    %v2091 = vlaneseq
    %v2092 = vshrl.u32 %v2091, 7
    %v2093 = vsub.s32 2, %v2092
    %v2094 = vrot.slane %v380, %v2093
    %v2095 = vmul.f32 %v2083, %v2090
    %v2096 = vmul.f32 %v2084, %v2090
    %v2097 = vmul.f32 %v2085, %v2094
    %v2098 = vmul.f32 %v2086, %v2094
    %v2099 = vsel %vm458, %v2095, 0.0
    %2100 = vadd.xlane.f32.xlu0 %v2099
    %v2101 = vpop.xlane.xlu0 %2100
    %v2102 = vsel %vm458, %v2096, 0.0
    %2103 = vadd.xlane.f32.xlu0 %v2102
    %v2104 = vpop.xlane.xlu0 %2103
    %v2105 = vsel %vm458, %v2097, 0.0
    %2106 = vadd.xlane.f32.xlu0 %v2105
    %v2107 = vpop.xlane.xlu0 %2106
    %v2108 = vsel %vm458, %v2098, 0.0
    %2109 = vadd.xlane.f32.xlu0 %v2108
    %v2110 = vpop.xlane.xlu0 %2109
    %v2111 = vlaneseq
    %v2112 = vshrl.u32 %v2111, 7
    %v2113 = vsub.s32 3, %v2112
    %v2114 = vrot.slane %v348, %v2113
    %v2115 = vlaneseq
    %v2116 = vshrl.u32 %v2115, 7
    %v2117 = vsub.s32 3, %v2116
    %v2118 = vrot.slane %v380, %v2117
    %v2119 = vmul.f32 %v2083, %v2114
    %v2120 = vmul.f32 %v2084, %v2114
    %v2121 = vmul.f32 %v2085, %v2118
    %v2122 = vmul.f32 %v2086, %v2118
    %v2123 = vsel %vm458, %v2119, 0.0
    %2124 = vadd.xlane.f32.xlu0 %v2123
    %v2125 = vpop.xlane.xlu0 %2124
    %v2126 = vsel %vm458, %v2120, 0.0
    %2127 = vadd.xlane.f32.xlu0 %v2126
    %v2128 = vpop.xlane.xlu0 %2127
    %v2129 = vsel %vm458, %v2121, 0.0
    %2130 = vadd.xlane.f32.xlu0 %v2129
    %v2131 = vpop.xlane.xlu0 %2130
    %v2132 = vsel %vm458, %v2122, 0.0
    %2133 = vadd.xlane.f32.xlu0 %v2132
    %v2134 = vpop.xlane.xlu0 %2133
    %v2135 = vlaneseq
    %v2136 = vshrl.u32 %v2135, 7
    %v2137 = vsub.s32 2, %v2136
    %v2138 = vrot.slane %v154, %v2137
    %v2139 = vmul.f32 %v2101, %v2138
    %v2140 = vmul.f32 %v2104, %v2138
    %v2141 = vmul.f32 %v2107, %v2138
    %v2142 = vmul.f32 %v2110, %v2138
    %v2143 = vadd.f32 %v1979, %v2139
    %v2144 = vadd.f32 %v1980, %v2140
    %v2145 = vadd.f32 %v1981, %v2141
    %v2146 = vadd.f32 %v1982, %v2142
    %v2147 = vlaneseq
    %v2148 = vshrl.u32 %v2147, 7
    %v2149 = vsub.s32 3, %v2148
    %v2150 = vrot.slane %v154, %v2149
    %v2151 = vmul.f32 %v2125, %v2150
    %v2152 = vmul.f32 %v2128, %v2150
    %v2153 = vmul.f32 %v2131, %v2150
    %v2154 = vmul.f32 %v2134, %v2150
    %v2155 = vadd.f32 %v2143, %v2151
    %v2156 = vadd.f32 %v2144, %v2152
    %v2157 = vadd.f32 %v2145, %v2153
    %v2158 = vadd.f32 %v2146, %v2154
    %2159 = vset.pattern.permute.xlu0 20
    %2160 = vperm.xlu0 %2159, %v234
    %v2161 = vpop.permute.xlu0 %2160
    %2163 = vset.pattern.permute.xlu0 20
    %2164 = vperm.xlu0 %2163, %v235
    %v2165 = vpop.permute.xlu0 %2164
    %2167 = vset.pattern.permute.xlu0 20
    %2168 = vperm.xlu0 %2167, %v236
    %v2169 = vpop.permute.xlu0 %2168
    %2171 = vset.pattern.permute.xlu0 20
    %2172 = vperm.xlu0 %2171, %v237
    %v2173 = vpop.permute.xlu0 %2172
    %v2175 = vlaneseq
    %v2176 = vshrl.u32 %v2175, 7
    %v2177 = vsub.s32 4, %v2176
    %v2178 = vrot.slane %v272, %v2177
    %v2179 = vlaneseq
    %v2180 = vshrl.u32 %v2179, 7
    %v2181 = vsub.s32 4, %v2180
    %v2182 = vrot.slane %v304, %v2181
    %v2183 = vmul.f32 %v2161, %v2178
    %v2184 = vmul.f32 %v2165, %v2178
    %v2185 = vmul.f32 %v2169, %v2182
    %v2186 = vmul.f32 %v2173, %v2182
    %2187 = vset.pattern.permute.xlu0 21
    %2188 = vperm.xlu0 %2187, %v234
    %v2189 = vpop.permute.xlu0 %2188
    %2191 = vset.pattern.permute.xlu0 21
    %2192 = vperm.xlu0 %2191, %v235
    %v2193 = vpop.permute.xlu0 %2192
    %2195 = vset.pattern.permute.xlu0 21
    %2196 = vperm.xlu0 %2195, %v236
    %v2197 = vpop.permute.xlu0 %2196
    %2199 = vset.pattern.permute.xlu0 21
    %2200 = vperm.xlu0 %2199, %v237
    %v2201 = vpop.permute.xlu0 %2200
    %v2203 = vlaneseq
    %v2204 = vshrl.u32 %v2203, 7
    %v2205 = vsub.s32 5, %v2204
    %v2206 = vrot.slane %v272, %v2205
    %v2207 = vlaneseq
    %v2208 = vshrl.u32 %v2207, 7
    %v2209 = vsub.s32 5, %v2208
    %v2210 = vrot.slane %v304, %v2209
    %v2211 = vmul.f32 %v2189, %v2206
    %v2212 = vmul.f32 %v2193, %v2206
    %v2213 = vmul.f32 %v2197, %v2210
    %v2214 = vmul.f32 %v2201, %v2210
    %v2215 = vadd.f32 %v2183, %v2211
    %v2216 = vadd.f32 %v2184, %v2212
    %v2217 = vadd.f32 %v2185, %v2213
    %v2218 = vadd.f32 %v2186, %v2214
    %v2219 = vsel %vm458, %v2215, -inf
    %2220 = vmax.xlane.f32.xlu0 %v2219
    %v2221 = vpop.xlane.xlu0 %2220
    %v2222 = vsel %vm458, %v2216, -inf
    %2223 = vmax.xlane.f32.xlu0 %v2222
    %v2224 = vpop.xlane.xlu0 %2223
    %v2225 = vsel %vm458, %v2217, -inf
    %2226 = vmax.xlane.f32.xlu0 %v2225
    %v2227 = vpop.xlane.xlu0 %2226
    %v2228 = vsel %vm458, %v2218, -inf
    %2229 = vmax.xlane.f32.xlu0 %v2228
    %v2230 = vpop.xlane.xlu0 %2229
    %v2231 = vsub.f32 %v2215, %v2221
    %v2232 = vsub.f32 %v2216, %v2224
    %v2233 = vsub.f32 %v2217, %v2227
    %v2234 = vsub.f32 %v2218, %v2230
    %v2235 = vmul.f32 %v2231, 1.442695
    %v2236 = vpow.pop %v2235
    %v2237 = vmul.f32 %v2232, 1.442695
    %v2238 = vpow.pop %v2237
    %v2239 = vmul.f32 %v2233, 1.442695
    %v2240 = vpow.pop %v2239
    %v2241 = vmul.f32 %v2234, 1.442695
    %v2242 = vpow.pop %v2241
    %v2243 = vsel %vm458, %v2236, 0.0
    %2244 = vadd.xlane.f32.xlu0 %v2243
    %v2245 = vpop.xlane.xlu0 %2244
    %v2246 = vsel %vm458, %v2238, 0.0
    %2247 = vadd.xlane.f32.xlu0 %v2246
    %v2248 = vpop.xlane.xlu0 %2247
    %v2249 = vsel %vm458, %v2240, 0.0
    %2250 = vadd.xlane.f32.xlu0 %v2249
    %v2251 = vpop.xlane.xlu0 %2250
    %v2252 = vsel %vm458, %v2242, 0.0
    %2253 = vadd.xlane.f32.xlu0 %v2252
    %v2254 = vpop.xlane.xlu0 %2253
    %v2255 = vrcp.pop %v2245
    %v2256 = vrcp.pop %v2248
    %v2257 = vrcp.pop %v2251
    %v2258 = vrcp.pop %v2254
    %v2259 = vmul.f32 %v2236, %v2255
    %v2260 = vmul.f32 %v2238, %v2256
    %v2261 = vmul.f32 %v2240, %v2257
    %v2262 = vmul.f32 %v2242, %v2258
    %v2263 = vlaneseq
    %v2264 = vshrl.u32 %v2263, 7
    %v2265 = vsub.s32 4, %v2264
    %v2266 = vrot.slane %v348, %v2265
    %v2267 = vlaneseq
    %v2268 = vshrl.u32 %v2267, 7
    %v2269 = vsub.s32 4, %v2268
    %v2270 = vrot.slane %v380, %v2269
    %v2271 = vmul.f32 %v2259, %v2266
    %v2272 = vmul.f32 %v2260, %v2266
    %v2273 = vmul.f32 %v2261, %v2270
    %v2274 = vmul.f32 %v2262, %v2270
    %v2275 = vsel %vm458, %v2271, 0.0
    %2276 = vadd.xlane.f32.xlu0 %v2275
    %v2277 = vpop.xlane.xlu0 %2276
    %v2278 = vsel %vm458, %v2272, 0.0
    %2279 = vadd.xlane.f32.xlu0 %v2278
    %v2280 = vpop.xlane.xlu0 %2279
    %v2281 = vsel %vm458, %v2273, 0.0
    %2282 = vadd.xlane.f32.xlu0 %v2281
    %v2283 = vpop.xlane.xlu0 %2282
    %v2284 = vsel %vm458, %v2274, 0.0
    %2285 = vadd.xlane.f32.xlu0 %v2284
    %v2286 = vpop.xlane.xlu0 %2285
    %v2287 = vlaneseq
    %v2288 = vshrl.u32 %v2287, 7
    %v2289 = vsub.s32 5, %v2288
    %v2290 = vrot.slane %v348, %v2289
    %v2291 = vlaneseq
    %v2292 = vshrl.u32 %v2291, 7
    %v2293 = vsub.s32 5, %v2292
    %v2294 = vrot.slane %v380, %v2293
    %v2295 = vmul.f32 %v2259, %v2290
    %v2296 = vmul.f32 %v2260, %v2290
    %v2297 = vmul.f32 %v2261, %v2294
    %v2298 = vmul.f32 %v2262, %v2294
    %v2299 = vsel %vm458, %v2295, 0.0
    %2300 = vadd.xlane.f32.xlu0 %v2299
    %v2301 = vpop.xlane.xlu0 %2300
    %v2302 = vsel %vm458, %v2296, 0.0
    %2303 = vadd.xlane.f32.xlu0 %v2302
    %v2304 = vpop.xlane.xlu0 %2303
    %v2305 = vsel %vm458, %v2297, 0.0
    %2306 = vadd.xlane.f32.xlu0 %v2305
    %v2307 = vpop.xlane.xlu0 %2306
    %v2308 = vsel %vm458, %v2298, 0.0
    %2309 = vadd.xlane.f32.xlu0 %v2308
    %v2310 = vpop.xlane.xlu0 %2309
    %v2311 = vlaneseq
    %v2312 = vshrl.u32 %v2311, 7
    %v2313 = vsub.s32 4, %v2312
    %v2314 = vrot.slane %v154, %v2313
    %v2315 = vmul.f32 %v2277, %v2314
    %v2316 = vmul.f32 %v2280, %v2314
    %v2317 = vmul.f32 %v2283, %v2314
    %v2318 = vmul.f32 %v2286, %v2314
    %v2319 = vadd.f32 %v2155, %v2315
    %v2320 = vadd.f32 %v2156, %v2316
    %v2321 = vadd.f32 %v2157, %v2317
    %v2322 = vadd.f32 %v2158, %v2318
    %v2323 = vlaneseq
    %v2324 = vshrl.u32 %v2323, 7
    %v2325 = vsub.s32 5, %v2324
    %v2326 = vrot.slane %v154, %v2325
    %v2327 = vmul.f32 %v2301, %v2326
    %v2328 = vmul.f32 %v2304, %v2326
    %v2329 = vmul.f32 %v2307, %v2326
    %v2330 = vmul.f32 %v2310, %v2326
    %v2331 = vadd.f32 %v2319, %v2327
    %v2332 = vadd.f32 %v2320, %v2328
    %v2333 = vadd.f32 %v2321, %v2329
    %v2334 = vadd.f32 %v2322, %v2330
    %2335 = vset.pattern.permute.xlu0 22
    %2336 = vperm.xlu0 %2335, %v234
    %v2337 = vpop.permute.xlu0 %2336
    %2339 = vset.pattern.permute.xlu0 22
    %2340 = vperm.xlu0 %2339, %v235
    %v2341 = vpop.permute.xlu0 %2340
    %2343 = vset.pattern.permute.xlu0 22
    %2344 = vperm.xlu0 %2343, %v236
    %v2345 = vpop.permute.xlu0 %2344
    %2347 = vset.pattern.permute.xlu0 22
    %2348 = vperm.xlu0 %2347, %v237
    %v2349 = vpop.permute.xlu0 %2348
    %v2351 = vlaneseq
    %v2352 = vshrl.u32 %v2351, 7
    %v2353 = vsub.s32 6, %v2352
    %v2354 = vrot.slane %v272, %v2353
    %v2355 = vlaneseq
    %v2356 = vshrl.u32 %v2355, 7
    %v2357 = vsub.s32 6, %v2356
    %v2358 = vrot.slane %v304, %v2357
    %v2359 = vmul.f32 %v2337, %v2354
    %v2360 = vmul.f32 %v2341, %v2354
    %v2361 = vmul.f32 %v2345, %v2358
    %v2362 = vmul.f32 %v2349, %v2358
    %2363 = vset.pattern.permute.xlu0 23
    %2364 = vperm.xlu0 %2363, %v234
    %v2365 = vpop.permute.xlu0 %2364
    %2367 = vset.pattern.permute.xlu0 23
    %2368 = vperm.xlu0 %2367, %v235
    %v2369 = vpop.permute.xlu0 %2368
    %2371 = vset.pattern.permute.xlu0 23
    %2372 = vperm.xlu0 %2371, %v236
    %v2373 = vpop.permute.xlu0 %2372
    %2375 = vset.pattern.permute.xlu0 23
    %2376 = vperm.xlu0 %2375, %v237
    %v2377 = vpop.permute.xlu0 %2376
    %v2379 = vlaneseq
    %v2380 = vshrl.u32 %v2379, 7
    %v2381 = vsub.s32 7, %v2380
    %v2382 = vrot.slane %v272, %v2381
    %v2383 = vlaneseq
    %v2384 = vshrl.u32 %v2383, 7
    %v2385 = vsub.s32 7, %v2384
    %v2386 = vrot.slane %v304, %v2385
    %v2387 = vmul.f32 %v2365, %v2382
    %v2388 = vmul.f32 %v2369, %v2382
    %v2389 = vmul.f32 %v2373, %v2386
    %v2390 = vmul.f32 %v2377, %v2386
    %v2391 = vadd.f32 %v2359, %v2387
    %v2392 = vadd.f32 %v2360, %v2388
    %v2393 = vadd.f32 %v2361, %v2389
    %v2394 = vadd.f32 %v2362, %v2390
    %v2395 = vsel %vm458, %v2391, -inf
    %2396 = vmax.xlane.f32.xlu0 %v2395
    %v2397 = vpop.xlane.xlu0 %2396
    %v2398 = vsel %vm458, %v2392, -inf
    %2399 = vmax.xlane.f32.xlu0 %v2398
    %v2400 = vpop.xlane.xlu0 %2399
    %v2401 = vsel %vm458, %v2393, -inf
    %2402 = vmax.xlane.f32.xlu0 %v2401
    %v2403 = vpop.xlane.xlu0 %2402
    %v2404 = vsel %vm458, %v2394, -inf
    %2405 = vmax.xlane.f32.xlu0 %v2404
    %v2406 = vpop.xlane.xlu0 %2405
    %v2407 = vsub.f32 %v2391, %v2397
    %v2408 = vsub.f32 %v2392, %v2400
    %v2409 = vsub.f32 %v2393, %v2403
    %v2410 = vsub.f32 %v2394, %v2406
    %v2411 = vmul.f32 %v2407, 1.442695
    %v2412 = vpow.pop %v2411
    %v2413 = vmul.f32 %v2408, 1.442695
    %v2414 = vpow.pop %v2413
    %v2415 = vmul.f32 %v2409, 1.442695
    %v2416 = vpow.pop %v2415
    %v2417 = vmul.f32 %v2410, 1.442695
    %v2418 = vpow.pop %v2417
    %v2419 = vsel %vm458, %v2412, 0.0
    %2420 = vadd.xlane.f32.xlu0 %v2419
    %v2421 = vpop.xlane.xlu0 %2420
    %v2422 = vsel %vm458, %v2414, 0.0
    %2423 = vadd.xlane.f32.xlu0 %v2422
    %v2424 = vpop.xlane.xlu0 %2423
    %v2425 = vsel %vm458, %v2416, 0.0
    %2426 = vadd.xlane.f32.xlu0 %v2425
    %v2427 = vpop.xlane.xlu0 %2426
    %v2428 = vsel %vm458, %v2418, 0.0
    %2429 = vadd.xlane.f32.xlu0 %v2428
    %v2430 = vpop.xlane.xlu0 %2429
    %v2431 = vrcp.pop %v2421
    %v2432 = vrcp.pop %v2424
    %v2433 = vrcp.pop %v2427
    %v2434 = vrcp.pop %v2430
    %v2435 = vmul.f32 %v2412, %v2431
    %v2436 = vmul.f32 %v2414, %v2432
    %v2437 = vmul.f32 %v2416, %v2433
    %v2438 = vmul.f32 %v2418, %v2434
    %v2439 = vlaneseq
    %v2440 = vshrl.u32 %v2439, 7
    %v2441 = vsub.s32 6, %v2440
    %v2442 = vrot.slane %v348, %v2441
    %v2443 = vlaneseq
    %v2444 = vshrl.u32 %v2443, 7
    %v2445 = vsub.s32 6, %v2444
    %v2446 = vrot.slane %v380, %v2445
    %v2447 = vmul.f32 %v2435, %v2442
    %v2448 = vmul.f32 %v2436, %v2442
    %v2449 = vmul.f32 %v2437, %v2446
    %v2450 = vmul.f32 %v2438, %v2446
    %v2451 = vsel %vm458, %v2447, 0.0
    %2452 = vadd.xlane.f32.xlu0 %v2451
    %v2453 = vpop.xlane.xlu0 %2452
    %v2454 = vsel %vm458, %v2448, 0.0
    %2455 = vadd.xlane.f32.xlu0 %v2454
    %v2456 = vpop.xlane.xlu0 %2455
    %v2457 = vsel %vm458, %v2449, 0.0
    %2458 = vadd.xlane.f32.xlu0 %v2457
    %v2459 = vpop.xlane.xlu0 %2458
    %v2460 = vsel %vm458, %v2450, 0.0
    %2461 = vadd.xlane.f32.xlu0 %v2460
    %v2462 = vpop.xlane.xlu0 %2461
    %v2463 = vlaneseq
    %v2464 = vshrl.u32 %v2463, 7
    %v2465 = vsub.s32 7, %v2464
    %v2466 = vrot.slane %v348, %v2465
    %v2467 = vlaneseq
    %v2468 = vshrl.u32 %v2467, 7
    %v2469 = vsub.s32 7, %v2468
    %v2470 = vrot.slane %v380, %v2469
    %v2471 = vmul.f32 %v2435, %v2466
    %v2472 = vmul.f32 %v2436, %v2466
    %v2473 = vmul.f32 %v2437, %v2470
    %v2474 = vmul.f32 %v2438, %v2470
    %v2475 = vsel %vm458, %v2471, 0.0
    %2476 = vadd.xlane.f32.xlu0 %v2475
    %v2477 = vpop.xlane.xlu0 %2476
    %v2478 = vsel %vm458, %v2472, 0.0
    %2479 = vadd.xlane.f32.xlu0 %v2478
    %v2480 = vpop.xlane.xlu0 %2479
    %v2481 = vsel %vm458, %v2473, 0.0
    %2482 = vadd.xlane.f32.xlu0 %v2481
    %v2483 = vpop.xlane.xlu0 %2482
    %v2484 = vsel %vm458, %v2474, 0.0
    %2485 = vadd.xlane.f32.xlu0 %v2484
    %v2486 = vpop.xlane.xlu0 %2485
    %v2487 = vlaneseq
    %v2488 = vshrl.u32 %v2487, 7
    %v2489 = vsub.s32 6, %v2488
    %v2490 = vrot.slane %v154, %v2489
    %v2491 = vmul.f32 %v2453, %v2490
    %v2492 = vmul.f32 %v2456, %v2490
    %v2493 = vmul.f32 %v2459, %v2490
    %v2494 = vmul.f32 %v2462, %v2490
    %v2495 = vadd.f32 %v2331, %v2491
    %v2496 = vadd.f32 %v2332, %v2492
    %v2497 = vadd.f32 %v2333, %v2493
    %v2498 = vadd.f32 %v2334, %v2494
    %v2499 = vlaneseq
    %v2500 = vshrl.u32 %v2499, 7
    %v2501 = vsub.s32 7, %v2500
    %v2502 = vrot.slane %v154, %v2501
    %v2503 = vmul.f32 %v2477, %v2502
    %v2504 = vmul.f32 %v2480, %v2502
    %v2505 = vmul.f32 %v2483, %v2502
    %v2506 = vmul.f32 %v2486, %v2502
    %v2507 = vadd.f32 %v2495, %v2503
    %v2508 = vadd.f32 %v2496, %v2504
    %v2509 = vadd.f32 %v2497, %v2505
    %v2510 = vadd.f32 %v2498, %v2506
    %2511 = vset.pattern.permute.xlu0 24
    %2512 = vperm.xlu0 %2511, %v234
    %v2513 = vpop.permute.xlu0 %2512
    %2515 = vset.pattern.permute.xlu0 24
    %2516 = vperm.xlu0 %2515, %v235
    %v2517 = vpop.permute.xlu0 %2516
    %2519 = vset.pattern.permute.xlu0 24
    %2520 = vperm.xlu0 %2519, %v236
    %v2521 = vpop.permute.xlu0 %2520
    %2523 = vset.pattern.permute.xlu0 24
    %2524 = vperm.xlu0 %2523, %v237
    %v2525 = vpop.permute.xlu0 %2524
    %v2527 = vlaneseq
    %v2528 = vshrl.u32 %v2527, 7
    %v2529 = vsub.s32 0, %v2528
    %v2530 = vrot.slane %v273, %v2529
    %v2531 = vlaneseq
    %v2532 = vshrl.u32 %v2531, 7
    %v2533 = vsub.s32 0, %v2532
    %v2534 = vrot.slane %v305, %v2533
    %v2535 = vmul.f32 %v2513, %v2530
    %v2536 = vmul.f32 %v2517, %v2530
    %v2537 = vmul.f32 %v2521, %v2534
    %v2538 = vmul.f32 %v2525, %v2534
    %2539 = vset.pattern.permute.xlu0 25
    %2540 = vperm.xlu0 %2539, %v234
    %v2541 = vpop.permute.xlu0 %2540
    %2543 = vset.pattern.permute.xlu0 25
    %2544 = vperm.xlu0 %2543, %v235
    %v2545 = vpop.permute.xlu0 %2544
    %2547 = vset.pattern.permute.xlu0 25
    %2548 = vperm.xlu0 %2547, %v236
    %v2549 = vpop.permute.xlu0 %2548
    %2551 = vset.pattern.permute.xlu0 25
    %2552 = vperm.xlu0 %2551, %v237
    %v2553 = vpop.permute.xlu0 %2552
    %v2555 = vlaneseq
    %v2556 = vshrl.u32 %v2555, 7
    %v2557 = vsub.s32 1, %v2556
    %v2558 = vrot.slane %v273, %v2557
    %v2559 = vlaneseq
    %v2560 = vshrl.u32 %v2559, 7
    %v2561 = vsub.s32 1, %v2560
    %v2562 = vrot.slane %v305, %v2561
    %v2563 = vmul.f32 %v2541, %v2558
    %v2564 = vmul.f32 %v2545, %v2558
    %v2565 = vmul.f32 %v2549, %v2562
    %v2566 = vmul.f32 %v2553, %v2562
    %v2567 = vadd.f32 %v2535, %v2563
    %v2568 = vadd.f32 %v2536, %v2564
    %v2569 = vadd.f32 %v2537, %v2565
    %v2570 = vadd.f32 %v2538, %v2566
    %v2571 = vsel %vm458, %v2567, -inf
    %2572 = vmax.xlane.f32.xlu0 %v2571
    %v2573 = vpop.xlane.xlu0 %2572
    %v2574 = vsel %vm458, %v2568, -inf
    %2575 = vmax.xlane.f32.xlu0 %v2574
    %v2576 = vpop.xlane.xlu0 %2575
    %v2577 = vsel %vm458, %v2569, -inf
    %2578 = vmax.xlane.f32.xlu0 %v2577
    %v2579 = vpop.xlane.xlu0 %2578
    %v2580 = vsel %vm458, %v2570, -inf
    %2581 = vmax.xlane.f32.xlu0 %v2580
    %v2582 = vpop.xlane.xlu0 %2581
    %v2583 = vsub.f32 %v2567, %v2573
    %v2584 = vsub.f32 %v2568, %v2576
    %v2585 = vsub.f32 %v2569, %v2579
    %v2586 = vsub.f32 %v2570, %v2582
    %v2587 = vmul.f32 %v2583, 1.442695
    %v2588 = vpow.pop %v2587
    %v2589 = vmul.f32 %v2584, 1.442695
    %v2590 = vpow.pop %v2589
    %v2591 = vmul.f32 %v2585, 1.442695
    %v2592 = vpow.pop %v2591
    %v2593 = vmul.f32 %v2586, 1.442695
    %v2594 = vpow.pop %v2593
    %v2595 = vsel %vm458, %v2588, 0.0
    %2596 = vadd.xlane.f32.xlu0 %v2595
    %v2597 = vpop.xlane.xlu0 %2596
    %v2598 = vsel %vm458, %v2590, 0.0
    %2599 = vadd.xlane.f32.xlu0 %v2598
    %v2600 = vpop.xlane.xlu0 %2599
    %v2601 = vsel %vm458, %v2592, 0.0
    %2602 = vadd.xlane.f32.xlu0 %v2601
    %v2603 = vpop.xlane.xlu0 %2602
    %v2604 = vsel %vm458, %v2594, 0.0
    %2605 = vadd.xlane.f32.xlu0 %v2604
    %v2606 = vpop.xlane.xlu0 %2605
    %v2607 = vrcp.pop %v2597
    %v2608 = vrcp.pop %v2600
    %v2609 = vrcp.pop %v2603
    %v2610 = vrcp.pop %v2606
    %v2611 = vmul.f32 %v2588, %v2607
    %v2612 = vmul.f32 %v2590, %v2608
    %v2613 = vmul.f32 %v2592, %v2609
    %v2614 = vmul.f32 %v2594, %v2610
    %v2615 = vlaneseq
    %v2616 = vshrl.u32 %v2615, 7
    %v2617 = vsub.s32 0, %v2616
    %v2618 = vrot.slane %v349, %v2617
    %v2619 = vlaneseq
    %v2620 = vshrl.u32 %v2619, 7
    %v2621 = vsub.s32 0, %v2620
    %v2622 = vrot.slane %v381, %v2621
    %v2623 = vmul.f32 %v2611, %v2618
    %v2624 = vmul.f32 %v2612, %v2618
    %v2625 = vmul.f32 %v2613, %v2622
    %v2626 = vmul.f32 %v2614, %v2622
    %v2627 = vsel %vm458, %v2623, 0.0
    %2628 = vadd.xlane.f32.xlu0 %v2627
    %v2629 = vpop.xlane.xlu0 %2628
    %v2630 = vsel %vm458, %v2624, 0.0
    %2631 = vadd.xlane.f32.xlu0 %v2630
    %v2632 = vpop.xlane.xlu0 %2631
    %v2633 = vsel %vm458, %v2625, 0.0
    %2634 = vadd.xlane.f32.xlu0 %v2633
    %v2635 = vpop.xlane.xlu0 %2634
    %v2636 = vsel %vm458, %v2626, 0.0
    %2637 = vadd.xlane.f32.xlu0 %v2636
    %v2638 = vpop.xlane.xlu0 %2637
    %v2639 = vlaneseq
    %v2640 = vshrl.u32 %v2639, 7
    %v2641 = vsub.s32 1, %v2640
    %v2642 = vrot.slane %v349, %v2641
    %v2643 = vlaneseq
    %v2644 = vshrl.u32 %v2643, 7
    %v2645 = vsub.s32 1, %v2644
    %v2646 = vrot.slane %v381, %v2645
    %v2647 = vmul.f32 %v2611, %v2642
    %v2648 = vmul.f32 %v2612, %v2642
    %v2649 = vmul.f32 %v2613, %v2646
    %v2650 = vmul.f32 %v2614, %v2646
    %v2651 = vsel %vm458, %v2647, 0.0
    %2652 = vadd.xlane.f32.xlu0 %v2651
    %v2653 = vpop.xlane.xlu0 %2652
    %v2654 = vsel %vm458, %v2648, 0.0
    %2655 = vadd.xlane.f32.xlu0 %v2654
    %v2656 = vpop.xlane.xlu0 %2655
    %v2657 = vsel %vm458, %v2649, 0.0
    %2658 = vadd.xlane.f32.xlu0 %v2657
    %v2659 = vpop.xlane.xlu0 %2658
    %v2660 = vsel %vm458, %v2650, 0.0
    %2661 = vadd.xlane.f32.xlu0 %v2660
    %v2662 = vpop.xlane.xlu0 %2661
    %v2663 = vlaneseq
    %v2664 = vshrl.u32 %v2663, 7
    %v2665 = vsub.s32 0, %v2664
    %v2666 = vrot.slane %v155, %v2665
    %v2667 = vmul.f32 %v2629, %v2666
    %v2668 = vmul.f32 %v2632, %v2666
    %v2669 = vmul.f32 %v2635, %v2666
    %v2670 = vmul.f32 %v2638, %v2666
    %v2671 = vadd.f32 %v2507, %v2667
    %v2672 = vadd.f32 %v2508, %v2668
    %v2673 = vadd.f32 %v2509, %v2669
    %v2674 = vadd.f32 %v2510, %v2670
    %v2675 = vlaneseq
    %v2676 = vshrl.u32 %v2675, 7
    %v2677 = vsub.s32 1, %v2676
    %v2678 = vrot.slane %v155, %v2677
    %v2679 = vmul.f32 %v2653, %v2678
    %v2680 = vmul.f32 %v2656, %v2678
    %v2681 = vmul.f32 %v2659, %v2678
    %v2682 = vmul.f32 %v2662, %v2678
    %v2683 = vadd.f32 %v2671, %v2679
    %v2684 = vadd.f32 %v2672, %v2680
    %v2685 = vadd.f32 %v2673, %v2681
    %v2686 = vadd.f32 %v2674, %v2682
    %2687 = vset.pattern.permute.xlu0 26
    %2688 = vperm.xlu0 %2687, %v234
    %v2689 = vpop.permute.xlu0 %2688
    %2691 = vset.pattern.permute.xlu0 26
    %2692 = vperm.xlu0 %2691, %v235
    %v2693 = vpop.permute.xlu0 %2692
    %2695 = vset.pattern.permute.xlu0 26
    %2696 = vperm.xlu0 %2695, %v236
    %v2697 = vpop.permute.xlu0 %2696
    %2699 = vset.pattern.permute.xlu0 26
    %2700 = vperm.xlu0 %2699, %v237
    %v2701 = vpop.permute.xlu0 %2700
    %v2703 = vlaneseq
    %v2704 = vshrl.u32 %v2703, 7
    %v2705 = vsub.s32 2, %v2704
    %v2706 = vrot.slane %v273, %v2705
    %v2707 = vlaneseq
    %v2708 = vshrl.u32 %v2707, 7
    %v2709 = vsub.s32 2, %v2708
    %v2710 = vrot.slane %v305, %v2709
    %v2711 = vmul.f32 %v2689, %v2706
    %v2712 = vmul.f32 %v2693, %v2706
    %v2713 = vmul.f32 %v2697, %v2710
    %v2714 = vmul.f32 %v2701, %v2710
    %2715 = vset.pattern.permute.xlu0 27
    %2716 = vperm.xlu0 %2715, %v234
    %v2717 = vpop.permute.xlu0 %2716
    %2719 = vset.pattern.permute.xlu0 27
    %2720 = vperm.xlu0 %2719, %v235
    %v2721 = vpop.permute.xlu0 %2720
    %2723 = vset.pattern.permute.xlu0 27
    %2724 = vperm.xlu0 %2723, %v236
    %v2725 = vpop.permute.xlu0 %2724
    %2727 = vset.pattern.permute.xlu0 27
    %2728 = vperm.xlu0 %2727, %v237
    %v2729 = vpop.permute.xlu0 %2728
    %v2731 = vlaneseq
    %v2732 = vshrl.u32 %v2731, 7
    %v2733 = vsub.s32 3, %v2732
    %v2734 = vrot.slane %v273, %v2733
    %v2735 = vlaneseq
    %v2736 = vshrl.u32 %v2735, 7
    %v2737 = vsub.s32 3, %v2736
    %v2738 = vrot.slane %v305, %v2737
    %v2739 = vmul.f32 %v2717, %v2734
    %v2740 = vmul.f32 %v2721, %v2734
    %v2741 = vmul.f32 %v2725, %v2738
    %v2742 = vmul.f32 %v2729, %v2738
    %v2743 = vadd.f32 %v2711, %v2739
    %v2744 = vadd.f32 %v2712, %v2740
    %v2745 = vadd.f32 %v2713, %v2741
    %v2746 = vadd.f32 %v2714, %v2742
    %v2747 = vsel %vm458, %v2743, -inf
    %2748 = vmax.xlane.f32.xlu0 %v2747
    %v2749 = vpop.xlane.xlu0 %2748
    %v2750 = vsel %vm458, %v2744, -inf
    %2751 = vmax.xlane.f32.xlu0 %v2750
    %v2752 = vpop.xlane.xlu0 %2751
    %v2753 = vsel %vm458, %v2745, -inf
    %2754 = vmax.xlane.f32.xlu0 %v2753
    %v2755 = vpop.xlane.xlu0 %2754
    %v2756 = vsel %vm458, %v2746, -inf
    %2757 = vmax.xlane.f32.xlu0 %v2756
    %v2758 = vpop.xlane.xlu0 %2757
    %v2759 = vsub.f32 %v2743, %v2749
    %v2760 = vsub.f32 %v2744, %v2752
    %v2761 = vsub.f32 %v2745, %v2755
    %v2762 = vsub.f32 %v2746, %v2758
    %v2763 = vmul.f32 %v2759, 1.442695
    %v2764 = vpow.pop %v2763
    %v2765 = vmul.f32 %v2760, 1.442695
    %v2766 = vpow.pop %v2765
    %v2767 = vmul.f32 %v2761, 1.442695
    %v2768 = vpow.pop %v2767
    %v2769 = vmul.f32 %v2762, 1.442695
    %v2770 = vpow.pop %v2769
    %v2771 = vsel %vm458, %v2764, 0.0
    %2772 = vadd.xlane.f32.xlu0 %v2771
    %v2773 = vpop.xlane.xlu0 %2772
    %v2774 = vsel %vm458, %v2766, 0.0
    %2775 = vadd.xlane.f32.xlu0 %v2774
    %v2776 = vpop.xlane.xlu0 %2775
    %v2777 = vsel %vm458, %v2768, 0.0
    %2778 = vadd.xlane.f32.xlu0 %v2777
    %v2779 = vpop.xlane.xlu0 %2778
    %v2780 = vsel %vm458, %v2770, 0.0
    %2781 = vadd.xlane.f32.xlu0 %v2780
    %v2782 = vpop.xlane.xlu0 %2781
    %v2783 = vrcp.pop %v2773
    %v2784 = vrcp.pop %v2776
    %v2785 = vrcp.pop %v2779
    %v2786 = vrcp.pop %v2782
    %v2787 = vmul.f32 %v2764, %v2783
    %v2788 = vmul.f32 %v2766, %v2784
    %v2789 = vmul.f32 %v2768, %v2785
    %v2790 = vmul.f32 %v2770, %v2786
    %v2791 = vlaneseq
    %v2792 = vshrl.u32 %v2791, 7
    %v2793 = vsub.s32 2, %v2792
    %v2794 = vrot.slane %v349, %v2793
    %v2795 = vlaneseq
    %v2796 = vshrl.u32 %v2795, 7
    %v2797 = vsub.s32 2, %v2796
    %v2798 = vrot.slane %v381, %v2797
    %v2799 = vmul.f32 %v2787, %v2794
    %v2800 = vmul.f32 %v2788, %v2794
    %v2801 = vmul.f32 %v2789, %v2798
    %v2802 = vmul.f32 %v2790, %v2798
    %v2803 = vsel %vm458, %v2799, 0.0
    %2804 = vadd.xlane.f32.xlu0 %v2803
    %v2805 = vpop.xlane.xlu0 %2804
    %v2806 = vsel %vm458, %v2800, 0.0
    %2807 = vadd.xlane.f32.xlu0 %v2806
    %v2808 = vpop.xlane.xlu0 %2807
    %v2809 = vsel %vm458, %v2801, 0.0
    %2810 = vadd.xlane.f32.xlu0 %v2809
    %v2811 = vpop.xlane.xlu0 %2810
    %v2812 = vsel %vm458, %v2802, 0.0
    %2813 = vadd.xlane.f32.xlu0 %v2812
    %v2814 = vpop.xlane.xlu0 %2813
    %v2815 = vlaneseq
    %v2816 = vshrl.u32 %v2815, 7
    %v2817 = vsub.s32 3, %v2816
    %v2818 = vrot.slane %v349, %v2817
    %v2819 = vlaneseq
    %v2820 = vshrl.u32 %v2819, 7
    %v2821 = vsub.s32 3, %v2820
    %v2822 = vrot.slane %v381, %v2821
    %v2823 = vmul.f32 %v2787, %v2818
    %v2824 = vmul.f32 %v2788, %v2818
    %v2825 = vmul.f32 %v2789, %v2822
    %v2826 = vmul.f32 %v2790, %v2822
    %v2827 = vsel %vm458, %v2823, 0.0
    %2828 = vadd.xlane.f32.xlu0 %v2827
    %v2829 = vpop.xlane.xlu0 %2828
    %v2830 = vsel %vm458, %v2824, 0.0
    %2831 = vadd.xlane.f32.xlu0 %v2830
    %v2832 = vpop.xlane.xlu0 %2831
    %v2833 = vsel %vm458, %v2825, 0.0
    %2834 = vadd.xlane.f32.xlu0 %v2833
    %v2835 = vpop.xlane.xlu0 %2834
    %v2836 = vsel %vm458, %v2826, 0.0
    %2837 = vadd.xlane.f32.xlu0 %v2836
    %v2838 = vpop.xlane.xlu0 %2837
    %v2839 = vlaneseq
    %v2840 = vshrl.u32 %v2839, 7
    %v2841 = vsub.s32 2, %v2840
    %v2842 = vrot.slane %v155, %v2841
    %v2843 = vmul.f32 %v2805, %v2842
    %v2844 = vmul.f32 %v2808, %v2842
    %v2845 = vmul.f32 %v2811, %v2842
    %v2846 = vmul.f32 %v2814, %v2842
    %v2847 = vadd.f32 %v2683, %v2843
    %v2848 = vadd.f32 %v2684, %v2844
    %v2849 = vadd.f32 %v2685, %v2845
    %v2850 = vadd.f32 %v2686, %v2846
    %v2851 = vlaneseq
    %v2852 = vshrl.u32 %v2851, 7
    %v2853 = vsub.s32 3, %v2852
    %v2854 = vrot.slane %v155, %v2853
    %v2855 = vmul.f32 %v2829, %v2854
    %v2856 = vmul.f32 %v2832, %v2854
    %v2857 = vmul.f32 %v2835, %v2854
    %v2858 = vmul.f32 %v2838, %v2854
    %v2859 = vadd.f32 %v2847, %v2855
    %v2860 = vadd.f32 %v2848, %v2856
    %v2861 = vadd.f32 %v2849, %v2857
    %v2862 = vadd.f32 %v2850, %v2858
    %2863 = vset.pattern.permute.xlu0 28
    %2864 = vperm.xlu0 %2863, %v234
    %v2865 = vpop.permute.xlu0 %2864
    %2867 = vset.pattern.permute.xlu0 28
    %2868 = vperm.xlu0 %2867, %v235
    %v2869 = vpop.permute.xlu0 %2868
    %2871 = vset.pattern.permute.xlu0 28
    %2872 = vperm.xlu0 %2871, %v236
    %v2873 = vpop.permute.xlu0 %2872
    %2875 = vset.pattern.permute.xlu0 28
    %2876 = vperm.xlu0 %2875, %v237
    %v2877 = vpop.permute.xlu0 %2876
    %v2879 = vlaneseq
    %v2880 = vshrl.u32 %v2879, 7
    %v2881 = vsub.s32 4, %v2880
    %v2882 = vrot.slane %v273, %v2881
    %v2883 = vlaneseq
    %v2884 = vshrl.u32 %v2883, 7
    %v2885 = vsub.s32 4, %v2884
    %v2886 = vrot.slane %v305, %v2885
    %v2887 = vmul.f32 %v2865, %v2882
    %v2888 = vmul.f32 %v2869, %v2882
    %v2889 = vmul.f32 %v2873, %v2886
    %v2890 = vmul.f32 %v2877, %v2886
    %2891 = vset.pattern.permute.xlu0 29
    %2892 = vperm.xlu0 %2891, %v234
    %v2893 = vpop.permute.xlu0 %2892
    %2895 = vset.pattern.permute.xlu0 29
    %2896 = vperm.xlu0 %2895, %v235
    %v2897 = vpop.permute.xlu0 %2896
    %2899 = vset.pattern.permute.xlu0 29
    %2900 = vperm.xlu0 %2899, %v236
    %v2901 = vpop.permute.xlu0 %2900
    %2903 = vset.pattern.permute.xlu0 29
    %2904 = vperm.xlu0 %2903, %v237
    %v2905 = vpop.permute.xlu0 %2904
    %v2907 = vlaneseq
    %v2908 = vshrl.u32 %v2907, 7
    %v2909 = vsub.s32 5, %v2908
    %v2910 = vrot.slane %v273, %v2909
    %v2911 = vlaneseq
    %v2912 = vshrl.u32 %v2911, 7
    %v2913 = vsub.s32 5, %v2912
    %v2914 = vrot.slane %v305, %v2913
    %v2915 = vmul.f32 %v2893, %v2910
    %v2916 = vmul.f32 %v2897, %v2910
    %v2917 = vmul.f32 %v2901, %v2914
    %v2918 = vmul.f32 %v2905, %v2914
    %v2919 = vadd.f32 %v2887, %v2915
    %v2920 = vadd.f32 %v2888, %v2916
    %v2921 = vadd.f32 %v2889, %v2917
    %v2922 = vadd.f32 %v2890, %v2918
    %v2923 = vsel %vm458, %v2919, -inf
    %2924 = vmax.xlane.f32.xlu0 %v2923
    %v2925 = vpop.xlane.xlu0 %2924
    %v2926 = vsel %vm458, %v2920, -inf
    %2927 = vmax.xlane.f32.xlu0 %v2926
    %v2928 = vpop.xlane.xlu0 %2927
    %v2929 = vsel %vm458, %v2921, -inf
    %2930 = vmax.xlane.f32.xlu0 %v2929
    %v2931 = vpop.xlane.xlu0 %2930
    %v2932 = vsel %vm458, %v2922, -inf
    %2933 = vmax.xlane.f32.xlu0 %v2932
    %v2934 = vpop.xlane.xlu0 %2933
    %v2935 = vsub.f32 %v2919, %v2925
    %v2936 = vsub.f32 %v2920, %v2928
    %v2937 = vsub.f32 %v2921, %v2931
    %v2938 = vsub.f32 %v2922, %v2934
    %v2939 = vmul.f32 %v2935, 1.442695
    %v2940 = vpow.pop %v2939
    %v2941 = vmul.f32 %v2936, 1.442695
    %v2942 = vpow.pop %v2941
    %v2943 = vmul.f32 %v2937, 1.442695
    %v2944 = vpow.pop %v2943
    %v2945 = vmul.f32 %v2938, 1.442695
    %v2946 = vpow.pop %v2945
    %v2947 = vsel %vm458, %v2940, 0.0
    %2948 = vadd.xlane.f32.xlu0 %v2947
    %v2949 = vpop.xlane.xlu0 %2948
    %v2950 = vsel %vm458, %v2942, 0.0
    %2951 = vadd.xlane.f32.xlu0 %v2950
    %v2952 = vpop.xlane.xlu0 %2951
    %v2953 = vsel %vm458, %v2944, 0.0
    %2954 = vadd.xlane.f32.xlu0 %v2953
    %v2955 = vpop.xlane.xlu0 %2954
    %v2956 = vsel %vm458, %v2946, 0.0
    %2957 = vadd.xlane.f32.xlu0 %v2956
    %v2958 = vpop.xlane.xlu0 %2957
    %v2959 = vrcp.pop %v2949
    %v2960 = vrcp.pop %v2952
    %v2961 = vrcp.pop %v2955
    %v2962 = vrcp.pop %v2958
    %v2963 = vmul.f32 %v2940, %v2959
    %v2964 = vmul.f32 %v2942, %v2960
    %v2965 = vmul.f32 %v2944, %v2961
    %v2966 = vmul.f32 %v2946, %v2962
    %v2967 = vlaneseq
    %v2968 = vshrl.u32 %v2967, 7
    %v2969 = vsub.s32 4, %v2968
    %v2970 = vrot.slane %v349, %v2969
    %v2971 = vlaneseq
    %v2972 = vshrl.u32 %v2971, 7
    %v2973 = vsub.s32 4, %v2972
    %v2974 = vrot.slane %v381, %v2973
    %v2975 = vmul.f32 %v2963, %v2970
    %v2976 = vmul.f32 %v2964, %v2970
    %v2977 = vmul.f32 %v2965, %v2974
    %v2978 = vmul.f32 %v2966, %v2974
    %v2979 = vsel %vm458, %v2975, 0.0
    %2980 = vadd.xlane.f32.xlu0 %v2979
    %v2981 = vpop.xlane.xlu0 %2980
    %v2982 = vsel %vm458, %v2976, 0.0
    %2983 = vadd.xlane.f32.xlu0 %v2982
    %v2984 = vpop.xlane.xlu0 %2983
    %v2985 = vsel %vm458, %v2977, 0.0
    %2986 = vadd.xlane.f32.xlu0 %v2985
    %v2987 = vpop.xlane.xlu0 %2986
    %v2988 = vsel %vm458, %v2978, 0.0
    %2989 = vadd.xlane.f32.xlu0 %v2988
    %v2990 = vpop.xlane.xlu0 %2989
    %v2991 = vlaneseq
    %v2992 = vshrl.u32 %v2991, 7
    %v2993 = vsub.s32 5, %v2992
    %v2994 = vrot.slane %v349, %v2993
    %v2995 = vlaneseq
    %v2996 = vshrl.u32 %v2995, 7
    %v2997 = vsub.s32 5, %v2996
    %v2998 = vrot.slane %v381, %v2997
    %v2999 = vmul.f32 %v2963, %v2994
    %v3000 = vmul.f32 %v2964, %v2994
    %v3001 = vmul.f32 %v2965, %v2998
    %v3002 = vmul.f32 %v2966, %v2998
    %v3003 = vsel %vm458, %v2999, 0.0
    %3004 = vadd.xlane.f32.xlu0 %v3003
    %v3005 = vpop.xlane.xlu0 %3004
    %v3006 = vsel %vm458, %v3000, 0.0
    %3007 = vadd.xlane.f32.xlu0 %v3006
    %v3008 = vpop.xlane.xlu0 %3007
    %v3009 = vsel %vm458, %v3001, 0.0
    %3010 = vadd.xlane.f32.xlu0 %v3009
    %v3011 = vpop.xlane.xlu0 %3010
    %v3012 = vsel %vm458, %v3002, 0.0
    %3013 = vadd.xlane.f32.xlu0 %v3012
    %v3014 = vpop.xlane.xlu0 %3013
    %v3015 = vlaneseq
    %v3016 = vshrl.u32 %v3015, 7
    %v3017 = vsub.s32 4, %v3016
    %v3018 = vrot.slane %v155, %v3017
    %v3019 = vmul.f32 %v2981, %v3018
    %v3020 = vmul.f32 %v2984, %v3018
    %v3021 = vmul.f32 %v2987, %v3018
    %v3022 = vmul.f32 %v2990, %v3018
    %v3023 = vadd.f32 %v2859, %v3019
    %v3024 = vadd.f32 %v2860, %v3020
    %v3025 = vadd.f32 %v2861, %v3021
    %v3026 = vadd.f32 %v2862, %v3022
    %v3027 = vlaneseq
    %v3028 = vshrl.u32 %v3027, 7
    %v3029 = vsub.s32 5, %v3028
    %v3030 = vrot.slane %v155, %v3029
    %v3031 = vmul.f32 %v3005, %v3030
    %v3032 = vmul.f32 %v3008, %v3030
    %v3033 = vmul.f32 %v3011, %v3030
    %v3034 = vmul.f32 %v3014, %v3030
    %v3035 = vadd.f32 %v3023, %v3031
    %v3036 = vadd.f32 %v3024, %v3032
    %v3037 = vadd.f32 %v3025, %v3033
    %v3038 = vadd.f32 %v3026, %v3034
    %3039 = vset.pattern.permute.xlu0 30
    %3040 = vperm.xlu0 %3039, %v234
    %v3041 = vpop.permute.xlu0 %3040
    %3043 = vset.pattern.permute.xlu0 30
    %3044 = vperm.xlu0 %3043, %v235
    %v3045 = vpop.permute.xlu0 %3044
    %3047 = vset.pattern.permute.xlu0 30
    %3048 = vperm.xlu0 %3047, %v236
    %v3049 = vpop.permute.xlu0 %3048
    %3051 = vset.pattern.permute.xlu0 30
    %3052 = vperm.xlu0 %3051, %v237
    %v3053 = vpop.permute.xlu0 %3052
    %v3055 = vlaneseq
    %v3056 = vshrl.u32 %v3055, 7
    %v3057 = vsub.s32 6, %v3056
    %v3058 = vrot.slane %v273, %v3057
    %v3059 = vlaneseq
    %v3060 = vshrl.u32 %v3059, 7
    %v3061 = vsub.s32 6, %v3060
    %v3062 = vrot.slane %v305, %v3061
    %v3063 = vmul.f32 %v3041, %v3058
    %v3064 = vmul.f32 %v3045, %v3058
    %v3065 = vmul.f32 %v3049, %v3062
    %v3066 = vmul.f32 %v3053, %v3062
    %3067 = vset.pattern.permute.xlu0 31
    %3068 = vperm.xlu0 %3067, %v234
    %v3069 = vpop.permute.xlu0 %3068
    %3071 = vset.pattern.permute.xlu0 31
    %3072 = vperm.xlu0 %3071, %v235
    %v3073 = vpop.permute.xlu0 %3072
    %3075 = vset.pattern.permute.xlu0 31
    %3076 = vperm.xlu0 %3075, %v236
    %v3077 = vpop.permute.xlu0 %3076
    %3079 = vset.pattern.permute.xlu0 31
    %3080 = vperm.xlu0 %3079, %v237
    %v3081 = vpop.permute.xlu0 %3080
    %v3083 = vlaneseq
    %v3084 = vshrl.u32 %v3083, 7
    %v3085 = vsub.s32 7, %v3084
    %v3086 = vrot.slane %v273, %v3085
    %v3087 = vlaneseq
    %v3088 = vshrl.u32 %v3087, 7
    %v3089 = vsub.s32 7, %v3088
    %v3090 = vrot.slane %v305, %v3089
    %v3091 = vmul.f32 %v3069, %v3086
    %v3092 = vmul.f32 %v3073, %v3086
    %v3093 = vmul.f32 %v3077, %v3090
    %v3094 = vmul.f32 %v3081, %v3090
    %v3095 = vadd.f32 %v3063, %v3091
    %v3096 = vadd.f32 %v3064, %v3092
    %v3097 = vadd.f32 %v3065, %v3093
    %v3098 = vadd.f32 %v3066, %v3094
    %v3099 = vsel %vm458, %v3095, -inf
    %3100 = vmax.xlane.f32.xlu0 %v3099
    %v3101 = vpop.xlane.xlu0 %3100
    %v3102 = vsel %vm458, %v3096, -inf
    %3103 = vmax.xlane.f32.xlu0 %v3102
    %v3104 = vpop.xlane.xlu0 %3103
    %v3105 = vsel %vm458, %v3097, -inf
    %3106 = vmax.xlane.f32.xlu0 %v3105
    %v3107 = vpop.xlane.xlu0 %3106
    %v3108 = vsel %vm458, %v3098, -inf
    %3109 = vmax.xlane.f32.xlu0 %v3108
    %v3110 = vpop.xlane.xlu0 %3109
    %v3111 = vsub.f32 %v3095, %v3101
    %v3112 = vsub.f32 %v3096, %v3104
    %v3113 = vsub.f32 %v3097, %v3107
    %v3114 = vsub.f32 %v3098, %v3110
    %v3115 = vmul.f32 %v3111, 1.442695
    %v3116 = vpow.pop %v3115
    %v3117 = vmul.f32 %v3112, 1.442695
    %v3118 = vpow.pop %v3117
    %v3119 = vmul.f32 %v3113, 1.442695
    %v3120 = vpow.pop %v3119
    %v3121 = vmul.f32 %v3114, 1.442695
    %v3122 = vpow.pop %v3121
    %v3123 = vsel %vm458, %v3116, 0.0
    %3124 = vadd.xlane.f32.xlu0 %v3123
    %v3125 = vpop.xlane.xlu0 %3124
    %v3126 = vsel %vm458, %v3118, 0.0
    %3127 = vadd.xlane.f32.xlu0 %v3126
    %v3128 = vpop.xlane.xlu0 %3127
    %v3129 = vsel %vm458, %v3120, 0.0
    %3130 = vadd.xlane.f32.xlu0 %v3129
    %v3131 = vpop.xlane.xlu0 %3130
    %v3132 = vsel %vm458, %v3122, 0.0
    %3133 = vadd.xlane.f32.xlu0 %v3132
    %v3134 = vpop.xlane.xlu0 %3133
    %v3135 = vrcp.pop %v3125
    %v3136 = vrcp.pop %v3128
    %v3137 = vrcp.pop %v3131
    %v3138 = vrcp.pop %v3134
    %v3139 = vmul.f32 %v3116, %v3135
    %v3140 = vmul.f32 %v3118, %v3136
    %v3141 = vmul.f32 %v3120, %v3137
    %v3142 = vmul.f32 %v3122, %v3138
    %v3143 = vlaneseq
    %v3144 = vshrl.u32 %v3143, 7
    %v3145 = vsub.s32 6, %v3144
    %v3146 = vrot.slane %v349, %v3145
    %v3147 = vlaneseq
    %v3148 = vshrl.u32 %v3147, 7
    %v3149 = vsub.s32 6, %v3148
    %v3150 = vrot.slane %v381, %v3149
    %v3151 = vmul.f32 %v3139, %v3146
    %v3152 = vmul.f32 %v3140, %v3146
    %v3153 = vmul.f32 %v3141, %v3150
    %v3154 = vmul.f32 %v3142, %v3150
    %v3155 = vsel %vm458, %v3151, 0.0
    %3156 = vadd.xlane.f32.xlu0 %v3155
    %v3157 = vpop.xlane.xlu0 %3156
    %v3158 = vsel %vm458, %v3152, 0.0
    %3159 = vadd.xlane.f32.xlu0 %v3158
    %v3160 = vpop.xlane.xlu0 %3159
    %v3161 = vsel %vm458, %v3153, 0.0
    %3162 = vadd.xlane.f32.xlu0 %v3161
    %v3163 = vpop.xlane.xlu0 %3162
    %v3164 = vsel %vm458, %v3154, 0.0
    %3165 = vadd.xlane.f32.xlu0 %v3164
    %v3166 = vpop.xlane.xlu0 %3165
    %v3167 = vlaneseq
    %v3168 = vshrl.u32 %v3167, 7
    %v3169 = vsub.s32 7, %v3168
    %v3170 = vrot.slane %v349, %v3169
    %v3171 = vlaneseq
    %v3172 = vshrl.u32 %v3171, 7
    %v3173 = vsub.s32 7, %v3172
    %v3174 = vrot.slane %v381, %v3173
    %v3175 = vmul.f32 %v3139, %v3170
    %v3176 = vmul.f32 %v3140, %v3170
    %v3177 = vmul.f32 %v3141, %v3174
    %v3178 = vmul.f32 %v3142, %v3174
    %v3179 = vsel %vm458, %v3175, 0.0
    %3180 = vadd.xlane.f32.xlu0 %v3179
    %v3181 = vpop.xlane.xlu0 %3180
    %v3182 = vsel %vm458, %v3176, 0.0
    %3183 = vadd.xlane.f32.xlu0 %v3182
    %v3184 = vpop.xlane.xlu0 %3183
    %v3185 = vsel %vm458, %v3177, 0.0
    %3186 = vadd.xlane.f32.xlu0 %v3185
    %v3187 = vpop.xlane.xlu0 %3186
    %v3188 = vsel %vm458, %v3178, 0.0
    %3189 = vadd.xlane.f32.xlu0 %v3188
    %v3190 = vpop.xlane.xlu0 %3189
    %v3191 = vlaneseq
    %v3192 = vshrl.u32 %v3191, 7
    %v3193 = vsub.s32 6, %v3192
    %v3194 = vrot.slane %v155, %v3193
    %v3195 = vmul.f32 %v3157, %v3194
    %v3196 = vmul.f32 %v3160, %v3194
    %v3197 = vmul.f32 %v3163, %v3194
    %v3198 = vmul.f32 %v3166, %v3194
    %v3199 = vadd.f32 %v3035, %v3195
    %v3200 = vadd.f32 %v3036, %v3196
    %v3201 = vadd.f32 %v3037, %v3197
    %v3202 = vadd.f32 %v3038, %v3198
    %v3203 = vlaneseq
    %v3204 = vshrl.u32 %v3203, 7
    %v3205 = vsub.s32 7, %v3204
    %v3206 = vrot.slane %v155, %v3205
    %v3207 = vmul.f32 %v3181, %v3206
    %v3208 = vmul.f32 %v3184, %v3206
    %v3209 = vmul.f32 %v3187, %v3206
    %v3210 = vmul.f32 %v3190, %v3206
    %v3211 = vadd.f32 %v3199, %v3207
    %v3212 = vadd.f32 %v3200, %v3208
    %v3213 = vadd.f32 %v3201, %v3209
    %v3214 = vadd.f32 %v3202, %v3210
    %v3215 = vadd.f32 %v136, %v3211
    %v3216 = vadd.f32 %v137, %v3212
    %v3217 = vadd.f32 %v138, %v3213
    %v3218 = vadd.f32 %v139, %v3214
    %v3219 = vlaneseq
    %v3220 = vshrl.u32 %v3219, 7
    %v3221 = vsub.s32 0, %v3220
    %v3222 = vrot.slane %v141, %v3221
    %v3223 = vadd.f32 %v3215, %v3222
    %v3224 = vadd.f32 %v3216, %v3222
    %v3225 = vadd.f32 %v3217, %v3222
    %v3226 = vadd.f32 %v3218, %v3222
    %v3227 = vsel %vm178, %v3223, 0.0
    %3228 = vadd.xlane.f32.xlu0 %v3227
    %v3229 = vpop.xlane.xlu0 %3228
    %v3230 = vsel %vm178, %v3224, 0.0
    %3231 = vadd.xlane.f32.xlu0 %v3230
    %v3232 = vpop.xlane.xlu0 %3231
    %v3233 = vsel %vm178, %v3225, 0.0
    %3234 = vadd.xlane.f32.xlu0 %v3233
    %v3235 = vpop.xlane.xlu0 %3234
    %v3236 = vsel %vm178, %v3226, 0.0
    %3237 = vadd.xlane.f32.xlu0 %v3236
    %v3238 = vpop.xlane.xlu0 %3237
    %v3239 = vrcp.pop 32.0
    %v3240 = vmul.f32 %v3229, %v3239
    %v3241 = vmul.f32 %v3232, %v3239
    %v3242 = vmul.f32 %v3235, %v3239
    %v3243 = vmul.f32 %v3238, %v3239
    %v3244 = vsub.f32 %v3223, %v3240
    %v3245 = vsub.f32 %v3224, %v3241
    %v3246 = vsub.f32 %v3225, %v3242
    %v3247 = vsub.f32 %v3226, %v3243
    %v3248 = vmul.f32 %v3244, %v3244
    %v3249 = vmul.f32 %v3245, %v3245
    %v3250 = vmul.f32 %v3246, %v3246
    %v3251 = vmul.f32 %v3247, %v3247
    %v3252 = vsel %vm178, %v3248, 0.0
    %3253 = vadd.xlane.f32.xlu0 %v3252
    %v3254 = vpop.xlane.xlu0 %3253
    %v3255 = vsel %vm178, %v3249, 0.0
    %3256 = vadd.xlane.f32.xlu0 %v3255
    %v3257 = vpop.xlane.xlu0 %3256
    %v3258 = vsel %vm178, %v3250, 0.0
    %3259 = vadd.xlane.f32.xlu0 %v3258
    %v3260 = vpop.xlane.xlu0 %3259
    %v3261 = vsel %vm178, %v3251, 0.0
    %3262 = vadd.xlane.f32.xlu0 %v3261
    %v3263 = vpop.xlane.xlu0 %3262
    %v3264 = vmul.f32 %v3254, %v3239
    %v3265 = vmul.f32 %v3257, %v3239
    %v3266 = vmul.f32 %v3260, %v3239
    %v3267 = vmul.f32 %v3263, %v3239
    %v3268 = vadd.f32 %v3264, 1e-05
    %v3269 = vadd.f32 %v3265, 1e-05
    %v3270 = vadd.f32 %v3266, 1e-05
    %v3271 = vadd.f32 %v3267, 1e-05
    %v3272 = vrsqrt.pop %v3268
    %v3273 = vrsqrt.pop %v3269
    %v3274 = vrsqrt.pop %v3270
    %v3275 = vrsqrt.pop %v3271
    %v3276 = vmul.f32 %v3244, %v3272
    %v3277 = vmul.f32 %v3245, %v3273
    %v3278 = vmul.f32 %v3246, %v3274
    %v3279 = vmul.f32 %v3247, %v3275
    %v3280 = vlaneseq
    %v3281 = vshrl.u32 %v3280, 7
    %v3282 = vsub.s32 0, %v3281
    %v3283 = vrot.slane %v142, %v3282
    %v3284 = vmul.f32 %v3276, %v3283
    %v3285 = vmul.f32 %v3277, %v3283
    %v3286 = vmul.f32 %v3278, %v3283
    %v3287 = vmul.f32 %v3279, %v3283
    %v3288 = vlaneseq
    %v3289 = vshrl.u32 %v3288, 7
    %v3290 = vsub.s32 0, %v3289
    %v3291 = vrot.slane %v143, %v3290
    %v3292 = vadd.f32 %v3284, %v3291
    %v3293 = vadd.f32 %v3285, %v3291
    %v3294 = vadd.f32 %v3286, %v3291
    %v3295 = vadd.f32 %v3287, %v3291
    %v3296 = vld [vmem:[%s5] sm:$0xf]
    %v3297 = vld [vmem:[%s5 + $0x4] sm:$0xf]
    %v3298 = vld [vmem:[%s5 + $0x8] sm:$0xf]
    %v3299 = vld [vmem:[%s5 + $0xc] sm:$0xf]
    %v3300 = vpack.c.bf16 %v3293, %v3292
    %v3301 = vpack.c.bf16 %v3295, %v3294
    %v3302 = vlaneseq
    %v3303 = vshrl.u32 %v3302, 7
    %v3304 = vsub.s32 0, %v3303
    %v3305 = vrot.slane %v146, %v3304
    %v3310 = vunpack.c.l.b16 %v3296
    %v3311 = vunpack.c.l.b16 %v3297
    %v3312 = vunpack.c.l.b16 %v3298
    %v3313 = vunpack.c.l.b16 %v3299
    %v3314 = vpack.c.b16 %v3311, %v3310
    %v3315 = vpack.c.b16 %v3313, %v3312
    %v3319 = vsel %vm178, %v3300, 0
    %v3322 = vsel %vm178, %v3301, 0
    %3324 = vmatprep.subr.bf16.mxu0 0
    %3325 = vmatpush1.bf16.msra.mxu0 0
    %3326 = vmatprep.subr.bf16.mxu0 0
    %3327 = vmatpush1.bf16.msra.mxu0 0
    %3328 = vmatprep.subr.bf16.mxu0 0
    %3329 = vmatpush1.bf16.msra.mxu0 0
    %3330 = vmatprep.subr.bf16.mxu0 0
    %3331 = vmatpush1.bf16.msra.mxu0 0
    %3332 = vmatprep.subr.bf16.mxu0 0
    %3333 = vmatpush1.bf16.msra.mxu0 0
    %3334 = vmatprep.subr.bf16.mxu0 0
    %3335 = vmatpush1.bf16.msra.mxu0 0
    %3336 = vmatprep.subr.bf16.mxu0 0
    %3337 = vmatpush1.bf16.msra.mxu0 %v3315
    %3338 = vmatprep.subr.bf16.mxu0 0
    %3339 = vmatpush1.bf16.msra.mxu0 %v3314
    %3340 = vmatprep.subr.bf16.mxu0 0
    %3341 = vmatpush2.bf16.msra.mxu0 0
    %3342 = vmatprep.subr.bf16.mxu0 0
    %3343 = vmatpush2.bf16.msra.mxu0 0
    %3344 = vmatprep.subr.bf16.mxu0 0
    %3345 = vmatpush2.bf16.msra.mxu0 0
    %3346 = vmatprep.subr.bf16.mxu0 0
    %3347 = vmatpush2.bf16.msra.mxu0 0
    %3348 = vmatprep.subr.bf16.mxu0 0
    %3349 = vmatpush2.bf16.msra.mxu0 0
    %3350 = vmatprep.subr.bf16.mxu0 0
    %3351 = vmatpush2.bf16.msra.mxu0 0
    %3352 = vmatprep.subr.bf16.mxu0 0
    %3353 = vmatpush2.bf16.msra.mxu0 0
    %3354 = vmatprep.subr.bf16.mxu0 0
    %3355 = vmatpush2.bf16.msra.mxu0 0
    %3356 = vmatprep.mubr.bf16.mxu0 0
    %3357 = vmatmul.mubr.bf16.gmra.mxu0 %v3319
    %v3358 = vpop.f32.mrf.mxu0
    %v3359 = vadd.f32 %v3305, %v3358
    %v3360 = vpop.f32.mrf.mxu0
    %v3361 = vpop.f32.mrf.mxu0
    %v3362 = vadd.f32 %v3305, %v3361
    %v3363 = vpop.f32.mrf.mxu0
    %3364 = vmatprep.mubr.bf16.mxu0 0
    %3365 = vmatmul.mubr.bf16.gmra.mxu0 %v3322
    %v3366 = vpop.f32.mrf.mxu0
    %v3367 = vadd.f32 %v3305, %v3366
    %v3368 = vpop.f32.mrf.mxu0
    %v3369 = vpop.f32.mrf.mxu0
    %v3370 = vadd.f32 %v3305, %v3369
    %v3371 = vpop.f32.mrf.mxu0
    %3372 = vdwg.mxu0
    %v3373 = vmax.f32 %v3359, 0.0
    %v3374 = vmax.f32 %v3362, 0.0
    %v3375 = vmax.f32 %v3367, 0.0
    %v3376 = vmax.f32 %v3370, 0.0
    %v3377 = vld [vmem:[%s6] sm:$0xf]
    %v3378 = vld [vmem:[%s6 + $0x4] sm:$0xf]
    %v3379 = vld [vmem:[%s6 + $0x8] sm:$0xf]
    %v3380 = vld [vmem:[%s6 + $0xc] sm:$0xf]
    %v3381 = vld [vmem:[%s6 + $0x10] sm:$0xf]
    %v3382 = vld [vmem:[%s6 + $0x14] sm:$0xf]
    %v3383 = vld [vmem:[%s6 + $0x18] sm:$0xf]
    %v3384 = vld [vmem:[%s6 + $0x1c] sm:$0xf]
    %v3385 = vpack.c.bf16 %v3374, %v3373
    %v3386 = vpack.c.bf16 %v3376, %v3375
    %v3387 = vlaneseq
    %v3388 = vshrl.u32 %v3387, 7
    %v3389 = vsub.s32 0, %v3388
    %v3390 = vrot.slane %v147, %v3389
    %v3399 = vunpack.c.l.b16 %v3377
    %v3400 = vunpack.c.l.b16 %v3378
    %v3401 = vunpack.c.l.b16 %v3379
    %v3402 = vunpack.c.l.b16 %v3380
    %v3403 = vunpack.c.l.b16 %v3381
    %v3404 = vunpack.c.l.b16 %v3382
    %v3405 = vunpack.c.l.b16 %v3383
    %v3406 = vunpack.c.l.b16 %v3384
    %v3407 = vpack.c.b16 %v3400, %v3399
    %v3408 = vpack.c.b16 %v3402, %v3401
    %v3409 = vpack.c.b16 %v3404, %v3403
    %v3410 = vpack.c.b16 %v3406, %v3405
    %vm3415 = vcmask 523264
    %v3417 = vsel %vm3415, %v3385, 0
    %v3420 = vsel %vm3415, %v3386, 0
    %3422 = vmatprep.subr.bf16.mxu0 0
    %3423 = vmatpush1.bf16.msra.mxu0 0
    %3424 = vmatprep.subr.bf16.mxu0 0
    %3425 = vmatpush1.bf16.msra.mxu0 0
    %3426 = vmatprep.subr.bf16.mxu0 0
    %3427 = vmatpush1.bf16.msra.mxu0 0
    %3428 = vmatprep.subr.bf16.mxu0 0
    %3429 = vmatpush1.bf16.msra.mxu0 0
    %3430 = vmatprep.subr.bf16.mxu0 0
    %3431 = vmatpush1.bf16.msra.mxu0 %v3410
    %3432 = vmatprep.subr.bf16.mxu0 0
    %3433 = vmatpush1.bf16.msra.mxu0 %v3409
    %3434 = vmatprep.subr.bf16.mxu0 0
    %3435 = vmatpush1.bf16.msra.mxu0 %v3408
    %3436 = vmatprep.subr.bf16.mxu0 0
    %3437 = vmatpush1.bf16.msra.mxu0 %v3407
    %3438 = vmatprep.subr.bf16.mxu0 0
    %3439 = vmatpush2.bf16.msra.mxu0 0
    %3440 = vmatprep.subr.bf16.mxu0 0
    %3441 = vmatpush2.bf16.msra.mxu0 0
    %3442 = vmatprep.subr.bf16.mxu0 0
    %3443 = vmatpush2.bf16.msra.mxu0 0
    %3444 = vmatprep.subr.bf16.mxu0 0
    %3445 = vmatpush2.bf16.msra.mxu0 0
    %3446 = vmatprep.subr.bf16.mxu0 0
    %3447 = vmatpush2.bf16.msra.mxu0 0
    %3448 = vmatprep.subr.bf16.mxu0 0
    %3449 = vmatpush2.bf16.msra.mxu0 0
    %3450 = vmatprep.subr.bf16.mxu0 0
    %3451 = vmatpush2.bf16.msra.mxu0 0
    %3452 = vmatprep.subr.bf16.mxu0 0
    %3453 = vmatpush2.bf16.msra.mxu0 0
    %3454 = vmatprep.mubr.bf16.mxu0 0
    %3455 = vmatmul.mubr.bf16.gmra.mxu0 %v3417
    %v3456 = vpop.f32.mrf.mxu0
    %v3457 = vadd.f32 %v3390, %v3456
    %v3458 = vpop.f32.mrf.mxu0
    %v3459 = vpop.f32.mrf.mxu0
    %v3460 = vadd.f32 %v3390, %v3459
    %v3461 = vpop.f32.mrf.mxu0
    %3462 = vmatprep.mubr.bf16.mxu0 0
    %3463 = vmatmul.mubr.bf16.gmra.mxu0 %v3420
    %v3464 = vpop.f32.mrf.mxu0
    %v3465 = vadd.f32 %v3390, %v3464
    %v3466 = vpop.f32.mrf.mxu0
    %v3467 = vpop.f32.mrf.mxu0
    %v3468 = vadd.f32 %v3390, %v3467
    %v3469 = vpop.f32.mrf.mxu0
    %3470 = vdwg.mxu0
    %v3471 = vadd.f32 %v3292, %v3457
    %v3472 = vadd.f32 %v3293, %v3460
    %v3473 = vadd.f32 %v3294, %v3465
    %v3474 = vadd.f32 %v3295, %v3468
    %v3475 = vsel %vm178, %v3471, 0.0
    %3476 = vadd.xlane.f32.xlu0 %v3475
    %v3477 = vpop.xlane.xlu0 %3476
    %v3478 = vsel %vm178, %v3472, 0.0
    %3479 = vadd.xlane.f32.xlu0 %v3478
    %v3480 = vpop.xlane.xlu0 %3479
    %v3481 = vsel %vm178, %v3473, 0.0
    %3482 = vadd.xlane.f32.xlu0 %v3481
    %v3483 = vpop.xlane.xlu0 %3482
    %v3484 = vsel %vm178, %v3474, 0.0
    %3485 = vadd.xlane.f32.xlu0 %v3484
    %v3486 = vpop.xlane.xlu0 %3485
    %v3487 = vmul.f32 %v3477, %v3239
    %v3488 = vmul.f32 %v3480, %v3239
    %v3489 = vmul.f32 %v3483, %v3239
    %v3490 = vmul.f32 %v3486, %v3239
    %v3491 = vsub.f32 %v3471, %v3487
    %v3492 = vsub.f32 %v3472, %v3488
    %v3493 = vsub.f32 %v3473, %v3489
    %v3494 = vsub.f32 %v3474, %v3490
    %v3495 = vmul.f32 %v3491, %v3491
    %v3496 = vmul.f32 %v3492, %v3492
    %v3497 = vmul.f32 %v3493, %v3493
    %v3498 = vmul.f32 %v3494, %v3494
    %v3499 = vsel %vm178, %v3495, 0.0
    %3500 = vadd.xlane.f32.xlu0 %v3499
    %v3501 = vpop.xlane.xlu0 %3500
    %v3502 = vsel %vm178, %v3496, 0.0
    %3503 = vadd.xlane.f32.xlu0 %v3502
    %v3504 = vpop.xlane.xlu0 %3503
    %v3505 = vsel %vm178, %v3497, 0.0
    %3506 = vadd.xlane.f32.xlu0 %v3505
    %v3507 = vpop.xlane.xlu0 %3506
    %v3508 = vsel %vm178, %v3498, 0.0
    %3509 = vadd.xlane.f32.xlu0 %v3508
    %v3510 = vpop.xlane.xlu0 %3509
    %v3511 = vmul.f32 %v3501, %v3239
    %v3512 = vmul.f32 %v3504, %v3239
    %v3513 = vmul.f32 %v3507, %v3239
    %v3514 = vmul.f32 %v3510, %v3239
    %v3515 = vadd.f32 %v3511, 1e-05
    %v3516 = vadd.f32 %v3512, 1e-05
    %v3517 = vadd.f32 %v3513, 1e-05
    %v3518 = vadd.f32 %v3514, 1e-05
    %v3519 = vrsqrt.pop %v3515
    %v3520 = vrsqrt.pop %v3516
    %v3521 = vrsqrt.pop %v3517
    %v3522 = vrsqrt.pop %v3518
    %v3523 = vmul.f32 %v3491, %v3519
    %v3524 = vmul.f32 %v3492, %v3520
    %v3525 = vmul.f32 %v3493, %v3521
    %v3526 = vmul.f32 %v3494, %v3522
    %v3527 = vlaneseq
    %v3528 = vshrl.u32 %v3527, 7
    %v3529 = vsub.s32 0, %v3528
    %v3530 = vrot.slane %v144, %v3529
    %v3531 = vmul.f32 %v3523, %v3530
    %v3532 = vmul.f32 %v3524, %v3530
    %v3533 = vmul.f32 %v3525, %v3530
    %v3534 = vmul.f32 %v3526, %v3530
    %v3535 = vlaneseq
    %v3536 = vshrl.u32 %v3535, 7
    %v3537 = vsub.s32 0, %v3536
    %v3538 = vrot.slane %v145, %v3537
    %v3539 = vadd.f32 %v3531, %v3538
    %v3540 = vadd.f32 %v3532, %v3538
    %v3541 = vadd.f32 %v3533, %v3538
    %v3542 = vadd.f32 %v3534, %v3538
    %v3543 = vld [vmem:[#allocation5 + $0xc] sm:$0x1]
    %v3544 = vld [vmem:[#allocation5 + $0xd] sm:$0x1]
    %v3545 = vld [vmem:[#allocation5 + $0xe] sm:$0x1]
    %v3546 = vld [vmem:[#allocation5 + $0xf] sm:$0x1]
    %v3547 = vld [vmem:[#allocation5 + $0x10] sm:$0x1]
    %v3548 = vld [vmem:[#allocation5 + $0x11] sm:$0x1]
    %v3549 = vld [vmem:[#allocation5 + $0x12] sm:$0x1]
    %v3550 = vld [vmem:[#allocation5 + $0x13] sm:$0x1]
    %s3551 = scalar_lea.vmem %s4, 16
    %v3552 = vld [vmem:[%s3551] sm:$0xf]
    %v3553 = vld [vmem:[%s3551 + $0x4] sm:$0xf]
    %v3554 = vld [vmem:[%s3551 + $0x8] sm:$0xf]
    %v3555 = vld [vmem:[%s3551 + $0xc] sm:$0xf]
    %v3556 = vunpack.c.l.bf16 %v3552
    %v3557 = vunpack.c.l.bf16 %v3553
    %v3558 = vunpack.c.l.bf16 %v3554
    %v3559 = vunpack.c.l.bf16 %v3555
    %s3560 = scalar_lea.vmem %s3, 16
    %v3561 = vld [vmem:[%s3560] sm:$0xf]
    %v3562 = vld [vmem:[%s3560 + $0x4] sm:$0xf]
    %v3563 = vld [vmem:[%s3560 + $0x8] sm:$0xf]
    %v3564 = vld [vmem:[%s3560 + $0xc] sm:$0xf]
    %v3565 = vpack.c.bf16 %v3540, %v3539
    %v3566 = vpack.c.bf16 %v3542, %v3541
    %v3567 = vlaneseq
    %v3568 = vshrl.u32 %v3567, 7
    %v3569 = vsub.s32 0, %v3568
    %v3570 = vrot.slane %v3543, %v3569
    %v3575 = vunpack.c.l.b16 %v3561
    %v3576 = vunpack.c.l.b16 %v3562
    %v3577 = vunpack.c.l.b16 %v3563
    %v3578 = vunpack.c.l.b16 %v3564
    %v3579 = vpack.c.b16 %v3576, %v3575
    %v3580 = vpack.c.b16 %v3578, %v3577
    %v3584 = vsel %vm178, %v3565, 0
    %v3587 = vsel %vm178, %v3566, 0
    %3589 = vmatprep.subr.bf16.mxu0 0
    %3590 = vmatpush1.bf16.msra.mxu0 0
    %3591 = vmatprep.subr.bf16.mxu0 0
    %3592 = vmatpush1.bf16.msra.mxu0 0
    %3593 = vmatprep.subr.bf16.mxu0 0
    %3594 = vmatpush1.bf16.msra.mxu0 0
    %3595 = vmatprep.subr.bf16.mxu0 0
    %3596 = vmatpush1.bf16.msra.mxu0 0
    %3597 = vmatprep.subr.bf16.mxu0 0
    %3598 = vmatpush1.bf16.msra.mxu0 0
    %3599 = vmatprep.subr.bf16.mxu0 0
    %3600 = vmatpush1.bf16.msra.mxu0 0
    %3601 = vmatprep.subr.bf16.mxu0 0
    %3602 = vmatpush1.bf16.msra.mxu0 %v3580
    %3603 = vmatprep.subr.bf16.mxu0 0
    %3604 = vmatpush1.bf16.msra.mxu0 %v3579
    %3605 = vmatprep.subr.bf16.mxu0 0
    %3606 = vmatpush2.bf16.msra.mxu0 0
    %3607 = vmatprep.subr.bf16.mxu0 0
    %3608 = vmatpush2.bf16.msra.mxu0 0
    %3609 = vmatprep.subr.bf16.mxu0 0
    %3610 = vmatpush2.bf16.msra.mxu0 0
    %3611 = vmatprep.subr.bf16.mxu0 0
    %3612 = vmatpush2.bf16.msra.mxu0 0
    %3613 = vmatprep.subr.bf16.mxu0 0
    %3614 = vmatpush2.bf16.msra.mxu0 0
    %3615 = vmatprep.subr.bf16.mxu0 0
    %3616 = vmatpush2.bf16.msra.mxu0 0
    %3617 = vmatprep.subr.bf16.mxu0 0
    %3618 = vmatpush2.bf16.msra.mxu0 0
    %3619 = vmatprep.subr.bf16.mxu0 0
    %3620 = vmatpush2.bf16.msra.mxu0 0
    %3621 = vmatprep.mubr.bf16.mxu0 0
    %3622 = vmatmul.mubr.bf16.gmra.mxu0 %v3584
    %v3623 = vpop.f32.mrf.mxu0
    %v3624 = vadd.f32 %v3570, %v3623
    %v3625 = vpop.f32.mrf.mxu0
    %v3626 = vpop.f32.mrf.mxu0
    %v3627 = vadd.f32 %v3570, %v3626
    %v3628 = vpop.f32.mrf.mxu0
    %3629 = vmatprep.mubr.bf16.mxu0 0
    %3630 = vmatmul.mubr.bf16.gmra.mxu0 %v3587
    %v3631 = vpop.f32.mrf.mxu0
    %v3632 = vadd.f32 %v3570, %v3631
    %v3633 = vpop.f32.mrf.mxu0
    %v3634 = vpop.f32.mrf.mxu0
    %v3635 = vadd.f32 %v3570, %v3634
    %v3636 = vpop.f32.mrf.mxu0
    %3637 = vdwg.mxu0
    %v3638 = vmul.f32 %v3624, 0.70710677
    %v3639 = vmul.f32 %v3627, 0.70710677
    %v3640 = vmul.f32 %v3632, 0.70710677
    %v3641 = vmul.f32 %v3635, 0.70710677
    %3646 = vrot.lane.b32.xlu0 %v3624, 96
    %v3647 = vpop.permute.xlu0 %3646
    %3648 = vrot.lane.b32.xlu0 %v3627, 96
    %v3649 = vpop.permute.xlu0 %3648
    %3650 = vrot.lane.b32.xlu0 %v3632, 96
    %v3651 = vpop.permute.xlu0 %3650
    %3652 = vrot.lane.b32.xlu0 %v3635, 96
    %v3653 = vpop.permute.xlu0 %3652
    %3658 = vxpose.xlu0.b32.start [1/16] %v3647, 128
    %3659 = vxpose.xlu0.b32.cont [2/16] %v3649, 128
    %3660 = vxpose.xlu0.b32.cont [3/16] 0.0, 128
    %3661 = vxpose.xlu0.b32.cont [4/16] 0.0, 128
    %3662 = vxpose.xlu0.b32.cont [5/16] 0.0, 128
    %3663 = vxpose.xlu0.b32.cont [6/16] 0.0, 128
    %3664 = vxpose.xlu0.b32.cont [7/16] 0.0, 128
    %3665 = vxpose.xlu0.b32.cont [8/16] 0.0, 128
    %3666 = vxpose.xlu0.b32.cont [9/16] 0.0, 128
    %3667 = vxpose.xlu0.b32.cont [10/16] 0.0, 128
    %3668 = vxpose.xlu0.b32.cont [11/16] 0.0, 128
    %3669 = vxpose.xlu0.b32.cont [12/16] 0.0, 128
    %3670 = vxpose.xlu0.b32.cont [13/16] 0.0, 128
    %3671 = vxpose.xlu0.b32.cont [14/16] 0.0, 128
    %3672 = vxpose.xlu0.b32.cont [15/16] 0.0, 128
    %3673 = vxpose.xlu0.b32.end [16/16] 0.0, 128
    %v3674 = vpop.trf.xlu0
    %v3675 = vpop.trf.xlu0
    %v3676 = vpop.trf.xlu0
    %v3677 = vpop.trf.xlu0
    %v3678 = vpop.trf.xlu0
    %v3679 = vpop.trf.xlu0
    %v3680 = vpop.trf.xlu0
    %v3681 = vpop.trf.xlu0
    %v3682 = vpop.trf.xlu0
    %v3683 = vpop.trf.xlu0
    %v3684 = vpop.trf.xlu0
    %v3685 = vpop.trf.xlu0
    %v3686 = vpop.trf.xlu0
    %v3687 = vpop.trf.xlu0
    %v3688 = vpop.trf.xlu0
    %v3689 = vpop.trf.xlu0
    %3690 = vxpose.xlu0.b32.start [1/16] %v3651, 128
    %3691 = vxpose.xlu0.b32.cont [2/16] %v3653, 128
    %3692 = vxpose.xlu0.b32.cont [3/16] 0.0, 128
    %3693 = vxpose.xlu0.b32.cont [4/16] 0.0, 128
    %3694 = vxpose.xlu0.b32.cont [5/16] 0.0, 128
    %3695 = vxpose.xlu0.b32.cont [6/16] 0.0, 128
    %3696 = vxpose.xlu0.b32.cont [7/16] 0.0, 128
    %3697 = vxpose.xlu0.b32.cont [8/16] 0.0, 128
    %3698 = vxpose.xlu0.b32.cont [9/16] 0.0, 128
    %3699 = vxpose.xlu0.b32.cont [10/16] 0.0, 128
    %3700 = vxpose.xlu0.b32.cont [11/16] 0.0, 128
    %3701 = vxpose.xlu0.b32.cont [12/16] 0.0, 128
    %3702 = vxpose.xlu0.b32.cont [13/16] 0.0, 128
    %3703 = vxpose.xlu0.b32.cont [14/16] 0.0, 128
    %3704 = vxpose.xlu0.b32.cont [15/16] 0.0, 128
    %3705 = vxpose.xlu0.b32.end [16/16] 0.0, 128
    %v3706 = vpop.trf.xlu0
    %v3707 = vpop.trf.xlu0
    %v3708 = vpop.trf.xlu0
    %v3709 = vpop.trf.xlu0
    %v3710 = vpop.trf.xlu0
    %v3711 = vpop.trf.xlu0
    %v3712 = vpop.trf.xlu0
    %v3713 = vpop.trf.xlu0
    %v3714 = vpop.trf.xlu0
    %v3715 = vpop.trf.xlu0
    %v3716 = vpop.trf.xlu0
    %v3717 = vpop.trf.xlu0
    %v3718 = vpop.trf.xlu0
    %v3719 = vpop.trf.xlu0
    %v3720 = vpop.trf.xlu0
    %v3721 = vpop.trf.xlu0
    %3722 = vrot.lane.b32.xlu0 %v3624, 64
    %v3723 = vpop.permute.xlu0 %3722
    %3724 = vrot.lane.b32.xlu0 %v3627, 64
    %v3725 = vpop.permute.xlu0 %3724
    %3726 = vrot.lane.b32.xlu0 %v3632, 64
    %v3727 = vpop.permute.xlu0 %3726
    %3728 = vrot.lane.b32.xlu0 %v3635, 64
    %v3729 = vpop.permute.xlu0 %3728
    %3734 = vxpose.xlu0.b32.start [1/16] %v3723, 128
    %3735 = vxpose.xlu0.b32.cont [2/16] %v3725, 128
    %3736 = vxpose.xlu0.b32.cont [3/16] 0.0, 128
    %3737 = vxpose.xlu0.b32.cont [4/16] 0.0, 128
    %3738 = vxpose.xlu0.b32.cont [5/16] 0.0, 128
    %3739 = vxpose.xlu0.b32.cont [6/16] 0.0, 128
    %3740 = vxpose.xlu0.b32.cont [7/16] 0.0, 128
    %3741 = vxpose.xlu0.b32.cont [8/16] 0.0, 128
    %3742 = vxpose.xlu0.b32.cont [9/16] 0.0, 128
    %3743 = vxpose.xlu0.b32.cont [10/16] 0.0, 128
    %3744 = vxpose.xlu0.b32.cont [11/16] 0.0, 128
    %3745 = vxpose.xlu0.b32.cont [12/16] 0.0, 128
    %3746 = vxpose.xlu0.b32.cont [13/16] 0.0, 128
    %3747 = vxpose.xlu0.b32.cont [14/16] 0.0, 128
    %3748 = vxpose.xlu0.b32.cont [15/16] 0.0, 128
    %3749 = vxpose.xlu0.b32.end [16/16] 0.0, 128
    %v3750 = vpop.trf.xlu0
    %v3751 = vpop.trf.xlu0
    %v3752 = vpop.trf.xlu0
    %v3753 = vpop.trf.xlu0
    %v3754 = vpop.trf.xlu0
    %v3755 = vpop.trf.xlu0
    %v3756 = vpop.trf.xlu0
    %v3757 = vpop.trf.xlu0
    %v3758 = vpop.trf.xlu0
    %v3759 = vpop.trf.xlu0
    %v3760 = vpop.trf.xlu0
    %v3761 = vpop.trf.xlu0
    %v3762 = vpop.trf.xlu0
    %v3763 = vpop.trf.xlu0
    %v3764 = vpop.trf.xlu0
    %v3765 = vpop.trf.xlu0
    %3766 = vxpose.xlu0.b32.start [1/16] %v3727, 128
    %3767 = vxpose.xlu0.b32.cont [2/16] %v3729, 128
    %3768 = vxpose.xlu0.b32.cont [3/16] 0.0, 128
    %3769 = vxpose.xlu0.b32.cont [4/16] 0.0, 128
    %3770 = vxpose.xlu0.b32.cont [5/16] 0.0, 128
    %3771 = vxpose.xlu0.b32.cont [6/16] 0.0, 128
    %3772 = vxpose.xlu0.b32.cont [7/16] 0.0, 128
    %3773 = vxpose.xlu0.b32.cont [8/16] 0.0, 128
    %3774 = vxpose.xlu0.b32.cont [9/16] 0.0, 128
    %3775 = vxpose.xlu0.b32.cont [10/16] 0.0, 128
    %3776 = vxpose.xlu0.b32.cont [11/16] 0.0, 128
    %3777 = vxpose.xlu0.b32.cont [12/16] 0.0, 128
    %3778 = vxpose.xlu0.b32.cont [13/16] 0.0, 128
    %3779 = vxpose.xlu0.b32.cont [14/16] 0.0, 128
    %3780 = vxpose.xlu0.b32.cont [15/16] 0.0, 128
    %3781 = vxpose.xlu0.b32.end [16/16] 0.0, 128
    %v3782 = vpop.trf.xlu0
    %v3783 = vpop.trf.xlu0
    %v3784 = vpop.trf.xlu0
    %v3785 = vpop.trf.xlu0
    %v3786 = vpop.trf.xlu0
    %v3787 = vpop.trf.xlu0
    %v3788 = vpop.trf.xlu0
    %v3789 = vpop.trf.xlu0
    %v3790 = vpop.trf.xlu0
    %v3791 = vpop.trf.xlu0
    %v3792 = vpop.trf.xlu0
    %v3793 = vpop.trf.xlu0
    %v3794 = vpop.trf.xlu0
    %v3795 = vpop.trf.xlu0
    %v3796 = vpop.trf.xlu0
    %v3797 = vpop.trf.xlu0
    %3799 = vset.pattern.permute.xlu0 0
    %3800 = vperm.xlu0 %3799, %v3638
    %v3801 = vpop.permute.xlu0 %3800
    %3804 = vset.pattern.permute.xlu0 0
    %3805 = vperm.xlu0 %3804, %v3639
    %v3806 = vpop.permute.xlu0 %3805
    %3809 = vset.pattern.permute.xlu0 0
    %3810 = vperm.xlu0 %3809, %v3640
    %v3811 = vpop.permute.xlu0 %3810
    %3814 = vset.pattern.permute.xlu0 0
    %3815 = vperm.xlu0 %3814, %v3641
    %v3816 = vpop.permute.xlu0 %3815
    %v3818 = vlaneseq
    %v3819 = vshrl.u32 %v3818, 7
    %v3820 = vsub.s32 0, %v3819
    %v3821 = vrot.slane %v3674, %v3820
    %v3822 = vlaneseq
    %v3823 = vshrl.u32 %v3822, 7
    %v3824 = vsub.s32 0, %v3823
    %v3825 = vrot.slane %v3706, %v3824
    %v3826 = vmul.f32 %v3801, %v3821
    %v3827 = vmul.f32 %v3806, %v3821
    %v3828 = vmul.f32 %v3811, %v3825
    %v3829 = vmul.f32 %v3816, %v3825
    %3830 = vset.pattern.permute.xlu0 1
    %3831 = vperm.xlu0 %3830, %v3638
    %v3832 = vpop.permute.xlu0 %3831
    %3834 = vset.pattern.permute.xlu0 1
    %3835 = vperm.xlu0 %3834, %v3639
    %v3836 = vpop.permute.xlu0 %3835
    %3838 = vset.pattern.permute.xlu0 1
    %3839 = vperm.xlu0 %3838, %v3640
    %v3840 = vpop.permute.xlu0 %3839
    %3842 = vset.pattern.permute.xlu0 1
    %3843 = vperm.xlu0 %3842, %v3641
    %v3844 = vpop.permute.xlu0 %3843
    %v3846 = vlaneseq
    %v3847 = vshrl.u32 %v3846, 7
    %v3848 = vsub.s32 1, %v3847
    %v3849 = vrot.slane %v3674, %v3848
    %v3850 = vlaneseq
    %v3851 = vshrl.u32 %v3850, 7
    %v3852 = vsub.s32 1, %v3851
    %v3853 = vrot.slane %v3706, %v3852
    %v3854 = vmul.f32 %v3832, %v3849
    %v3855 = vmul.f32 %v3836, %v3849
    %v3856 = vmul.f32 %v3840, %v3853
    %v3857 = vmul.f32 %v3844, %v3853
    %v3858 = vadd.f32 %v3826, %v3854
    %v3859 = vadd.f32 %v3827, %v3855
    %v3860 = vadd.f32 %v3828, %v3856
    %v3861 = vadd.f32 %v3829, %v3857
    %v3862 = vsel %vm458, %v3858, -inf
    %3863 = vmax.xlane.f32.xlu0 %v3862
    %v3864 = vpop.xlane.xlu0 %3863
    %v3865 = vsel %vm458, %v3859, -inf
    %3866 = vmax.xlane.f32.xlu0 %v3865
    %v3867 = vpop.xlane.xlu0 %3866
    %v3868 = vsel %vm458, %v3860, -inf
    %3869 = vmax.xlane.f32.xlu0 %v3868
    %v3870 = vpop.xlane.xlu0 %3869
    %v3871 = vsel %vm458, %v3861, -inf
    %3872 = vmax.xlane.f32.xlu0 %v3871
    %v3873 = vpop.xlane.xlu0 %3872
    %v3874 = vsub.f32 %v3858, %v3864
    %v3875 = vsub.f32 %v3859, %v3867
    %v3876 = vsub.f32 %v3860, %v3870
    %v3877 = vsub.f32 %v3861, %v3873
    %v3878 = vmul.f32 %v3874, 1.442695
    %v3879 = vpow.pop %v3878
    %v3880 = vmul.f32 %v3875, 1.442695
    %v3881 = vpow.pop %v3880
    %v3882 = vmul.f32 %v3876, 1.442695
    %v3883 = vpow.pop %v3882
    %v3884 = vmul.f32 %v3877, 1.442695
    %v3885 = vpow.pop %v3884
    %v3886 = vsel %vm458, %v3879, 0.0
    %3887 = vadd.xlane.f32.xlu0 %v3886
    %v3888 = vpop.xlane.xlu0 %3887
    %v3889 = vsel %vm458, %v3881, 0.0
    %3890 = vadd.xlane.f32.xlu0 %v3889
    %v3891 = vpop.xlane.xlu0 %3890
    %v3892 = vsel %vm458, %v3883, 0.0
    %3893 = vadd.xlane.f32.xlu0 %v3892
    %v3894 = vpop.xlane.xlu0 %3893
    %v3895 = vsel %vm458, %v3885, 0.0
    %3896 = vadd.xlane.f32.xlu0 %v3895
    %v3897 = vpop.xlane.xlu0 %3896
    %v3898 = vrcp.pop %v3888
    %v3899 = vrcp.pop %v3891
    %v3900 = vrcp.pop %v3894
    %v3901 = vrcp.pop %v3897
    %v3902 = vmul.f32 %v3879, %v3898
    %v3903 = vmul.f32 %v3881, %v3899
    %v3904 = vmul.f32 %v3883, %v3900
    %v3905 = vmul.f32 %v3885, %v3901
    %v3906 = vlaneseq
    %v3907 = vshrl.u32 %v3906, 7
    %v3908 = vsub.s32 0, %v3907
    %v3909 = vrot.slane %v3750, %v3908
    %v3910 = vlaneseq
    %v3911 = vshrl.u32 %v3910, 7
    %v3912 = vsub.s32 0, %v3911
    %v3913 = vrot.slane %v3782, %v3912
    %v3914 = vmul.f32 %v3902, %v3909
    %v3915 = vmul.f32 %v3903, %v3909
    %v3916 = vmul.f32 %v3904, %v3913
    %v3917 = vmul.f32 %v3905, %v3913
    %v3918 = vsel %vm458, %v3914, 0.0
    %3919 = vadd.xlane.f32.xlu0 %v3918
    %v3920 = vpop.xlane.xlu0 %3919
    %v3921 = vsel %vm458, %v3915, 0.0
    %3922 = vadd.xlane.f32.xlu0 %v3921
    %v3923 = vpop.xlane.xlu0 %3922
    %v3924 = vsel %vm458, %v3916, 0.0
    %3925 = vadd.xlane.f32.xlu0 %v3924
    %v3926 = vpop.xlane.xlu0 %3925
    %v3927 = vsel %vm458, %v3917, 0.0
    %3928 = vadd.xlane.f32.xlu0 %v3927
    %v3929 = vpop.xlane.xlu0 %3928
    %v3930 = vlaneseq
    %v3931 = vshrl.u32 %v3930, 7
    %v3932 = vsub.s32 1, %v3931
    %v3933 = vrot.slane %v3750, %v3932
    %v3934 = vlaneseq
    %v3935 = vshrl.u32 %v3934, 7
    %v3936 = vsub.s32 1, %v3935
    %v3937 = vrot.slane %v3782, %v3936
    %v3938 = vmul.f32 %v3902, %v3933
    %v3939 = vmul.f32 %v3903, %v3933
    %v3940 = vmul.f32 %v3904, %v3937
    %v3941 = vmul.f32 %v3905, %v3937
    %v3942 = vsel %vm458, %v3938, 0.0
    %3943 = vadd.xlane.f32.xlu0 %v3942
    %v3944 = vpop.xlane.xlu0 %3943
    %v3945 = vsel %vm458, %v3939, 0.0
    %3946 = vadd.xlane.f32.xlu0 %v3945
    %v3947 = vpop.xlane.xlu0 %3946
    %v3948 = vsel %vm458, %v3940, 0.0
    %3949 = vadd.xlane.f32.xlu0 %v3948
    %v3950 = vpop.xlane.xlu0 %3949
    %v3951 = vsel %vm458, %v3941, 0.0
    %3952 = vadd.xlane.f32.xlu0 %v3951
    %v3953 = vpop.xlane.xlu0 %3952
    %v3954 = vlaneseq
    %v3955 = vshrl.u32 %v3954, 7
    %v3956 = vsub.s32 0, %v3955
    %v3957 = vrot.slane %v3556, %v3956
    %v3958 = vmul.f32 %v3920, %v3957
    %v3959 = vmul.f32 %v3923, %v3957
    %v3960 = vmul.f32 %v3926, %v3957
    %v3961 = vmul.f32 %v3929, %v3957
    %v3962 = vadd.f32 %v3958, 0.0
    %v3963 = vadd.f32 %v3959, 0.0
    %v3964 = vadd.f32 %v3960, 0.0
    %v3965 = vadd.f32 %v3961, 0.0
    %v3966 = vlaneseq
    %v3967 = vshrl.u32 %v3966, 7
    %v3968 = vsub.s32 1, %v3967
    %v3969 = vrot.slane %v3556, %v3968
    %v3970 = vmul.f32 %v3944, %v3969
    %v3971 = vmul.f32 %v3947, %v3969
    %v3972 = vmul.f32 %v3950, %v3969
    %v3973 = vmul.f32 %v3953, %v3969
    %v3974 = vadd.f32 %v3962, %v3970
    %v3975 = vadd.f32 %v3963, %v3971
    %v3976 = vadd.f32 %v3964, %v3972
    %v3977 = vadd.f32 %v3965, %v3973
    %3978 = vset.pattern.permute.xlu0 2
    %3979 = vperm.xlu0 %3978, %v3638
    %v3980 = vpop.permute.xlu0 %3979
    %3982 = vset.pattern.permute.xlu0 2
    %3983 = vperm.xlu0 %3982, %v3639
    %v3984 = vpop.permute.xlu0 %3983
    %3986 = vset.pattern.permute.xlu0 2
    %3987 = vperm.xlu0 %3986, %v3640
    %v3988 = vpop.permute.xlu0 %3987
    %3990 = vset.pattern.permute.xlu0 2
    %3991 = vperm.xlu0 %3990, %v3641
    %v3992 = vpop.permute.xlu0 %3991
    %v3994 = vlaneseq
    %v3995 = vshrl.u32 %v3994, 7
    %v3996 = vsub.s32 2, %v3995
    %v3997 = vrot.slane %v3674, %v3996
    %v3998 = vlaneseq
    %v3999 = vshrl.u32 %v3998, 7
    %v4000 = vsub.s32 2, %v3999
    %v4001 = vrot.slane %v3706, %v4000
    %v4002 = vmul.f32 %v3980, %v3997
    %v4003 = vmul.f32 %v3984, %v3997
    %v4004 = vmul.f32 %v3988, %v4001
    %v4005 = vmul.f32 %v3992, %v4001
    %4006 = vset.pattern.permute.xlu0 3
    %4007 = vperm.xlu0 %4006, %v3638
    %v4008 = vpop.permute.xlu0 %4007
    %4010 = vset.pattern.permute.xlu0 3
    %4011 = vperm.xlu0 %4010, %v3639
    %v4012 = vpop.permute.xlu0 %4011
    %4014 = vset.pattern.permute.xlu0 3
    %4015 = vperm.xlu0 %4014, %v3640
    %v4016 = vpop.permute.xlu0 %4015
    %4018 = vset.pattern.permute.xlu0 3
    %4019 = vperm.xlu0 %4018, %v3641
    %v4020 = vpop.permute.xlu0 %4019
    %v4022 = vlaneseq
    %v4023 = vshrl.u32 %v4022, 7
    %v4024 = vsub.s32 3, %v4023
    %v4025 = vrot.slane %v3674, %v4024
    %v4026 = vlaneseq
    %v4027 = vshrl.u32 %v4026, 7
    %v4028 = vsub.s32 3, %v4027
    %v4029 = vrot.slane %v3706, %v4028
    %v4030 = vmul.f32 %v4008, %v4025
    %v4031 = vmul.f32 %v4012, %v4025
    %v4032 = vmul.f32 %v4016, %v4029
    %v4033 = vmul.f32 %v4020, %v4029
    %v4034 = vadd.f32 %v4002, %v4030
    %v4035 = vadd.f32 %v4003, %v4031
    %v4036 = vadd.f32 %v4004, %v4032
    %v4037 = vadd.f32 %v4005, %v4033
    %v4038 = vsel %vm458, %v4034, -inf
    %4039 = vmax.xlane.f32.xlu0 %v4038
    %v4040 = vpop.xlane.xlu0 %4039
    %v4041 = vsel %vm458, %v4035, -inf
    %4042 = vmax.xlane.f32.xlu0 %v4041
    %v4043 = vpop.xlane.xlu0 %4042
    %v4044 = vsel %vm458, %v4036, -inf
    %4045 = vmax.xlane.f32.xlu0 %v4044
    %v4046 = vpop.xlane.xlu0 %4045
    %v4047 = vsel %vm458, %v4037, -inf
    %4048 = vmax.xlane.f32.xlu0 %v4047
    %v4049 = vpop.xlane.xlu0 %4048
    %v4050 = vsub.f32 %v4034, %v4040
    %v4051 = vsub.f32 %v4035, %v4043
    %v4052 = vsub.f32 %v4036, %v4046
    %v4053 = vsub.f32 %v4037, %v4049
    %v4054 = vmul.f32 %v4050, 1.442695
    %v4055 = vpow.pop %v4054
    %v4056 = vmul.f32 %v4051, 1.442695
    %v4057 = vpow.pop %v4056
    %v4058 = vmul.f32 %v4052, 1.442695
    %v4059 = vpow.pop %v4058
    %v4060 = vmul.f32 %v4053, 1.442695
    %v4061 = vpow.pop %v4060
    %v4062 = vsel %vm458, %v4055, 0.0
    %4063 = vadd.xlane.f32.xlu0 %v4062
    %v4064 = vpop.xlane.xlu0 %4063
    %v4065 = vsel %vm458, %v4057, 0.0
    %4066 = vadd.xlane.f32.xlu0 %v4065
    %v4067 = vpop.xlane.xlu0 %4066
    %v4068 = vsel %vm458, %v4059, 0.0
    %4069 = vadd.xlane.f32.xlu0 %v4068
    %v4070 = vpop.xlane.xlu0 %4069
    %v4071 = vsel %vm458, %v4061, 0.0
    %4072 = vadd.xlane.f32.xlu0 %v4071
    %v4073 = vpop.xlane.xlu0 %4072
    %v4074 = vrcp.pop %v4064
    %v4075 = vrcp.pop %v4067
    %v4076 = vrcp.pop %v4070
    %v4077 = vrcp.pop %v4073
    %v4078 = vmul.f32 %v4055, %v4074
    %v4079 = vmul.f32 %v4057, %v4075
    %v4080 = vmul.f32 %v4059, %v4076
    %v4081 = vmul.f32 %v4061, %v4077
    %v4082 = vlaneseq
    %v4083 = vshrl.u32 %v4082, 7
    %v4084 = vsub.s32 2, %v4083
    %v4085 = vrot.slane %v3750, %v4084
    %v4086 = vlaneseq
    %v4087 = vshrl.u32 %v4086, 7
    %v4088 = vsub.s32 2, %v4087
    %v4089 = vrot.slane %v3782, %v4088
    %v4090 = vmul.f32 %v4078, %v4085
    %v4091 = vmul.f32 %v4079, %v4085
    %v4092 = vmul.f32 %v4080, %v4089
    %v4093 = vmul.f32 %v4081, %v4089
    %v4094 = vsel %vm458, %v4090, 0.0
    %4095 = vadd.xlane.f32.xlu0 %v4094
    %v4096 = vpop.xlane.xlu0 %4095
    %v4097 = vsel %vm458, %v4091, 0.0
    %4098 = vadd.xlane.f32.xlu0 %v4097
    %v4099 = vpop.xlane.xlu0 %4098
    %v4100 = vsel %vm458, %v4092, 0.0
    %4101 = vadd.xlane.f32.xlu0 %v4100
    %v4102 = vpop.xlane.xlu0 %4101
    %v4103 = vsel %vm458, %v4093, 0.0
    %4104 = vadd.xlane.f32.xlu0 %v4103
    %v4105 = vpop.xlane.xlu0 %4104
    %v4106 = vlaneseq
    %v4107 = vshrl.u32 %v4106, 7
    %v4108 = vsub.s32 3, %v4107
    %v4109 = vrot.slane %v3750, %v4108
    %v4110 = vlaneseq
    %v4111 = vshrl.u32 %v4110, 7
    %v4112 = vsub.s32 3, %v4111
    %v4113 = vrot.slane %v3782, %v4112
    %v4114 = vmul.f32 %v4078, %v4109
    %v4115 = vmul.f32 %v4079, %v4109
    %v4116 = vmul.f32 %v4080, %v4113
    %v4117 = vmul.f32 %v4081, %v4113
    %v4118 = vsel %vm458, %v4114, 0.0
    %4119 = vadd.xlane.f32.xlu0 %v4118
    %v4120 = vpop.xlane.xlu0 %4119
    %v4121 = vsel %vm458, %v4115, 0.0
    %4122 = vadd.xlane.f32.xlu0 %v4121
    %v4123 = vpop.xlane.xlu0 %4122
    %v4124 = vsel %vm458, %v4116, 0.0
    %4125 = vadd.xlane.f32.xlu0 %v4124
    %v4126 = vpop.xlane.xlu0 %4125
    %v4127 = vsel %vm458, %v4117, 0.0
    %4128 = vadd.xlane.f32.xlu0 %v4127
    %v4129 = vpop.xlane.xlu0 %4128
    %v4130 = vlaneseq
    %v4131 = vshrl.u32 %v4130, 7
    %v4132 = vsub.s32 2, %v4131
    %v4133 = vrot.slane %v3556, %v4132
    %v4134 = vmul.f32 %v4096, %v4133
    %v4135 = vmul.f32 %v4099, %v4133
    %v4136 = vmul.f32 %v4102, %v4133
    %v4137 = vmul.f32 %v4105, %v4133
    %v4138 = vadd.f32 %v3974, %v4134
    %v4139 = vadd.f32 %v3975, %v4135
    %v4140 = vadd.f32 %v3976, %v4136
    %v4141 = vadd.f32 %v3977, %v4137
    %v4142 = vlaneseq
    %v4143 = vshrl.u32 %v4142, 7
    %v4144 = vsub.s32 3, %v4143
    %v4145 = vrot.slane %v3556, %v4144
    %v4146 = vmul.f32 %v4120, %v4145
    %v4147 = vmul.f32 %v4123, %v4145
    %v4148 = vmul.f32 %v4126, %v4145
    %v4149 = vmul.f32 %v4129, %v4145
    %v4150 = vadd.f32 %v4138, %v4146
    %v4151 = vadd.f32 %v4139, %v4147
    %v4152 = vadd.f32 %v4140, %v4148
    %v4153 = vadd.f32 %v4141, %v4149
    %4154 = vset.pattern.permute.xlu0 4
    %4155 = vperm.xlu0 %4154, %v3638
    %v4156 = vpop.permute.xlu0 %4155
    %4158 = vset.pattern.permute.xlu0 4
    %4159 = vperm.xlu0 %4158, %v3639
    %v4160 = vpop.permute.xlu0 %4159
    %4162 = vset.pattern.permute.xlu0 4
    %4163 = vperm.xlu0 %4162, %v3640
    %v4164 = vpop.permute.xlu0 %4163
    %4166 = vset.pattern.permute.xlu0 4
    %4167 = vperm.xlu0 %4166, %v3641
    %v4168 = vpop.permute.xlu0 %4167
    %v4170 = vlaneseq
    %v4171 = vshrl.u32 %v4170, 7
    %v4172 = vsub.s32 4, %v4171
    %v4173 = vrot.slane %v3674, %v4172
    %v4174 = vlaneseq
    %v4175 = vshrl.u32 %v4174, 7
    %v4176 = vsub.s32 4, %v4175
    %v4177 = vrot.slane %v3706, %v4176
    %v4178 = vmul.f32 %v4156, %v4173
    %v4179 = vmul.f32 %v4160, %v4173
    %v4180 = vmul.f32 %v4164, %v4177
    %v4181 = vmul.f32 %v4168, %v4177
    %4182 = vset.pattern.permute.xlu0 5
    %4183 = vperm.xlu0 %4182, %v3638
    %v4184 = vpop.permute.xlu0 %4183
    %4186 = vset.pattern.permute.xlu0 5
    %4187 = vperm.xlu0 %4186, %v3639
    %v4188 = vpop.permute.xlu0 %4187
    %4190 = vset.pattern.permute.xlu0 5
    %4191 = vperm.xlu0 %4190, %v3640
    %v4192 = vpop.permute.xlu0 %4191
    %4194 = vset.pattern.permute.xlu0 5
    %4195 = vperm.xlu0 %4194, %v3641
    %v4196 = vpop.permute.xlu0 %4195
    %v4198 = vlaneseq
    %v4199 = vshrl.u32 %v4198, 7
    %v4200 = vsub.s32 5, %v4199
    %v4201 = vrot.slane %v3674, %v4200
    %v4202 = vlaneseq
    %v4203 = vshrl.u32 %v4202, 7
    %v4204 = vsub.s32 5, %v4203
    %v4205 = vrot.slane %v3706, %v4204
    %v4206 = vmul.f32 %v4184, %v4201
    %v4207 = vmul.f32 %v4188, %v4201
    %v4208 = vmul.f32 %v4192, %v4205
    %v4209 = vmul.f32 %v4196, %v4205
    %v4210 = vadd.f32 %v4178, %v4206
    %v4211 = vadd.f32 %v4179, %v4207
    %v4212 = vadd.f32 %v4180, %v4208
    %v4213 = vadd.f32 %v4181, %v4209
    %v4214 = vsel %vm458, %v4210, -inf
    %4215 = vmax.xlane.f32.xlu0 %v4214
    %v4216 = vpop.xlane.xlu0 %4215
    %v4217 = vsel %vm458, %v4211, -inf
    %4218 = vmax.xlane.f32.xlu0 %v4217
    %v4219 = vpop.xlane.xlu0 %4218
    %v4220 = vsel %vm458, %v4212, -inf
    %4221 = vmax.xlane.f32.xlu0 %v4220
    %v4222 = vpop.xlane.xlu0 %4221
    %v4223 = vsel %vm458, %v4213, -inf
    %4224 = vmax.xlane.f32.xlu0 %v4223
    %v4225 = vpop.xlane.xlu0 %4224
    %v4226 = vsub.f32 %v4210, %v4216
    %v4227 = vsub.f32 %v4211, %v4219
    %v4228 = vsub.f32 %v4212, %v4222
    %v4229 = vsub.f32 %v4213, %v4225
    %v4230 = vmul.f32 %v4226, 1.442695
    %v4231 = vpow.pop %v4230
    %v4232 = vmul.f32 %v4227, 1.442695
    %v4233 = vpow.pop %v4232
    %v4234 = vmul.f32 %v4228, 1.442695
    %v4235 = vpow.pop %v4234
    %v4236 = vmul.f32 %v4229, 1.442695
    %v4237 = vpow.pop %v4236
    %v4238 = vsel %vm458, %v4231, 0.0
    %4239 = vadd.xlane.f32.xlu0 %v4238
    %v4240 = vpop.xlane.xlu0 %4239
    %v4241 = vsel %vm458, %v4233, 0.0
    %4242 = vadd.xlane.f32.xlu0 %v4241
    %v4243 = vpop.xlane.xlu0 %4242
    %v4244 = vsel %vm458, %v4235, 0.0
    %4245 = vadd.xlane.f32.xlu0 %v4244
    %v4246 = vpop.xlane.xlu0 %4245
    %v4247 = vsel %vm458, %v4237, 0.0
    %4248 = vadd.xlane.f32.xlu0 %v4247
    %v4249 = vpop.xlane.xlu0 %4248
    %v4250 = vrcp.pop %v4240
    %v4251 = vrcp.pop %v4243
    %v4252 = vrcp.pop %v4246
    %v4253 = vrcp.pop %v4249
    %v4254 = vmul.f32 %v4231, %v4250
    %v4255 = vmul.f32 %v4233, %v4251
    %v4256 = vmul.f32 %v4235, %v4252
    %v4257 = vmul.f32 %v4237, %v4253
    %v4258 = vlaneseq
    %v4259 = vshrl.u32 %v4258, 7
    %v4260 = vsub.s32 4, %v4259
    %v4261 = vrot.slane %v3750, %v4260
    %v4262 = vlaneseq
    %v4263 = vshrl.u32 %v4262, 7
    %v4264 = vsub.s32 4, %v4263
    %v4265 = vrot.slane %v3782, %v4264
    %v4266 = vmul.f32 %v4254, %v4261
    %v4267 = vmul.f32 %v4255, %v4261
    %v4268 = vmul.f32 %v4256, %v4265
    %v4269 = vmul.f32 %v4257, %v4265
    %v4270 = vsel %vm458, %v4266, 0.0
    %4271 = vadd.xlane.f32.xlu0 %v4270
    %v4272 = vpop.xlane.xlu0 %4271
    %v4273 = vsel %vm458, %v4267, 0.0
    %4274 = vadd.xlane.f32.xlu0 %v4273
    %v4275 = vpop.xlane.xlu0 %4274
    %v4276 = vsel %vm458, %v4268, 0.0
    %4277 = vadd.xlane.f32.xlu0 %v4276
    %v4278 = vpop.xlane.xlu0 %4277
    %v4279 = vsel %vm458, %v4269, 0.0
    %4280 = vadd.xlane.f32.xlu0 %v4279
    %v4281 = vpop.xlane.xlu0 %4280
    %v4282 = vlaneseq
    %v4283 = vshrl.u32 %v4282, 7
    %v4284 = vsub.s32 5, %v4283
    %v4285 = vrot.slane %v3750, %v4284
    %v4286 = vlaneseq
    %v4287 = vshrl.u32 %v4286, 7
    %v4288 = vsub.s32 5, %v4287
    %v4289 = vrot.slane %v3782, %v4288
    %v4290 = vmul.f32 %v4254, %v4285
    %v4291 = vmul.f32 %v4255, %v4285
    %v4292 = vmul.f32 %v4256, %v4289
    %v4293 = vmul.f32 %v4257, %v4289
    %v4294 = vsel %vm458, %v4290, 0.0
    %4295 = vadd.xlane.f32.xlu0 %v4294
    %v4296 = vpop.xlane.xlu0 %4295
    %v4297 = vsel %vm458, %v4291, 0.0
    %4298 = vadd.xlane.f32.xlu0 %v4297
    %v4299 = vpop.xlane.xlu0 %4298
    %v4300 = vsel %vm458, %v4292, 0.0
    %4301 = vadd.xlane.f32.xlu0 %v4300
    %v4302 = vpop.xlane.xlu0 %4301
    %v4303 = vsel %vm458, %v4293, 0.0
    %4304 = vadd.xlane.f32.xlu0 %v4303
    %v4305 = vpop.xlane.xlu0 %4304
    %v4306 = vlaneseq
    %v4307 = vshrl.u32 %v4306, 7
    %v4308 = vsub.s32 4, %v4307
    %v4309 = vrot.slane %v3556, %v4308
    %v4310 = vmul.f32 %v4272, %v4309
    %v4311 = vmul.f32 %v4275, %v4309
    %v4312 = vmul.f32 %v4278, %v4309
    %v4313 = vmul.f32 %v4281, %v4309
    %v4314 = vadd.f32 %v4150, %v4310
    %v4315 = vadd.f32 %v4151, %v4311
    %v4316 = vadd.f32 %v4152, %v4312
    %v4317 = vadd.f32 %v4153, %v4313
    %v4318 = vlaneseq
    %v4319 = vshrl.u32 %v4318, 7
    %v4320 = vsub.s32 5, %v4319
    %v4321 = vrot.slane %v3556, %v4320
    %v4322 = vmul.f32 %v4296, %v4321
    %v4323 = vmul.f32 %v4299, %v4321
    %v4324 = vmul.f32 %v4302, %v4321
    %v4325 = vmul.f32 %v4305, %v4321
    %v4326 = vadd.f32 %v4314, %v4322
    %v4327 = vadd.f32 %v4315, %v4323
    %v4328 = vadd.f32 %v4316, %v4324
    %v4329 = vadd.f32 %v4317, %v4325
    %4330 = vset.pattern.permute.xlu0 6
    %4331 = vperm.xlu0 %4330, %v3638
    %v4332 = vpop.permute.xlu0 %4331
    %4334 = vset.pattern.permute.xlu0 6
    %4335 = vperm.xlu0 %4334, %v3639
    %v4336 = vpop.permute.xlu0 %4335
    %4338 = vset.pattern.permute.xlu0 6
    %4339 = vperm.xlu0 %4338, %v3640
    %v4340 = vpop.permute.xlu0 %4339
    %4342 = vset.pattern.permute.xlu0 6
    %4343 = vperm.xlu0 %4342, %v3641
    %v4344 = vpop.permute.xlu0 %4343
    %v4346 = vlaneseq
    %v4347 = vshrl.u32 %v4346, 7
    %v4348 = vsub.s32 6, %v4347
    %v4349 = vrot.slane %v3674, %v4348
    %v4350 = vlaneseq
    %v4351 = vshrl.u32 %v4350, 7
    %v4352 = vsub.s32 6, %v4351
    %v4353 = vrot.slane %v3706, %v4352
    %v4354 = vmul.f32 %v4332, %v4349
    %v4355 = vmul.f32 %v4336, %v4349
    %v4356 = vmul.f32 %v4340, %v4353
    %v4357 = vmul.f32 %v4344, %v4353
    %4358 = vset.pattern.permute.xlu0 7
    %4359 = vperm.xlu0 %4358, %v3638
    %v4360 = vpop.permute.xlu0 %4359
    %4362 = vset.pattern.permute.xlu0 7
    %4363 = vperm.xlu0 %4362, %v3639
    %v4364 = vpop.permute.xlu0 %4363
    %4366 = vset.pattern.permute.xlu0 7
    %4367 = vperm.xlu0 %4366, %v3640
    %v4368 = vpop.permute.xlu0 %4367
    %4370 = vset.pattern.permute.xlu0 7
    %4371 = vperm.xlu0 %4370, %v3641
    %v4372 = vpop.permute.xlu0 %4371
    %v4374 = vlaneseq
    %v4375 = vshrl.u32 %v4374, 7
    %v4376 = vsub.s32 7, %v4375
    %v4377 = vrot.slane %v3674, %v4376
    %v4378 = vlaneseq
    %v4379 = vshrl.u32 %v4378, 7
    %v4380 = vsub.s32 7, %v4379
    %v4381 = vrot.slane %v3706, %v4380
    %v4382 = vmul.f32 %v4360, %v4377
    %v4383 = vmul.f32 %v4364, %v4377
    %v4384 = vmul.f32 %v4368, %v4381
    %v4385 = vmul.f32 %v4372, %v4381
    %v4386 = vadd.f32 %v4354, %v4382
    %v4387 = vadd.f32 %v4355, %v4383
    %v4388 = vadd.f32 %v4356, %v4384
    %v4389 = vadd.f32 %v4357, %v4385
    %v4390 = vsel %vm458, %v4386, -inf
    %4391 = vmax.xlane.f32.xlu0 %v4390
    %v4392 = vpop.xlane.xlu0 %4391
    %v4393 = vsel %vm458, %v4387, -inf
    %4394 = vmax.xlane.f32.xlu0 %v4393
    %v4395 = vpop.xlane.xlu0 %4394
    %v4396 = vsel %vm458, %v4388, -inf
    %4397 = vmax.xlane.f32.xlu0 %v4396
    %v4398 = vpop.xlane.xlu0 %4397
    %v4399 = vsel %vm458, %v4389, -inf
    %4400 = vmax.xlane.f32.xlu0 %v4399
    %v4401 = vpop.xlane.xlu0 %4400
    %v4402 = vsub.f32 %v4386, %v4392
    %v4403 = vsub.f32 %v4387, %v4395
    %v4404 = vsub.f32 %v4388, %v4398
    %v4405 = vsub.f32 %v4389, %v4401
    %v4406 = vmul.f32 %v4402, 1.442695
    %v4407 = vpow.pop %v4406
    %v4408 = vmul.f32 %v4403, 1.442695
    %v4409 = vpow.pop %v4408
    %v4410 = vmul.f32 %v4404, 1.442695
    %v4411 = vpow.pop %v4410
    %v4412 = vmul.f32 %v4405, 1.442695
    %v4413 = vpow.pop %v4412
    %v4414 = vsel %vm458, %v4407, 0.0
    %4415 = vadd.xlane.f32.xlu0 %v4414
    %v4416 = vpop.xlane.xlu0 %4415
    %v4417 = vsel %vm458, %v4409, 0.0
    %4418 = vadd.xlane.f32.xlu0 %v4417
    %v4419 = vpop.xlane.xlu0 %4418
    %v4420 = vsel %vm458, %v4411, 0.0
    %4421 = vadd.xlane.f32.xlu0 %v4420
    %v4422 = vpop.xlane.xlu0 %4421
    %v4423 = vsel %vm458, %v4413, 0.0
    %4424 = vadd.xlane.f32.xlu0 %v4423
    %v4425 = vpop.xlane.xlu0 %4424
    %v4426 = vrcp.pop %v4416
    %v4427 = vrcp.pop %v4419
    %v4428 = vrcp.pop %v4422
    %v4429 = vrcp.pop %v4425
    %v4430 = vmul.f32 %v4407, %v4426
    %v4431 = vmul.f32 %v4409, %v4427
    %v4432 = vmul.f32 %v4411, %v4428
    %v4433 = vmul.f32 %v4413, %v4429
    %v4434 = vlaneseq
    %v4435 = vshrl.u32 %v4434, 7
    %v4436 = vsub.s32 6, %v4435
    %v4437 = vrot.slane %v3750, %v4436
    %v4438 = vlaneseq
    %v4439 = vshrl.u32 %v4438, 7
    %v4440 = vsub.s32 6, %v4439
    %v4441 = vrot.slane %v3782, %v4440
    %v4442 = vmul.f32 %v4430, %v4437
    %v4443 = vmul.f32 %v4431, %v4437
    %v4444 = vmul.f32 %v4432, %v4441
    %v4445 = vmul.f32 %v4433, %v4441
    %v4446 = vsel %vm458, %v4442, 0.0
    %4447 = vadd.xlane.f32.xlu0 %v4446
    %v4448 = vpop.xlane.xlu0 %4447
    %v4449 = vsel %vm458, %v4443, 0.0
    %4450 = vadd.xlane.f32.xlu0 %v4449
    %v4451 = vpop.xlane.xlu0 %4450
    %v4452 = vsel %vm458, %v4444, 0.0
    %4453 = vadd.xlane.f32.xlu0 %v4452
    %v4454 = vpop.xlane.xlu0 %4453
    %v4455 = vsel %vm458, %v4445, 0.0
    %4456 = vadd.xlane.f32.xlu0 %v4455
    %v4457 = vpop.xlane.xlu0 %4456
    %v4458 = vlaneseq
    %v4459 = vshrl.u32 %v4458, 7
    %v4460 = vsub.s32 7, %v4459
    %v4461 = vrot.slane %v3750, %v4460
    %v4462 = vlaneseq
    %v4463 = vshrl.u32 %v4462, 7
    %v4464 = vsub.s32 7, %v4463
    %v4465 = vrot.slane %v3782, %v4464
    %v4466 = vmul.f32 %v4430, %v4461
    %v4467 = vmul.f32 %v4431, %v4461
    %v4468 = vmul.f32 %v4432, %v4465
    %v4469 = vmul.f32 %v4433, %v4465
    %v4470 = vsel %vm458, %v4466, 0.0
    %4471 = vadd.xlane.f32.xlu0 %v4470
    %v4472 = vpop.xlane.xlu0 %4471
    %v4473 = vsel %vm458, %v4467, 0.0
    %4474 = vadd.xlane.f32.xlu0 %v4473
    %v4475 = vpop.xlane.xlu0 %4474
    %v4476 = vsel %vm458, %v4468, 0.0
    %4477 = vadd.xlane.f32.xlu0 %v4476
    %v4478 = vpop.xlane.xlu0 %4477
    %v4479 = vsel %vm458, %v4469, 0.0
    %4480 = vadd.xlane.f32.xlu0 %v4479
    %v4481 = vpop.xlane.xlu0 %4480
    %v4482 = vlaneseq
    %v4483 = vshrl.u32 %v4482, 7
    %v4484 = vsub.s32 6, %v4483
    %v4485 = vrot.slane %v3556, %v4484
    %v4486 = vmul.f32 %v4448, %v4485
    %v4487 = vmul.f32 %v4451, %v4485
    %v4488 = vmul.f32 %v4454, %v4485
    %v4489 = vmul.f32 %v4457, %v4485
    %v4490 = vadd.f32 %v4326, %v4486
    %v4491 = vadd.f32 %v4327, %v4487
    %v4492 = vadd.f32 %v4328, %v4488
    %v4493 = vadd.f32 %v4329, %v4489
    %v4494 = vlaneseq
    %v4495 = vshrl.u32 %v4494, 7
    %v4496 = vsub.s32 7, %v4495
    %v4497 = vrot.slane %v3556, %v4496
    %v4498 = vmul.f32 %v4472, %v4497
    %v4499 = vmul.f32 %v4475, %v4497
    %v4500 = vmul.f32 %v4478, %v4497
    %v4501 = vmul.f32 %v4481, %v4497
    %v4502 = vadd.f32 %v4490, %v4498
    %v4503 = vadd.f32 %v4491, %v4499
    %v4504 = vadd.f32 %v4492, %v4500
    %v4505 = vadd.f32 %v4493, %v4501
    %4506 = vset.pattern.permute.xlu0 8
    %4507 = vperm.xlu0 %4506, %v3638
    %v4508 = vpop.permute.xlu0 %4507
    %4510 = vset.pattern.permute.xlu0 8
    %4511 = vperm.xlu0 %4510, %v3639
    %v4512 = vpop.permute.xlu0 %4511
    %4514 = vset.pattern.permute.xlu0 8
    %4515 = vperm.xlu0 %4514, %v3640
    %v4516 = vpop.permute.xlu0 %4515
    %4518 = vset.pattern.permute.xlu0 8
    %4519 = vperm.xlu0 %4518, %v3641
    %v4520 = vpop.permute.xlu0 %4519
    %v4522 = vlaneseq
    %v4523 = vshrl.u32 %v4522, 7
    %v4524 = vsub.s32 0, %v4523
    %v4525 = vrot.slane %v3675, %v4524
    %v4526 = vlaneseq
    %v4527 = vshrl.u32 %v4526, 7
    %v4528 = vsub.s32 0, %v4527
    %v4529 = vrot.slane %v3707, %v4528
    %v4530 = vmul.f32 %v4508, %v4525
    %v4531 = vmul.f32 %v4512, %v4525
    %v4532 = vmul.f32 %v4516, %v4529
    %v4533 = vmul.f32 %v4520, %v4529
    %4534 = vset.pattern.permute.xlu0 9
    %4535 = vperm.xlu0 %4534, %v3638
    %v4536 = vpop.permute.xlu0 %4535
    %4538 = vset.pattern.permute.xlu0 9
    %4539 = vperm.xlu0 %4538, %v3639
    %v4540 = vpop.permute.xlu0 %4539
    %4542 = vset.pattern.permute.xlu0 9
    %4543 = vperm.xlu0 %4542, %v3640
    %v4544 = vpop.permute.xlu0 %4543
    %4546 = vset.pattern.permute.xlu0 9
    %4547 = vperm.xlu0 %4546, %v3641
    %v4548 = vpop.permute.xlu0 %4547
    %v4550 = vlaneseq
    %v4551 = vshrl.u32 %v4550, 7
    %v4552 = vsub.s32 1, %v4551
    %v4553 = vrot.slane %v3675, %v4552
    %v4554 = vlaneseq
    %v4555 = vshrl.u32 %v4554, 7
    %v4556 = vsub.s32 1, %v4555
    %v4557 = vrot.slane %v3707, %v4556
    %v4558 = vmul.f32 %v4536, %v4553
    %v4559 = vmul.f32 %v4540, %v4553
    %v4560 = vmul.f32 %v4544, %v4557
    %v4561 = vmul.f32 %v4548, %v4557
    %v4562 = vadd.f32 %v4530, %v4558
    %v4563 = vadd.f32 %v4531, %v4559
    %v4564 = vadd.f32 %v4532, %v4560
    %v4565 = vadd.f32 %v4533, %v4561
    %v4566 = vsel %vm458, %v4562, -inf
    %4567 = vmax.xlane.f32.xlu0 %v4566
    %v4568 = vpop.xlane.xlu0 %4567
    %v4569 = vsel %vm458, %v4563, -inf
    %4570 = vmax.xlane.f32.xlu0 %v4569
    %v4571 = vpop.xlane.xlu0 %4570
    %v4572 = vsel %vm458, %v4564, -inf
    %4573 = vmax.xlane.f32.xlu0 %v4572
    %v4574 = vpop.xlane.xlu0 %4573
    %v4575 = vsel %vm458, %v4565, -inf
    %4576 = vmax.xlane.f32.xlu0 %v4575
    %v4577 = vpop.xlane.xlu0 %4576
    %v4578 = vsub.f32 %v4562, %v4568
    %v4579 = vsub.f32 %v4563, %v4571
    %v4580 = vsub.f32 %v4564, %v4574
    %v4581 = vsub.f32 %v4565, %v4577
    %v4582 = vmul.f32 %v4578, 1.442695
    %v4583 = vpow.pop %v4582
    %v4584 = vmul.f32 %v4579, 1.442695
    %v4585 = vpow.pop %v4584
    %v4586 = vmul.f32 %v4580, 1.442695
    %v4587 = vpow.pop %v4586
    %v4588 = vmul.f32 %v4581, 1.442695
    %v4589 = vpow.pop %v4588
    %v4590 = vsel %vm458, %v4583, 0.0
    %4591 = vadd.xlane.f32.xlu0 %v4590
    %v4592 = vpop.xlane.xlu0 %4591
    %v4593 = vsel %vm458, %v4585, 0.0
    %4594 = vadd.xlane.f32.xlu0 %v4593
    %v4595 = vpop.xlane.xlu0 %4594
    %v4596 = vsel %vm458, %v4587, 0.0
    %4597 = vadd.xlane.f32.xlu0 %v4596
    %v4598 = vpop.xlane.xlu0 %4597
    %v4599 = vsel %vm458, %v4589, 0.0
    %4600 = vadd.xlane.f32.xlu0 %v4599
    %v4601 = vpop.xlane.xlu0 %4600
    %v4602 = vrcp.pop %v4592
    %v4603 = vrcp.pop %v4595
    %v4604 = vrcp.pop %v4598
    %v4605 = vrcp.pop %v4601
    %v4606 = vmul.f32 %v4583, %v4602
    %v4607 = vmul.f32 %v4585, %v4603
    %v4608 = vmul.f32 %v4587, %v4604
    %v4609 = vmul.f32 %v4589, %v4605
    %v4610 = vlaneseq
    %v4611 = vshrl.u32 %v4610, 7
    %v4612 = vsub.s32 0, %v4611
    %v4613 = vrot.slane %v3751, %v4612
    %v4614 = vlaneseq
    %v4615 = vshrl.u32 %v4614, 7
    %v4616 = vsub.s32 0, %v4615
    %v4617 = vrot.slane %v3783, %v4616
    %v4618 = vmul.f32 %v4606, %v4613
    %v4619 = vmul.f32 %v4607, %v4613
    %v4620 = vmul.f32 %v4608, %v4617
    %v4621 = vmul.f32 %v4609, %v4617
    %v4622 = vsel %vm458, %v4618, 0.0
    %4623 = vadd.xlane.f32.xlu0 %v4622
    %v4624 = vpop.xlane.xlu0 %4623
    %v4625 = vsel %vm458, %v4619, 0.0
    %4626 = vadd.xlane.f32.xlu0 %v4625
    %v4627 = vpop.xlane.xlu0 %4626
    %v4628 = vsel %vm458, %v4620, 0.0
    %4629 = vadd.xlane.f32.xlu0 %v4628
    %v4630 = vpop.xlane.xlu0 %4629
    %v4631 = vsel %vm458, %v4621, 0.0
    %4632 = vadd.xlane.f32.xlu0 %v4631
    %v4633 = vpop.xlane.xlu0 %4632
    %v4634 = vlaneseq
    %v4635 = vshrl.u32 %v4634, 7
    %v4636 = vsub.s32 1, %v4635
    %v4637 = vrot.slane %v3751, %v4636
    %v4638 = vlaneseq
    %v4639 = vshrl.u32 %v4638, 7
    %v4640 = vsub.s32 1, %v4639
    %v4641 = vrot.slane %v3783, %v4640
    %v4642 = vmul.f32 %v4606, %v4637
    %v4643 = vmul.f32 %v4607, %v4637
    %v4644 = vmul.f32 %v4608, %v4641
    %v4645 = vmul.f32 %v4609, %v4641
    %v4646 = vsel %vm458, %v4642, 0.0
    %4647 = vadd.xlane.f32.xlu0 %v4646
    %v4648 = vpop.xlane.xlu0 %4647
    %v4649 = vsel %vm458, %v4643, 0.0
    %4650 = vadd.xlane.f32.xlu0 %v4649
    %v4651 = vpop.xlane.xlu0 %4650
    %v4652 = vsel %vm458, %v4644, 0.0
    %4653 = vadd.xlane.f32.xlu0 %v4652
    %v4654 = vpop.xlane.xlu0 %4653
    %v4655 = vsel %vm458, %v4645, 0.0
    %4656 = vadd.xlane.f32.xlu0 %v4655
    %v4657 = vpop.xlane.xlu0 %4656
    %v4658 = vlaneseq
    %v4659 = vshrl.u32 %v4658, 7
    %v4660 = vsub.s32 0, %v4659
    %v4661 = vrot.slane %v3557, %v4660
    %v4662 = vmul.f32 %v4624, %v4661
    %v4663 = vmul.f32 %v4627, %v4661
    %v4664 = vmul.f32 %v4630, %v4661
    %v4665 = vmul.f32 %v4633, %v4661
    %v4666 = vadd.f32 %v4502, %v4662
    %v4667 = vadd.f32 %v4503, %v4663
    %v4668 = vadd.f32 %v4504, %v4664
    %v4669 = vadd.f32 %v4505, %v4665
    %v4670 = vlaneseq
    %v4671 = vshrl.u32 %v4670, 7
    %v4672 = vsub.s32 1, %v4671
    %v4673 = vrot.slane %v3557, %v4672
    %v4674 = vmul.f32 %v4648, %v4673
    %v4675 = vmul.f32 %v4651, %v4673
    %v4676 = vmul.f32 %v4654, %v4673
    %v4677 = vmul.f32 %v4657, %v4673
    %v4678 = vadd.f32 %v4666, %v4674
    %v4679 = vadd.f32 %v4667, %v4675
    %v4680 = vadd.f32 %v4668, %v4676
    %v4681 = vadd.f32 %v4669, %v4677
    %4682 = vset.pattern.permute.xlu0 10
    %4683 = vperm.xlu0 %4682, %v3638
    %v4684 = vpop.permute.xlu0 %4683
    %4686 = vset.pattern.permute.xlu0 10
    %4687 = vperm.xlu0 %4686, %v3639
    %v4688 = vpop.permute.xlu0 %4687
    %4690 = vset.pattern.permute.xlu0 10
    %4691 = vperm.xlu0 %4690, %v3640
    %v4692 = vpop.permute.xlu0 %4691
    %4694 = vset.pattern.permute.xlu0 10
    %4695 = vperm.xlu0 %4694, %v3641
    %v4696 = vpop.permute.xlu0 %4695
    %v4698 = vlaneseq
    %v4699 = vshrl.u32 %v4698, 7
    %v4700 = vsub.s32 2, %v4699
    %v4701 = vrot.slane %v3675, %v4700
    %v4702 = vlaneseq
    %v4703 = vshrl.u32 %v4702, 7
    %v4704 = vsub.s32 2, %v4703
    %v4705 = vrot.slane %v3707, %v4704
    %v4706 = vmul.f32 %v4684, %v4701
    %v4707 = vmul.f32 %v4688, %v4701
    %v4708 = vmul.f32 %v4692, %v4705
    %v4709 = vmul.f32 %v4696, %v4705
    %4710 = vset.pattern.permute.xlu0 11
    %4711 = vperm.xlu0 %4710, %v3638
    %v4712 = vpop.permute.xlu0 %4711
    %4714 = vset.pattern.permute.xlu0 11
    %4715 = vperm.xlu0 %4714, %v3639
    %v4716 = vpop.permute.xlu0 %4715
    %4718 = vset.pattern.permute.xlu0 11
    %4719 = vperm.xlu0 %4718, %v3640
    %v4720 = vpop.permute.xlu0 %4719
    %4722 = vset.pattern.permute.xlu0 11
    %4723 = vperm.xlu0 %4722, %v3641
    %v4724 = vpop.permute.xlu0 %4723
    %v4726 = vlaneseq
    %v4727 = vshrl.u32 %v4726, 7
    %v4728 = vsub.s32 3, %v4727
    %v4729 = vrot.slane %v3675, %v4728
    %v4730 = vlaneseq
    %v4731 = vshrl.u32 %v4730, 7
    %v4732 = vsub.s32 3, %v4731
    %v4733 = vrot.slane %v3707, %v4732
    %v4734 = vmul.f32 %v4712, %v4729
    %v4735 = vmul.f32 %v4716, %v4729
    %v4736 = vmul.f32 %v4720, %v4733
    %v4737 = vmul.f32 %v4724, %v4733
    %v4738 = vadd.f32 %v4706, %v4734
    %v4739 = vadd.f32 %v4707, %v4735
    %v4740 = vadd.f32 %v4708, %v4736
    %v4741 = vadd.f32 %v4709, %v4737
    %v4742 = vsel %vm458, %v4738, -inf
    %4743 = vmax.xlane.f32.xlu0 %v4742
    %v4744 = vpop.xlane.xlu0 %4743
    %v4745 = vsel %vm458, %v4739, -inf
    %4746 = vmax.xlane.f32.xlu0 %v4745
    %v4747 = vpop.xlane.xlu0 %4746
    %v4748 = vsel %vm458, %v4740, -inf
    %4749 = vmax.xlane.f32.xlu0 %v4748
    %v4750 = vpop.xlane.xlu0 %4749
    %v4751 = vsel %vm458, %v4741, -inf
    %4752 = vmax.xlane.f32.xlu0 %v4751
    %v4753 = vpop.xlane.xlu0 %4752
    %v4754 = vsub.f32 %v4738, %v4744
    %v4755 = vsub.f32 %v4739, %v4747
    %v4756 = vsub.f32 %v4740, %v4750
    %v4757 = vsub.f32 %v4741, %v4753
    %v4758 = vmul.f32 %v4754, 1.442695
    %v4759 = vpow.pop %v4758
    %v4760 = vmul.f32 %v4755, 1.442695
    %v4761 = vpow.pop %v4760
    %v4762 = vmul.f32 %v4756, 1.442695
    %v4763 = vpow.pop %v4762
    %v4764 = vmul.f32 %v4757, 1.442695
    %v4765 = vpow.pop %v4764
    %v4766 = vsel %vm458, %v4759, 0.0
    %4767 = vadd.xlane.f32.xlu0 %v4766
    %v4768 = vpop.xlane.xlu0 %4767
    %v4769 = vsel %vm458, %v4761, 0.0
    %4770 = vadd.xlane.f32.xlu0 %v4769
    %v4771 = vpop.xlane.xlu0 %4770
    %v4772 = vsel %vm458, %v4763, 0.0
    %4773 = vadd.xlane.f32.xlu0 %v4772
    %v4774 = vpop.xlane.xlu0 %4773
    %v4775 = vsel %vm458, %v4765, 0.0
    %4776 = vadd.xlane.f32.xlu0 %v4775
    %v4777 = vpop.xlane.xlu0 %4776
    %v4778 = vrcp.pop %v4768
    %v4779 = vrcp.pop %v4771
    %v4780 = vrcp.pop %v4774
    %v4781 = vrcp.pop %v4777
    %v4782 = vmul.f32 %v4759, %v4778
    %v4783 = vmul.f32 %v4761, %v4779
    %v4784 = vmul.f32 %v4763, %v4780
    %v4785 = vmul.f32 %v4765, %v4781
    %v4786 = vlaneseq
    %v4787 = vshrl.u32 %v4786, 7
    %v4788 = vsub.s32 2, %v4787
    %v4789 = vrot.slane %v3751, %v4788
    %v4790 = vlaneseq
    %v4791 = vshrl.u32 %v4790, 7
    %v4792 = vsub.s32 2, %v4791
    %v4793 = vrot.slane %v3783, %v4792
    %v4794 = vmul.f32 %v4782, %v4789
    %v4795 = vmul.f32 %v4783, %v4789
    %v4796 = vmul.f32 %v4784, %v4793
    %v4797 = vmul.f32 %v4785, %v4793
    %v4798 = vsel %vm458, %v4794, 0.0
    %4799 = vadd.xlane.f32.xlu0 %v4798
    %v4800 = vpop.xlane.xlu0 %4799
    %v4801 = vsel %vm458, %v4795, 0.0
    %4802 = vadd.xlane.f32.xlu0 %v4801
    %v4803 = vpop.xlane.xlu0 %4802
    %v4804 = vsel %vm458, %v4796, 0.0
    %4805 = vadd.xlane.f32.xlu0 %v4804
    %v4806 = vpop.xlane.xlu0 %4805
    %v4807 = vsel %vm458, %v4797, 0.0
    %4808 = vadd.xlane.f32.xlu0 %v4807
    %v4809 = vpop.xlane.xlu0 %4808
    %v4810 = vlaneseq
    %v4811 = vshrl.u32 %v4810, 7
    %v4812 = vsub.s32 3, %v4811
    %v4813 = vrot.slane %v3751, %v4812
    %v4814 = vlaneseq
    %v4815 = vshrl.u32 %v4814, 7
    %v4816 = vsub.s32 3, %v4815
    %v4817 = vrot.slane %v3783, %v4816
    %v4818 = vmul.f32 %v4782, %v4813
    %v4819 = vmul.f32 %v4783, %v4813
    %v4820 = vmul.f32 %v4784, %v4817
    %v4821 = vmul.f32 %v4785, %v4817
    %v4822 = vsel %vm458, %v4818, 0.0
    %4823 = vadd.xlane.f32.xlu0 %v4822
    %v4824 = vpop.xlane.xlu0 %4823
    %v4825 = vsel %vm458, %v4819, 0.0
    %4826 = vadd.xlane.f32.xlu0 %v4825
    %v4827 = vpop.xlane.xlu0 %4826
    %v4828 = vsel %vm458, %v4820, 0.0
    %4829 = vadd.xlane.f32.xlu0 %v4828
    %v4830 = vpop.xlane.xlu0 %4829
    %v4831 = vsel %vm458, %v4821, 0.0
    %4832 = vadd.xlane.f32.xlu0 %v4831
    %v4833 = vpop.xlane.xlu0 %4832
    %v4834 = vlaneseq
    %v4835 = vshrl.u32 %v4834, 7
    %v4836 = vsub.s32 2, %v4835
    %v4837 = vrot.slane %v3557, %v4836
    %v4838 = vmul.f32 %v4800, %v4837
    %v4839 = vmul.f32 %v4803, %v4837
    %v4840 = vmul.f32 %v4806, %v4837
    %v4841 = vmul.f32 %v4809, %v4837
    %v4842 = vadd.f32 %v4678, %v4838
    %v4843 = vadd.f32 %v4679, %v4839
    %v4844 = vadd.f32 %v4680, %v4840
    %v4845 = vadd.f32 %v4681, %v4841
    %v4846 = vlaneseq
    %v4847 = vshrl.u32 %v4846, 7
    %v4848 = vsub.s32 3, %v4847
    %v4849 = vrot.slane %v3557, %v4848
    %v4850 = vmul.f32 %v4824, %v4849
    %v4851 = vmul.f32 %v4827, %v4849
    %v4852 = vmul.f32 %v4830, %v4849
    %v4853 = vmul.f32 %v4833, %v4849
    %v4854 = vadd.f32 %v4842, %v4850
    %v4855 = vadd.f32 %v4843, %v4851
    %v4856 = vadd.f32 %v4844, %v4852
    %v4857 = vadd.f32 %v4845, %v4853
    %4858 = vset.pattern.permute.xlu0 12
    %4859 = vperm.xlu0 %4858, %v3638
    %v4860 = vpop.permute.xlu0 %4859
    %4862 = vset.pattern.permute.xlu0 12
    %4863 = vperm.xlu0 %4862, %v3639
    %v4864 = vpop.permute.xlu0 %4863
    %4866 = vset.pattern.permute.xlu0 12
    %4867 = vperm.xlu0 %4866, %v3640
    %v4868 = vpop.permute.xlu0 %4867
    %4870 = vset.pattern.permute.xlu0 12
    %4871 = vperm.xlu0 %4870, %v3641
    %v4872 = vpop.permute.xlu0 %4871
    %v4874 = vlaneseq
    %v4875 = vshrl.u32 %v4874, 7
    %v4876 = vsub.s32 4, %v4875
    %v4877 = vrot.slane %v3675, %v4876
    %v4878 = vlaneseq
    %v4879 = vshrl.u32 %v4878, 7
    %v4880 = vsub.s32 4, %v4879
    %v4881 = vrot.slane %v3707, %v4880
    %v4882 = vmul.f32 %v4860, %v4877
    %v4883 = vmul.f32 %v4864, %v4877
    %v4884 = vmul.f32 %v4868, %v4881
    %v4885 = vmul.f32 %v4872, %v4881
    %4886 = vset.pattern.permute.xlu0 13
    %4887 = vperm.xlu0 %4886, %v3638
    %v4888 = vpop.permute.xlu0 %4887
    %4890 = vset.pattern.permute.xlu0 13
    %4891 = vperm.xlu0 %4890, %v3639
    %v4892 = vpop.permute.xlu0 %4891
    %4894 = vset.pattern.permute.xlu0 13
    %4895 = vperm.xlu0 %4894, %v3640
    %v4896 = vpop.permute.xlu0 %4895
    %4898 = vset.pattern.permute.xlu0 13
    %4899 = vperm.xlu0 %4898, %v3641
    %v4900 = vpop.permute.xlu0 %4899
    %v4902 = vlaneseq
    %v4903 = vshrl.u32 %v4902, 7
    %v4904 = vsub.s32 5, %v4903
    %v4905 = vrot.slane %v3675, %v4904
    %v4906 = vlaneseq
    %v4907 = vshrl.u32 %v4906, 7
    %v4908 = vsub.s32 5, %v4907
    %v4909 = vrot.slane %v3707, %v4908
    %v4910 = vmul.f32 %v4888, %v4905
    %v4911 = vmul.f32 %v4892, %v4905
    %v4912 = vmul.f32 %v4896, %v4909
    %v4913 = vmul.f32 %v4900, %v4909
    %v4914 = vadd.f32 %v4882, %v4910
    %v4915 = vadd.f32 %v4883, %v4911
    %v4916 = vadd.f32 %v4884, %v4912
    %v4917 = vadd.f32 %v4885, %v4913
    %v4918 = vsel %vm458, %v4914, -inf
    %4919 = vmax.xlane.f32.xlu0 %v4918
    %v4920 = vpop.xlane.xlu0 %4919
    %v4921 = vsel %vm458, %v4915, -inf
    %4922 = vmax.xlane.f32.xlu0 %v4921
    %v4923 = vpop.xlane.xlu0 %4922
    %v4924 = vsel %vm458, %v4916, -inf
    %4925 = vmax.xlane.f32.xlu0 %v4924
    %v4926 = vpop.xlane.xlu0 %4925
    %v4927 = vsel %vm458, %v4917, -inf
    %4928 = vmax.xlane.f32.xlu0 %v4927
    %v4929 = vpop.xlane.xlu0 %4928
    %v4930 = vsub.f32 %v4914, %v4920
    %v4931 = vsub.f32 %v4915, %v4923
    %v4932 = vsub.f32 %v4916, %v4926
    %v4933 = vsub.f32 %v4917, %v4929
    %v4934 = vmul.f32 %v4930, 1.442695
    %v4935 = vpow.pop %v4934
    %v4936 = vmul.f32 %v4931, 1.442695
    %v4937 = vpow.pop %v4936
    %v4938 = vmul.f32 %v4932, 1.442695
    %v4939 = vpow.pop %v4938
    %v4940 = vmul.f32 %v4933, 1.442695
    %v4941 = vpow.pop %v4940
    %v4942 = vsel %vm458, %v4935, 0.0
    %4943 = vadd.xlane.f32.xlu0 %v4942
    %v4944 = vpop.xlane.xlu0 %4943
    %v4945 = vsel %vm458, %v4937, 0.0
    %4946 = vadd.xlane.f32.xlu0 %v4945
    %v4947 = vpop.xlane.xlu0 %4946
    %v4948 = vsel %vm458, %v4939, 0.0
    %4949 = vadd.xlane.f32.xlu0 %v4948
    %v4950 = vpop.xlane.xlu0 %4949
    %v4951 = vsel %vm458, %v4941, 0.0
    %4952 = vadd.xlane.f32.xlu0 %v4951
    %v4953 = vpop.xlane.xlu0 %4952
    %v4954 = vrcp.pop %v4944
    %v4955 = vrcp.pop %v4947
    %v4956 = vrcp.pop %v4950
    %v4957 = vrcp.pop %v4953
    %v4958 = vmul.f32 %v4935, %v4954
    %v4959 = vmul.f32 %v4937, %v4955
    %v4960 = vmul.f32 %v4939, %v4956
    %v4961 = vmul.f32 %v4941, %v4957
    %v4962 = vlaneseq
    %v4963 = vshrl.u32 %v4962, 7
    %v4964 = vsub.s32 4, %v4963
    %v4965 = vrot.slane %v3751, %v4964
    %v4966 = vlaneseq
    %v4967 = vshrl.u32 %v4966, 7
    %v4968 = vsub.s32 4, %v4967
    %v4969 = vrot.slane %v3783, %v4968
    %v4970 = vmul.f32 %v4958, %v4965
    %v4971 = vmul.f32 %v4959, %v4965
    %v4972 = vmul.f32 %v4960, %v4969
    %v4973 = vmul.f32 %v4961, %v4969
    %v4974 = vsel %vm458, %v4970, 0.0
    %4975 = vadd.xlane.f32.xlu0 %v4974
    %v4976 = vpop.xlane.xlu0 %4975
    %v4977 = vsel %vm458, %v4971, 0.0
    %4978 = vadd.xlane.f32.xlu0 %v4977
    %v4979 = vpop.xlane.xlu0 %4978
    %v4980 = vsel %vm458, %v4972, 0.0
    %4981 = vadd.xlane.f32.xlu0 %v4980
    %v4982 = vpop.xlane.xlu0 %4981
    %v4983 = vsel %vm458, %v4973, 0.0
    %4984 = vadd.xlane.f32.xlu0 %v4983
    %v4985 = vpop.xlane.xlu0 %4984
    %v4986 = vlaneseq
    %v4987 = vshrl.u32 %v4986, 7
    %v4988 = vsub.s32 5, %v4987
    %v4989 = vrot.slane %v3751, %v4988
    %v4990 = vlaneseq
    %v4991 = vshrl.u32 %v4990, 7
    %v4992 = vsub.s32 5, %v4991
    %v4993 = vrot.slane %v3783, %v4992
    %v4994 = vmul.f32 %v4958, %v4989
    %v4995 = vmul.f32 %v4959, %v4989
    %v4996 = vmul.f32 %v4960, %v4993
    %v4997 = vmul.f32 %v4961, %v4993
    %v4998 = vsel %vm458, %v4994, 0.0
    %4999 = vadd.xlane.f32.xlu0 %v4998
    %v5000 = vpop.xlane.xlu0 %4999
    %v5001 = vsel %vm458, %v4995, 0.0
    %5002 = vadd.xlane.f32.xlu0 %v5001
    %v5003 = vpop.xlane.xlu0 %5002
    %v5004 = vsel %vm458, %v4996, 0.0
    %5005 = vadd.xlane.f32.xlu0 %v5004
    %v5006 = vpop.xlane.xlu0 %5005
    %v5007 = vsel %vm458, %v4997, 0.0
    %5008 = vadd.xlane.f32.xlu0 %v5007
    %v5009 = vpop.xlane.xlu0 %5008
    %v5010 = vlaneseq
    %v5011 = vshrl.u32 %v5010, 7
    %v5012 = vsub.s32 4, %v5011
    %v5013 = vrot.slane %v3557, %v5012
    %v5014 = vmul.f32 %v4976, %v5013
    %v5015 = vmul.f32 %v4979, %v5013
    %v5016 = vmul.f32 %v4982, %v5013
    %v5017 = vmul.f32 %v4985, %v5013
    %v5018 = vadd.f32 %v4854, %v5014
    %v5019 = vadd.f32 %v4855, %v5015
    %v5020 = vadd.f32 %v4856, %v5016
    %v5021 = vadd.f32 %v4857, %v5017
    %v5022 = vlaneseq
    %v5023 = vshrl.u32 %v5022, 7
    %v5024 = vsub.s32 5, %v5023
    %v5025 = vrot.slane %v3557, %v5024
    %v5026 = vmul.f32 %v5000, %v5025
    %v5027 = vmul.f32 %v5003, %v5025
    %v5028 = vmul.f32 %v5006, %v5025
    %v5029 = vmul.f32 %v5009, %v5025
    %v5030 = vadd.f32 %v5018, %v5026
    %v5031 = vadd.f32 %v5019, %v5027
    %v5032 = vadd.f32 %v5020, %v5028
    %v5033 = vadd.f32 %v5021, %v5029
    %5034 = vset.pattern.permute.xlu0 14
    %5035 = vperm.xlu0 %5034, %v3638
    %v5036 = vpop.permute.xlu0 %5035
    %5038 = vset.pattern.permute.xlu0 14
    %5039 = vperm.xlu0 %5038, %v3639
    %v5040 = vpop.permute.xlu0 %5039
    %5042 = vset.pattern.permute.xlu0 14
    %5043 = vperm.xlu0 %5042, %v3640
    %v5044 = vpop.permute.xlu0 %5043
    %5046 = vset.pattern.permute.xlu0 14
    %5047 = vperm.xlu0 %5046, %v3641
    %v5048 = vpop.permute.xlu0 %5047
    %v5050 = vlaneseq
    %v5051 = vshrl.u32 %v5050, 7
    %v5052 = vsub.s32 6, %v5051
    %v5053 = vrot.slane %v3675, %v5052
    %v5054 = vlaneseq
    %v5055 = vshrl.u32 %v5054, 7
    %v5056 = vsub.s32 6, %v5055
    %v5057 = vrot.slane %v3707, %v5056
    %v5058 = vmul.f32 %v5036, %v5053
    %v5059 = vmul.f32 %v5040, %v5053
    %v5060 = vmul.f32 %v5044, %v5057
    %v5061 = vmul.f32 %v5048, %v5057
    %5062 = vset.pattern.permute.xlu0 15
    %5063 = vperm.xlu0 %5062, %v3638
    %v5064 = vpop.permute.xlu0 %5063
    %5066 = vset.pattern.permute.xlu0 15
    %5067 = vperm.xlu0 %5066, %v3639
    %v5068 = vpop.permute.xlu0 %5067
    %5070 = vset.pattern.permute.xlu0 15
    %5071 = vperm.xlu0 %5070, %v3640
    %v5072 = vpop.permute.xlu0 %5071
    %5074 = vset.pattern.permute.xlu0 15
    %5075 = vperm.xlu0 %5074, %v3641
    %v5076 = vpop.permute.xlu0 %5075
    %v5078 = vlaneseq
    %v5079 = vshrl.u32 %v5078, 7
    %v5080 = vsub.s32 7, %v5079
    %v5081 = vrot.slane %v3675, %v5080
    %v5082 = vlaneseq
    %v5083 = vshrl.u32 %v5082, 7
    %v5084 = vsub.s32 7, %v5083
    %v5085 = vrot.slane %v3707, %v5084
    %v5086 = vmul.f32 %v5064, %v5081
    %v5087 = vmul.f32 %v5068, %v5081
    %v5088 = vmul.f32 %v5072, %v5085
    %v5089 = vmul.f32 %v5076, %v5085
    %v5090 = vadd.f32 %v5058, %v5086
    %v5091 = vadd.f32 %v5059, %v5087
    %v5092 = vadd.f32 %v5060, %v5088
    %v5093 = vadd.f32 %v5061, %v5089
    %v5094 = vsel %vm458, %v5090, -inf
    %5095 = vmax.xlane.f32.xlu0 %v5094
    %v5096 = vpop.xlane.xlu0 %5095
    %v5097 = vsel %vm458, %v5091, -inf
    %5098 = vmax.xlane.f32.xlu0 %v5097
    %v5099 = vpop.xlane.xlu0 %5098
    %v5100 = vsel %vm458, %v5092, -inf
    %5101 = vmax.xlane.f32.xlu0 %v5100
    %v5102 = vpop.xlane.xlu0 %5101
    %v5103 = vsel %vm458, %v5093, -inf
    %5104 = vmax.xlane.f32.xlu0 %v5103
    %v5105 = vpop.xlane.xlu0 %5104
    %v5106 = vsub.f32 %v5090, %v5096
    %v5107 = vsub.f32 %v5091, %v5099
    %v5108 = vsub.f32 %v5092, %v5102
    %v5109 = vsub.f32 %v5093, %v5105
    %v5110 = vmul.f32 %v5106, 1.442695
    %v5111 = vpow.pop %v5110
    %v5112 = vmul.f32 %v5107, 1.442695
    %v5113 = vpow.pop %v5112
    %v5114 = vmul.f32 %v5108, 1.442695
    %v5115 = vpow.pop %v5114
    %v5116 = vmul.f32 %v5109, 1.442695
    %v5117 = vpow.pop %v5116
    %v5118 = vsel %vm458, %v5111, 0.0
    %5119 = vadd.xlane.f32.xlu0 %v5118
    %v5120 = vpop.xlane.xlu0 %5119
    %v5121 = vsel %vm458, %v5113, 0.0
    %5122 = vadd.xlane.f32.xlu0 %v5121
    %v5123 = vpop.xlane.xlu0 %5122
    %v5124 = vsel %vm458, %v5115, 0.0
    %5125 = vadd.xlane.f32.xlu0 %v5124
    %v5126 = vpop.xlane.xlu0 %5125
    %v5127 = vsel %vm458, %v5117, 0.0
    %5128 = vadd.xlane.f32.xlu0 %v5127
    %v5129 = vpop.xlane.xlu0 %5128
    %v5130 = vrcp.pop %v5120
    %v5131 = vrcp.pop %v5123
    %v5132 = vrcp.pop %v5126
    %v5133 = vrcp.pop %v5129
    %v5134 = vmul.f32 %v5111, %v5130
    %v5135 = vmul.f32 %v5113, %v5131
    %v5136 = vmul.f32 %v5115, %v5132
    %v5137 = vmul.f32 %v5117, %v5133
    %v5138 = vlaneseq
    %v5139 = vshrl.u32 %v5138, 7
    %v5140 = vsub.s32 6, %v5139
    %v5141 = vrot.slane %v3751, %v5140
    %v5142 = vlaneseq
    %v5143 = vshrl.u32 %v5142, 7
    %v5144 = vsub.s32 6, %v5143
    %v5145 = vrot.slane %v3783, %v5144
    %v5146 = vmul.f32 %v5134, %v5141
    %v5147 = vmul.f32 %v5135, %v5141
    %v5148 = vmul.f32 %v5136, %v5145
    %v5149 = vmul.f32 %v5137, %v5145
    %v5150 = vsel %vm458, %v5146, 0.0
    %5151 = vadd.xlane.f32.xlu0 %v5150
    %v5152 = vpop.xlane.xlu0 %5151
    %v5153 = vsel %vm458, %v5147, 0.0
    %5154 = vadd.xlane.f32.xlu0 %v5153
    %v5155 = vpop.xlane.xlu0 %5154
    %v5156 = vsel %vm458, %v5148, 0.0
    %5157 = vadd.xlane.f32.xlu0 %v5156
    %v5158 = vpop.xlane.xlu0 %5157
    %v5159 = vsel %vm458, %v5149, 0.0
    %5160 = vadd.xlane.f32.xlu0 %v5159
    %v5161 = vpop.xlane.xlu0 %5160
    %v5162 = vlaneseq
    %v5163 = vshrl.u32 %v5162, 7
    %v5164 = vsub.s32 7, %v5163
    %v5165 = vrot.slane %v3751, %v5164
    %v5166 = vlaneseq
    %v5167 = vshrl.u32 %v5166, 7
    %v5168 = vsub.s32 7, %v5167
    %v5169 = vrot.slane %v3783, %v5168
    %v5170 = vmul.f32 %v5134, %v5165
    %v5171 = vmul.f32 %v5135, %v5165
    %v5172 = vmul.f32 %v5136, %v5169
    %v5173 = vmul.f32 %v5137, %v5169
    %v5174 = vsel %vm458, %v5170, 0.0
    %5175 = vadd.xlane.f32.xlu0 %v5174
    %v5176 = vpop.xlane.xlu0 %5175
    %v5177 = vsel %vm458, %v5171, 0.0
    %5178 = vadd.xlane.f32.xlu0 %v5177
    %v5179 = vpop.xlane.xlu0 %5178
    %v5180 = vsel %vm458, %v5172, 0.0
    %5181 = vadd.xlane.f32.xlu0 %v5180
    %v5182 = vpop.xlane.xlu0 %5181
    %v5183 = vsel %vm458, %v5173, 0.0
    %5184 = vadd.xlane.f32.xlu0 %v5183
    %v5185 = vpop.xlane.xlu0 %5184
    %v5186 = vlaneseq
    %v5187 = vshrl.u32 %v5186, 7
    %v5188 = vsub.s32 6, %v5187
    %v5189 = vrot.slane %v3557, %v5188
    %v5190 = vmul.f32 %v5152, %v5189
    %v5191 = vmul.f32 %v5155, %v5189
    %v5192 = vmul.f32 %v5158, %v5189
    %v5193 = vmul.f32 %v5161, %v5189
    %v5194 = vadd.f32 %v5030, %v5190
    %v5195 = vadd.f32 %v5031, %v5191
    %v5196 = vadd.f32 %v5032, %v5192
    %v5197 = vadd.f32 %v5033, %v5193
    %v5198 = vlaneseq
    %v5199 = vshrl.u32 %v5198, 7
    %v5200 = vsub.s32 7, %v5199
    %v5201 = vrot.slane %v3557, %v5200
    %v5202 = vmul.f32 %v5176, %v5201
    %v5203 = vmul.f32 %v5179, %v5201
    %v5204 = vmul.f32 %v5182, %v5201
    %v5205 = vmul.f32 %v5185, %v5201
    %v5206 = vadd.f32 %v5194, %v5202
    %v5207 = vadd.f32 %v5195, %v5203
    %v5208 = vadd.f32 %v5196, %v5204
    %v5209 = vadd.f32 %v5197, %v5205
    %5210 = vset.pattern.permute.xlu0 16
    %5211 = vperm.xlu0 %5210, %v3638
    %v5212 = vpop.permute.xlu0 %5211
    %5214 = vset.pattern.permute.xlu0 16
    %5215 = vperm.xlu0 %5214, %v3639
    %v5216 = vpop.permute.xlu0 %5215
    %5218 = vset.pattern.permute.xlu0 16
    %5219 = vperm.xlu0 %5218, %v3640
    %v5220 = vpop.permute.xlu0 %5219
    %5222 = vset.pattern.permute.xlu0 16
    %5223 = vperm.xlu0 %5222, %v3641
    %v5224 = vpop.permute.xlu0 %5223
    %v5226 = vlaneseq
    %v5227 = vshrl.u32 %v5226, 7
    %v5228 = vsub.s32 0, %v5227
    %v5229 = vrot.slane %v3676, %v5228
    %v5230 = vlaneseq
    %v5231 = vshrl.u32 %v5230, 7
    %v5232 = vsub.s32 0, %v5231
    %v5233 = vrot.slane %v3708, %v5232
    %v5234 = vmul.f32 %v5212, %v5229
    %v5235 = vmul.f32 %v5216, %v5229
    %v5236 = vmul.f32 %v5220, %v5233
    %v5237 = vmul.f32 %v5224, %v5233
    %5238 = vset.pattern.permute.xlu0 17
    %5239 = vperm.xlu0 %5238, %v3638
    %v5240 = vpop.permute.xlu0 %5239
    %5242 = vset.pattern.permute.xlu0 17
    %5243 = vperm.xlu0 %5242, %v3639
    %v5244 = vpop.permute.xlu0 %5243
    %5246 = vset.pattern.permute.xlu0 17
    %5247 = vperm.xlu0 %5246, %v3640
    %v5248 = vpop.permute.xlu0 %5247
    %5250 = vset.pattern.permute.xlu0 17
    %5251 = vperm.xlu0 %5250, %v3641
    %v5252 = vpop.permute.xlu0 %5251
    %v5254 = vlaneseq
    %v5255 = vshrl.u32 %v5254, 7
    %v5256 = vsub.s32 1, %v5255
    %v5257 = vrot.slane %v3676, %v5256
    %v5258 = vlaneseq
    %v5259 = vshrl.u32 %v5258, 7
    %v5260 = vsub.s32 1, %v5259
    %v5261 = vrot.slane %v3708, %v5260
    %v5262 = vmul.f32 %v5240, %v5257
    %v5263 = vmul.f32 %v5244, %v5257
    %v5264 = vmul.f32 %v5248, %v5261
    %v5265 = vmul.f32 %v5252, %v5261
    %v5266 = vadd.f32 %v5234, %v5262
    %v5267 = vadd.f32 %v5235, %v5263
    %v5268 = vadd.f32 %v5236, %v5264
    %v5269 = vadd.f32 %v5237, %v5265
    %v5270 = vsel %vm458, %v5266, -inf
    %5271 = vmax.xlane.f32.xlu0 %v5270
    %v5272 = vpop.xlane.xlu0 %5271
    %v5273 = vsel %vm458, %v5267, -inf
    %5274 = vmax.xlane.f32.xlu0 %v5273
    %v5275 = vpop.xlane.xlu0 %5274
    %v5276 = vsel %vm458, %v5268, -inf
    %5277 = vmax.xlane.f32.xlu0 %v5276
    %v5278 = vpop.xlane.xlu0 %5277
    %v5279 = vsel %vm458, %v5269, -inf
    %5280 = vmax.xlane.f32.xlu0 %v5279
    %v5281 = vpop.xlane.xlu0 %5280
    %v5282 = vsub.f32 %v5266, %v5272
    %v5283 = vsub.f32 %v5267, %v5275
    %v5284 = vsub.f32 %v5268, %v5278
    %v5285 = vsub.f32 %v5269, %v5281
    %v5286 = vmul.f32 %v5282, 1.442695
    %v5287 = vpow.pop %v5286
    %v5288 = vmul.f32 %v5283, 1.442695
    %v5289 = vpow.pop %v5288
    %v5290 = vmul.f32 %v5284, 1.442695
    %v5291 = vpow.pop %v5290
    %v5292 = vmul.f32 %v5285, 1.442695
    %v5293 = vpow.pop %v5292
    %v5294 = vsel %vm458, %v5287, 0.0
    %5295 = vadd.xlane.f32.xlu0 %v5294
    %v5296 = vpop.xlane.xlu0 %5295
    %v5297 = vsel %vm458, %v5289, 0.0
    %5298 = vadd.xlane.f32.xlu0 %v5297
    %v5299 = vpop.xlane.xlu0 %5298
    %v5300 = vsel %vm458, %v5291, 0.0
    %5301 = vadd.xlane.f32.xlu0 %v5300
    %v5302 = vpop.xlane.xlu0 %5301
    %v5303 = vsel %vm458, %v5293, 0.0
    %5304 = vadd.xlane.f32.xlu0 %v5303
    %v5305 = vpop.xlane.xlu0 %5304
    %v5306 = vrcp.pop %v5296
    %v5307 = vrcp.pop %v5299
    %v5308 = vrcp.pop %v5302
    %v5309 = vrcp.pop %v5305
    %v5310 = vmul.f32 %v5287, %v5306
    %v5311 = vmul.f32 %v5289, %v5307
    %v5312 = vmul.f32 %v5291, %v5308
    %v5313 = vmul.f32 %v5293, %v5309
    %v5314 = vlaneseq
    %v5315 = vshrl.u32 %v5314, 7
    %v5316 = vsub.s32 0, %v5315
    %v5317 = vrot.slane %v3752, %v5316
    %v5318 = vlaneseq
    %v5319 = vshrl.u32 %v5318, 7
    %v5320 = vsub.s32 0, %v5319
    %v5321 = vrot.slane %v3784, %v5320
    %v5322 = vmul.f32 %v5310, %v5317
    %v5323 = vmul.f32 %v5311, %v5317
    %v5324 = vmul.f32 %v5312, %v5321
    %v5325 = vmul.f32 %v5313, %v5321
    %v5326 = vsel %vm458, %v5322, 0.0
    %5327 = vadd.xlane.f32.xlu0 %v5326
    %v5328 = vpop.xlane.xlu0 %5327
    %v5329 = vsel %vm458, %v5323, 0.0
    %5330 = vadd.xlane.f32.xlu0 %v5329
    %v5331 = vpop.xlane.xlu0 %5330
    %v5332 = vsel %vm458, %v5324, 0.0
    %5333 = vadd.xlane.f32.xlu0 %v5332
    %v5334 = vpop.xlane.xlu0 %5333
    %v5335 = vsel %vm458, %v5325, 0.0
    %5336 = vadd.xlane.f32.xlu0 %v5335
    %v5337 = vpop.xlane.xlu0 %5336
    %v5338 = vlaneseq
    %v5339 = vshrl.u32 %v5338, 7
    %v5340 = vsub.s32 1, %v5339
    %v5341 = vrot.slane %v3752, %v5340
    %v5342 = vlaneseq
    %v5343 = vshrl.u32 %v5342, 7
    %v5344 = vsub.s32 1, %v5343
    %v5345 = vrot.slane %v3784, %v5344
    %v5346 = vmul.f32 %v5310, %v5341
    %v5347 = vmul.f32 %v5311, %v5341
    %v5348 = vmul.f32 %v5312, %v5345
    %v5349 = vmul.f32 %v5313, %v5345
    %v5350 = vsel %vm458, %v5346, 0.0
    %5351 = vadd.xlane.f32.xlu0 %v5350
    %v5352 = vpop.xlane.xlu0 %5351
    %v5353 = vsel %vm458, %v5347, 0.0
    %5354 = vadd.xlane.f32.xlu0 %v5353
    %v5355 = vpop.xlane.xlu0 %5354
    %v5356 = vsel %vm458, %v5348, 0.0
    %5357 = vadd.xlane.f32.xlu0 %v5356
    %v5358 = vpop.xlane.xlu0 %5357
    %v5359 = vsel %vm458, %v5349, 0.0
    %5360 = vadd.xlane.f32.xlu0 %v5359
    %v5361 = vpop.xlane.xlu0 %5360
    %v5362 = vlaneseq
    %v5363 = vshrl.u32 %v5362, 7
    %v5364 = vsub.s32 0, %v5363
    %v5365 = vrot.slane %v3558, %v5364
    %v5366 = vmul.f32 %v5328, %v5365
    %v5367 = vmul.f32 %v5331, %v5365
    %v5368 = vmul.f32 %v5334, %v5365
    %v5369 = vmul.f32 %v5337, %v5365
    %v5370 = vadd.f32 %v5206, %v5366
    %v5371 = vadd.f32 %v5207, %v5367
    %v5372 = vadd.f32 %v5208, %v5368
    %v5373 = vadd.f32 %v5209, %v5369
    %v5374 = vlaneseq
    %v5375 = vshrl.u32 %v5374, 7
    %v5376 = vsub.s32 1, %v5375
    %v5377 = vrot.slane %v3558, %v5376
    %v5378 = vmul.f32 %v5352, %v5377
    %v5379 = vmul.f32 %v5355, %v5377
    %v5380 = vmul.f32 %v5358, %v5377
    %v5381 = vmul.f32 %v5361, %v5377
    %v5382 = vadd.f32 %v5370, %v5378
    %v5383 = vadd.f32 %v5371, %v5379
    %v5384 = vadd.f32 %v5372, %v5380
    %v5385 = vadd.f32 %v5373, %v5381
    %5386 = vset.pattern.permute.xlu0 18
    %5387 = vperm.xlu0 %5386, %v3638
    %v5388 = vpop.permute.xlu0 %5387
    %5390 = vset.pattern.permute.xlu0 18
    %5391 = vperm.xlu0 %5390, %v3639
    %v5392 = vpop.permute.xlu0 %5391
    %5394 = vset.pattern.permute.xlu0 18
    %5395 = vperm.xlu0 %5394, %v3640
    %v5396 = vpop.permute.xlu0 %5395
    %5398 = vset.pattern.permute.xlu0 18
    %5399 = vperm.xlu0 %5398, %v3641
    %v5400 = vpop.permute.xlu0 %5399
    %v5402 = vlaneseq
    %v5403 = vshrl.u32 %v5402, 7
    %v5404 = vsub.s32 2, %v5403
    %v5405 = vrot.slane %v3676, %v5404
    %v5406 = vlaneseq
    %v5407 = vshrl.u32 %v5406, 7
    %v5408 = vsub.s32 2, %v5407
    %v5409 = vrot.slane %v3708, %v5408
    %v5410 = vmul.f32 %v5388, %v5405
    %v5411 = vmul.f32 %v5392, %v5405
    %v5412 = vmul.f32 %v5396, %v5409
    %v5413 = vmul.f32 %v5400, %v5409
    %5414 = vset.pattern.permute.xlu0 19
    %5415 = vperm.xlu0 %5414, %v3638
    %v5416 = vpop.permute.xlu0 %5415
    %5418 = vset.pattern.permute.xlu0 19
    %5419 = vperm.xlu0 %5418, %v3639
    %v5420 = vpop.permute.xlu0 %5419
    %5422 = vset.pattern.permute.xlu0 19
    %5423 = vperm.xlu0 %5422, %v3640
    %v5424 = vpop.permute.xlu0 %5423
    %5426 = vset.pattern.permute.xlu0 19
    %5427 = vperm.xlu0 %5426, %v3641
    %v5428 = vpop.permute.xlu0 %5427
    %v5430 = vlaneseq
    %v5431 = vshrl.u32 %v5430, 7
    %v5432 = vsub.s32 3, %v5431
    %v5433 = vrot.slane %v3676, %v5432
    %v5434 = vlaneseq
    %v5435 = vshrl.u32 %v5434, 7
    %v5436 = vsub.s32 3, %v5435
    %v5437 = vrot.slane %v3708, %v5436
    %v5438 = vmul.f32 %v5416, %v5433
    %v5439 = vmul.f32 %v5420, %v5433
    %v5440 = vmul.f32 %v5424, %v5437
    %v5441 = vmul.f32 %v5428, %v5437
    %v5442 = vadd.f32 %v5410, %v5438
    %v5443 = vadd.f32 %v5411, %v5439
    %v5444 = vadd.f32 %v5412, %v5440
    %v5445 = vadd.f32 %v5413, %v5441
    %v5446 = vsel %vm458, %v5442, -inf
    %5447 = vmax.xlane.f32.xlu0 %v5446
    %v5448 = vpop.xlane.xlu0 %5447
    %v5449 = vsel %vm458, %v5443, -inf
    %5450 = vmax.xlane.f32.xlu0 %v5449
    %v5451 = vpop.xlane.xlu0 %5450
    %v5452 = vsel %vm458, %v5444, -inf
    %5453 = vmax.xlane.f32.xlu0 %v5452
    %v5454 = vpop.xlane.xlu0 %5453
    %v5455 = vsel %vm458, %v5445, -inf
    %5456 = vmax.xlane.f32.xlu0 %v5455
    %v5457 = vpop.xlane.xlu0 %5456
    %v5458 = vsub.f32 %v5442, %v5448
    %v5459 = vsub.f32 %v5443, %v5451
    %v5460 = vsub.f32 %v5444, %v5454
    %v5461 = vsub.f32 %v5445, %v5457
    %v5462 = vmul.f32 %v5458, 1.442695
    %v5463 = vpow.pop %v5462
    %v5464 = vmul.f32 %v5459, 1.442695
    %v5465 = vpow.pop %v5464
    %v5466 = vmul.f32 %v5460, 1.442695
    %v5467 = vpow.pop %v5466
    %v5468 = vmul.f32 %v5461, 1.442695
    %v5469 = vpow.pop %v5468
    %v5470 = vsel %vm458, %v5463, 0.0
    %5471 = vadd.xlane.f32.xlu0 %v5470
    %v5472 = vpop.xlane.xlu0 %5471
    %v5473 = vsel %vm458, %v5465, 0.0
    %5474 = vadd.xlane.f32.xlu0 %v5473
    %v5475 = vpop.xlane.xlu0 %5474
    %v5476 = vsel %vm458, %v5467, 0.0
    %5477 = vadd.xlane.f32.xlu0 %v5476
    %v5478 = vpop.xlane.xlu0 %5477
    %v5479 = vsel %vm458, %v5469, 0.0
    %5480 = vadd.xlane.f32.xlu0 %v5479
    %v5481 = vpop.xlane.xlu0 %5480
    %v5482 = vrcp.pop %v5472
    %v5483 = vrcp.pop %v5475
    %v5484 = vrcp.pop %v5478
    %v5485 = vrcp.pop %v5481
    %v5486 = vmul.f32 %v5463, %v5482
    %v5487 = vmul.f32 %v5465, %v5483
    %v5488 = vmul.f32 %v5467, %v5484
    %v5489 = vmul.f32 %v5469, %v5485
    %v5490 = vlaneseq
    %v5491 = vshrl.u32 %v5490, 7
    %v5492 = vsub.s32 2, %v5491
    %v5493 = vrot.slane %v3752, %v5492
    %v5494 = vlaneseq
    %v5495 = vshrl.u32 %v5494, 7
    %v5496 = vsub.s32 2, %v5495
    %v5497 = vrot.slane %v3784, %v5496
    %v5498 = vmul.f32 %v5486, %v5493
    %v5499 = vmul.f32 %v5487, %v5493
    %v5500 = vmul.f32 %v5488, %v5497
    %v5501 = vmul.f32 %v5489, %v5497
    %v5502 = vsel %vm458, %v5498, 0.0
    %5503 = vadd.xlane.f32.xlu0 %v5502
    %v5504 = vpop.xlane.xlu0 %5503
    %v5505 = vsel %vm458, %v5499, 0.0
    %5506 = vadd.xlane.f32.xlu0 %v5505
    %v5507 = vpop.xlane.xlu0 %5506
    %v5508 = vsel %vm458, %v5500, 0.0
    %5509 = vadd.xlane.f32.xlu0 %v5508
    %v5510 = vpop.xlane.xlu0 %5509
    %v5511 = vsel %vm458, %v5501, 0.0
    %5512 = vadd.xlane.f32.xlu0 %v5511
    %v5513 = vpop.xlane.xlu0 %5512
    %v5514 = vlaneseq
    %v5515 = vshrl.u32 %v5514, 7
    %v5516 = vsub.s32 3, %v5515
    %v5517 = vrot.slane %v3752, %v5516
    %v5518 = vlaneseq
    %v5519 = vshrl.u32 %v5518, 7
    %v5520 = vsub.s32 3, %v5519
    %v5521 = vrot.slane %v3784, %v5520
    %v5522 = vmul.f32 %v5486, %v5517
    %v5523 = vmul.f32 %v5487, %v5517
    %v5524 = vmul.f32 %v5488, %v5521
    %v5525 = vmul.f32 %v5489, %v5521
    %v5526 = vsel %vm458, %v5522, 0.0
    %5527 = vadd.xlane.f32.xlu0 %v5526
    %v5528 = vpop.xlane.xlu0 %5527
    %v5529 = vsel %vm458, %v5523, 0.0
    %5530 = vadd.xlane.f32.xlu0 %v5529
    %v5531 = vpop.xlane.xlu0 %5530
    %v5532 = vsel %vm458, %v5524, 0.0
    %5533 = vadd.xlane.f32.xlu0 %v5532
    %v5534 = vpop.xlane.xlu0 %5533
    %v5535 = vsel %vm458, %v5525, 0.0
    %5536 = vadd.xlane.f32.xlu0 %v5535
    %v5537 = vpop.xlane.xlu0 %5536
    %v5538 = vlaneseq
    %v5539 = vshrl.u32 %v5538, 7
    %v5540 = vsub.s32 2, %v5539
    %v5541 = vrot.slane %v3558, %v5540
    %v5542 = vmul.f32 %v5504, %v5541
    %v5543 = vmul.f32 %v5507, %v5541
    %v5544 = vmul.f32 %v5510, %v5541
    %v5545 = vmul.f32 %v5513, %v5541
    %v5546 = vadd.f32 %v5382, %v5542
    %v5547 = vadd.f32 %v5383, %v5543
    %v5548 = vadd.f32 %v5384, %v5544
    %v5549 = vadd.f32 %v5385, %v5545
    %v5550 = vlaneseq
    %v5551 = vshrl.u32 %v5550, 7
    %v5552 = vsub.s32 3, %v5551
    %v5553 = vrot.slane %v3558, %v5552
    %v5554 = vmul.f32 %v5528, %v5553
    %v5555 = vmul.f32 %v5531, %v5553
    %v5556 = vmul.f32 %v5534, %v5553
    %v5557 = vmul.f32 %v5537, %v5553
    %v5558 = vadd.f32 %v5546, %v5554
    %v5559 = vadd.f32 %v5547, %v5555
    %v5560 = vadd.f32 %v5548, %v5556
    %v5561 = vadd.f32 %v5549, %v5557
    %5562 = vset.pattern.permute.xlu0 20
    %5563 = vperm.xlu0 %5562, %v3638
    %v5564 = vpop.permute.xlu0 %5563
    %5566 = vset.pattern.permute.xlu0 20
    %5567 = vperm.xlu0 %5566, %v3639
    %v5568 = vpop.permute.xlu0 %5567
    %5570 = vset.pattern.permute.xlu0 20
    %5571 = vperm.xlu0 %5570, %v3640
    %v5572 = vpop.permute.xlu0 %5571
    %5574 = vset.pattern.permute.xlu0 20
    %5575 = vperm.xlu0 %5574, %v3641
    %v5576 = vpop.permute.xlu0 %5575
    %v5578 = vlaneseq
    %v5579 = vshrl.u32 %v5578, 7
    %v5580 = vsub.s32 4, %v5579
    %v5581 = vrot.slane %v3676, %v5580
    %v5582 = vlaneseq
    %v5583 = vshrl.u32 %v5582, 7
    %v5584 = vsub.s32 4, %v5583
    %v5585 = vrot.slane %v3708, %v5584
    %v5586 = vmul.f32 %v5564, %v5581
    %v5587 = vmul.f32 %v5568, %v5581
    %v5588 = vmul.f32 %v5572, %v5585
    %v5589 = vmul.f32 %v5576, %v5585
    %5590 = vset.pattern.permute.xlu0 21
    %5591 = vperm.xlu0 %5590, %v3638
    %v5592 = vpop.permute.xlu0 %5591
    %5594 = vset.pattern.permute.xlu0 21
    %5595 = vperm.xlu0 %5594, %v3639
    %v5596 = vpop.permute.xlu0 %5595
    %5598 = vset.pattern.permute.xlu0 21
    %5599 = vperm.xlu0 %5598, %v3640
    %v5600 = vpop.permute.xlu0 %5599
    %5602 = vset.pattern.permute.xlu0 21
    %5603 = vperm.xlu0 %5602, %v3641
    %v5604 = vpop.permute.xlu0 %5603
    %v5606 = vlaneseq
    %v5607 = vshrl.u32 %v5606, 7
    %v5608 = vsub.s32 5, %v5607
    %v5609 = vrot.slane %v3676, %v5608
    %v5610 = vlaneseq
    %v5611 = vshrl.u32 %v5610, 7
    %v5612 = vsub.s32 5, %v5611
    %v5613 = vrot.slane %v3708, %v5612
    %v5614 = vmul.f32 %v5592, %v5609
    %v5615 = vmul.f32 %v5596, %v5609
    %v5616 = vmul.f32 %v5600, %v5613
    %v5617 = vmul.f32 %v5604, %v5613
    %v5618 = vadd.f32 %v5586, %v5614
    %v5619 = vadd.f32 %v5587, %v5615
    %v5620 = vadd.f32 %v5588, %v5616
    %v5621 = vadd.f32 %v5589, %v5617
    %v5622 = vsel %vm458, %v5618, -inf
    %5623 = vmax.xlane.f32.xlu0 %v5622
    %v5624 = vpop.xlane.xlu0 %5623
    %v5625 = vsel %vm458, %v5619, -inf
    %5626 = vmax.xlane.f32.xlu0 %v5625
    %v5627 = vpop.xlane.xlu0 %5626
    %v5628 = vsel %vm458, %v5620, -inf
    %5629 = vmax.xlane.f32.xlu0 %v5628
    %v5630 = vpop.xlane.xlu0 %5629
    %v5631 = vsel %vm458, %v5621, -inf
    %5632 = vmax.xlane.f32.xlu0 %v5631
    %v5633 = vpop.xlane.xlu0 %5632
    %v5634 = vsub.f32 %v5618, %v5624
    %v5635 = vsub.f32 %v5619, %v5627
    %v5636 = vsub.f32 %v5620, %v5630
    %v5637 = vsub.f32 %v5621, %v5633
    %v5638 = vmul.f32 %v5634, 1.442695
    %v5639 = vpow.pop %v5638
    %v5640 = vmul.f32 %v5635, 1.442695
    %v5641 = vpow.pop %v5640
    %v5642 = vmul.f32 %v5636, 1.442695
    %v5643 = vpow.pop %v5642
    %v5644 = vmul.f32 %v5637, 1.442695
    %v5645 = vpow.pop %v5644
    %v5646 = vsel %vm458, %v5639, 0.0
    %5647 = vadd.xlane.f32.xlu0 %v5646
    %v5648 = vpop.xlane.xlu0 %5647
    %v5649 = vsel %vm458, %v5641, 0.0
    %5650 = vadd.xlane.f32.xlu0 %v5649
    %v5651 = vpop.xlane.xlu0 %5650
    %v5652 = vsel %vm458, %v5643, 0.0
    %5653 = vadd.xlane.f32.xlu0 %v5652
    %v5654 = vpop.xlane.xlu0 %5653
    %v5655 = vsel %vm458, %v5645, 0.0
    %5656 = vadd.xlane.f32.xlu0 %v5655
    %v5657 = vpop.xlane.xlu0 %5656
    %v5658 = vrcp.pop %v5648
    %v5659 = vrcp.pop %v5651
    %v5660 = vrcp.pop %v5654
    %v5661 = vrcp.pop %v5657
    %v5662 = vmul.f32 %v5639, %v5658
    %v5663 = vmul.f32 %v5641, %v5659
    %v5664 = vmul.f32 %v5643, %v5660
    %v5665 = vmul.f32 %v5645, %v5661
    %v5666 = vlaneseq
    %v5667 = vshrl.u32 %v5666, 7
    %v5668 = vsub.s32 4, %v5667
    %v5669 = vrot.slane %v3752, %v5668
    %v5670 = vlaneseq
    %v5671 = vshrl.u32 %v5670, 7
    %v5672 = vsub.s32 4, %v5671
    %v5673 = vrot.slane %v3784, %v5672
    %v5674 = vmul.f32 %v5662, %v5669
    %v5675 = vmul.f32 %v5663, %v5669
    %v5676 = vmul.f32 %v5664, %v5673
    %v5677 = vmul.f32 %v5665, %v5673
    %v5678 = vsel %vm458, %v5674, 0.0
    %5679 = vadd.xlane.f32.xlu0 %v5678
    %v5680 = vpop.xlane.xlu0 %5679
    %v5681 = vsel %vm458, %v5675, 0.0
    %5682 = vadd.xlane.f32.xlu0 %v5681
    %v5683 = vpop.xlane.xlu0 %5682
    %v5684 = vsel %vm458, %v5676, 0.0
    %5685 = vadd.xlane.f32.xlu0 %v5684
    %v5686 = vpop.xlane.xlu0 %5685
    %v5687 = vsel %vm458, %v5677, 0.0
    %5688 = vadd.xlane.f32.xlu0 %v5687
    %v5689 = vpop.xlane.xlu0 %5688
    %v5690 = vlaneseq
    %v5691 = vshrl.u32 %v5690, 7
    %v5692 = vsub.s32 5, %v5691
    %v5693 = vrot.slane %v3752, %v5692
    %v5694 = vlaneseq
    %v5695 = vshrl.u32 %v5694, 7
    %v5696 = vsub.s32 5, %v5695
    %v5697 = vrot.slane %v3784, %v5696
    %v5698 = vmul.f32 %v5662, %v5693
    %v5699 = vmul.f32 %v5663, %v5693
    %v5700 = vmul.f32 %v5664, %v5697
    %v5701 = vmul.f32 %v5665, %v5697
    %v5702 = vsel %vm458, %v5698, 0.0
    %5703 = vadd.xlane.f32.xlu0 %v5702
    %v5704 = vpop.xlane.xlu0 %5703
    %v5705 = vsel %vm458, %v5699, 0.0
    %5706 = vadd.xlane.f32.xlu0 %v5705
    %v5707 = vpop.xlane.xlu0 %5706
    %v5708 = vsel %vm458, %v5700, 0.0
    %5709 = vadd.xlane.f32.xlu0 %v5708
    %v5710 = vpop.xlane.xlu0 %5709
    %v5711 = vsel %vm458, %v5701, 0.0
    %5712 = vadd.xlane.f32.xlu0 %v5711
    %v5713 = vpop.xlane.xlu0 %5712
    %v5714 = vlaneseq
    %v5715 = vshrl.u32 %v5714, 7
    %v5716 = vsub.s32 4, %v5715
    %v5717 = vrot.slane %v3558, %v5716
    %v5718 = vmul.f32 %v5680, %v5717
    %v5719 = vmul.f32 %v5683, %v5717
    %v5720 = vmul.f32 %v5686, %v5717
    %v5721 = vmul.f32 %v5689, %v5717
    %v5722 = vadd.f32 %v5558, %v5718
    %v5723 = vadd.f32 %v5559, %v5719
    %v5724 = vadd.f32 %v5560, %v5720
    %v5725 = vadd.f32 %v5561, %v5721
    %v5726 = vlaneseq
    %v5727 = vshrl.u32 %v5726, 7
    %v5728 = vsub.s32 5, %v5727
    %v5729 = vrot.slane %v3558, %v5728
    %v5730 = vmul.f32 %v5704, %v5729
    %v5731 = vmul.f32 %v5707, %v5729
    %v5732 = vmul.f32 %v5710, %v5729
    %v5733 = vmul.f32 %v5713, %v5729
    %v5734 = vadd.f32 %v5722, %v5730
    %v5735 = vadd.f32 %v5723, %v5731
    %v5736 = vadd.f32 %v5724, %v5732
    %v5737 = vadd.f32 %v5725, %v5733
    %5738 = vset.pattern.permute.xlu0 22
    %5739 = vperm.xlu0 %5738, %v3638
    %v5740 = vpop.permute.xlu0 %5739
    %5742 = vset.pattern.permute.xlu0 22
    %5743 = vperm.xlu0 %5742, %v3639
    %v5744 = vpop.permute.xlu0 %5743
    %5746 = vset.pattern.permute.xlu0 22
    %5747 = vperm.xlu0 %5746, %v3640
    %v5748 = vpop.permute.xlu0 %5747
    %5750 = vset.pattern.permute.xlu0 22
    %5751 = vperm.xlu0 %5750, %v3641
    %v5752 = vpop.permute.xlu0 %5751
    %v5754 = vlaneseq
    %v5755 = vshrl.u32 %v5754, 7
    %v5756 = vsub.s32 6, %v5755
    %v5757 = vrot.slane %v3676, %v5756
    %v5758 = vlaneseq
    %v5759 = vshrl.u32 %v5758, 7
    %v5760 = vsub.s32 6, %v5759
    %v5761 = vrot.slane %v3708, %v5760
    %v5762 = vmul.f32 %v5740, %v5757
    %v5763 = vmul.f32 %v5744, %v5757
    %v5764 = vmul.f32 %v5748, %v5761
    %v5765 = vmul.f32 %v5752, %v5761
    %5766 = vset.pattern.permute.xlu0 23
    %5767 = vperm.xlu0 %5766, %v3638
    %v5768 = vpop.permute.xlu0 %5767
    %5770 = vset.pattern.permute.xlu0 23
    %5771 = vperm.xlu0 %5770, %v3639
    %v5772 = vpop.permute.xlu0 %5771
    %5774 = vset.pattern.permute.xlu0 23
    %5775 = vperm.xlu0 %5774, %v3640
    %v5776 = vpop.permute.xlu0 %5775
    %5778 = vset.pattern.permute.xlu0 23
    %5779 = vperm.xlu0 %5778, %v3641
    %v5780 = vpop.permute.xlu0 %5779
    %v5782 = vlaneseq
    %v5783 = vshrl.u32 %v5782, 7
    %v5784 = vsub.s32 7, %v5783
    %v5785 = vrot.slane %v3676, %v5784
    %v5786 = vlaneseq
    %v5787 = vshrl.u32 %v5786, 7
    %v5788 = vsub.s32 7, %v5787
    %v5789 = vrot.slane %v3708, %v5788
    %v5790 = vmul.f32 %v5768, %v5785
    %v5791 = vmul.f32 %v5772, %v5785
    %v5792 = vmul.f32 %v5776, %v5789
    %v5793 = vmul.f32 %v5780, %v5789
    %v5794 = vadd.f32 %v5762, %v5790
    %v5795 = vadd.f32 %v5763, %v5791
    %v5796 = vadd.f32 %v5764, %v5792
    %v5797 = vadd.f32 %v5765, %v5793
    %v5798 = vsel %vm458, %v5794, -inf
    %5799 = vmax.xlane.f32.xlu0 %v5798
    %v5800 = vpop.xlane.xlu0 %5799
    %v5801 = vsel %vm458, %v5795, -inf
    %5802 = vmax.xlane.f32.xlu0 %v5801
    %v5803 = vpop.xlane.xlu0 %5802
    %v5804 = vsel %vm458, %v5796, -inf
    %5805 = vmax.xlane.f32.xlu0 %v5804
    %v5806 = vpop.xlane.xlu0 %5805
    %v5807 = vsel %vm458, %v5797, -inf
    %5808 = vmax.xlane.f32.xlu0 %v5807
    %v5809 = vpop.xlane.xlu0 %5808
    %v5810 = vsub.f32 %v5794, %v5800
    %v5811 = vsub.f32 %v5795, %v5803
    %v5812 = vsub.f32 %v5796, %v5806
    %v5813 = vsub.f32 %v5797, %v5809
    %v5814 = vmul.f32 %v5810, 1.442695
    %v5815 = vpow.pop %v5814
    %v5816 = vmul.f32 %v5811, 1.442695
    %v5817 = vpow.pop %v5816
    %v5818 = vmul.f32 %v5812, 1.442695
    %v5819 = vpow.pop %v5818
    %v5820 = vmul.f32 %v5813, 1.442695
    %v5821 = vpow.pop %v5820
    %v5822 = vsel %vm458, %v5815, 0.0
    %5823 = vadd.xlane.f32.xlu0 %v5822
    %v5824 = vpop.xlane.xlu0 %5823
    %v5825 = vsel %vm458, %v5817, 0.0
    %5826 = vadd.xlane.f32.xlu0 %v5825
    %v5827 = vpop.xlane.xlu0 %5826
    %v5828 = vsel %vm458, %v5819, 0.0
    %5829 = vadd.xlane.f32.xlu0 %v5828
    %v5830 = vpop.xlane.xlu0 %5829
    %v5831 = vsel %vm458, %v5821, 0.0
    %5832 = vadd.xlane.f32.xlu0 %v5831
    %v5833 = vpop.xlane.xlu0 %5832
    %v5834 = vrcp.pop %v5824
    %v5835 = vrcp.pop %v5827
    %v5836 = vrcp.pop %v5830
    %v5837 = vrcp.pop %v5833
    %v5838 = vmul.f32 %v5815, %v5834
    %v5839 = vmul.f32 %v5817, %v5835
    %v5840 = vmul.f32 %v5819, %v5836
    %v5841 = vmul.f32 %v5821, %v5837
    %v5842 = vlaneseq
    %v5843 = vshrl.u32 %v5842, 7
    %v5844 = vsub.s32 6, %v5843
    %v5845 = vrot.slane %v3752, %v5844
    %v5846 = vlaneseq
    %v5847 = vshrl.u32 %v5846, 7
    %v5848 = vsub.s32 6, %v5847
    %v5849 = vrot.slane %v3784, %v5848
    %v5850 = vmul.f32 %v5838, %v5845
    %v5851 = vmul.f32 %v5839, %v5845
    %v5852 = vmul.f32 %v5840, %v5849
    %v5853 = vmul.f32 %v5841, %v5849
    %v5854 = vsel %vm458, %v5850, 0.0
    %5855 = vadd.xlane.f32.xlu0 %v5854
    %v5856 = vpop.xlane.xlu0 %5855
    %v5857 = vsel %vm458, %v5851, 0.0
    %5858 = vadd.xlane.f32.xlu0 %v5857
    %v5859 = vpop.xlane.xlu0 %5858
    %v5860 = vsel %vm458, %v5852, 0.0
    %5861 = vadd.xlane.f32.xlu0 %v5860
    %v5862 = vpop.xlane.xlu0 %5861
    %v5863 = vsel %vm458, %v5853, 0.0
    %5864 = vadd.xlane.f32.xlu0 %v5863
    %v5865 = vpop.xlane.xlu0 %5864
    %v5866 = vlaneseq
    %v5867 = vshrl.u32 %v5866, 7
    %v5868 = vsub.s32 7, %v5867
    %v5869 = vrot.slane %v3752, %v5868
    %v5870 = vlaneseq
    %v5871 = vshrl.u32 %v5870, 7
    %v5872 = vsub.s32 7, %v5871
    %v5873 = vrot.slane %v3784, %v5872
    %v5874 = vmul.f32 %v5838, %v5869
    %v5875 = vmul.f32 %v5839, %v5869
    %v5876 = vmul.f32 %v5840, %v5873
    %v5877 = vmul.f32 %v5841, %v5873
    %v5878 = vsel %vm458, %v5874, 0.0
    %5879 = vadd.xlane.f32.xlu0 %v5878
    %v5880 = vpop.xlane.xlu0 %5879
    %v5881 = vsel %vm458, %v5875, 0.0
    %5882 = vadd.xlane.f32.xlu0 %v5881
    %v5883 = vpop.xlane.xlu0 %5882
    %v5884 = vsel %vm458, %v5876, 0.0
    %5885 = vadd.xlane.f32.xlu0 %v5884
    %v5886 = vpop.xlane.xlu0 %5885
    %v5887 = vsel %vm458, %v5877, 0.0
    %5888 = vadd.xlane.f32.xlu0 %v5887
    %v5889 = vpop.xlane.xlu0 %5888
    %v5890 = vlaneseq
    %v5891 = vshrl.u32 %v5890, 7
    %v5892 = vsub.s32 6, %v5891
    %v5893 = vrot.slane %v3558, %v5892
    %v5894 = vmul.f32 %v5856, %v5893
    %v5895 = vmul.f32 %v5859, %v5893
    %v5896 = vmul.f32 %v5862, %v5893
    %v5897 = vmul.f32 %v5865, %v5893
    %v5898 = vadd.f32 %v5734, %v5894
    %v5899 = vadd.f32 %v5735, %v5895
    %v5900 = vadd.f32 %v5736, %v5896
    %v5901 = vadd.f32 %v5737, %v5897
    %v5902 = vlaneseq
    %v5903 = vshrl.u32 %v5902, 7
    %v5904 = vsub.s32 7, %v5903
    %v5905 = vrot.slane %v3558, %v5904
    %v5906 = vmul.f32 %v5880, %v5905
    %v5907 = vmul.f32 %v5883, %v5905
    %v5908 = vmul.f32 %v5886, %v5905
    %v5909 = vmul.f32 %v5889, %v5905
    %v5910 = vadd.f32 %v5898, %v5906
    %v5911 = vadd.f32 %v5899, %v5907
    %v5912 = vadd.f32 %v5900, %v5908
    %v5913 = vadd.f32 %v5901, %v5909
    %5914 = vset.pattern.permute.xlu0 24
    %5915 = vperm.xlu0 %5914, %v3638
    %v5916 = vpop.permute.xlu0 %5915
    %5918 = vset.pattern.permute.xlu0 24
    %5919 = vperm.xlu0 %5918, %v3639
    %v5920 = vpop.permute.xlu0 %5919
    %5922 = vset.pattern.permute.xlu0 24
    %5923 = vperm.xlu0 %5922, %v3640
    %v5924 = vpop.permute.xlu0 %5923
    %5926 = vset.pattern.permute.xlu0 24
    %5927 = vperm.xlu0 %5926, %v3641
    %v5928 = vpop.permute.xlu0 %5927
    %v5930 = vlaneseq
    %v5931 = vshrl.u32 %v5930, 7
    %v5932 = vsub.s32 0, %v5931
    %v5933 = vrot.slane %v3677, %v5932
    %v5934 = vlaneseq
    %v5935 = vshrl.u32 %v5934, 7
    %v5936 = vsub.s32 0, %v5935
    %v5937 = vrot.slane %v3709, %v5936
    %v5938 = vmul.f32 %v5916, %v5933
    %v5939 = vmul.f32 %v5920, %v5933
    %v5940 = vmul.f32 %v5924, %v5937
    %v5941 = vmul.f32 %v5928, %v5937
    %5942 = vset.pattern.permute.xlu0 25
    %5943 = vperm.xlu0 %5942, %v3638
    %v5944 = vpop.permute.xlu0 %5943
    %5946 = vset.pattern.permute.xlu0 25
    %5947 = vperm.xlu0 %5946, %v3639
    %v5948 = vpop.permute.xlu0 %5947
    %5950 = vset.pattern.permute.xlu0 25
    %5951 = vperm.xlu0 %5950, %v3640
    %v5952 = vpop.permute.xlu0 %5951
    %5954 = vset.pattern.permute.xlu0 25
    %5955 = vperm.xlu0 %5954, %v3641
    %v5956 = vpop.permute.xlu0 %5955
    %v5958 = vlaneseq
    %v5959 = vshrl.u32 %v5958, 7
    %v5960 = vsub.s32 1, %v5959
    %v5961 = vrot.slane %v3677, %v5960
    %v5962 = vlaneseq
    %v5963 = vshrl.u32 %v5962, 7
    %v5964 = vsub.s32 1, %v5963
    %v5965 = vrot.slane %v3709, %v5964
    %v5966 = vmul.f32 %v5944, %v5961
    %v5967 = vmul.f32 %v5948, %v5961
    %v5968 = vmul.f32 %v5952, %v5965
    %v5969 = vmul.f32 %v5956, %v5965
    %v5970 = vadd.f32 %v5938, %v5966
    %v5971 = vadd.f32 %v5939, %v5967
    %v5972 = vadd.f32 %v5940, %v5968
    %v5973 = vadd.f32 %v5941, %v5969
    %v5974 = vsel %vm458, %v5970, -inf
    %5975 = vmax.xlane.f32.xlu0 %v5974
    %v5976 = vpop.xlane.xlu0 %5975
    %v5977 = vsel %vm458, %v5971, -inf
    %5978 = vmax.xlane.f32.xlu0 %v5977
    %v5979 = vpop.xlane.xlu0 %5978
    %v5980 = vsel %vm458, %v5972, -inf
    %5981 = vmax.xlane.f32.xlu0 %v5980
    %v5982 = vpop.xlane.xlu0 %5981
    %v5983 = vsel %vm458, %v5973, -inf
    %5984 = vmax.xlane.f32.xlu0 %v5983
    %v5985 = vpop.xlane.xlu0 %5984
    %v5986 = vsub.f32 %v5970, %v5976
    %v5987 = vsub.f32 %v5971, %v5979
    %v5988 = vsub.f32 %v5972, %v5982
    %v5989 = vsub.f32 %v5973, %v5985
    %v5990 = vmul.f32 %v5986, 1.442695
    %v5991 = vpow.pop %v5990
    %v5992 = vmul.f32 %v5987, 1.442695
    %v5993 = vpow.pop %v5992
    %v5994 = vmul.f32 %v5988, 1.442695
    %v5995 = vpow.pop %v5994
    %v5996 = vmul.f32 %v5989, 1.442695
    %v5997 = vpow.pop %v5996
    %v5998 = vsel %vm458, %v5991, 0.0
    %5999 = vadd.xlane.f32.xlu0 %v5998
    %v6000 = vpop.xlane.xlu0 %5999
    %v6001 = vsel %vm458, %v5993, 0.0
    %6002 = vadd.xlane.f32.xlu0 %v6001
    %v6003 = vpop.xlane.xlu0 %6002
    %v6004 = vsel %vm458, %v5995, 0.0
    %6005 = vadd.xlane.f32.xlu0 %v6004
    %v6006 = vpop.xlane.xlu0 %6005
    %v6007 = vsel %vm458, %v5997, 0.0
    %6008 = vadd.xlane.f32.xlu0 %v6007
    %v6009 = vpop.xlane.xlu0 %6008
    %v6010 = vrcp.pop %v6000
    %v6011 = vrcp.pop %v6003
    %v6012 = vrcp.pop %v6006
    %v6013 = vrcp.pop %v6009
    %v6014 = vmul.f32 %v5991, %v6010
    %v6015 = vmul.f32 %v5993, %v6011
    %v6016 = vmul.f32 %v5995, %v6012
    %v6017 = vmul.f32 %v5997, %v6013
    %v6018 = vlaneseq
    %v6019 = vshrl.u32 %v6018, 7
    %v6020 = vsub.s32 0, %v6019
    %v6021 = vrot.slane %v3753, %v6020
    %v6022 = vlaneseq
    %v6023 = vshrl.u32 %v6022, 7
    %v6024 = vsub.s32 0, %v6023
    %v6025 = vrot.slane %v3785, %v6024
    %v6026 = vmul.f32 %v6014, %v6021
    %v6027 = vmul.f32 %v6015, %v6021
    %v6028 = vmul.f32 %v6016, %v6025
    %v6029 = vmul.f32 %v6017, %v6025
    %v6030 = vsel %vm458, %v6026, 0.0
    %6031 = vadd.xlane.f32.xlu0 %v6030
    %v6032 = vpop.xlane.xlu0 %6031
    %v6033 = vsel %vm458, %v6027, 0.0
    %6034 = vadd.xlane.f32.xlu0 %v6033
    %v6035 = vpop.xlane.xlu0 %6034
    %v6036 = vsel %vm458, %v6028, 0.0
    %6037 = vadd.xlane.f32.xlu0 %v6036
    %v6038 = vpop.xlane.xlu0 %6037
    %v6039 = vsel %vm458, %v6029, 0.0
    %6040 = vadd.xlane.f32.xlu0 %v6039
    %v6041 = vpop.xlane.xlu0 %6040
    %v6042 = vlaneseq
    %v6043 = vshrl.u32 %v6042, 7
    %v6044 = vsub.s32 1, %v6043
    %v6045 = vrot.slane %v3753, %v6044
    %v6046 = vlaneseq
    %v6047 = vshrl.u32 %v6046, 7
    %v6048 = vsub.s32 1, %v6047
    %v6049 = vrot.slane %v3785, %v6048
    %v6050 = vmul.f32 %v6014, %v6045
    %v6051 = vmul.f32 %v6015, %v6045
    %v6052 = vmul.f32 %v6016, %v6049
    %v6053 = vmul.f32 %v6017, %v6049
    %v6054 = vsel %vm458, %v6050, 0.0
    %6055 = vadd.xlane.f32.xlu0 %v6054
    %v6056 = vpop.xlane.xlu0 %6055
    %v6057 = vsel %vm458, %v6051, 0.0
    %6058 = vadd.xlane.f32.xlu0 %v6057
    %v6059 = vpop.xlane.xlu0 %6058
    %v6060 = vsel %vm458, %v6052, 0.0
    %6061 = vadd.xlane.f32.xlu0 %v6060
    %v6062 = vpop.xlane.xlu0 %6061
    %v6063 = vsel %vm458, %v6053, 0.0
    %6064 = vadd.xlane.f32.xlu0 %v6063
    %v6065 = vpop.xlane.xlu0 %6064
    %v6066 = vlaneseq
    %v6067 = vshrl.u32 %v6066, 7
    %v6068 = vsub.s32 0, %v6067
    %v6069 = vrot.slane %v3559, %v6068
    %v6070 = vmul.f32 %v6032, %v6069
    %v6071 = vmul.f32 %v6035, %v6069
    %v6072 = vmul.f32 %v6038, %v6069
    %v6073 = vmul.f32 %v6041, %v6069
    %v6074 = vadd.f32 %v5910, %v6070
    %v6075 = vadd.f32 %v5911, %v6071
    %v6076 = vadd.f32 %v5912, %v6072
    %v6077 = vadd.f32 %v5913, %v6073
    %v6078 = vlaneseq
    %v6079 = vshrl.u32 %v6078, 7
    %v6080 = vsub.s32 1, %v6079
    %v6081 = vrot.slane %v3559, %v6080
    %v6082 = vmul.f32 %v6056, %v6081
    %v6083 = vmul.f32 %v6059, %v6081
    %v6084 = vmul.f32 %v6062, %v6081
    %v6085 = vmul.f32 %v6065, %v6081
    %v6086 = vadd.f32 %v6074, %v6082
    %v6087 = vadd.f32 %v6075, %v6083
    %v6088 = vadd.f32 %v6076, %v6084
    %v6089 = vadd.f32 %v6077, %v6085
    %6090 = vset.pattern.permute.xlu0 26
    %6091 = vperm.xlu0 %6090, %v3638
    %v6092 = vpop.permute.xlu0 %6091
    %6094 = vset.pattern.permute.xlu0 26
    %6095 = vperm.xlu0 %6094, %v3639
    %v6096 = vpop.permute.xlu0 %6095
    %6098 = vset.pattern.permute.xlu0 26
    %6099 = vperm.xlu0 %6098, %v3640
    %v6100 = vpop.permute.xlu0 %6099
    %6102 = vset.pattern.permute.xlu0 26
    %6103 = vperm.xlu0 %6102, %v3641
    %v6104 = vpop.permute.xlu0 %6103
    %v6106 = vlaneseq
    %v6107 = vshrl.u32 %v6106, 7
    %v6108 = vsub.s32 2, %v6107
    %v6109 = vrot.slane %v3677, %v6108
    %v6110 = vlaneseq
    %v6111 = vshrl.u32 %v6110, 7
    %v6112 = vsub.s32 2, %v6111
    %v6113 = vrot.slane %v3709, %v6112
    %v6114 = vmul.f32 %v6092, %v6109
    %v6115 = vmul.f32 %v6096, %v6109
    %v6116 = vmul.f32 %v6100, %v6113
    %v6117 = vmul.f32 %v6104, %v6113
    %6118 = vset.pattern.permute.xlu0 27
    %6119 = vperm.xlu0 %6118, %v3638
    %v6120 = vpop.permute.xlu0 %6119
    %6122 = vset.pattern.permute.xlu0 27
    %6123 = vperm.xlu0 %6122, %v3639
    %v6124 = vpop.permute.xlu0 %6123
    %6126 = vset.pattern.permute.xlu0 27
    %6127 = vperm.xlu0 %6126, %v3640
    %v6128 = vpop.permute.xlu0 %6127
    %6130 = vset.pattern.permute.xlu0 27
    %6131 = vperm.xlu0 %6130, %v3641
    %v6132 = vpop.permute.xlu0 %6131
    %v6134 = vlaneseq
    %v6135 = vshrl.u32 %v6134, 7
    %v6136 = vsub.s32 3, %v6135
    %v6137 = vrot.slane %v3677, %v6136
    %v6138 = vlaneseq
    %v6139 = vshrl.u32 %v6138, 7
    %v6140 = vsub.s32 3, %v6139
    %v6141 = vrot.slane %v3709, %v6140
    %v6142 = vmul.f32 %v6120, %v6137
    %v6143 = vmul.f32 %v6124, %v6137
    %v6144 = vmul.f32 %v6128, %v6141
    %v6145 = vmul.f32 %v6132, %v6141
    %v6146 = vadd.f32 %v6114, %v6142
    %v6147 = vadd.f32 %v6115, %v6143
    %v6148 = vadd.f32 %v6116, %v6144
    %v6149 = vadd.f32 %v6117, %v6145
    %v6150 = vsel %vm458, %v6146, -inf
    %6151 = vmax.xlane.f32.xlu0 %v6150
    %v6152 = vpop.xlane.xlu0 %6151
    %v6153 = vsel %vm458, %v6147, -inf
    %6154 = vmax.xlane.f32.xlu0 %v6153
    %v6155 = vpop.xlane.xlu0 %6154
    %v6156 = vsel %vm458, %v6148, -inf
    %6157 = vmax.xlane.f32.xlu0 %v6156
    %v6158 = vpop.xlane.xlu0 %6157
    %v6159 = vsel %vm458, %v6149, -inf
    %6160 = vmax.xlane.f32.xlu0 %v6159
    %v6161 = vpop.xlane.xlu0 %6160
    %v6162 = vsub.f32 %v6146, %v6152
    %v6163 = vsub.f32 %v6147, %v6155
    %v6164 = vsub.f32 %v6148, %v6158
    %v6165 = vsub.f32 %v6149, %v6161
    %v6166 = vmul.f32 %v6162, 1.442695
    %v6167 = vpow.pop %v6166
    %v6168 = vmul.f32 %v6163, 1.442695
    %v6169 = vpow.pop %v6168
    %v6170 = vmul.f32 %v6164, 1.442695
    %v6171 = vpow.pop %v6170
    %v6172 = vmul.f32 %v6165, 1.442695
    %v6173 = vpow.pop %v6172
    %v6174 = vsel %vm458, %v6167, 0.0
    %6175 = vadd.xlane.f32.xlu0 %v6174
    %v6176 = vpop.xlane.xlu0 %6175
    %v6177 = vsel %vm458, %v6169, 0.0
    %6178 = vadd.xlane.f32.xlu0 %v6177
    %v6179 = vpop.xlane.xlu0 %6178
    %v6180 = vsel %vm458, %v6171, 0.0
    %6181 = vadd.xlane.f32.xlu0 %v6180
    %v6182 = vpop.xlane.xlu0 %6181
    %v6183 = vsel %vm458, %v6173, 0.0
    %6184 = vadd.xlane.f32.xlu0 %v6183
    %v6185 = vpop.xlane.xlu0 %6184
    %v6186 = vrcp.pop %v6176
    %v6187 = vrcp.pop %v6179
    %v6188 = vrcp.pop %v6182
    %v6189 = vrcp.pop %v6185
    %v6190 = vmul.f32 %v6167, %v6186
    %v6191 = vmul.f32 %v6169, %v6187
    %v6192 = vmul.f32 %v6171, %v6188
    %v6193 = vmul.f32 %v6173, %v6189
    %v6194 = vlaneseq
    %v6195 = vshrl.u32 %v6194, 7
    %v6196 = vsub.s32 2, %v6195
    %v6197 = vrot.slane %v3753, %v6196
    %v6198 = vlaneseq
    %v6199 = vshrl.u32 %v6198, 7
    %v6200 = vsub.s32 2, %v6199
    %v6201 = vrot.slane %v3785, %v6200
    %v6202 = vmul.f32 %v6190, %v6197
    %v6203 = vmul.f32 %v6191, %v6197
    %v6204 = vmul.f32 %v6192, %v6201
    %v6205 = vmul.f32 %v6193, %v6201
    %v6206 = vsel %vm458, %v6202, 0.0
    %6207 = vadd.xlane.f32.xlu0 %v6206
    %v6208 = vpop.xlane.xlu0 %6207
    %v6209 = vsel %vm458, %v6203, 0.0
    %6210 = vadd.xlane.f32.xlu0 %v6209
    %v6211 = vpop.xlane.xlu0 %6210
    %v6212 = vsel %vm458, %v6204, 0.0
    %6213 = vadd.xlane.f32.xlu0 %v6212
    %v6214 = vpop.xlane.xlu0 %6213
    %v6215 = vsel %vm458, %v6205, 0.0
    %6216 = vadd.xlane.f32.xlu0 %v6215
    %v6217 = vpop.xlane.xlu0 %6216
    %v6218 = vlaneseq
    %v6219 = vshrl.u32 %v6218, 7
    %v6220 = vsub.s32 3, %v6219
    %v6221 = vrot.slane %v3753, %v6220
    %v6222 = vlaneseq
    %v6223 = vshrl.u32 %v6222, 7
    %v6224 = vsub.s32 3, %v6223
    %v6225 = vrot.slane %v3785, %v6224
    %v6226 = vmul.f32 %v6190, %v6221
    %v6227 = vmul.f32 %v6191, %v6221
    %v6228 = vmul.f32 %v6192, %v6225
    %v6229 = vmul.f32 %v6193, %v6225
    %v6230 = vsel %vm458, %v6226, 0.0
    %6231 = vadd.xlane.f32.xlu0 %v6230
    %v6232 = vpop.xlane.xlu0 %6231
    %v6233 = vsel %vm458, %v6227, 0.0
    %6234 = vadd.xlane.f32.xlu0 %v6233
    %v6235 = vpop.xlane.xlu0 %6234
    %v6236 = vsel %vm458, %v6228, 0.0
    %6237 = vadd.xlane.f32.xlu0 %v6236
    %v6238 = vpop.xlane.xlu0 %6237
    %v6239 = vsel %vm458, %v6229, 0.0
    %6240 = vadd.xlane.f32.xlu0 %v6239
    %v6241 = vpop.xlane.xlu0 %6240
    %v6242 = vlaneseq
    %v6243 = vshrl.u32 %v6242, 7
    %v6244 = vsub.s32 2, %v6243
    %v6245 = vrot.slane %v3559, %v6244
    %v6246 = vmul.f32 %v6208, %v6245
    %v6247 = vmul.f32 %v6211, %v6245
    %v6248 = vmul.f32 %v6214, %v6245
    %v6249 = vmul.f32 %v6217, %v6245
    %v6250 = vadd.f32 %v6086, %v6246
    %v6251 = vadd.f32 %v6087, %v6247
    %v6252 = vadd.f32 %v6088, %v6248
    %v6253 = vadd.f32 %v6089, %v6249
    %v6254 = vlaneseq
    %v6255 = vshrl.u32 %v6254, 7
    %v6256 = vsub.s32 3, %v6255
    %v6257 = vrot.slane %v3559, %v6256
    %v6258 = vmul.f32 %v6232, %v6257
    %v6259 = vmul.f32 %v6235, %v6257
    %v6260 = vmul.f32 %v6238, %v6257
    %v6261 = vmul.f32 %v6241, %v6257
    %v6262 = vadd.f32 %v6250, %v6258
    %v6263 = vadd.f32 %v6251, %v6259
    %v6264 = vadd.f32 %v6252, %v6260
    %v6265 = vadd.f32 %v6253, %v6261
    %6266 = vset.pattern.permute.xlu0 28
    %6267 = vperm.xlu0 %6266, %v3638
    %v6268 = vpop.permute.xlu0 %6267
    %6270 = vset.pattern.permute.xlu0 28
    %6271 = vperm.xlu0 %6270, %v3639
    %v6272 = vpop.permute.xlu0 %6271
    %6274 = vset.pattern.permute.xlu0 28
    %6275 = vperm.xlu0 %6274, %v3640
    %v6276 = vpop.permute.xlu0 %6275
    %6278 = vset.pattern.permute.xlu0 28
    %6279 = vperm.xlu0 %6278, %v3641
    %v6280 = vpop.permute.xlu0 %6279
    %v6282 = vlaneseq
    %v6283 = vshrl.u32 %v6282, 7
    %v6284 = vsub.s32 4, %v6283
    %v6285 = vrot.slane %v3677, %v6284
    %v6286 = vlaneseq
    %v6287 = vshrl.u32 %v6286, 7
    %v6288 = vsub.s32 4, %v6287
    %v6289 = vrot.slane %v3709, %v6288
    %v6290 = vmul.f32 %v6268, %v6285
    %v6291 = vmul.f32 %v6272, %v6285
    %v6292 = vmul.f32 %v6276, %v6289
    %v6293 = vmul.f32 %v6280, %v6289
    %6294 = vset.pattern.permute.xlu0 29
    %6295 = vperm.xlu0 %6294, %v3638
    %v6296 = vpop.permute.xlu0 %6295
    %6298 = vset.pattern.permute.xlu0 29
    %6299 = vperm.xlu0 %6298, %v3639
    %v6300 = vpop.permute.xlu0 %6299
    %6302 = vset.pattern.permute.xlu0 29
    %6303 = vperm.xlu0 %6302, %v3640
    %v6304 = vpop.permute.xlu0 %6303
    %6306 = vset.pattern.permute.xlu0 29
    %6307 = vperm.xlu0 %6306, %v3641
    %v6308 = vpop.permute.xlu0 %6307
    %v6310 = vlaneseq
    %v6311 = vshrl.u32 %v6310, 7
    %v6312 = vsub.s32 5, %v6311
    %v6313 = vrot.slane %v3677, %v6312
    %v6314 = vlaneseq
    %v6315 = vshrl.u32 %v6314, 7
    %v6316 = vsub.s32 5, %v6315
    %v6317 = vrot.slane %v3709, %v6316
    %v6318 = vmul.f32 %v6296, %v6313
    %v6319 = vmul.f32 %v6300, %v6313
    %v6320 = vmul.f32 %v6304, %v6317
    %v6321 = vmul.f32 %v6308, %v6317
    %v6322 = vadd.f32 %v6290, %v6318
    %v6323 = vadd.f32 %v6291, %v6319
    %v6324 = vadd.f32 %v6292, %v6320
    %v6325 = vadd.f32 %v6293, %v6321
    %v6326 = vsel %vm458, %v6322, -inf
    %6327 = vmax.xlane.f32.xlu0 %v6326
    %v6328 = vpop.xlane.xlu0 %6327
    %v6329 = vsel %vm458, %v6323, -inf
    %6330 = vmax.xlane.f32.xlu0 %v6329
    %v6331 = vpop.xlane.xlu0 %6330
    %v6332 = vsel %vm458, %v6324, -inf
    %6333 = vmax.xlane.f32.xlu0 %v6332
    %v6334 = vpop.xlane.xlu0 %6333
    %v6335 = vsel %vm458, %v6325, -inf
    %6336 = vmax.xlane.f32.xlu0 %v6335
    %v6337 = vpop.xlane.xlu0 %6336
    %v6338 = vsub.f32 %v6322, %v6328
    %v6339 = vsub.f32 %v6323, %v6331
    %v6340 = vsub.f32 %v6324, %v6334
    %v6341 = vsub.f32 %v6325, %v6337
    %v6342 = vmul.f32 %v6338, 1.442695
    %v6343 = vpow.pop %v6342
    %v6344 = vmul.f32 %v6339, 1.442695
    %v6345 = vpow.pop %v6344
    %v6346 = vmul.f32 %v6340, 1.442695
    %v6347 = vpow.pop %v6346
    %v6348 = vmul.f32 %v6341, 1.442695
    %v6349 = vpow.pop %v6348
    %v6350 = vsel %vm458, %v6343, 0.0
    %6351 = vadd.xlane.f32.xlu0 %v6350
    %v6352 = vpop.xlane.xlu0 %6351
    %v6353 = vsel %vm458, %v6345, 0.0
    %6354 = vadd.xlane.f32.xlu0 %v6353
    %v6355 = vpop.xlane.xlu0 %6354
    %v6356 = vsel %vm458, %v6347, 0.0
    %6357 = vadd.xlane.f32.xlu0 %v6356
    %v6358 = vpop.xlane.xlu0 %6357
    %v6359 = vsel %vm458, %v6349, 0.0
    %6360 = vadd.xlane.f32.xlu0 %v6359
    %v6361 = vpop.xlane.xlu0 %6360
    %v6362 = vrcp.pop %v6352
    %v6363 = vrcp.pop %v6355
    %v6364 = vrcp.pop %v6358
    %v6365 = vrcp.pop %v6361
    %v6366 = vmul.f32 %v6343, %v6362
    %v6367 = vmul.f32 %v6345, %v6363
    %v6368 = vmul.f32 %v6347, %v6364
    %v6369 = vmul.f32 %v6349, %v6365
    %v6370 = vlaneseq
    %v6371 = vshrl.u32 %v6370, 7
    %v6372 = vsub.s32 4, %v6371
    %v6373 = vrot.slane %v3753, %v6372
    %v6374 = vlaneseq
    %v6375 = vshrl.u32 %v6374, 7
    %v6376 = vsub.s32 4, %v6375
    %v6377 = vrot.slane %v3785, %v6376
    %v6378 = vmul.f32 %v6366, %v6373
    %v6379 = vmul.f32 %v6367, %v6373
    %v6380 = vmul.f32 %v6368, %v6377
    %v6381 = vmul.f32 %v6369, %v6377
    %v6382 = vsel %vm458, %v6378, 0.0
    %6383 = vadd.xlane.f32.xlu0 %v6382
    %v6384 = vpop.xlane.xlu0 %6383
    %v6385 = vsel %vm458, %v6379, 0.0
    %6386 = vadd.xlane.f32.xlu0 %v6385
    %v6387 = vpop.xlane.xlu0 %6386
    %v6388 = vsel %vm458, %v6380, 0.0
    %6389 = vadd.xlane.f32.xlu0 %v6388
    %v6390 = vpop.xlane.xlu0 %6389
    %v6391 = vsel %vm458, %v6381, 0.0
    %6392 = vadd.xlane.f32.xlu0 %v6391
    %v6393 = vpop.xlane.xlu0 %6392
    %v6394 = vlaneseq
    %v6395 = vshrl.u32 %v6394, 7
    %v6396 = vsub.s32 5, %v6395
    %v6397 = vrot.slane %v3753, %v6396
    %v6398 = vlaneseq
    %v6399 = vshrl.u32 %v6398, 7
    %v6400 = vsub.s32 5, %v6399
    %v6401 = vrot.slane %v3785, %v6400
    %v6402 = vmul.f32 %v6366, %v6397
    %v6403 = vmul.f32 %v6367, %v6397
    %v6404 = vmul.f32 %v6368, %v6401
    %v6405 = vmul.f32 %v6369, %v6401
    %v6406 = vsel %vm458, %v6402, 0.0
    %6407 = vadd.xlane.f32.xlu0 %v6406
    %v6408 = vpop.xlane.xlu0 %6407
    %v6409 = vsel %vm458, %v6403, 0.0
    %6410 = vadd.xlane.f32.xlu0 %v6409
    %v6411 = vpop.xlane.xlu0 %6410
    %v6412 = vsel %vm458, %v6404, 0.0
    %6413 = vadd.xlane.f32.xlu0 %v6412
    %v6414 = vpop.xlane.xlu0 %6413
    %v6415 = vsel %vm458, %v6405, 0.0
    %6416 = vadd.xlane.f32.xlu0 %v6415
    %v6417 = vpop.xlane.xlu0 %6416
    %v6418 = vlaneseq
    %v6419 = vshrl.u32 %v6418, 7
    %v6420 = vsub.s32 4, %v6419
    %v6421 = vrot.slane %v3559, %v6420
    %v6422 = vmul.f32 %v6384, %v6421
    %v6423 = vmul.f32 %v6387, %v6421
    %v6424 = vmul.f32 %v6390, %v6421
    %v6425 = vmul.f32 %v6393, %v6421
    %v6426 = vadd.f32 %v6262, %v6422
    %v6427 = vadd.f32 %v6263, %v6423
    %v6428 = vadd.f32 %v6264, %v6424
    %v6429 = vadd.f32 %v6265, %v6425
    %v6430 = vlaneseq
    %v6431 = vshrl.u32 %v6430, 7
    %v6432 = vsub.s32 5, %v6431
    %v6433 = vrot.slane %v3559, %v6432
    %v6434 = vmul.f32 %v6408, %v6433
    %v6435 = vmul.f32 %v6411, %v6433
    %v6436 = vmul.f32 %v6414, %v6433
    %v6437 = vmul.f32 %v6417, %v6433
    %v6438 = vadd.f32 %v6426, %v6434
    %v6439 = vadd.f32 %v6427, %v6435
    %v6440 = vadd.f32 %v6428, %v6436
    %v6441 = vadd.f32 %v6429, %v6437
    %6442 = vset.pattern.permute.xlu0 30
    %6443 = vperm.xlu0 %6442, %v3638
    %v6444 = vpop.permute.xlu0 %6443
    %6446 = vset.pattern.permute.xlu0 30
    %6447 = vperm.xlu0 %6446, %v3639
    %v6448 = vpop.permute.xlu0 %6447
    %6450 = vset.pattern.permute.xlu0 30
    %6451 = vperm.xlu0 %6450, %v3640
    %v6452 = vpop.permute.xlu0 %6451
    %6454 = vset.pattern.permute.xlu0 30
    %6455 = vperm.xlu0 %6454, %v3641
    %v6456 = vpop.permute.xlu0 %6455
    %v6458 = vlaneseq
    %v6459 = vshrl.u32 %v6458, 7
    %v6460 = vsub.s32 6, %v6459
    %v6461 = vrot.slane %v3677, %v6460
    %v6462 = vlaneseq
    %v6463 = vshrl.u32 %v6462, 7
    %v6464 = vsub.s32 6, %v6463
    %v6465 = vrot.slane %v3709, %v6464
    %v6466 = vmul.f32 %v6444, %v6461
    %v6467 = vmul.f32 %v6448, %v6461
    %v6468 = vmul.f32 %v6452, %v6465
    %v6469 = vmul.f32 %v6456, %v6465
    %6470 = vset.pattern.permute.xlu0 31
    %6471 = vperm.xlu0 %6470, %v3638
    %v6472 = vpop.permute.xlu0 %6471
    %6474 = vset.pattern.permute.xlu0 31
    %6475 = vperm.xlu0 %6474, %v3639
    %v6476 = vpop.permute.xlu0 %6475
    %6478 = vset.pattern.permute.xlu0 31
    %6479 = vperm.xlu0 %6478, %v3640
    %v6480 = vpop.permute.xlu0 %6479
    %6482 = vset.pattern.permute.xlu0 31
    %6483 = vperm.xlu0 %6482, %v3641
    %v6484 = vpop.permute.xlu0 %6483
    %v6486 = vlaneseq
    %v6487 = vshrl.u32 %v6486, 7
    %v6488 = vsub.s32 7, %v6487
    %v6489 = vrot.slane %v3677, %v6488
    %v6490 = vlaneseq
    %v6491 = vshrl.u32 %v6490, 7
    %v6492 = vsub.s32 7, %v6491
    %v6493 = vrot.slane %v3709, %v6492
    %v6494 = vmul.f32 %v6472, %v6489
    %v6495 = vmul.f32 %v6476, %v6489
    %v6496 = vmul.f32 %v6480, %v6493
    %v6497 = vmul.f32 %v6484, %v6493
    %v6498 = vadd.f32 %v6466, %v6494
    %v6499 = vadd.f32 %v6467, %v6495
    %v6500 = vadd.f32 %v6468, %v6496
    %v6501 = vadd.f32 %v6469, %v6497
    %v6502 = vsel %vm458, %v6498, -inf
    %6503 = vmax.xlane.f32.xlu0 %v6502
    %v6504 = vpop.xlane.xlu0 %6503
    %v6505 = vsel %vm458, %v6499, -inf
    %6506 = vmax.xlane.f32.xlu0 %v6505
    %v6507 = vpop.xlane.xlu0 %6506
    %v6508 = vsel %vm458, %v6500, -inf
    %6509 = vmax.xlane.f32.xlu0 %v6508
    %v6510 = vpop.xlane.xlu0 %6509
    %v6511 = vsel %vm458, %v6501, -inf
    %6512 = vmax.xlane.f32.xlu0 %v6511
    %v6513 = vpop.xlane.xlu0 %6512
    %v6514 = vsub.f32 %v6498, %v6504
    %v6515 = vsub.f32 %v6499, %v6507
    %v6516 = vsub.f32 %v6500, %v6510
    %v6517 = vsub.f32 %v6501, %v6513
    %v6518 = vmul.f32 %v6514, 1.442695
    %v6519 = vpow.pop %v6518
    %v6520 = vmul.f32 %v6515, 1.442695
    %v6521 = vpow.pop %v6520
    %v6522 = vmul.f32 %v6516, 1.442695
    %v6523 = vpow.pop %v6522
    %v6524 = vmul.f32 %v6517, 1.442695
    %v6525 = vpow.pop %v6524
    %v6526 = vsel %vm458, %v6519, 0.0
    %6527 = vadd.xlane.f32.xlu0 %v6526
    %v6528 = vpop.xlane.xlu0 %6527
    %v6529 = vsel %vm458, %v6521, 0.0
    %6530 = vadd.xlane.f32.xlu0 %v6529
    %v6531 = vpop.xlane.xlu0 %6530
    %v6532 = vsel %vm458, %v6523, 0.0
    %6533 = vadd.xlane.f32.xlu0 %v6532
    %v6534 = vpop.xlane.xlu0 %6533
    %v6535 = vsel %vm458, %v6525, 0.0
    %6536 = vadd.xlane.f32.xlu0 %v6535
    %v6537 = vpop.xlane.xlu0 %6536
    %v6538 = vrcp.pop %v6528
    %v6539 = vrcp.pop %v6531
    %v6540 = vrcp.pop %v6534
    %v6541 = vrcp.pop %v6537
    %v6542 = vmul.f32 %v6519, %v6538
    %v6543 = vmul.f32 %v6521, %v6539
    %v6544 = vmul.f32 %v6523, %v6540
    %v6545 = vmul.f32 %v6525, %v6541
    %v6546 = vlaneseq
    %v6547 = vshrl.u32 %v6546, 7
    %v6548 = vsub.s32 6, %v6547
    %v6549 = vrot.slane %v3753, %v6548
    %v6550 = vlaneseq
    %v6551 = vshrl.u32 %v6550, 7
    %v6552 = vsub.s32 6, %v6551
    %v6553 = vrot.slane %v3785, %v6552
    %v6554 = vmul.f32 %v6542, %v6549
    %v6555 = vmul.f32 %v6543, %v6549
    %v6556 = vmul.f32 %v6544, %v6553
    %v6557 = vmul.f32 %v6545, %v6553
    %v6558 = vsel %vm458, %v6554, 0.0
    %6559 = vadd.xlane.f32.xlu0 %v6558
    %v6560 = vpop.xlane.xlu0 %6559
    %v6561 = vsel %vm458, %v6555, 0.0
    %6562 = vadd.xlane.f32.xlu0 %v6561
    %v6563 = vpop.xlane.xlu0 %6562
    %v6564 = vsel %vm458, %v6556, 0.0
    %6565 = vadd.xlane.f32.xlu0 %v6564
    %v6566 = vpop.xlane.xlu0 %6565
    %v6567 = vsel %vm458, %v6557, 0.0
    %6568 = vadd.xlane.f32.xlu0 %v6567
    %v6569 = vpop.xlane.xlu0 %6568
    %v6570 = vlaneseq
    %v6571 = vshrl.u32 %v6570, 7
    %v6572 = vsub.s32 7, %v6571
    %v6573 = vrot.slane %v3753, %v6572
    %v6574 = vlaneseq
    %v6575 = vshrl.u32 %v6574, 7
    %v6576 = vsub.s32 7, %v6575
    %v6577 = vrot.slane %v3785, %v6576
    %v6578 = vmul.f32 %v6542, %v6573
    %v6579 = vmul.f32 %v6543, %v6573
    %v6580 = vmul.f32 %v6544, %v6577
    %v6581 = vmul.f32 %v6545, %v6577
    %v6582 = vsel %vm458, %v6578, 0.0
    %6583 = vadd.xlane.f32.xlu0 %v6582
    %v6584 = vpop.xlane.xlu0 %6583
    %v6585 = vsel %vm458, %v6579, 0.0
    %6586 = vadd.xlane.f32.xlu0 %v6585
    %v6587 = vpop.xlane.xlu0 %6586
    %v6588 = vsel %vm458, %v6580, 0.0
    %6589 = vadd.xlane.f32.xlu0 %v6588
    %v6590 = vpop.xlane.xlu0 %6589
    %v6591 = vsel %vm458, %v6581, 0.0
    %6592 = vadd.xlane.f32.xlu0 %v6591
    %v6593 = vpop.xlane.xlu0 %6592
    %v6594 = vlaneseq
    %v6595 = vshrl.u32 %v6594, 7
    %v6596 = vsub.s32 6, %v6595
    %v6597 = vrot.slane %v3559, %v6596
    %v6598 = vmul.f32 %v6560, %v6597
    %v6599 = vmul.f32 %v6563, %v6597
    %v6600 = vmul.f32 %v6566, %v6597
    %v6601 = vmul.f32 %v6569, %v6597
    %v6602 = vadd.f32 %v6438, %v6598
    %v6603 = vadd.f32 %v6439, %v6599
    %v6604 = vadd.f32 %v6440, %v6600
    %v6605 = vadd.f32 %v6441, %v6601
    %v6606 = vlaneseq
    %v6607 = vshrl.u32 %v6606, 7
    %v6608 = vsub.s32 7, %v6607
    %v6609 = vrot.slane %v3559, %v6608
    %v6610 = vmul.f32 %v6584, %v6609
    %v6611 = vmul.f32 %v6587, %v6609
    %v6612 = vmul.f32 %v6590, %v6609
    %v6613 = vmul.f32 %v6593, %v6609
    %v6614 = vadd.f32 %v6602, %v6610
    %v6615 = vadd.f32 %v6603, %v6611
    %v6616 = vadd.f32 %v6604, %v6612
    %v6617 = vadd.f32 %v6605, %v6613
    %v6618 = vadd.f32 %v3539, %v6614
    %v6619 = vadd.f32 %v3540, %v6615
    %v6620 = vadd.f32 %v3541, %v6616
    %v6621 = vadd.f32 %v3542, %v6617
    %v6622 = vlaneseq
    %v6623 = vshrl.u32 %v6622, 7
    %v6624 = vsub.s32 0, %v6623
    %v6625 = vrot.slane %v3544, %v6624
    %v6626 = vadd.f32 %v6618, %v6625
    %v6627 = vadd.f32 %v6619, %v6625
    %v6628 = vadd.f32 %v6620, %v6625
    %v6629 = vadd.f32 %v6621, %v6625
    %v6630 = vsel %vm178, %v6626, 0.0
    %6631 = vadd.xlane.f32.xlu0 %v6630
    %v6632 = vpop.xlane.xlu0 %6631
    %v6633 = vsel %vm178, %v6627, 0.0
    %6634 = vadd.xlane.f32.xlu0 %v6633
    %v6635 = vpop.xlane.xlu0 %6634
    %v6636 = vsel %vm178, %v6628, 0.0
    %6637 = vadd.xlane.f32.xlu0 %v6636
    %v6638 = vpop.xlane.xlu0 %6637
    %v6639 = vsel %vm178, %v6629, 0.0
    %6640 = vadd.xlane.f32.xlu0 %v6639
    %v6641 = vpop.xlane.xlu0 %6640
    %v6642 = vmul.f32 %v6632, %v3239
    %v6643 = vmul.f32 %v6635, %v3239
    %v6644 = vmul.f32 %v6638, %v3239
    %v6645 = vmul.f32 %v6641, %v3239
    %v6646 = vsub.f32 %v6626, %v6642
    %v6647 = vsub.f32 %v6627, %v6643
    %v6648 = vsub.f32 %v6628, %v6644
    %v6649 = vsub.f32 %v6629, %v6645
    %v6650 = vmul.f32 %v6646, %v6646
    %v6651 = vmul.f32 %v6647, %v6647
    %v6652 = vmul.f32 %v6648, %v6648
    %v6653 = vmul.f32 %v6649, %v6649
    %v6654 = vsel %vm178, %v6650, 0.0
    %6655 = vadd.xlane.f32.xlu0 %v6654
    %v6656 = vpop.xlane.xlu0 %6655
    %v6657 = vsel %vm178, %v6651, 0.0
    %6658 = vadd.xlane.f32.xlu0 %v6657
    %v6659 = vpop.xlane.xlu0 %6658
    %v6660 = vsel %vm178, %v6652, 0.0
    %6661 = vadd.xlane.f32.xlu0 %v6660
    %v6662 = vpop.xlane.xlu0 %6661
    %v6663 = vsel %vm178, %v6653, 0.0
    %6664 = vadd.xlane.f32.xlu0 %v6663
    %v6665 = vpop.xlane.xlu0 %6664
    %v6666 = vmul.f32 %v6656, %v3239
    %v6667 = vmul.f32 %v6659, %v3239
    %v6668 = vmul.f32 %v6662, %v3239
    %v6669 = vmul.f32 %v6665, %v3239
    %v6670 = vadd.f32 %v6666, 1e-05
    %v6671 = vadd.f32 %v6667, 1e-05
    %v6672 = vadd.f32 %v6668, 1e-05
    %v6673 = vadd.f32 %v6669, 1e-05
    %v6674 = vrsqrt.pop %v6670
    %v6675 = vrsqrt.pop %v6671
    %v6676 = vrsqrt.pop %v6672
    %v6677 = vrsqrt.pop %v6673
    %v6678 = vmul.f32 %v6646, %v6674
    %v6679 = vmul.f32 %v6647, %v6675
    %v6680 = vmul.f32 %v6648, %v6676
    %v6681 = vmul.f32 %v6649, %v6677
    %v6682 = vlaneseq
    %v6683 = vshrl.u32 %v6682, 7
    %v6684 = vsub.s32 0, %v6683
    %v6685 = vrot.slane %v3545, %v6684
    %v6686 = vmul.f32 %v6678, %v6685
    %v6687 = vmul.f32 %v6679, %v6685
    %v6688 = vmul.f32 %v6680, %v6685
    %v6689 = vmul.f32 %v6681, %v6685
    %v6690 = vlaneseq
    %v6691 = vshrl.u32 %v6690, 7
    %v6692 = vsub.s32 0, %v6691
    %v6693 = vrot.slane %v3546, %v6692
    %v6694 = vadd.f32 %v6686, %v6693
    %v6695 = vadd.f32 %v6687, %v6693
    %v6696 = vadd.f32 %v6688, %v6693
    %v6697 = vadd.f32 %v6689, %v6693
    %s6698 = scalar_lea.vmem %s5, 16
    %v6699 = vld [vmem:[%s6698] sm:$0xf]
    %v6700 = vld [vmem:[%s6698 + $0x4] sm:$0xf]
    %v6701 = vld [vmem:[%s6698 + $0x8] sm:$0xf]
    %v6702 = vld [vmem:[%s6698 + $0xc] sm:$0xf]
    %v6703 = vpack.c.bf16 %v6695, %v6694
    %v6704 = vpack.c.bf16 %v6697, %v6696
    %v6705 = vlaneseq
    %v6706 = vshrl.u32 %v6705, 7
    %v6707 = vsub.s32 0, %v6706
    %v6708 = vrot.slane %v3549, %v6707
    %v6713 = vunpack.c.l.b16 %v6699
    %v6714 = vunpack.c.l.b16 %v6700
    %v6715 = vunpack.c.l.b16 %v6701
    %v6716 = vunpack.c.l.b16 %v6702
    %v6717 = vpack.c.b16 %v6714, %v6713
    %v6718 = vpack.c.b16 %v6716, %v6715
    %v6722 = vsel %vm178, %v6703, 0
    %v6725 = vsel %vm178, %v6704, 0
    %6727 = vmatprep.subr.bf16.mxu0 0
    %6728 = vmatpush1.bf16.msra.mxu0 0
    %6729 = vmatprep.subr.bf16.mxu0 0
    %6730 = vmatpush1.bf16.msra.mxu0 0
    %6731 = vmatprep.subr.bf16.mxu0 0
    %6732 = vmatpush1.bf16.msra.mxu0 0
    %6733 = vmatprep.subr.bf16.mxu0 0
    %6734 = vmatpush1.bf16.msra.mxu0 0
    %6735 = vmatprep.subr.bf16.mxu0 0
    %6736 = vmatpush1.bf16.msra.mxu0 0
    %6737 = vmatprep.subr.bf16.mxu0 0
    %6738 = vmatpush1.bf16.msra.mxu0 0
    %6739 = vmatprep.subr.bf16.mxu0 0
    %6740 = vmatpush1.bf16.msra.mxu0 %v6718
    %6741 = vmatprep.subr.bf16.mxu0 0
    %6742 = vmatpush1.bf16.msra.mxu0 %v6717
    %6743 = vmatprep.subr.bf16.mxu0 0
    %6744 = vmatpush2.bf16.msra.mxu0 0
    %6745 = vmatprep.subr.bf16.mxu0 0
    %6746 = vmatpush2.bf16.msra.mxu0 0
    %6747 = vmatprep.subr.bf16.mxu0 0
    %6748 = vmatpush2.bf16.msra.mxu0 0
    %6749 = vmatprep.subr.bf16.mxu0 0
    %6750 = vmatpush2.bf16.msra.mxu0 0
    %6751 = vmatprep.subr.bf16.mxu0 0
    %6752 = vmatpush2.bf16.msra.mxu0 0
    %6753 = vmatprep.subr.bf16.mxu0 0
    %6754 = vmatpush2.bf16.msra.mxu0 0
    %6755 = vmatprep.subr.bf16.mxu0 0
    %6756 = vmatpush2.bf16.msra.mxu0 0
    %6757 = vmatprep.subr.bf16.mxu0 0
    %6758 = vmatpush2.bf16.msra.mxu0 0
    %6759 = vmatprep.mubr.bf16.mxu0 0
    %6760 = vmatmul.mubr.bf16.gmra.mxu0 %v6722
    %v6761 = vpop.f32.mrf.mxu0
    %v6762 = vadd.f32 %v6708, %v6761
    %v6763 = vpop.f32.mrf.mxu0
    %v6764 = vpop.f32.mrf.mxu0
    %v6765 = vadd.f32 %v6708, %v6764
    %v6766 = vpop.f32.mrf.mxu0
    %6767 = vmatprep.mubr.bf16.mxu0 0
    %6768 = vmatmul.mubr.bf16.gmra.mxu0 %v6725
    %v6769 = vpop.f32.mrf.mxu0
    %v6770 = vadd.f32 %v6708, %v6769
    %v6771 = vpop.f32.mrf.mxu0
    %v6772 = vpop.f32.mrf.mxu0
    %v6773 = vadd.f32 %v6708, %v6772
    %v6774 = vpop.f32.mrf.mxu0
    %6775 = vdwg.mxu0
    %v6776 = vmax.f32 %v6762, 0.0
    %v6777 = vmax.f32 %v6765, 0.0
    %v6778 = vmax.f32 %v6770, 0.0
    %v6779 = vmax.f32 %v6773, 0.0
    %s6780 = scalar_lea.vmem %s6, 32
    %v6781 = vld [vmem:[%s6780] sm:$0xf]
    %v6782 = vld [vmem:[%s6780 + $0x4] sm:$0xf]
    %v6783 = vld [vmem:[%s6780 + $0x8] sm:$0xf]
    %v6784 = vld [vmem:[%s6780 + $0xc] sm:$0xf]
    %v6785 = vld [vmem:[%s6780 + $0x10] sm:$0xf]
    %v6786 = vld [vmem:[%s6780 + $0x14] sm:$0xf]
    %v6787 = vld [vmem:[%s6780 + $0x18] sm:$0xf]
    %v6788 = vld [vmem:[%s6780 + $0x1c] sm:$0xf]
    %v6789 = vpack.c.bf16 %v6777, %v6776
    %v6790 = vpack.c.bf16 %v6779, %v6778
    %v6791 = vlaneseq
    %v6792 = vshrl.u32 %v6791, 7
    %v6793 = vsub.s32 0, %v6792
    %v6794 = vrot.slane %v3550, %v6793
    %v6803 = vunpack.c.l.b16 %v6781
    %v6804 = vunpack.c.l.b16 %v6782
    %v6805 = vunpack.c.l.b16 %v6783
    %v6806 = vunpack.c.l.b16 %v6784
    %v6807 = vunpack.c.l.b16 %v6785
    %v6808 = vunpack.c.l.b16 %v6786
    %v6809 = vunpack.c.l.b16 %v6787
    %v6810 = vunpack.c.l.b16 %v6788
    %v6811 = vpack.c.b16 %v6804, %v6803
    %v6812 = vpack.c.b16 %v6806, %v6805
    %v6813 = vpack.c.b16 %v6808, %v6807
    %v6814 = vpack.c.b16 %v6810, %v6809
    %v6820 = vsel %vm3415, %v6789, 0
    %v6823 = vsel %vm3415, %v6790, 0
    %6825 = vmatprep.subr.bf16.mxu0 0
    %6826 = vmatpush1.bf16.msra.mxu0 0
    %6827 = vmatprep.subr.bf16.mxu0 0
    %6828 = vmatpush1.bf16.msra.mxu0 0
    %6829 = vmatprep.subr.bf16.mxu0 0
    %6830 = vmatpush1.bf16.msra.mxu0 0
    %6831 = vmatprep.subr.bf16.mxu0 0
    %6832 = vmatpush1.bf16.msra.mxu0 0
    %6833 = vmatprep.subr.bf16.mxu0 0
    %6834 = vmatpush1.bf16.msra.mxu0 %v6814
    %6835 = vmatprep.subr.bf16.mxu0 0
    %6836 = vmatpush1.bf16.msra.mxu0 %v6813
    %6837 = vmatprep.subr.bf16.mxu0 0
    %6838 = vmatpush1.bf16.msra.mxu0 %v6812
    %6839 = vmatprep.subr.bf16.mxu0 0
    %6840 = vmatpush1.bf16.msra.mxu0 %v6811
    %6841 = vmatprep.subr.bf16.mxu0 0
    %6842 = vmatpush2.bf16.msra.mxu0 0
    %6843 = vmatprep.subr.bf16.mxu0 0
    %6844 = vmatpush2.bf16.msra.mxu0 0
    %6845 = vmatprep.subr.bf16.mxu0 0
    %6846 = vmatpush2.bf16.msra.mxu0 0
    %6847 = vmatprep.subr.bf16.mxu0 0
    %6848 = vmatpush2.bf16.msra.mxu0 0
    %6849 = vmatprep.subr.bf16.mxu0 0
    %6850 = vmatpush2.bf16.msra.mxu0 0
    %6851 = vmatprep.subr.bf16.mxu0 0
    %6852 = vmatpush2.bf16.msra.mxu0 0
    %6853 = vmatprep.subr.bf16.mxu0 0
    %6854 = vmatpush2.bf16.msra.mxu0 0
    %6855 = vmatprep.subr.bf16.mxu0 0
    %6856 = vmatpush2.bf16.msra.mxu0 0
    %6857 = vmatprep.mubr.bf16.mxu0 0
    %6858 = vmatmul.mubr.bf16.gmra.mxu0 %v6820
    %v6859 = vpop.f32.mrf.mxu0
    %v6860 = vadd.f32 %v6794, %v6859
    %v6861 = vpop.f32.mrf.mxu0
    %v6862 = vpop.f32.mrf.mxu0
    %v6863 = vadd.f32 %v6794, %v6862
    %v6864 = vpop.f32.mrf.mxu0
    %6865 = vmatprep.mubr.bf16.mxu0 0
    %6866 = vmatmul.mubr.bf16.gmra.mxu0 %v6823
    %v6867 = vpop.f32.mrf.mxu0
    %v6868 = vadd.f32 %v6794, %v6867
    %v6869 = vpop.f32.mrf.mxu0
    %v6870 = vpop.f32.mrf.mxu0
    %v6871 = vadd.f32 %v6794, %v6870
    %v6872 = vpop.f32.mrf.mxu0
    %6873 = vdwg.mxu0
    %v6874 = vadd.f32 %v6694, %v6860
    %v6875 = vadd.f32 %v6695, %v6863
    %v6876 = vadd.f32 %v6696, %v6868
    %v6877 = vadd.f32 %v6697, %v6871
    %v6878 = vsel %vm178, %v6874, 0.0
    %6879 = vadd.xlane.f32.xlu0 %v6878
    %v6880 = vpop.xlane.xlu0 %6879
    %v6881 = vsel %vm178, %v6875, 0.0
    %6882 = vadd.xlane.f32.xlu0 %v6881
    %v6883 = vpop.xlane.xlu0 %6882
    %v6884 = vsel %vm178, %v6876, 0.0
    %6885 = vadd.xlane.f32.xlu0 %v6884
    %v6886 = vpop.xlane.xlu0 %6885
    %v6887 = vsel %vm178, %v6877, 0.0
    %6888 = vadd.xlane.f32.xlu0 %v6887
    %v6889 = vpop.xlane.xlu0 %6888
    %v6890 = vmul.f32 %v6880, %v3239
    %v6891 = vmul.f32 %v6883, %v3239
    %v6892 = vmul.f32 %v6886, %v3239
    %v6893 = vmul.f32 %v6889, %v3239
    %v6894 = vsub.f32 %v6874, %v6890
    %v6895 = vsub.f32 %v6875, %v6891
    %v6896 = vsub.f32 %v6876, %v6892
    %v6897 = vsub.f32 %v6877, %v6893
    %v6898 = vmul.f32 %v6894, %v6894
    %v6899 = vmul.f32 %v6895, %v6895
    %v6900 = vmul.f32 %v6896, %v6896
    %v6901 = vmul.f32 %v6897, %v6897
    %v6902 = vsel %vm178, %v6898, 0.0
    %6903 = vadd.xlane.f32.xlu0 %v6902
    %v6904 = vpop.xlane.xlu0 %6903
    %v6905 = vsel %vm178, %v6899, 0.0
    %6906 = vadd.xlane.f32.xlu0 %v6905
    %v6907 = vpop.xlane.xlu0 %6906
    %v6908 = vsel %vm178, %v6900, 0.0
    %6909 = vadd.xlane.f32.xlu0 %v6908
    %v6910 = vpop.xlane.xlu0 %6909
    %v6911 = vsel %vm178, %v6901, 0.0
    %6912 = vadd.xlane.f32.xlu0 %v6911
    %v6913 = vpop.xlane.xlu0 %6912
    %v6914 = vmul.f32 %v6904, %v3239
    %v6915 = vmul.f32 %v6907, %v3239
    %v6916 = vmul.f32 %v6910, %v3239
    %v6917 = vmul.f32 %v6913, %v3239
    %v6918 = vadd.f32 %v6914, 1e-05
    %v6919 = vadd.f32 %v6915, 1e-05
    %v6920 = vadd.f32 %v6916, 1e-05
    %v6921 = vadd.f32 %v6917, 1e-05
    %v6922 = vrsqrt.pop %v6918
    %v6923 = vrsqrt.pop %v6919
    %v6924 = vrsqrt.pop %v6920
    %v6925 = vrsqrt.pop %v6921
    %v6926 = vmul.f32 %v6894, %v6922
    %v6927 = vmul.f32 %v6895, %v6923
    %v6928 = vmul.f32 %v6896, %v6924
    %v6929 = vmul.f32 %v6897, %v6925
    %v6930 = vlaneseq
    %v6931 = vshrl.u32 %v6930, 7
    %v6932 = vsub.s32 0, %v6931
    %v6933 = vrot.slane %v3547, %v6932
    %v6934 = vmul.f32 %v6926, %v6933
    %v6935 = vmul.f32 %v6927, %v6933
    %v6936 = vmul.f32 %v6928, %v6933
    %v6937 = vmul.f32 %v6929, %v6933
    %v6938 = vlaneseq
    %v6939 = vshrl.u32 %v6938, 7
    %v6940 = vsub.s32 0, %v6939
    %v6941 = vrot.slane %v3548, %v6940
    %v6942 = vadd.f32 %v6934, %v6941
    %v6943 = vadd.f32 %v6935, %v6941
    %v6944 = vadd.f32 %v6936, %v6941
    %v6945 = vadd.f32 %v6937, %v6941
    %v6946 = vsel %vm178, %v6942, 0.0
    %v6947 = vsel %vm178, %v6943, 0.0
    %v6948 = vadd.f32 %v6946, %v6947
    %v6949 = vrot.slane %v6948, 4
    %v6950 = vadd.f32 %v6948, %v6949
    %v6951 = vrot.slane %v6950, 2
    %v6952 = vadd.f32 %v6950, %v6951
    %v6953 = vrot.slane %v6952, 1
    %v6954 = vadd.f32 %v6952, %v6953
    %v6955 = vsel %vm178, %v6944, 0.0
    %v6956 = vsel %vm178, %v6945, 0.0
    %v6957 = vadd.f32 %v6955, %v6956
    %v6958 = vrot.slane %v6957, 4
    %v6959 = vadd.f32 %v6957, %v6958
    %v6960 = vrot.slane %v6959, 2
    %v6961 = vadd.f32 %v6959, %v6960
    %v6962 = vrot.slane %v6961, 1
    %v6963 = vadd.f32 %v6961, %v6962
    %v6964 = vmul.f32 %v6954, 0.0625
    %v6965 = vmul.f32 %v6963, 0.0625
    %v6966 = vld [vmem:[#allocation5 + $0x1] sm:$0x1]
    %v6967 = vld [vmem:[#allocation5 + $0x2] sm:$0x1]
    %vm6970 = vcmask 1041409
    %v6971 = vsel %vm6970, %v6965, %v6964
    %vm6973 = vcmask 254976
    %v6974 = vsel %vm6973, %v6971, 0.0
    %6975 = vadd.xlane.f32.xlu0 %v6974
    %v6976 = vpop.xlane.xlu0 %6975
    %v6977 = vmul.f32 %v6976, %v3239
    %v6979 = vrot.slane %v6977, 1
    %v6982 = vsub.f32 %v6964, %v6977
    %v6983 = vsub.f32 %v6965, %v6979
    %v6984 = vmul.f32 %v6982, %v6982
    %v6985 = vmul.f32 %v6983, %v6983
    %v6988 = vrot.slane %v6985, 7
    %v6989 = vsel %vm6970, %v6988, %v6984
    %v6991 = vsel %vm6973, %v6989, 0.0
    %6992 = vadd.xlane.f32.xlu0 %v6991
    %v6993 = vpop.xlane.xlu0 %6992
    %v6994 = vmul.f32 %v6993, %v3239
    %v6995 = vadd.f32 %v6994, 1e-05
    %v6996 = vrsqrt.pop %v6995
    %v6998 = vrot.slane %v6996, 1
    %v7001 = vmul.f32 %v6982, %v6996
    %v7002 = vmul.f32 %v6983, %v6998
    %v7003 = vlaneseq
    %v7004 = vshrl.u32 %v7003, 7
    %v7005 = vsub.s32 0, %v7004
    %v7006 = vrot.slane %v6966, %v7005
    %v7007 = vmul.f32 %v7001, %v7006
    %v7008 = vmul.f32 %v7002, %v7006
    %v7009 = vlaneseq
    %v7010 = vshrl.u32 %v7009, 7
    %v7011 = vsub.s32 0, %v7010
    %v7012 = vrot.slane %v6967, %v7011
    %v7013 = vadd.f32 %v7007, %v7012
    %v7014 = vadd.f32 %v7008, %v7012
    %v7015 = vld [vmem:[#allocation2] sm:$0xf]
    %v7016 = vld [vmem:[#allocation2 + $0x4] sm:$0xf]
    %v7017 = vld [vmem:[#allocation2 + $0x8] sm:$0xf]
    %v7018 = vld [vmem:[#allocation2 + $0xc] sm:$0xf]
    %v7019 = vpack.c.bf16 %v7013, %v7013
    %v7020 = vpack.c.bf16 %v7014, %v7014
    %v7021 = vld [vmem:[#allocation5 + $0x3] sm:$0x1]
    %v7022 = vlaneseq
    %v7023 = vshrl.u32 %v7022, 7
    %v7024 = vsub.s32 0, %v7023
    %v7025 = vrot.slane %v7021, %v7024
    %v7028 = vunpack.c.l.b16 %v7019
    %v7029 = vunpack.c.l.b16 %v7020
    %v7030 = vrot.slane %v7029, 7
    %v7031 = vsel %vm6970, %v7030, %v7028
    %v7032 = vpack.c.b16 %v7031, %v7031
    %v7037 = vunpack.c.l.b16 %v7015
    %v7038 = vunpack.c.l.b16 %v7016
    %v7039 = vunpack.c.l.b16 %v7017
    %v7040 = vunpack.c.l.b16 %v7018
    %v7041 = vpack.c.b16 %v7038, %v7037
    %v7042 = vpack.c.b16 %v7040, %v7039
    %v7046 = vsel %vm178, %v7032, 0
    %7048 = vmatprep.subr.bf16.mxu0 0
    %7049 = vmatpush1.bf16.msra.mxu0 0
    %7050 = vmatprep.subr.bf16.mxu0 0
    %7051 = vmatpush1.bf16.msra.mxu0 0
    %7052 = vmatprep.subr.bf16.mxu0 0
    %7053 = vmatpush1.bf16.msra.mxu0 0
    %7054 = vmatprep.subr.bf16.mxu0 0
    %7055 = vmatpush1.bf16.msra.mxu0 0
    %7056 = vmatprep.subr.bf16.mxu0 0
    %7057 = vmatpush1.bf16.msra.mxu0 0
    %7058 = vmatprep.subr.bf16.mxu0 0
    %7059 = vmatpush1.bf16.msra.mxu0 0
    %7060 = vmatprep.subr.bf16.mxu0 0
    %7061 = vmatpush1.bf16.msra.mxu0 %v7042
    %7062 = vmatprep.subr.bf16.mxu0 0
    %7063 = vmatpush1.bf16.msra.mxu0 %v7041
    %7064 = vmatprep.subr.bf16.mxu0 0
    %7065 = vmatpush2.bf16.msra.mxu0 0
    %7066 = vmatprep.subr.bf16.mxu0 0
    %7067 = vmatpush2.bf16.msra.mxu0 0
    %7068 = vmatprep.subr.bf16.mxu0 0
    %7069 = vmatpush2.bf16.msra.mxu0 0
    %7070 = vmatprep.subr.bf16.mxu0 0
    %7071 = vmatpush2.bf16.msra.mxu0 0
    %7072 = vmatprep.subr.bf16.mxu0 0
    %7073 = vmatpush2.bf16.msra.mxu0 0
    %7074 = vmatprep.subr.bf16.mxu0 0
    %7075 = vmatpush2.bf16.msra.mxu0 0
    %7076 = vmatprep.subr.bf16.mxu0 0
    %7077 = vmatpush2.bf16.msra.mxu0 0
    %7078 = vmatprep.subr.bf16.mxu0 0
    %7079 = vmatpush2.bf16.msra.mxu0 0
    %7080 = vmatprep.mubr.bf16.mxu0 0
    %7081 = vmatmul.mubr.bf16.gmra.mxu0 %v7046
    %v7082 = vpop.f32.mrf.mxu0
    %v7083 = vadd.f32 %v7025, %v7082
    %v7084 = vpop.f32.mrf.mxu0
    %v7085 = vpop.f32.mrf.mxu0
    %v7086 = vpop.f32.mrf.mxu0
    %7087 = vdwg.mxu0
    %7088 = vst [vmem:[#allocation7] sm:$0x3] %v7083
    // Predicated region
    $region46: #{tpu_custom_call.1} parent=1 // pred_check
      _
    $region47: #{tpu_custom_call.1} parent=1 // pred_check_branch
      %7090 = sbr.rel (0) target = $region49
    $region48: #{tpu_custom_call.1} parent=1 // pred_region
      %s7092 = ssub.s32 32, 32
      %7093 = vsyncadd [#allocation4], %s7092
      %s7095 = sshll.u32 [#allocation7], 4
      %s7096 = int_to_ptr.vmem [resolvable:$true] %s7095
      %7098 = dma.vmem_to_hbm [thread:$0]  %s7096, 32, %s9, [#allocation4]
    $region49: #{tpu_custom_call.1} parent=1 // pred_fallthru
      _
    // Predicated region
    $region50: #{tpu_custom_call.1} parent=1 // pred_check
      _
    $region51: #{tpu_custom_call.1} parent=1 // pred_check_branch
      %7100 = sbr.rel (0) target = $region53
    $region52: #{tpu_custom_call.1} parent=1 // pred_region
      %7101 = dma.done [#allocation4], 32
    $region53: #{tpu_custom_call.1} parent=1 // pred_fallthru
      _
    %7102 = vsyncpa [#allocation3], 1
    %7103 = vsyncpa [#allocation6], 1
    %7104 = vsyncpa [#allocation4], 1

</llo_original>
